<compile_context>
chip_gen: v7x
topology: tpu7x:2x2x1
jax: 0.10.0
libtpu: 0.0.40
codegen_flags: <defaults>
</compile_context>

<pallas_src>
import math

import numpy as np

import jax
import jax.numpy as jnp
from jax.experimental import pallas as pl
from jax.experimental.pallas import tpu as pltpu


_NEG_SLOPE = 0.2


def _leaky(x):
    return jnp.where(x >= 0, x, _NEG_SLOPE * x)


def _conv_tap_selectors(in_h, in_w, kernel, stride, pad):
    """0/1 selection matrices: sel[t, out_pos, in_pos] = 1 iff input pixel
    `in_pos` is the tap-t element of the patch for output position `out_pos`
    (0 rows where the tap falls into the zero padding).  Exact im2col."""
    out_h = (in_h + 2 * pad - kernel) // stride + 1
    out_w = (in_w + 2 * pad - kernel) // stride + 1
    sel = np.zeros((kernel * kernel, out_h * out_w, in_h * in_w), np.float32)
    for ki in range(kernel):
        for kj in range(kernel):
            t = ki * kernel + kj
            for oi in range(out_h):
                for oj in range(out_w):
                    r = stride * oi + ki - pad
                    c = stride * oj + kj - pad
                    if 0 <= r < in_h and 0 <= c < in_w:
                        sel[t, oi * out_w + oj, r * in_w + c] = 1.0
    return sel


def _cond_mapping_kernel(cond_ref, m2_ref, sb_ref, w1c_ref, b1c_ref,
                         sel2_ref, w2_ref, b2c_ref, out_ref):
    tb = cond_ref.shape[0]          # batch-tile size
    c1 = w1c_ref.shape[1]           # 512
    c2 = w2_ref.shape[2]            # 512

    # ---- Linear layer folded into the conv1 im2col operator (host prep):
    #   p[b, t*64 + pos] = (sel1[t] @ (W1 @ cond[b] + b1))[pos]
    p = jnp.dot(cond_ref[...], m2_ref[...],
                preferred_element_type=jnp.float32) + sb_ref[...]      # [TB, 9*64]

    # ---- Conv1 (1 -> 512, k=3, s=2, p=1): per-tap outer product on the VPU,
    # channels lane-dense.  (Tiny: 9 * TB*64*512 FMAs.)
    a1 = jnp.zeros((tb, 64, c1), jnp.float32)
    for t in range(9):
        pt = p[:, t * 64:(t + 1) * 64]                  # [TB, 64]
        a1 = a1 + pt[:, :, None] * w1c_ref[t]           # [TB, 64, 512]
    a1 = _leaky(a1 + b1c_ref[...])
    # Leading-dim collapse only (layout-preserving); bf16 for the MXU operands.
    a1 = a1.reshape(tb * 64, c1).astype(jnp.bfloat16)    # [TB*64, 512]

    # ---- Conv2 (512 -> 512, k=3, s=2, p=1): 9 taps unrolled in-kernel.
    # Patch gather = block-diagonal 0/1 selector matmul (exact in bf16),
    # channel contraction = [TB*16, 512] @ [512, 512] against the resident
    # bf16 weight, accumulated in f32.
    acc = jnp.zeros((tb * 16, c2), jnp.float32)
    for t in range(9):
        patch = jnp.dot(sel2_ref[t], a1,
                        preferred_element_type=jnp.float32)            # [TB*16, 512]
        patch = patch.astype(jnp.bfloat16)       # exact: pure selection of bf16 values
        acc = acc + jnp.dot(patch, w2_ref[t],
                            preferred_element_type=jnp.float32)        # [TB*16, 512]

    out_ref[...] = _leaky(acc + b2c_ref[...])    # lane-dense (512) unmasked store


def _prepare_params(params):
    """One-time host-side prep (hoisted out of the per-call forward path)."""
    w1 = np.asarray(params["linear_w"], np.float32)          # [256, L]
    b1 = np.asarray(params["linear_b"], np.float32)          # [256]
    w1c4 = np.asarray(params["conv1_w"], np.float32)         # [512, 1, 3, 3]
    b1c = np.asarray(params["conv1_b"], np.float32)          # [512]
    w2c4 = np.asarray(params["conv2_w"], np.float32)         # [512, 512, 3, 3]
    b2c = np.asarray(params["conv2_b"], np.float32)          # [512]

    label_dim = w1.shape[1]
    c1 = w1c4.shape[0]
    c2_in, c2_out = w2c4.shape[1], w2c4.shape[0]

    sel1 = _conv_tap_selectors(16, 16, 3, 2, 1)              # [9, 64, 256]
    sel2 = _conv_tap_selectors(8, 8, 3, 2, 1)                # [9, 16, 64]

    # Fold linear into conv1 im2col:  p = cond @ m2 + sb2  (columns = t*64+pos)
    m2 = np.einsum("tpi,il->ltp", sel1, w1).reshape(label_dim, 9 * 64)
    sb2 = np.einsum("tpi,i->tp", sel1, b1).reshape(1, 9 * 64)

    # Tap-major conv weights (t = ki*3 + kj).
    w1c = np.ascontiguousarray(w1c4.reshape(c1, 9).T)                        # [9, 512]
    w2 = np.ascontiguousarray(
        np.transpose(w2c4, (2, 3, 1, 0)).reshape(9, c2_in, c2_out))          # [9, 512, 512]

    return {
        "m2": jnp.asarray(m2),
        "sb2": jnp.asarray(sb2),
        "w1c": jnp.asarray(w1c),
        "b1c": jnp.asarray(b1c.reshape(1, c1)),
        "w2": jnp.asarray(w2, dtype=jnp.bfloat16),           # dominant HBM stream: bf16
        "b2c": jnp.asarray(b2c.reshape(1, c2_out)),
        "sel2": sel2,                                        # numpy; expanded per tile size
        "label_dim": label_dim,
        "c2": c2_out,
    }


def _forward(condition, prep, tile_b):
    condition = jnp.asarray(condition, jnp.float32)
    B, L = condition.shape
    c2 = prep["c2"]

    # Batch-tile size: full batch if small, else tile_b (multiple of 8).
    tb = B if B < tile_b else tile_b
    b_pad = int(pl.cdiv(B, tb)) * tb
    nbt = b_pad // tb
    if b_pad != B:
        condition = jnp.pad(condition, ((0, b_pad - B), (0, 0)))

    # Block-diagonal conv2 patch selector for this tile size (trace-time
    # constant, built once per compiled shape; 0/1 entries exact in bf16).
    sel2 = prep["sel2"]
    eye = np.eye(tb, dtype=np.float32)
    selbig = np.stack([np.kron(eye, sel2[t]) for t in range(9)])
    selbig = jnp.asarray(selbig, dtype=jnp.bfloat16)          # [9, tb*16, tb*64]

    def _const_spec(arr):
        zeros = (0,) * arr.ndim
        return pl.BlockSpec(arr.shape, lambda i, _z=zeros: _z)   # fetched once, stays resident

    out2d = pl.pallas_call(
        _cond_mapping_kernel,
        out_shape=jax.ShapeDtypeStruct((b_pad * 16, c2), jnp.float32),
        grid_spec=pltpu.PrefetchScalarGridSpec(
            num_scalar_prefetch=0,
            grid=(nbt,),
            in_specs=[
                pl.BlockSpec((tb, L), lambda i: (i, 0)),          # condition (row form)
                _const_spec(prep["m2"]),                          # folded linear/sel1
                _const_spec(prep["sb2"]),
                _const_spec(prep["w1c"]),                         # conv1 W (tap-major)
                _const_spec(prep["b1c"]),
                _const_spec(selbig),                              # conv2 im2col selector
                _const_spec(prep["w2"]),                          # conv2 W, bf16, resident
                _const_spec(prep["b2c"]),
            ],
            out_specs=pl.BlockSpec((tb * 16, c2), lambda i: (i, 0)),
        ),
        compiler_params=pltpu.CompilerParams(
            dimension_semantics=("parallel",),                    # megacore over batch tiles
            vmem_limit_bytes=32 * 1024 * 1024,
        ),
    )(condition, prep["m2"], prep["sb2"], prep["w1c"], prep["b1c"],
      selbig, prep["w2"], prep["b2c"])

    # Lane-dense [B, 16, 512] -> NCHW [B, 512, 4, 4] (layout plumbing only).
    out = out2d.reshape(b_pad, 16, c2)[:B]
    return jnp.transpose(out, (0, 2, 1)).reshape(B, c2, 4, 4)


def make_conditional_mapping(params, *, tile_b=8):
    """Build a jitted forward fn; all host-side weight prep happens once here.

    tile_b: batch elements per grid step.  8 fills the v5e MXU (128 rows) and
    keeps VMEM ~15 MiB; use 16 on v6e/v7x for full 256-row MXU occupancy."""
    assert tile_b >= 1 and (tile_b < 8 or tile_b % 8 == 0), "tile_b must be a multiple of 8"
    prep = _prepare_params(params)

    @jax.jit
    def forward(condition):
        return _forward(condition, prep, tile_b)

    return forward


def conditional_mapping_forward(condition, params, *, tile_b=8):
    """One-shot convenience wrapper (re-preps weights); prefer make_conditional_mapping."""
    return make_conditional_mapping(params, tile_b=tile_b)(condition)


def _reference(condition, params):
    """Plain-JAX reference for the full forward pass."""
    hp = jax.lax.Precision.HIGHEST
    h = jnp.dot(condition, params["linear_w"].T, precision=hp) + params["linear_b"]
    x = h.reshape(-1, 1, 16, 16)

    def conv(inp, w, b):
        y = jax.lax.conv_general_dilated(
            inp, w, window_strides=(2, 2), padding=((1, 1), (1, 1)),
            dimension_numbers=("NCHW", "OIHW", "NCHW"), precision=hp)
        return y + b.reshape(1, -1, 1, 1)

    y = conv(x, params["conv1_w"], params["conv1_b"])
    y = jnp.where(y >= 0, y, _NEG_SLOPE * y)
    y = conv(y, params["conv2_w"], params["conv2_b"])
    y = jnp.where(y >= 0, y, _NEG_SLOPE * y)
    return y


if __name__ == "__main__":
    key = jax.random.PRNGKey(0)
    B, label_dim = 2, 10
    ks = jax.random.split(key, 8)

    def _uniform(k, shape, fan_in):
        bound = 1.0 / math.sqrt(fan_in)
        return jax.random.uniform(k, shape, jnp.float32, -bound, bound)

    params = {
        # Unused in forward(); kept only for parity with the PyTorch module.
        "input": jax.random.normal(ks[0], (512, 4, 4), dtype=jnp.float32),
        "linear_w": _uniform(ks[1], (256, label_dim), label_dim),
        "linear_b": _uniform(ks[2], (256,), label_dim),
        "conv1_w": _uniform(ks[3], (512, 1, 3, 3), 1 * 9),
        "conv1_b": _uniform(ks[4], (512,), 1 * 9),
        "conv2_w": _uniform(ks[5], (512, 512, 3, 3), 512 * 9),
        "conv2_b": _uniform(ks[6], (512,), 512 * 9),
    }
    condition = jax.random.normal(ks[7], (B, label_dim), dtype=jnp.float32)

    forward = make_conditional_mapping(params, tile_b=8)
    out = jax.block_until_ready(forward(condition))

    ref = _reference(condition, params)
    assert out.shape == (B, 512, 4, 4), out.shape
    max_err = float(jnp.max(jnp.abs(out - ref)))
    # bf16 conv2 weights / activations -> tolerance relaxed vs. the f32 reference.
    assert jnp.allclose(out, ref, atol=1e-2, rtol=1e-2), max_err

    print("KERNEL_OK")
</pallas_src>

<mosaic_0001>
module attributes {stable_mosaic.version = 11 : i64} {
  func.func @_cond_mapping_kernel(%arg0: i32, %arg1: memref<2x10xf32, #tpu.memory_space<vmem>>, %arg2: memref<10x576xf32, #tpu.memory_space<vmem>>, %arg3: memref<1x576xf32, #tpu.memory_space<vmem>>, %arg4: memref<9x512xf32, #tpu.memory_space<vmem>>, %arg5: memref<1x512xf32, #tpu.memory_space<vmem>>, %arg6: memref<9x32x128xbf16, #tpu.memory_space<vmem>>, %arg7: memref<9x512x512xbf16, #tpu.memory_space<vmem>>, %arg8: memref<1x512xf32, #tpu.memory_space<vmem>>, %arg9: memref<32x512xf32, #tpu.memory_space<vmem>>) attributes {dimension_semantics = [#tpu.dimension_semantics<parallel>], iteration_bounds = array<i64: 1>, scalar_prefetch = 0 : i64, scratch_operands = 0 : i64, tpu.core_type = #tpu.core_type<tc>, window_params = [{transform_indices = @transform_0, window_bounds = array<i64: 2, 10>}, {pipeline_mode = #tpu.pipeline_mode<synchronous>, transform_indices = @transform_1, window_bounds = array<i64: 10, 576>}, {pipeline_mode = #tpu.pipeline_mode<synchronous>, transform_indices = @transform_2, window_bounds = array<i64: 1, 576>}, {pipeline_mode = #tpu.pipeline_mode<synchronous>, transform_indices = @transform_3, window_bounds = array<i64: 9, 512>}, {pipeline_mode = #tpu.pipeline_mode<synchronous>, transform_indices = @transform_4, window_bounds = array<i64: 1, 512>}, {pipeline_mode = #tpu.pipeline_mode<synchronous>, transform_indices = @transform_5, window_bounds = array<i64: 9, 32, 128>}, {pipeline_mode = #tpu.pipeline_mode<synchronous>, transform_indices = @transform_6, window_bounds = array<i64: 9, 512, 512>}, {pipeline_mode = #tpu.pipeline_mode<synchronous>, transform_indices = @transform_7, window_bounds = array<i64: 1, 512>}, {transform_indices = @transform_8, window_bounds = array<i64: 32, 512>}]} {
    %c0 = arith.constant 0 : index
    %c0_0 = arith.constant 0 : index
    %0 = vector.load %arg1[%c0, %c0_0] : memref<2x10xf32, #tpu.memory_space<vmem>>, vector<2x10xf32>
    %c0_1 = arith.constant 0 : index
    %c0_2 = arith.constant 0 : index
    %1 = vector.load %arg2[%c0_1, %c0_2] : memref<10x576xf32, #tpu.memory_space<vmem>>, vector<10x576xf32>
    %cst = arith.constant dense<0.000000e+00> : vector<2x576xf32>
    %2 = tpu.matmul %0, %1, %cst {dimension_numbers = #tpu.dot_dimension_numbers<[1], [0], [0], [1], [0, 0, 1, 1], [], []>} : vector<2x10xf32>, vector<10x576xf32>, vector<2x576xf32> -> vector<2x576xf32>
    %c0_3 = arith.constant 0 : index
    %c0_4 = arith.constant 0 : index
    %3 = vector.load %arg3[%c0_3, %c0_4] : memref<1x576xf32, #tpu.memory_space<vmem>>, vector<1x576xf32>
    %4 = vector.broadcast %3 : vector<1x576xf32> to vector<2x576xf32>
    %5 = arith.addf %2, %4 : vector<2x576xf32>
    %cst_5 = arith.constant 0.000000e+00 : f32
    %6 = vector.broadcast %cst_5 : f32 to vector<2x64x512xf32>
    %7 = vector.extract_strided_slice %5 {offsets = [0, 0], sizes = [2, 64], strides = [1, 1]} : vector<2x576xf32> to vector<2x64xf32>
    %8 = vector.shape_cast %7 : vector<2x64xf32> to vector<2x64x1xf32>
    %c0_6 = arith.constant 0 : index
    %c0_7 = arith.constant 0 : index
    %9 = vector.load %arg4[%c0_6, %c0_7] : memref<9x512xf32, #tpu.memory_space<vmem>>, vector<1x512xf32>
    %10 = vector.shape_cast %9 : vector<1x512xf32> to vector<512xf32>
    %11 = vector.shape_cast %10 : vector<512xf32> to vector<1x1x512xf32>
    %12 = vector.broadcast %8 : vector<2x64x1xf32> to vector<2x64x512xf32>
    %13 = vector.broadcast %11 : vector<1x1x512xf32> to vector<2x64x512xf32>
    %14 = arith.mulf %12, %13 : vector<2x64x512xf32>
    %15 = arith.addf %6, %14 : vector<2x64x512xf32>
    %16 = vector.extract_strided_slice %5 {offsets = [0, 64], sizes = [2, 64], strides = [1, 1]} : vector<2x576xf32> to vector<2x64xf32>
    %17 = vector.shape_cast %16 : vector<2x64xf32> to vector<2x64x1xf32>
    %c1 = arith.constant 1 : index
    %c0_8 = arith.constant 0 : index
    %18 = vector.load %arg4[%c1, %c0_8] : memref<9x512xf32, #tpu.memory_space<vmem>>, vector<1x512xf32>
    %19 = vector.shape_cast %18 : vector<1x512xf32> to vector<512xf32>
    %20 = vector.shape_cast %19 : vector<512xf32> to vector<1x1x512xf32>
    %21 = vector.broadcast %17 : vector<2x64x1xf32> to vector<2x64x512xf32>
    %22 = vector.broadcast %20 : vector<1x1x512xf32> to vector<2x64x512xf32>
    %23 = arith.mulf %21, %22 : vector<2x64x512xf32>
    %24 = arith.addf %15, %23 : vector<2x64x512xf32>
    %25 = vector.extract_strided_slice %5 {offsets = [0, 128], sizes = [2, 64], strides = [1, 1]} : vector<2x576xf32> to vector<2x64xf32>
    %26 = vector.shape_cast %25 : vector<2x64xf32> to vector<2x64x1xf32>
    %c2 = arith.constant 2 : index
    %c0_9 = arith.constant 0 : index
    %27 = vector.load %arg4[%c2, %c0_9] : memref<9x512xf32, #tpu.memory_space<vmem>>, vector<1x512xf32>
    %28 = vector.shape_cast %27 : vector<1x512xf32> to vector<512xf32>
    %29 = vector.shape_cast %28 : vector<512xf32> to vector<1x1x512xf32>
    %30 = vector.broadcast %26 : vector<2x64x1xf32> to vector<2x64x512xf32>
    %31 = vector.broadcast %29 : vector<1x1x512xf32> to vector<2x64x512xf32>
    %32 = arith.mulf %30, %31 : vector<2x64x512xf32>
    %33 = arith.addf %24, %32 : vector<2x64x512xf32>
    %34 = vector.extract_strided_slice %5 {offsets = [0, 192], sizes = [2, 64], strides = [1, 1]} : vector<2x576xf32> to vector<2x64xf32>
    %35 = vector.shape_cast %34 : vector<2x64xf32> to vector<2x64x1xf32>
    %c3 = arith.constant 3 : index
    %c0_10 = arith.constant 0 : index
    %36 = vector.load %arg4[%c3, %c0_10] : memref<9x512xf32, #tpu.memory_space<vmem>>, vector<1x512xf32>
    %37 = vector.shape_cast %36 : vector<1x512xf32> to vector<512xf32>
    %38 = vector.shape_cast %37 : vector<512xf32> to vector<1x1x512xf32>
    %39 = vector.broadcast %35 : vector<2x64x1xf32> to vector<2x64x512xf32>
    %40 = vector.broadcast %38 : vector<1x1x512xf32> to vector<2x64x512xf32>
    %41 = arith.mulf %39, %40 : vector<2x64x512xf32>
    %42 = arith.addf %33, %41 : vector<2x64x512xf32>
    %43 = vector.extract_strided_slice %5 {offsets = [0, 256], sizes = [2, 64], strides = [1, 1]} : vector<2x576xf32> to vector<2x64xf32>
    %44 = vector.shape_cast %43 : vector<2x64xf32> to vector<2x64x1xf32>
    %c4 = arith.constant 4 : index
    %c0_11 = arith.constant 0 : index
    %45 = vector.load %arg4[%c4, %c0_11] : memref<9x512xf32, #tpu.memory_space<vmem>>, vector<1x512xf32>
    %46 = vector.shape_cast %45 : vector<1x512xf32> to vector<512xf32>
    %47 = vector.shape_cast %46 : vector<512xf32> to vector<1x1x512xf32>
    %48 = vector.broadcast %44 : vector<2x64x1xf32> to vector<2x64x512xf32>
    %49 = vector.broadcast %47 : vector<1x1x512xf32> to vector<2x64x512xf32>
    %50 = arith.mulf %48, %49 : vector<2x64x512xf32>
    %51 = arith.addf %42, %50 : vector<2x64x512xf32>
    %52 = vector.extract_strided_slice %5 {offsets = [0, 320], sizes = [2, 64], strides = [1, 1]} : vector<2x576xf32> to vector<2x64xf32>
    %53 = vector.shape_cast %52 : vector<2x64xf32> to vector<2x64x1xf32>
    %c5 = arith.constant 5 : index
    %c0_12 = arith.constant 0 : index
    %54 = vector.load %arg4[%c5, %c0_12] : memref<9x512xf32, #tpu.memory_space<vmem>>, vector<1x512xf32>
    %55 = vector.shape_cast %54 : vector<1x512xf32> to vector<512xf32>
    %56 = vector.shape_cast %55 : vector<512xf32> to vector<1x1x512xf32>
    %57 = vector.broadcast %53 : vector<2x64x1xf32> to vector<2x64x512xf32>
    %58 = vector.broadcast %56 : vector<1x1x512xf32> to vector<2x64x512xf32>
    %59 = arith.mulf %57, %58 : vector<2x64x512xf32>
    %60 = arith.addf %51, %59 : vector<2x64x512xf32>
    %61 = vector.extract_strided_slice %5 {offsets = [0, 384], sizes = [2, 64], strides = [1, 1]} : vector<2x576xf32> to vector<2x64xf32>
    %62 = vector.shape_cast %61 : vector<2x64xf32> to vector<2x64x1xf32>
    %c6 = arith.constant 6 : index
    %c0_13 = arith.constant 0 : index
    %63 = vector.load %arg4[%c6, %c0_13] : memref<9x512xf32, #tpu.memory_space<vmem>>, vector<1x512xf32>
    %64 = vector.shape_cast %63 : vector<1x512xf32> to vector<512xf32>
    %65 = vector.shape_cast %64 : vector<512xf32> to vector<1x1x512xf32>
    %66 = vector.broadcast %62 : vector<2x64x1xf32> to vector<2x64x512xf32>
    %67 = vector.broadcast %65 : vector<1x1x512xf32> to vector<2x64x512xf32>
    %68 = arith.mulf %66, %67 : vector<2x64x512xf32>
    %69 = arith.addf %60, %68 : vector<2x64x512xf32>
    %70 = vector.extract_strided_slice %5 {offsets = [0, 448], sizes = [2, 64], strides = [1, 1]} : vector<2x576xf32> to vector<2x64xf32>
    %71 = vector.shape_cast %70 : vector<2x64xf32> to vector<2x64x1xf32>
    %c7 = arith.constant 7 : index
    %c0_14 = arith.constant 0 : index
    %72 = vector.load %arg4[%c7, %c0_14] : memref<9x512xf32, #tpu.memory_space<vmem>>, vector<1x512xf32>
    %73 = vector.shape_cast %72 : vector<1x512xf32> to vector<512xf32>
    %74 = vector.shape_cast %73 : vector<512xf32> to vector<1x1x512xf32>
    %75 = vector.broadcast %71 : vector<2x64x1xf32> to vector<2x64x512xf32>
    %76 = vector.broadcast %74 : vector<1x1x512xf32> to vector<2x64x512xf32>
    %77 = arith.mulf %75, %76 : vector<2x64x512xf32>
    %78 = arith.addf %69, %77 : vector<2x64x512xf32>
    %79 = vector.extract_strided_slice %5 {offsets = [0, 512], sizes = [2, 64], strides = [1, 1]} : vector<2x576xf32> to vector<2x64xf32>
    %80 = vector.shape_cast %79 : vector<2x64xf32> to vector<2x64x1xf32>
    %c8 = arith.constant 8 : index
    %c0_15 = arith.constant 0 : index
    %81 = vector.load %arg4[%c8, %c0_15] : memref<9x512xf32, #tpu.memory_space<vmem>>, vector<1x512xf32>
    %82 = vector.shape_cast %81 : vector<1x512xf32> to vector<512xf32>
    %83 = vector.shape_cast %82 : vector<512xf32> to vector<1x1x512xf32>
    %84 = vector.broadcast %80 : vector<2x64x1xf32> to vector<2x64x512xf32>
    %85 = vector.broadcast %83 : vector<1x1x512xf32> to vector<2x64x512xf32>
    %86 = arith.mulf %84, %85 : vector<2x64x512xf32>
    %87 = arith.addf %78, %86 : vector<2x64x512xf32>
    %c0_16 = arith.constant 0 : index
    %c0_17 = arith.constant 0 : index
    %88 = vector.load %arg5[%c0_16, %c0_17] : memref<1x512xf32, #tpu.memory_space<vmem>>, vector<1x512xf32>
    %89 = vector.shape_cast %88 : vector<1x512xf32> to vector<1x1x512xf32>
    %90 = vector.broadcast %89 : vector<1x1x512xf32> to vector<2x64x512xf32>
    %91 = arith.addf %87, %90 : vector<2x64x512xf32>
    %cst_18 = arith.constant 0.000000e+00 : f32
    %92 = vector.broadcast %cst_18 : f32 to vector<2x64x512xf32>
    %93 = arith.cmpf oge, %91, %92 : vector<2x64x512xf32>
    %cst_19 = arith.constant 2.000000e-01 : f32
    %94 = vector.broadcast %cst_19 : f32 to vector<2x64x512xf32>
    %95 = arith.mulf %94, %91 : vector<2x64x512xf32>
    %96 = arith.select %93, %91, %95 : vector<2x64x512xi1>, vector<2x64x512xf32>
    %97 = vector.shape_cast %96 : vector<2x64x512xf32> to vector<128x512xf32>
    %98 = arith.truncf %97 : vector<128x512xf32> to vector<128x512xbf16>
    %cst_20 = arith.constant 0.000000e+00 : f32
    %99 = vector.broadcast %cst_20 : f32 to vector<32x512xf32>
    %c0_21 = arith.constant 0 : index
    %c0_22 = arith.constant 0 : index
    %c0_23 = arith.constant 0 : index
    %100 = vector.load %arg6[%c0_21, %c0_22, %c0_23] : memref<9x32x128xbf16, #tpu.memory_space<vmem>>, vector<1x32x128xbf16>
    %101 = vector.shape_cast %100 : vector<1x32x128xbf16> to vector<32x128xbf16>
    %cst_24 = arith.constant dense<0.000000e+00> : vector<32x512xf32>
    %102 = tpu.matmul %101, %98, %cst_24 {dimension_numbers = #tpu.dot_dimension_numbers<[1], [0], [0], [1], [0, 0, 1, 1], [], []>} : vector<32x128xbf16>, vector<128x512xbf16>, vector<32x512xf32> -> vector<32x512xf32>
    %103 = arith.truncf %102 : vector<32x512xf32> to vector<32x512xbf16>
    %c0_25 = arith.constant 0 : index
    %c0_26 = arith.constant 0 : index
    %c0_27 = arith.constant 0 : index
    %104 = vector.load %arg7[%c0_25, %c0_26, %c0_27] : memref<9x512x512xbf16, #tpu.memory_space<vmem>>, vector<1x512x512xbf16>
    %105 = vector.shape_cast %104 : vector<1x512x512xbf16> to vector<512x512xbf16>
    %cst_28 = arith.constant dense<0.000000e+00> : vector<32x512xf32>
    %106 = tpu.matmul %103, %105, %cst_28 {dimension_numbers = #tpu.dot_dimension_numbers<[1], [0], [0], [1], [0, 0, 1, 1], [], []>} : vector<32x512xbf16>, vector<512x512xbf16>, vector<32x512xf32> -> vector<32x512xf32>
    %107 = arith.addf %99, %106 : vector<32x512xf32>
    %c1_29 = arith.constant 1 : index
    %c0_30 = arith.constant 0 : index
    %c0_31 = arith.constant 0 : index
    %108 = vector.load %arg6[%c1_29, %c0_30, %c0_31] : memref<9x32x128xbf16, #tpu.memory_space<vmem>>, vector<1x32x128xbf16>
    %109 = vector.shape_cast %108 : vector<1x32x128xbf16> to vector<32x128xbf16>
    %cst_32 = arith.constant dense<0.000000e+00> : vector<32x512xf32>
    %110 = tpu.matmul %109, %98, %cst_32 {dimension_numbers = #tpu.dot_dimension_numbers<[1], [0], [0], [1], [0, 0, 1, 1], [], []>} : vector<32x128xbf16>, vector<128x512xbf16>, vector<32x512xf32> -> vector<32x512xf32>
    %111 = arith.truncf %110 : vector<32x512xf32> to vector<32x512xbf16>
    %c1_33 = arith.constant 1 : index
    %c0_34 = arith.constant 0 : index
    %c0_35 = arith.constant 0 : index
    %112 = vector.load %arg7[%c1_33, %c0_34, %c0_35] : memref<9x512x512xbf16, #tpu.memory_space<vmem>>, vector<1x512x512xbf16>
    %113 = vector.shape_cast %112 : vector<1x512x512xbf16> to vector<512x512xbf16>
    %cst_36 = arith.constant dense<0.000000e+00> : vector<32x512xf32>
    %114 = tpu.matmul %111, %113, %cst_36 {dimension_numbers = #tpu.dot_dimension_numbers<[1], [0], [0], [1], [0, 0, 1, 1], [], []>} : vector<32x512xbf16>, vector<512x512xbf16>, vector<32x512xf32> -> vector<32x512xf32>
    %115 = arith.addf %107, %114 : vector<32x512xf32>
    %c2_37 = arith.constant 2 : index
    %c0_38 = arith.constant 0 : index
    %c0_39 = arith.constant 0 : index
    %116 = vector.load %arg6[%c2_37, %c0_38, %c0_39] : memref<9x32x128xbf16, #tpu.memory_space<vmem>>, vector<1x32x128xbf16>
    %117 = vector.shape_cast %116 : vector<1x32x128xbf16> to vector<32x128xbf16>
    %cst_40 = arith.constant dense<0.000000e+00> : vector<32x512xf32>
    %118 = tpu.matmul %117, %98, %cst_40 {dimension_numbers = #tpu.dot_dimension_numbers<[1], [0], [0], [1], [0, 0, 1, 1], [], []>} : vector<32x128xbf16>, vector<128x512xbf16>, vector<32x512xf32> -> vector<32x512xf32>
    %119 = arith.truncf %118 : vector<32x512xf32> to vector<32x512xbf16>
    %c2_41 = arith.constant 2 : index
    %c0_42 = arith.constant 0 : index
    %c0_43 = arith.constant 0 : index
    %120 = vector.load %arg7[%c2_41, %c0_42, %c0_43] : memref<9x512x512xbf16, #tpu.memory_space<vmem>>, vector<1x512x512xbf16>
    %121 = vector.shape_cast %120 : vector<1x512x512xbf16> to vector<512x512xbf16>
    %cst_44 = arith.constant dense<0.000000e+00> : vector<32x512xf32>
    %122 = tpu.matmul %119, %121, %cst_44 {dimension_numbers = #tpu.dot_dimension_numbers<[1], [0], [0], [1], [0, 0, 1, 1], [], []>} : vector<32x512xbf16>, vector<512x512xbf16>, vector<32x512xf32> -> vector<32x512xf32>
    %123 = arith.addf %115, %122 : vector<32x512xf32>
    %c3_45 = arith.constant 3 : index
    %c0_46 = arith.constant 0 : index
    %c0_47 = arith.constant 0 : index
    %124 = vector.load %arg6[%c3_45, %c0_46, %c0_47] : memref<9x32x128xbf16, #tpu.memory_space<vmem>>, vector<1x32x128xbf16>
    %125 = vector.shape_cast %124 : vector<1x32x128xbf16> to vector<32x128xbf16>
    %cst_48 = arith.constant dense<0.000000e+00> : vector<32x512xf32>
    %126 = tpu.matmul %125, %98, %cst_48 {dimension_numbers = #tpu.dot_dimension_numbers<[1], [0], [0], [1], [0, 0, 1, 1], [], []>} : vector<32x128xbf16>, vector<128x512xbf16>, vector<32x512xf32> -> vector<32x512xf32>
    %127 = arith.truncf %126 : vector<32x512xf32> to vector<32x512xbf16>
    %c3_49 = arith.constant 3 : index
    %c0_50 = arith.constant 0 : index
    %c0_51 = arith.constant 0 : index
    %128 = vector.load %arg7[%c3_49, %c0_50, %c0_51] : memref<9x512x512xbf16, #tpu.memory_space<vmem>>, vector<1x512x512xbf16>
    %129 = vector.shape_cast %128 : vector<1x512x512xbf16> to vector<512x512xbf16>
    %cst_52 = arith.constant dense<0.000000e+00> : vector<32x512xf32>
    %130 = tpu.matmul %127, %129, %cst_52 {dimension_numbers = #tpu.dot_dimension_numbers<[1], [0], [0], [1], [0, 0, 1, 1], [], []>} : vector<32x512xbf16>, vector<512x512xbf16>, vector<32x512xf32> -> vector<32x512xf32>
    %131 = arith.addf %123, %130 : vector<32x512xf32>
    %c4_53 = arith.constant 4 : index
    %c0_54 = arith.constant 0 : index
    %c0_55 = arith.constant 0 : index
    %132 = vector.load %arg6[%c4_53, %c0_54, %c0_55] : memref<9x32x128xbf16, #tpu.memory_space<vmem>>, vector<1x32x128xbf16>
    %133 = vector.shape_cast %132 : vector<1x32x128xbf16> to vector<32x128xbf16>
    %cst_56 = arith.constant dense<0.000000e+00> : vector<32x512xf32>
    %134 = tpu.matmul %133, %98, %cst_56 {dimension_numbers = #tpu.dot_dimension_numbers<[1], [0], [0], [1], [0, 0, 1, 1], [], []>} : vector<32x128xbf16>, vector<128x512xbf16>, vector<32x512xf32> -> vector<32x512xf32>
    %135 = arith.truncf %134 : vector<32x512xf32> to vector<32x512xbf16>
    %c4_57 = arith.constant 4 : index
    %c0_58 = arith.constant 0 : index
    %c0_59 = arith.constant 0 : index
    %136 = vector.load %arg7[%c4_57, %c0_58, %c0_59] : memref<9x512x512xbf16, #tpu.memory_space<vmem>>, vector<1x512x512xbf16>
    %137 = vector.shape_cast %136 : vector<1x512x512xbf16> to vector<512x512xbf16>
    %cst_60 = arith.constant dense<0.000000e+00> : vector<32x512xf32>
    %138 = tpu.matmul %135, %137, %cst_60 {dimension_numbers = #tpu.dot_dimension_numbers<[1], [0], [0], [1], [0, 0, 1, 1], [], []>} : vector<32x512xbf16>, vector<512x512xbf16>, vector<32x512xf32> -> vector<32x512xf32>
    %139 = arith.addf %131, %138 : vector<32x512xf32>
    %c5_61 = arith.constant 5 : index
    %c0_62 = arith.constant 0 : index
    %c0_63 = arith.constant 0 : index
    %140 = vector.load %arg6[%c5_61, %c0_62, %c0_63] : memref<9x32x128xbf16, #tpu.memory_space<vmem>>, vector<1x32x128xbf16>
    %141 = vector.shape_cast %140 : vector<1x32x128xbf16> to vector<32x128xbf16>
    %cst_64 = arith.constant dense<0.000000e+00> : vector<32x512xf32>
    %142 = tpu.matmul %141, %98, %cst_64 {dimension_numbers = #tpu.dot_dimension_numbers<[1], [0], [0], [1], [0, 0, 1, 1], [], []>} : vector<32x128xbf16>, vector<128x512xbf16>, vector<32x512xf32> -> vector<32x512xf32>
    %143 = arith.truncf %142 : vector<32x512xf32> to vector<32x512xbf16>
    %c5_65 = arith.constant 5 : index
    %c0_66 = arith.constant 0 : index
    %c0_67 = arith.constant 0 : index
    %144 = vector.load %arg7[%c5_65, %c0_66, %c0_67] : memref<9x512x512xbf16, #tpu.memory_space<vmem>>, vector<1x512x512xbf16>
    %145 = vector.shape_cast %144 : vector<1x512x512xbf16> to vector<512x512xbf16>
    %cst_68 = arith.constant dense<0.000000e+00> : vector<32x512xf32>
    %146 = tpu.matmul %143, %145, %cst_68 {dimension_numbers = #tpu.dot_dimension_numbers<[1], [0], [0], [1], [0, 0, 1, 1], [], []>} : vector<32x512xbf16>, vector<512x512xbf16>, vector<32x512xf32> -> vector<32x512xf32>
    %147 = arith.addf %139, %146 : vector<32x512xf32>
    %c6_69 = arith.constant 6 : index
    %c0_70 = arith.constant 0 : index
    %c0_71 = arith.constant 0 : index
    %148 = vector.load %arg6[%c6_69, %c0_70, %c0_71] : memref<9x32x128xbf16, #tpu.memory_space<vmem>>, vector<1x32x128xbf16>
    %149 = vector.shape_cast %148 : vector<1x32x128xbf16> to vector<32x128xbf16>
    %cst_72 = arith.constant dense<0.000000e+00> : vector<32x512xf32>
    %150 = tpu.matmul %149, %98, %cst_72 {dimension_numbers = #tpu.dot_dimension_numbers<[1], [0], [0], [1], [0, 0, 1, 1], [], []>} : vector<32x128xbf16>, vector<128x512xbf16>, vector<32x512xf32> -> vector<32x512xf32>
    %151 = arith.truncf %150 : vector<32x512xf32> to vector<32x512xbf16>
    %c6_73 = arith.constant 6 : index
    %c0_74 = arith.constant 0 : index
    %c0_75 = arith.constant 0 : index
    %152 = vector.load %arg7[%c6_73, %c0_74, %c0_75] : memref<9x512x512xbf16, #tpu.memory_space<vmem>>, vector<1x512x512xbf16>
    %153 = vector.shape_cast %152 : vector<1x512x512xbf16> to vector<512x512xbf16>
    %cst_76 = arith.constant dense<0.000000e+00> : vector<32x512xf32>
    %154 = tpu.matmul %151, %153, %cst_76 {dimension_numbers = #tpu.dot_dimension_numbers<[1], [0], [0], [1], [0, 0, 1, 1], [], []>} : vector<32x512xbf16>, vector<512x512xbf16>, vector<32x512xf32> -> vector<32x512xf32>
    %155 = arith.addf %147, %154 : vector<32x512xf32>
    %c7_77 = arith.constant 7 : index
    %c0_78 = arith.constant 0 : index
    %c0_79 = arith.constant 0 : index
    %156 = vector.load %arg6[%c7_77, %c0_78, %c0_79] : memref<9x32x128xbf16, #tpu.memory_space<vmem>>, vector<1x32x128xbf16>
    %157 = vector.shape_cast %156 : vector<1x32x128xbf16> to vector<32x128xbf16>
    %cst_80 = arith.constant dense<0.000000e+00> : vector<32x512xf32>
    %158 = tpu.matmul %157, %98, %cst_80 {dimension_numbers = #tpu.dot_dimension_numbers<[1], [0], [0], [1], [0, 0, 1, 1], [], []>} : vector<32x128xbf16>, vector<128x512xbf16>, vector<32x512xf32> -> vector<32x512xf32>
    %159 = arith.truncf %158 : vector<32x512xf32> to vector<32x512xbf16>
    %c7_81 = arith.constant 7 : index
    %c0_82 = arith.constant 0 : index
    %c0_83 = arith.constant 0 : index
    %160 = vector.load %arg7[%c7_81, %c0_82, %c0_83] : memref<9x512x512xbf16, #tpu.memory_space<vmem>>, vector<1x512x512xbf16>
    %161 = vector.shape_cast %160 : vector<1x512x512xbf16> to vector<512x512xbf16>
    %cst_84 = arith.constant dense<0.000000e+00> : vector<32x512xf32>
    %162 = tpu.matmul %159, %161, %cst_84 {dimension_numbers = #tpu.dot_dimension_numbers<[1], [0], [0], [1], [0, 0, 1, 1], [], []>} : vector<32x512xbf16>, vector<512x512xbf16>, vector<32x512xf32> -> vector<32x512xf32>
    %163 = arith.addf %155, %162 : vector<32x512xf32>
    %c8_85 = arith.constant 8 : index
    %c0_86 = arith.constant 0 : index
    %c0_87 = arith.constant 0 : index
    %164 = vector.load %arg6[%c8_85, %c0_86, %c0_87] : memref<9x32x128xbf16, #tpu.memory_space<vmem>>, vector<1x32x128xbf16>
    %165 = vector.shape_cast %164 : vector<1x32x128xbf16> to vector<32x128xbf16>
    %cst_88 = arith.constant dense<0.000000e+00> : vector<32x512xf32>
    %166 = tpu.matmul %165, %98, %cst_88 {dimension_numbers = #tpu.dot_dimension_numbers<[1], [0], [0], [1], [0, 0, 1, 1], [], []>} : vector<32x128xbf16>, vector<128x512xbf16>, vector<32x512xf32> -> vector<32x512xf32>
    %167 = arith.truncf %166 : vector<32x512xf32> to vector<32x512xbf16>
    %c8_89 = arith.constant 8 : index
    %c0_90 = arith.constant 0 : index
    %c0_91 = arith.constant 0 : index
    %168 = vector.load %arg7[%c8_89, %c0_90, %c0_91] : memref<9x512x512xbf16, #tpu.memory_space<vmem>>, vector<1x512x512xbf16>
    %169 = vector.shape_cast %168 : vector<1x512x512xbf16> to vector<512x512xbf16>
    %cst_92 = arith.constant dense<0.000000e+00> : vector<32x512xf32>
    %170 = tpu.matmul %167, %169, %cst_92 {dimension_numbers = #tpu.dot_dimension_numbers<[1], [0], [0], [1], [0, 0, 1, 1], [], []>} : vector<32x512xbf16>, vector<512x512xbf16>, vector<32x512xf32> -> vector<32x512xf32>
    %171 = arith.addf %163, %170 : vector<32x512xf32>
    %c0_93 = arith.constant 0 : index
    %c0_94 = arith.constant 0 : index
    %172 = vector.load %arg8[%c0_93, %c0_94] : memref<1x512xf32, #tpu.memory_space<vmem>>, vector<1x512xf32>
    %173 = vector.broadcast %172 : vector<1x512xf32> to vector<32x512xf32>
    %174 = arith.addf %171, %173 : vector<32x512xf32>
    %cst_95 = arith.constant 0.000000e+00 : f32
    %175 = vector.broadcast %cst_95 : f32 to vector<32x512xf32>
    %176 = arith.cmpf oge, %174, %175 : vector<32x512xf32>
    %cst_96 = arith.constant 2.000000e-01 : f32
    %177 = vector.broadcast %cst_96 : f32 to vector<32x512xf32>
    %178 = arith.mulf %177, %174 : vector<32x512xf32>
    %179 = arith.select %176, %174, %178 : vector<32x512xi1>, vector<32x512xf32>
    %c0_97 = arith.constant 0 : index
    %c0_98 = arith.constant 0 : index
    %180 = vector.load %arg9[%c0_97, %c0_98] : memref<32x512xf32, #tpu.memory_space<vmem>>, vector<32x512xf32>
    tpu.vector_store %arg9[%c0_97, %c0_98], %179 {strides = array<i32>} : memref<32x512xf32, #tpu.memory_space<vmem>>, vector<32x512xf32>,
    return
  }
  func.func @transform_0(%arg0: i32) -> (i32, i32) {
    %c0_i32 = arith.constant 0 : i32
    %c0_i32_0 = arith.constant 0 : i32
    return %arg0, %c0_i32 : i32, i32
  }
  func.func @transform_1(%arg0: i32) -> (i32, i32) {
    %c0_i32 = arith.constant 0 : i32
    %c0_i32_0 = arith.constant 0 : i32
    %c0_i32_1 = arith.constant 0 : i32
    return %c0_i32, %c0_i32_0 : i32, i32
  }
  func.func @transform_2(%arg0: i32) -> (i32, i32) {
    %c0_i32 = arith.constant 0 : i32
    %c0_i32_0 = arith.constant 0 : i32
    %c0_i32_1 = arith.constant 0 : i32
    return %c0_i32, %c0_i32_0 : i32, i32
  }
  func.func @transform_3(%arg0: i32) -> (i32, i32) {
    %c0_i32 = arith.constant 0 : i32
    %c0_i32_0 = arith.constant 0 : i32
    %c0_i32_1 = arith.constant 0 : i32
    return %c0_i32, %c0_i32_0 : i32, i32
  }
  func.func @transform_4(%arg0: i32) -> (i32, i32) {
    %c0_i32 = arith.constant 0 : i32
    %c0_i32_0 = arith.constant 0 : i32
    %c0_i32_1 = arith.constant 0 : i32
    return %c0_i32, %c0_i32_0 : i32, i32
  }
  func.func @transform_5(%arg0: i32) -> (i32, i32, i32) {
    %c0_i32 = arith.constant 0 : i32
    %c0_i32_0 = arith.constant 0 : i32
    %c0_i32_1 = arith.constant 0 : i32
    %c0_i32_2 = arith.constant 0 : i32
    return %c0_i32, %c0_i32_0, %c0_i32_1 : i32, i32, i32
  }
  func.func @transform_6(%arg0: i32) -> (i32, i32, i32) {
    %c0_i32 = arith.constant 0 : i32
    %c0_i32_0 = arith.constant 0 : i32
    %c0_i32_1 = arith.constant 0 : i32
    %c0_i32_2 = arith.constant 0 : i32
    return %c0_i32, %c0_i32_0, %c0_i32_1 : i32, i32, i32
  }
  func.func @transform_7(%arg0: i32) -> (i32, i32) {
    %c0_i32 = arith.constant 0 : i32
    %c0_i32_0 = arith.constant 0 : i32
    %c0_i32_1 = arith.constant 0 : i32
    return %c0_i32, %c0_i32_0 : i32, i32
  }
  func.func @transform_8(%arg0: i32) -> (i32, i32) {
    %c0_i32 = arith.constant 0 : i32
    %c0_i32_0 = arith.constant 0 : i32
    return %arg0, %c0_i32 : i32, i32
  }
}

</mosaic_0001>

<llo_original>
// kernel: forward.1
$region0: #{forward.1}
  #allocation0 [shape = 'u32[]', space=smem, size = 0x4, offset = 0x4, fixed_abs, tag = 'smem constant byte address 0x4 - core index']
  #allocation1 [shape = 'u32[144,128]{1,0:T(1,128)}', space=vmem, size = 0x12000, scoped, tag = 'internal scratch']
  %s0 = inlined_call_operand.vmem [shape: f32[2,10], index: 0, kind: input, shape index: {}]
  %s1 = inlined_call_operand.vmem [shape: f32[10,576], index: 1, kind: input, shape index: {}]
  %s2 = inlined_call_operand.vmem [shape: f32[1,576], index: 2, kind: input, shape index: {}]
  %s3 = inlined_call_operand.vmem [shape: f32[9,512], index: 3, kind: input, shape index: {}]
  %s4 = inlined_call_operand.vmem [shape: f32[1,512], index: 4, kind: input, shape index: {}]
  %s5 = inlined_call_operand.vmem [shape: bf16[9,32,128], index: 5, kind: input, shape index: {}]
  %s6 = inlined_call_operand.vmem [shape: bf16[9,512,512], index: 6, kind: input, shape index: {}]
  %s7 = inlined_call_operand.vmem [shape: f32[1,512], index: 7, kind: input, shape index: {}]
  %s8 = inlined_call_operand.vmem [shape: f32[32,512], index: 8, kind: output, shape index: {}]
  %s9 = sld [smem:[#allocation0]]
  $region42: #{forward.1} parent=0
    _
  %s11 = ssub.s32 1, %s9
  %s12 = scalar_select 0, %s11, %s9
  // Predicated region
  $region2: #{forward.1} parent=0 // pred_check
    _
  $region3: #{forward.1} parent=0 // pred_check_branch
    %14 = sbr.rel (0) target = $region5
  $region4: #{forward.1} parent=0 // pred_region
    _
  $region5: #{forward.1} parent=0 // pred_fallthru
    _
  // Predicated region
  $region6: #{forward.1} parent=0 // pred_check
    _
  $region7: #{forward.1} parent=0 // pred_check_branch
    %16 = sbr.rel (0) target = $region9
  $region8: #{forward.1} parent=0 // pred_region
    _
  $region9: #{forward.1} parent=0 // pred_fallthru
    _
  // Predicated region
  $region10: #{forward.1} parent=0 // pred_check
    _
  $region11: #{forward.1} parent=0 // pred_check_branch
    %18 = sbr.rel (0) target = $region13
  $region12: #{forward.1} parent=0 // pred_region
    _
  $region13: #{forward.1} parent=0 // pred_fallthru
    _
  // Predicated region
  $region14: #{forward.1} parent=0 // pred_check
    _
  $region15: #{forward.1} parent=0 // pred_check_branch
    %20 = sbr.rel (0) target = $region17
  $region16: #{forward.1} parent=0 // pred_region
    _
  $region17: #{forward.1} parent=0 // pred_fallthru
    _
  // Predicated region
  $region18: #{forward.1} parent=0 // pred_check
    _
  $region19: #{forward.1} parent=0 // pred_check_branch
    %22 = sbr.rel (0) target = $region21
  $region20: #{forward.1} parent=0 // pred_region
    _
  $region21: #{forward.1} parent=0 // pred_fallthru
    _
  // Predicated region
  $region22: #{forward.1} parent=0 // pred_check
    _
  $region23: #{forward.1} parent=0 // pred_check_branch
    %24 = sbr.rel (0) target = $region25
  $region24: #{forward.1} parent=0 // pred_region
    _
  $region25: #{forward.1} parent=0 // pred_fallthru
    _
  // Predicated region
  $region26: #{forward.1} parent=0 // pred_check
    _
  $region27: #{forward.1} parent=0 // pred_check_branch
    %26 = sbr.rel (0) target = $region29
  $region28: #{forward.1} parent=0 // pred_region
    _
  $region29: #{forward.1} parent=0 // pred_fallthru
    _
  // Predicated region
  $region30: #{forward.1} parent=0 // pred_check
    _
  $region31: #{forward.1} parent=0 // pred_check_branch
    %28 = sbr.rel (0) target = $region33
  $region32: #{forward.1} parent=0 // pred_region
    _
  $region33: #{forward.1} parent=0 // pred_fallthru
    _
  %v30 = vld [vmem:[%s0] sm:$0x3]
  %v31 = vld [vmem:[%s1] sm:$0xff]
  %v32 = vld [vmem:[%s1 + $0x8] sm:$0xff]
  %v33 = vld [vmem:[%s1 + $0x10] sm:$0xff]
  %v34 = vld [vmem:[%s1 + $0x18] sm:$0xff]
  %v35 = vld [vmem:[%s1 + $0x20] sm:$0xff]
  %v36 = vld [vmem:[%s1 + $0x28] sm:$0x3]
  %v37 = vld [vmem:[%s1 + $0x30] sm:$0x3]
  %v38 = vld [vmem:[%s1 + $0x38] sm:$0x3]
  %v39 = vld [vmem:[%s1 + $0x40] sm:$0x3]
  %v40 = vld [vmem:[%s1 + $0x48] sm:$0x3]
  %v41 = vld [vmem:[%s2] sm:$0x1f]
  %v43 = vlaneseq
  %v44 = vshrl.u32 %v43, 7
  %v45 = vsub.s32 0, %v44
  %v46 = vrot.slane %v41, %v45
  %v47 = vlaneseq
  %v48 = vshrl.u32 %v47, 7
  %v49 = vsub.s32 1, %v48
  %v50 = vrot.slane %v41, %v49
  %v51 = vlaneseq
  %v52 = vshrl.u32 %v51, 7
  %v53 = vsub.s32 2, %v52
  %v54 = vrot.slane %v41, %v53
  %v55 = vlaneseq
  %v56 = vshrl.u32 %v55, 7
  %v57 = vsub.s32 3, %v56
  %v58 = vrot.slane %v41, %v57
  %v59 = vlaneseq
  %v60 = vshrl.u32 %v59, 7
  %v61 = vsub.s32 4, %v60
  %v62 = vrot.slane %v41, %v61
  %vm68 = vcmask 80896
  %v70 = vsel %vm68, %v30, 0
  %vm72 = vcmask 1041408
  %v74 = vsel %vm72, %v36, 0
  %v77 = vsel %vm72, %v37, 0
  %v80 = vsel %vm72, %v38, 0
  %v83 = vsel %vm72, %v39, 0
  %v86 = vsel %vm72, %v40, 0
  %88 = vmatprep.subr.mxu0 %v32
  %89 = vmatpush1.msra.mxu0 %v31
  %90 = vmatprep.subr.mxu0 %v77
  %91 = vmatpush1.msra.mxu0 %v74
  %92 = vmatprep.subr.mxu0 0.0
  %93 = vmatpush1.msra.mxu0 0.0
  %94 = vmatprep.subr.mxu0 0.0
  %95 = vmatpush1.msra.mxu0 0.0
  %96 = vmatprep.subr.mxu0 0.0
  %97 = vmatpush1.msra.mxu0 0.0
  %98 = vmatprep.subr.mxu0 0.0
  %99 = vmatpush1.msra.mxu0 0.0
  %100 = vmatprep.subr.mxu0 0.0
  %101 = vmatpush1.msra.mxu0 0.0
  %102 = vmatprep.subr.mxu0 0.0
  %103 = vmatpush1.msra.mxu0 0.0
  %104 = vmatprep.subr.mxu0 0.0
  %105 = vmatpush1.msra.mxu0 0.0
  %106 = vmatprep.subr.mxu0 0.0
  %107 = vmatpush1.msra.mxu0 0.0
  %108 = vmatprep.subr.mxu0 0.0
  %109 = vmatpush1.msra.mxu0 0.0
  %110 = vmatprep.subr.mxu0 0.0
  %111 = vmatpush1.msra.mxu0 0.0
  %112 = vmatprep.subr.mxu0 0.0
  %113 = vmatpush1.msra.mxu0 0.0
  %114 = vmatprep.subr.mxu0 0.0
  %115 = vmatpush1.msra.mxu0 0.0
  %116 = vmatprep.subr.mxu0 0.0
  %117 = vmatpush1.msra.mxu0 0.0
  %118 = vmatprep.subr.mxu0 0.0
  %119 = vmatpush1.msra.mxu0 0.0
  %120 = vmatprep.subr.mxu0 0.0
  %121 = vmatpush1.msra.mxu0 0.0
  %122 = vmatprep.subr.mxu0 0.0
  %123 = vmatpush1.msra.mxu0 0.0
  %124 = vmatprep.subr.mxu0 0.0
  %125 = vmatpush1.msra.mxu0 0.0
  %126 = vmatprep.subr.mxu0 0.0
  %127 = vmatpush1.msra.mxu0 0.0
  %128 = vmatprep.subr.mxu0 0.0
  %129 = vmatpush1.msra.mxu0 0.0
  %130 = vmatprep.subr.mxu0 0.0
  %131 = vmatpush1.msra.mxu0 0.0
  %132 = vmatprep.subr.mxu0 0.0
  %133 = vmatpush1.msra.mxu0 0.0
  %134 = vmatprep.subr.mxu0 0.0
  %135 = vmatpush1.msra.mxu0 0.0
  %136 = vmatprep.subr.mxu0 0.0
  %137 = vmatpush1.msra.mxu0 0.0
  %138 = vmatprep.subr.mxu0 0.0
  %139 = vmatpush1.msra.mxu0 0.0
  %140 = vmatprep.subr.mxu0 0.0
  %141 = vmatpush1.msra.mxu0 0.0
  %142 = vmatprep.subr.mxu0 0.0
  %143 = vmatpush1.msra.mxu0 0.0
  %144 = vmatprep.subr.mxu0 0.0
  %145 = vmatpush1.msra.mxu0 0.0
  %146 = vmatprep.subr.mxu0 0.0
  %147 = vmatpush1.msra.mxu0 0.0
  %148 = vmatprep.subr.mxu0 0.0
  %149 = vmatpush1.msra.mxu0 0.0
  %150 = vmatprep.subr.mxu0 0.0
  %151 = vmatpush1.msra.mxu0 0.0
  %152 = vmatprep.mubr.f32.mxu0 0.0
  %153 = vmatmul.mubr.f32.gmra.mrb[0].mxu0 %v70
  %v154 = vpop.f32.mrb[0].mxu0
  %v155 = vadd.f32 %v46, %v154
  %v156 = vpop.f32.mrb[0].mxu0
  %v157 = vadd.f32 %v50, %v156
  %158 = vdwg.mxu0
  %159 = vmatprep.subr.mxu0 %v34
  %160 = vmatpush1.msra.mxu0 %v33
  %161 = vmatprep.subr.mxu0 %v83
  %162 = vmatpush1.msra.mxu0 %v80
  %163 = vmatprep.subr.mxu0 0.0
  %164 = vmatpush1.msra.mxu0 0.0
  %165 = vmatprep.subr.mxu0 0.0
  %166 = vmatpush1.msra.mxu0 0.0
  %167 = vmatprep.subr.mxu0 0.0
  %168 = vmatpush1.msra.mxu0 0.0
  %169 = vmatprep.subr.mxu0 0.0
  %170 = vmatpush1.msra.mxu0 0.0
  %171 = vmatprep.subr.mxu0 0.0
  %172 = vmatpush1.msra.mxu0 0.0
  %173 = vmatprep.subr.mxu0 0.0
  %174 = vmatpush1.msra.mxu0 0.0
  %175 = vmatprep.subr.mxu0 0.0
  %176 = vmatpush1.msra.mxu0 0.0
  %177 = vmatprep.subr.mxu0 0.0
  %178 = vmatpush1.msra.mxu0 0.0
  %179 = vmatprep.subr.mxu0 0.0
  %180 = vmatpush1.msra.mxu0 0.0
  %181 = vmatprep.subr.mxu0 0.0
  %182 = vmatpush1.msra.mxu0 0.0
  %183 = vmatprep.subr.mxu0 0.0
  %184 = vmatpush1.msra.mxu0 0.0
  %185 = vmatprep.subr.mxu0 0.0
  %186 = vmatpush1.msra.mxu0 0.0
  %187 = vmatprep.subr.mxu0 0.0
  %188 = vmatpush1.msra.mxu0 0.0
  %189 = vmatprep.subr.mxu0 0.0
  %190 = vmatpush1.msra.mxu0 0.0
  %191 = vmatprep.subr.mxu0 0.0
  %192 = vmatpush1.msra.mxu0 0.0
  %193 = vmatprep.subr.mxu0 0.0
  %194 = vmatpush1.msra.mxu0 0.0
  %195 = vmatprep.subr.mxu0 0.0
  %196 = vmatpush1.msra.mxu0 0.0
  %197 = vmatprep.subr.mxu0 0.0
  %198 = vmatpush1.msra.mxu0 0.0
  %199 = vmatprep.subr.mxu0 0.0
  %200 = vmatpush1.msra.mxu0 0.0
  %201 = vmatprep.subr.mxu0 0.0
  %202 = vmatpush1.msra.mxu0 0.0
  %203 = vmatprep.subr.mxu0 0.0
  %204 = vmatpush1.msra.mxu0 0.0
  %205 = vmatprep.subr.mxu0 0.0
  %206 = vmatpush1.msra.mxu0 0.0
  %207 = vmatprep.subr.mxu0 0.0
  %208 = vmatpush1.msra.mxu0 0.0
  %209 = vmatprep.subr.mxu0 0.0
  %210 = vmatpush1.msra.mxu0 0.0
  %211 = vmatprep.subr.mxu0 0.0
  %212 = vmatpush1.msra.mxu0 0.0
  %213 = vmatprep.subr.mxu0 0.0
  %214 = vmatpush1.msra.mxu0 0.0
  %215 = vmatprep.subr.mxu0 0.0
  %216 = vmatpush1.msra.mxu0 0.0
  %217 = vmatprep.subr.mxu0 0.0
  %218 = vmatpush1.msra.mxu0 0.0
  %219 = vmatprep.subr.mxu0 0.0
  %220 = vmatpush1.msra.mxu0 0.0
  %221 = vmatprep.subr.mxu0 0.0
  %222 = vmatpush1.msra.mxu0 0.0
  %223 = vmatprep.mubr.f32.mxu0 0.0
  %224 = vmatmul.mubr.f32.gmra.mrb[0].mxu0 %v70
  %v225 = vpop.f32.mrb[0].mxu0
  %v226 = vadd.f32 %v54, %v225
  %v227 = vpop.f32.mrb[0].mxu0
  %v228 = vadd.f32 %v58, %v227
  %229 = vdwg.mxu0
  %230 = vmatprep.subr.mxu0 0.0
  %231 = vmatpush1.msra.mxu0 %v35
  %232 = vmatprep.subr.mxu0 0.0
  %233 = vmatpush1.msra.mxu0 %v86
  %234 = vmatprep.subr.mxu0 0.0
  %235 = vmatpush1.msra.mxu0 0.0
  %236 = vmatprep.subr.mxu0 0.0
  %237 = vmatpush1.msra.mxu0 0.0
  %238 = vmatprep.subr.mxu0 0.0
  %239 = vmatpush1.msra.mxu0 0.0
  %240 = vmatprep.subr.mxu0 0.0
  %241 = vmatpush1.msra.mxu0 0.0
  %242 = vmatprep.subr.mxu0 0.0
  %243 = vmatpush1.msra.mxu0 0.0
  %244 = vmatprep.subr.mxu0 0.0
  %245 = vmatpush1.msra.mxu0 0.0
  %246 = vmatprep.subr.mxu0 0.0
  %247 = vmatpush1.msra.mxu0 0.0
  %248 = vmatprep.subr.mxu0 0.0
  %249 = vmatpush1.msra.mxu0 0.0
  %250 = vmatprep.subr.mxu0 0.0
  %251 = vmatpush1.msra.mxu0 0.0
  %252 = vmatprep.subr.mxu0 0.0
  %253 = vmatpush1.msra.mxu0 0.0
  %254 = vmatprep.subr.mxu0 0.0
  %255 = vmatpush1.msra.mxu0 0.0
  %256 = vmatprep.subr.mxu0 0.0
  %257 = vmatpush1.msra.mxu0 0.0
  %258 = vmatprep.subr.mxu0 0.0
  %259 = vmatpush1.msra.mxu0 0.0
  %260 = vmatprep.subr.mxu0 0.0
  %261 = vmatpush1.msra.mxu0 0.0
  %262 = vmatprep.subr.mxu0 0.0
  %263 = vmatpush1.msra.mxu0 0.0
  %264 = vmatprep.subr.mxu0 0.0
  %265 = vmatpush1.msra.mxu0 0.0
  %266 = vmatprep.subr.mxu0 0.0
  %267 = vmatpush1.msra.mxu0 0.0
  %268 = vmatprep.subr.mxu0 0.0
  %269 = vmatpush1.msra.mxu0 0.0
  %270 = vmatprep.subr.mxu0 0.0
  %271 = vmatpush1.msra.mxu0 0.0
  %272 = vmatprep.subr.mxu0 0.0
  %273 = vmatpush1.msra.mxu0 0.0
  %274 = vmatprep.subr.mxu0 0.0
  %275 = vmatpush1.msra.mxu0 0.0
  %276 = vmatprep.subr.mxu0 0.0
  %277 = vmatpush1.msra.mxu0 0.0
  %278 = vmatprep.subr.mxu0 0.0
  %279 = vmatpush1.msra.mxu0 0.0
  %280 = vmatprep.subr.mxu0 0.0
  %281 = vmatpush1.msra.mxu0 0.0
  %282 = vmatprep.subr.mxu0 0.0
  %283 = vmatpush1.msra.mxu0 0.0
  %284 = vmatprep.subr.mxu0 0.0
  %285 = vmatpush1.msra.mxu0 0.0
  %286 = vmatprep.subr.mxu0 0.0
  %287 = vmatpush1.msra.mxu0 0.0
  %288 = vmatprep.subr.mxu0 0.0
  %289 = vmatpush1.msra.mxu0 0.0
  %290 = vmatprep.subr.mxu0 0.0
  %291 = vmatpush1.msra.mxu0 0.0
  %292 = vmatprep.subr.mxu0 0.0
  %293 = vmatpush1.msra.mxu0 0.0
  %294 = vmatprep.mubr.f32.mxu0 0.0
  %295 = vmatmul.mubr.f32.gmra.mrb[0].mxu0 %v70
  %v296 = vpop.f32.mrb[0].mxu0
  %v297 = vadd.f32 %v62, %v296
  %v298 = vpop.f32.mrb[0].mxu0
  %299 = vdwg.mxu0
  %v300 = vlaneseq
  %v301 = vshrl.u32 %v300, 7
  %v302 = vsub.s32 0, %v301
  %v303 = vrot.slane %v155, %v302
  %305 = vbcast.lane.b32.xlu0 %v303, 256
  %v306 = vpop.permute.xlu0 %305
  %s308 = sor.u32 256, 8
  %309 = vbcast.lane.b32.xlu0 %v303, %s308
  %v310 = vpop.permute.xlu0 %309
  %s312 = sor.u32 256, 16
  %313 = vbcast.lane.b32.xlu0 %v303, %s312
  %v314 = vpop.permute.xlu0 %313
  %s316 = sor.u32 256, 24
  %317 = vbcast.lane.b32.xlu0 %v303, %s316
  %v318 = vpop.permute.xlu0 %317
  %s320 = sor.u32 256, 32
  %321 = vbcast.lane.b32.xlu0 %v303, %s320
  %v322 = vpop.permute.xlu0 %321
  %s324 = sor.u32 256, 40
  %325 = vbcast.lane.b32.xlu0 %v303, %s324
  %v326 = vpop.permute.xlu0 %325
  %s328 = sor.u32 256, 48
  %329 = vbcast.lane.b32.xlu0 %v303, %s328
  %v330 = vpop.permute.xlu0 %329
  %s332 = sor.u32 256, 56
  %333 = vbcast.lane.b32.xlu0 %v303, %s332
  %v334 = vpop.permute.xlu0 %333
  %v335 = vlaneseq
  %v336 = vshrl.u32 %v335, 7
  %v337 = vsub.s32 1, %v336
  %v338 = vrot.slane %v155, %v337
  %340 = vbcast.lane.b32.xlu0 %v338, 256
  %v341 = vpop.permute.xlu0 %340
  %s343 = sor.u32 256, 8
  %344 = vbcast.lane.b32.xlu0 %v338, %s343
  %v345 = vpop.permute.xlu0 %344
  %s347 = sor.u32 256, 16
  %348 = vbcast.lane.b32.xlu0 %v338, %s347
  %v349 = vpop.permute.xlu0 %348
  %s351 = sor.u32 256, 24
  %352 = vbcast.lane.b32.xlu0 %v338, %s351
  %v353 = vpop.permute.xlu0 %352
  %s355 = sor.u32 256, 32
  %356 = vbcast.lane.b32.xlu0 %v338, %s355
  %v357 = vpop.permute.xlu0 %356
  %s359 = sor.u32 256, 40
  %360 = vbcast.lane.b32.xlu0 %v338, %s359
  %v361 = vpop.permute.xlu0 %360
  %s363 = sor.u32 256, 48
  %364 = vbcast.lane.b32.xlu0 %v338, %s363
  %v365 = vpop.permute.xlu0 %364
  %s367 = sor.u32 256, 56
  %368 = vbcast.lane.b32.xlu0 %v338, %s367
  %v369 = vpop.permute.xlu0 %368
  %v370 = vld [vmem:[%s3] ss:$8 sm:$0xf]
  %v372 = vlaneseq
  %v373 = vshrl.u32 %v372, 7
  %v374 = vsub.s32 0, %v373
  %v375 = vrot.slane %v370, %v374
  %v376 = vlaneseq
  %v377 = vshrl.u32 %v376, 7
  %v378 = vsub.s32 1, %v377
  %v379 = vrot.slane %v370, %v378
  %v380 = vlaneseq
  %v381 = vshrl.u32 %v380, 7
  %v382 = vsub.s32 2, %v381
  %v383 = vrot.slane %v370, %v382
  %v384 = vlaneseq
  %v385 = vshrl.u32 %v384, 7
  %v386 = vsub.s32 3, %v385
  %v387 = vrot.slane %v370, %v386
  %v392 = vmul.f32 %v306, %v375
  %v393 = vmul.f32 %v306, %v379
  %v394 = vmul.f32 %v306, %v383
  %v395 = vmul.f32 %v306, %v387
  %v396 = vmul.f32 %v310, %v375
  %v397 = vmul.f32 %v310, %v379
  %v398 = vmul.f32 %v310, %v383
  %v399 = vmul.f32 %v310, %v387
  %v400 = vmul.f32 %v314, %v375
  %v401 = vmul.f32 %v314, %v379
  %v402 = vmul.f32 %v314, %v383
  %v403 = vmul.f32 %v314, %v387
  %v404 = vmul.f32 %v318, %v375
  %v405 = vmul.f32 %v318, %v379
  %v406 = vmul.f32 %v318, %v383
  %v407 = vmul.f32 %v318, %v387
  %v408 = vmul.f32 %v322, %v375
  %v409 = vmul.f32 %v322, %v379
  %v410 = vmul.f32 %v322, %v383
  %v411 = vmul.f32 %v322, %v387
  %v412 = vmul.f32 %v326, %v375
  %v413 = vmul.f32 %v326, %v379
  %v414 = vmul.f32 %v326, %v383
  %v415 = vmul.f32 %v326, %v387
  %v416 = vmul.f32 %v330, %v375
  %v417 = vmul.f32 %v330, %v379
  %v418 = vmul.f32 %v330, %v383
  %v419 = vmul.f32 %v330, %v387
  %v420 = vmul.f32 %v334, %v375
  %v421 = vmul.f32 %v334, %v379
  %v422 = vmul.f32 %v334, %v383
  %v423 = vmul.f32 %v334, %v387
  %v424 = vmul.f32 %v341, %v375
  %v425 = vmul.f32 %v341, %v379
  %v426 = vmul.f32 %v341, %v383
  %v427 = vmul.f32 %v341, %v387
  %v428 = vmul.f32 %v345, %v375
  %v429 = vmul.f32 %v345, %v379
  %v430 = vmul.f32 %v345, %v383
  %v431 = vmul.f32 %v345, %v387
  %v432 = vmul.f32 %v349, %v375
  %v433 = vmul.f32 %v349, %v379
  %v434 = vmul.f32 %v349, %v383
  %v435 = vmul.f32 %v349, %v387
  %v436 = vmul.f32 %v353, %v375
  %v437 = vmul.f32 %v353, %v379
  %v438 = vmul.f32 %v353, %v383
  %v439 = vmul.f32 %v353, %v387
  %v440 = vmul.f32 %v357, %v375
  %v441 = vmul.f32 %v357, %v379
  %v442 = vmul.f32 %v357, %v383
  %v443 = vmul.f32 %v357, %v387
  %v444 = vmul.f32 %v361, %v375
  %v445 = vmul.f32 %v361, %v379
  %v446 = vmul.f32 %v361, %v383
  %v447 = vmul.f32 %v361, %v387
  %v448 = vmul.f32 %v365, %v375
  %v449 = vmul.f32 %v365, %v379
  %v450 = vmul.f32 %v365, %v383
  %v451 = vmul.f32 %v365, %v387
  %v452 = vmul.f32 %v369, %v375
  %v453 = vmul.f32 %v369, %v379
  %v454 = vmul.f32 %v369, %v383
  %v455 = vmul.f32 %v369, %v387
  %v456 = vadd.f32 %v392, 0.0
  %v457 = vadd.f32 %v393, 0.0
  %v458 = vadd.f32 %v394, 0.0
  %v459 = vadd.f32 %v395, 0.0
  %v460 = vadd.f32 %v396, 0.0
  %v461 = vadd.f32 %v397, 0.0
  %v462 = vadd.f32 %v398, 0.0
  %v463 = vadd.f32 %v399, 0.0
  %v464 = vadd.f32 %v400, 0.0
  %v465 = vadd.f32 %v401, 0.0
  %v466 = vadd.f32 %v402, 0.0
  %v467 = vadd.f32 %v403, 0.0
  %v468 = vadd.f32 %v404, 0.0
  %v469 = vadd.f32 %v405, 0.0
  %v470 = vadd.f32 %v406, 0.0
  %v471 = vadd.f32 %v407, 0.0
  %v472 = vadd.f32 %v408, 0.0
  %v473 = vadd.f32 %v409, 0.0
  %v474 = vadd.f32 %v410, 0.0
  %v475 = vadd.f32 %v411, 0.0
  %v476 = vadd.f32 %v412, 0.0
  %v477 = vadd.f32 %v413, 0.0
  %v478 = vadd.f32 %v414, 0.0
  %v479 = vadd.f32 %v415, 0.0
  %v480 = vadd.f32 %v416, 0.0
  %v481 = vadd.f32 %v417, 0.0
  %v482 = vadd.f32 %v418, 0.0
  %v483 = vadd.f32 %v419, 0.0
  %v484 = vadd.f32 %v420, 0.0
  %v485 = vadd.f32 %v421, 0.0
  %v486 = vadd.f32 %v422, 0.0
  %v487 = vadd.f32 %v423, 0.0
  %v488 = vadd.f32 %v424, 0.0
  %v489 = vadd.f32 %v425, 0.0
  %v490 = vadd.f32 %v426, 0.0
  %v491 = vadd.f32 %v427, 0.0
  %v492 = vadd.f32 %v428, 0.0
  %v493 = vadd.f32 %v429, 0.0
  %v494 = vadd.f32 %v430, 0.0
  %v495 = vadd.f32 %v431, 0.0
  %v496 = vadd.f32 %v432, 0.0
  %v497 = vadd.f32 %v433, 0.0
  %v498 = vadd.f32 %v434, 0.0
  %v499 = vadd.f32 %v435, 0.0
  %v500 = vadd.f32 %v436, 0.0
  %v501 = vadd.f32 %v437, 0.0
  %v502 = vadd.f32 %v438, 0.0
  %v503 = vadd.f32 %v439, 0.0
  %v504 = vadd.f32 %v440, 0.0
  %v505 = vadd.f32 %v441, 0.0
  %v506 = vadd.f32 %v442, 0.0
  %v507 = vadd.f32 %v443, 0.0
  %v508 = vadd.f32 %v444, 0.0
  %v509 = vadd.f32 %v445, 0.0
  %v510 = vadd.f32 %v446, 0.0
  %v511 = vadd.f32 %v447, 0.0
  %v512 = vadd.f32 %v448, 0.0
  %v513 = vadd.f32 %v449, 0.0
  %v514 = vadd.f32 %v450, 0.0
  %v515 = vadd.f32 %v451, 0.0
  %v516 = vadd.f32 %v452, 0.0
  %v517 = vadd.f32 %v453, 0.0
  %v518 = vadd.f32 %v454, 0.0
  %v519 = vadd.f32 %v455, 0.0
  %s521 = sor.u32 256, 64
  %522 = vbcast.lane.b32.xlu0 %v303, %s521
  %v523 = vpop.permute.xlu0 %522
  %s525 = sor.u32 256, 72
  %526 = vbcast.lane.b32.xlu0 %v303, %s525
  %v527 = vpop.permute.xlu0 %526
  %s529 = sor.u32 256, 80
  %530 = vbcast.lane.b32.xlu0 %v303, %s529
  %v531 = vpop.permute.xlu0 %530
  %s533 = sor.u32 256, 88
  %534 = vbcast.lane.b32.xlu0 %v303, %s533
  %v535 = vpop.permute.xlu0 %534
  %s537 = sor.u32 256, 96
  %538 = vbcast.lane.b32.xlu0 %v303, %s537
  %v539 = vpop.permute.xlu0 %538
  %s541 = sor.u32 256, 104
  %542 = vbcast.lane.b32.xlu0 %v303, %s541
  %v543 = vpop.permute.xlu0 %542
  %s545 = sor.u32 256, 112
  %546 = vbcast.lane.b32.xlu0 %v303, %s545
  %v547 = vpop.permute.xlu0 %546
  %s549 = sor.u32 256, 120
  %550 = vbcast.lane.b32.xlu0 %v303, %s549
  %v551 = vpop.permute.xlu0 %550
  %s553 = sor.u32 256, 64
  %554 = vbcast.lane.b32.xlu0 %v338, %s553
  %v555 = vpop.permute.xlu0 %554
  %s557 = sor.u32 256, 72
  %558 = vbcast.lane.b32.xlu0 %v338, %s557
  %v559 = vpop.permute.xlu0 %558
  %s561 = sor.u32 256, 80
  %562 = vbcast.lane.b32.xlu0 %v338, %s561
  %v563 = vpop.permute.xlu0 %562
  %s565 = sor.u32 256, 88
  %566 = vbcast.lane.b32.xlu0 %v338, %s565
  %v567 = vpop.permute.xlu0 %566
  %s569 = sor.u32 256, 96
  %570 = vbcast.lane.b32.xlu0 %v338, %s569
  %v571 = vpop.permute.xlu0 %570
  %s573 = sor.u32 256, 104
  %574 = vbcast.lane.b32.xlu0 %v338, %s573
  %v575 = vpop.permute.xlu0 %574
  %s577 = sor.u32 256, 112
  %578 = vbcast.lane.b32.xlu0 %v338, %s577
  %v579 = vpop.permute.xlu0 %578
  %s581 = sor.u32 256, 120
  %582 = vbcast.lane.b32.xlu0 %v338, %s581
  %v583 = vpop.permute.xlu0 %582
  %s584 = scalar_lea.vmem %s3, 1
  %v585 = vld [vmem:[%s584] ss:$8 sm:$0xf]
  %v587 = vlaneseq
  %v588 = vshrl.u32 %v587, 7
  %v589 = vsub.s32 0, %v588
  %v590 = vrot.slane %v585, %v589
  %v591 = vlaneseq
  %v592 = vshrl.u32 %v591, 7
  %v593 = vsub.s32 1, %v592
  %v594 = vrot.slane %v585, %v593
  %v595 = vlaneseq
  %v596 = vshrl.u32 %v595, 7
  %v597 = vsub.s32 2, %v596
  %v598 = vrot.slane %v585, %v597
  %v599 = vlaneseq
  %v600 = vshrl.u32 %v599, 7
  %v601 = vsub.s32 3, %v600
  %v602 = vrot.slane %v585, %v601
  %v607 = vmul.f32 %v523, %v590
  %v608 = vmul.f32 %v523, %v594
  %v609 = vmul.f32 %v523, %v598
  %v610 = vmul.f32 %v523, %v602
  %v611 = vmul.f32 %v527, %v590
  %v612 = vmul.f32 %v527, %v594
  %v613 = vmul.f32 %v527, %v598
  %v614 = vmul.f32 %v527, %v602
  %v615 = vmul.f32 %v531, %v590
  %v616 = vmul.f32 %v531, %v594
  %v617 = vmul.f32 %v531, %v598
  %v618 = vmul.f32 %v531, %v602
  %v619 = vmul.f32 %v535, %v590
  %v620 = vmul.f32 %v535, %v594
  %v621 = vmul.f32 %v535, %v598
  %v622 = vmul.f32 %v535, %v602
  %v623 = vmul.f32 %v539, %v590
  %v624 = vmul.f32 %v539, %v594
  %v625 = vmul.f32 %v539, %v598
  %v626 = vmul.f32 %v539, %v602
  %v627 = vmul.f32 %v543, %v590
  %v628 = vmul.f32 %v543, %v594
  %v629 = vmul.f32 %v543, %v598
  %v630 = vmul.f32 %v543, %v602
  %v631 = vmul.f32 %v547, %v590
  %v632 = vmul.f32 %v547, %v594
  %v633 = vmul.f32 %v547, %v598
  %v634 = vmul.f32 %v547, %v602
  %v635 = vmul.f32 %v551, %v590
  %v636 = vmul.f32 %v551, %v594
  %v637 = vmul.f32 %v551, %v598
  %v638 = vmul.f32 %v551, %v602
  %v639 = vmul.f32 %v555, %v590
  %v640 = vmul.f32 %v555, %v594
  %v641 = vmul.f32 %v555, %v598
  %v642 = vmul.f32 %v555, %v602
  %v643 = vmul.f32 %v559, %v590
  %v644 = vmul.f32 %v559, %v594
  %v645 = vmul.f32 %v559, %v598
  %v646 = vmul.f32 %v559, %v602
  %v647 = vmul.f32 %v563, %v590
  %v648 = vmul.f32 %v563, %v594
  %v649 = vmul.f32 %v563, %v598
  %v650 = vmul.f32 %v563, %v602
  %v651 = vmul.f32 %v567, %v590
  %v652 = vmul.f32 %v567, %v594
  %v653 = vmul.f32 %v567, %v598
  %v654 = vmul.f32 %v567, %v602
  %v655 = vmul.f32 %v571, %v590
  %v656 = vmul.f32 %v571, %v594
  %v657 = vmul.f32 %v571, %v598
  %v658 = vmul.f32 %v571, %v602
  %v659 = vmul.f32 %v575, %v590
  %v660 = vmul.f32 %v575, %v594
  %v661 = vmul.f32 %v575, %v598
  %v662 = vmul.f32 %v575, %v602
  %v663 = vmul.f32 %v579, %v590
  %v664 = vmul.f32 %v579, %v594
  %v665 = vmul.f32 %v579, %v598
  %v666 = vmul.f32 %v579, %v602
  %v667 = vmul.f32 %v583, %v590
  %v668 = vmul.f32 %v583, %v594
  %v669 = vmul.f32 %v583, %v598
  %v670 = vmul.f32 %v583, %v602
  %v671 = vadd.f32 %v456, %v607
  %v672 = vadd.f32 %v457, %v608
  %v673 = vadd.f32 %v458, %v609
  %v674 = vadd.f32 %v459, %v610
  %v675 = vadd.f32 %v460, %v611
  %v676 = vadd.f32 %v461, %v612
  %v677 = vadd.f32 %v462, %v613
  %v678 = vadd.f32 %v463, %v614
  %v679 = vadd.f32 %v464, %v615
  %v680 = vadd.f32 %v465, %v616
  %v681 = vadd.f32 %v466, %v617
  %v682 = vadd.f32 %v467, %v618
  %v683 = vadd.f32 %v468, %v619
  %v684 = vadd.f32 %v469, %v620
  %v685 = vadd.f32 %v470, %v621
  %v686 = vadd.f32 %v471, %v622
  %v687 = vadd.f32 %v472, %v623
  %v688 = vadd.f32 %v473, %v624
  %v689 = vadd.f32 %v474, %v625
  %v690 = vadd.f32 %v475, %v626
  %v691 = vadd.f32 %v476, %v627
  %v692 = vadd.f32 %v477, %v628
  %v693 = vadd.f32 %v478, %v629
  %v694 = vadd.f32 %v479, %v630
  %v695 = vadd.f32 %v480, %v631
  %v696 = vadd.f32 %v481, %v632
  %v697 = vadd.f32 %v482, %v633
  %v698 = vadd.f32 %v483, %v634
  %v699 = vadd.f32 %v484, %v635
  %v700 = vadd.f32 %v485, %v636
  %v701 = vadd.f32 %v486, %v637
  %v702 = vadd.f32 %v487, %v638
  %v703 = vadd.f32 %v488, %v639
  %v704 = vadd.f32 %v489, %v640
  %v705 = vadd.f32 %v490, %v641
  %v706 = vadd.f32 %v491, %v642
  %v707 = vadd.f32 %v492, %v643
  %v708 = vadd.f32 %v493, %v644
  %v709 = vadd.f32 %v494, %v645
  %v710 = vadd.f32 %v495, %v646
  %v711 = vadd.f32 %v496, %v647
  %v712 = vadd.f32 %v497, %v648
  %v713 = vadd.f32 %v498, %v649
  %v714 = vadd.f32 %v499, %v650
  %v715 = vadd.f32 %v500, %v651
  %v716 = vadd.f32 %v501, %v652
  %v717 = vadd.f32 %v502, %v653
  %v718 = vadd.f32 %v503, %v654
  %v719 = vadd.f32 %v504, %v655
  %v720 = vadd.f32 %v505, %v656
  %v721 = vadd.f32 %v506, %v657
  %v722 = vadd.f32 %v507, %v658
  %v723 = vadd.f32 %v508, %v659
  %v724 = vadd.f32 %v509, %v660
  %v725 = vadd.f32 %v510, %v661
  %v726 = vadd.f32 %v511, %v662
  %v727 = vadd.f32 %v512, %v663
  %v728 = vadd.f32 %v513, %v664
  %v729 = vadd.f32 %v514, %v665
  %v730 = vadd.f32 %v515, %v666
  %v731 = vadd.f32 %v516, %v667
  %v732 = vadd.f32 %v517, %v668
  %v733 = vadd.f32 %v518, %v669
  %v734 = vadd.f32 %v519, %v670
  %v735 = vlaneseq
  %v736 = vshrl.u32 %v735, 7
  %v737 = vsub.s32 0, %v736
  %v738 = vrot.slane %v157, %v737
  %740 = vbcast.lane.b32.xlu0 %v738, 256
  %v741 = vpop.permute.xlu0 %740
  %s743 = sor.u32 256, 8
  %744 = vbcast.lane.b32.xlu0 %v738, %s743
  %v745 = vpop.permute.xlu0 %744
  %s747 = sor.u32 256, 16
  %748 = vbcast.lane.b32.xlu0 %v738, %s747
  %v749 = vpop.permute.xlu0 %748
  %s751 = sor.u32 256, 24
  %752 = vbcast.lane.b32.xlu0 %v738, %s751
  %v753 = vpop.permute.xlu0 %752
  %s755 = sor.u32 256, 32
  %756 = vbcast.lane.b32.xlu0 %v738, %s755
  %v757 = vpop.permute.xlu0 %756
  %s759 = sor.u32 256, 40
  %760 = vbcast.lane.b32.xlu0 %v738, %s759
  %v761 = vpop.permute.xlu0 %760
  %s763 = sor.u32 256, 48
  %764 = vbcast.lane.b32.xlu0 %v738, %s763
  %v765 = vpop.permute.xlu0 %764
  %s767 = sor.u32 256, 56
  %768 = vbcast.lane.b32.xlu0 %v738, %s767
  %v769 = vpop.permute.xlu0 %768
  %v770 = vlaneseq
  %v771 = vshrl.u32 %v770, 7
  %v772 = vsub.s32 1, %v771
  %v773 = vrot.slane %v157, %v772
  %775 = vbcast.lane.b32.xlu0 %v773, 256
  %v776 = vpop.permute.xlu0 %775
  %s778 = sor.u32 256, 8
  %779 = vbcast.lane.b32.xlu0 %v773, %s778
  %v780 = vpop.permute.xlu0 %779
  %s782 = sor.u32 256, 16
  %783 = vbcast.lane.b32.xlu0 %v773, %s782
  %v784 = vpop.permute.xlu0 %783
  %s786 = sor.u32 256, 24
  %787 = vbcast.lane.b32.xlu0 %v773, %s786
  %v788 = vpop.permute.xlu0 %787
  %s790 = sor.u32 256, 32
  %791 = vbcast.lane.b32.xlu0 %v773, %s790
  %v792 = vpop.permute.xlu0 %791
  %s794 = sor.u32 256, 40
  %795 = vbcast.lane.b32.xlu0 %v773, %s794
  %v796 = vpop.permute.xlu0 %795
  %s798 = sor.u32 256, 48
  %799 = vbcast.lane.b32.xlu0 %v773, %s798
  %v800 = vpop.permute.xlu0 %799
  %s802 = sor.u32 256, 56
  %803 = vbcast.lane.b32.xlu0 %v773, %s802
  %v804 = vpop.permute.xlu0 %803
  %s805 = scalar_lea.vmem %s3, 2
  %v806 = vld [vmem:[%s805] ss:$8 sm:$0xf]
  %v808 = vlaneseq
  %v809 = vshrl.u32 %v808, 7
  %v810 = vsub.s32 0, %v809
  %v811 = vrot.slane %v806, %v810
  %v812 = vlaneseq
  %v813 = vshrl.u32 %v812, 7
  %v814 = vsub.s32 1, %v813
  %v815 = vrot.slane %v806, %v814
  %v816 = vlaneseq
  %v817 = vshrl.u32 %v816, 7
  %v818 = vsub.s32 2, %v817
  %v819 = vrot.slane %v806, %v818
  %v820 = vlaneseq
  %v821 = vshrl.u32 %v820, 7
  %v822 = vsub.s32 3, %v821
  %v823 = vrot.slane %v806, %v822
  %v828 = vmul.f32 %v741, %v811
  %v829 = vmul.f32 %v741, %v815
  %v830 = vmul.f32 %v741, %v819
  %v831 = vmul.f32 %v741, %v823
  %v832 = vmul.f32 %v745, %v811
  %v833 = vmul.f32 %v745, %v815
  %v834 = vmul.f32 %v745, %v819
  %v835 = vmul.f32 %v745, %v823
  %v836 = vmul.f32 %v749, %v811
  %v837 = vmul.f32 %v749, %v815
  %v838 = vmul.f32 %v749, %v819
  %v839 = vmul.f32 %v749, %v823
  %v840 = vmul.f32 %v753, %v811
  %v841 = vmul.f32 %v753, %v815
  %v842 = vmul.f32 %v753, %v819
  %v843 = vmul.f32 %v753, %v823
  %v844 = vmul.f32 %v757, %v811
  %v845 = vmul.f32 %v757, %v815
  %v846 = vmul.f32 %v757, %v819
  %v847 = vmul.f32 %v757, %v823
  %v848 = vmul.f32 %v761, %v811
  %v849 = vmul.f32 %v761, %v815
  %v850 = vmul.f32 %v761, %v819
  %v851 = vmul.f32 %v761, %v823
  %v852 = vmul.f32 %v765, %v811
  %v853 = vmul.f32 %v765, %v815
  %v854 = vmul.f32 %v765, %v819
  %v855 = vmul.f32 %v765, %v823
  %v856 = vmul.f32 %v769, %v811
  %v857 = vmul.f32 %v769, %v815
  %v858 = vmul.f32 %v769, %v819
  %v859 = vmul.f32 %v769, %v823
  %v860 = vmul.f32 %v776, %v811
  %v861 = vmul.f32 %v776, %v815
  %v862 = vmul.f32 %v776, %v819
  %v863 = vmul.f32 %v776, %v823
  %v864 = vmul.f32 %v780, %v811
  %v865 = vmul.f32 %v780, %v815
  %v866 = vmul.f32 %v780, %v819
  %v867 = vmul.f32 %v780, %v823
  %v868 = vmul.f32 %v784, %v811
  %v869 = vmul.f32 %v784, %v815
  %v870 = vmul.f32 %v784, %v819
  %v871 = vmul.f32 %v784, %v823
  %v872 = vmul.f32 %v788, %v811
  %v873 = vmul.f32 %v788, %v815
  %v874 = vmul.f32 %v788, %v819
  %v875 = vmul.f32 %v788, %v823
  %v876 = vmul.f32 %v792, %v811
  %v877 = vmul.f32 %v792, %v815
  %v878 = vmul.f32 %v792, %v819
  %v879 = vmul.f32 %v792, %v823
  %v880 = vmul.f32 %v796, %v811
  %v881 = vmul.f32 %v796, %v815
  %v882 = vmul.f32 %v796, %v819
  %v883 = vmul.f32 %v796, %v823
  %v884 = vmul.f32 %v800, %v811
  %v885 = vmul.f32 %v800, %v815
  %v886 = vmul.f32 %v800, %v819
  %v887 = vmul.f32 %v800, %v823
  %v888 = vmul.f32 %v804, %v811
  %v889 = vmul.f32 %v804, %v815
  %v890 = vmul.f32 %v804, %v819
  %v891 = vmul.f32 %v804, %v823
  %v892 = vadd.f32 %v671, %v828
  %v893 = vadd.f32 %v672, %v829
  %v894 = vadd.f32 %v673, %v830
  %v895 = vadd.f32 %v674, %v831
  %v896 = vadd.f32 %v675, %v832
  %v897 = vadd.f32 %v676, %v833
  %v898 = vadd.f32 %v677, %v834
  %v899 = vadd.f32 %v678, %v835
  %v900 = vadd.f32 %v679, %v836
  %v901 = vadd.f32 %v680, %v837
  %v902 = vadd.f32 %v681, %v838
  %v903 = vadd.f32 %v682, %v839
  %v904 = vadd.f32 %v683, %v840
  %v905 = vadd.f32 %v684, %v841
  %v906 = vadd.f32 %v685, %v842
  %v907 = vadd.f32 %v686, %v843
  %v908 = vadd.f32 %v687, %v844
  %v909 = vadd.f32 %v688, %v845
  %v910 = vadd.f32 %v689, %v846
  %v911 = vadd.f32 %v690, %v847
  %v912 = vadd.f32 %v691, %v848
  %v913 = vadd.f32 %v692, %v849
  %v914 = vadd.f32 %v693, %v850
  %v915 = vadd.f32 %v694, %v851
  %v916 = vadd.f32 %v695, %v852
  %v917 = vadd.f32 %v696, %v853
  %v918 = vadd.f32 %v697, %v854
  %v919 = vadd.f32 %v698, %v855
  %v920 = vadd.f32 %v699, %v856
  %v921 = vadd.f32 %v700, %v857
  %v922 = vadd.f32 %v701, %v858
  %v923 = vadd.f32 %v702, %v859
  %v924 = vadd.f32 %v703, %v860
  %v925 = vadd.f32 %v704, %v861
  %v926 = vadd.f32 %v705, %v862
  %v927 = vadd.f32 %v706, %v863
  %v928 = vadd.f32 %v707, %v864
  %v929 = vadd.f32 %v708, %v865
  %v930 = vadd.f32 %v709, %v866
  %v931 = vadd.f32 %v710, %v867
  %v932 = vadd.f32 %v711, %v868
  %v933 = vadd.f32 %v712, %v869
  %v934 = vadd.f32 %v713, %v870
  %v935 = vadd.f32 %v714, %v871
  %v936 = vadd.f32 %v715, %v872
  %v937 = vadd.f32 %v716, %v873
  %v938 = vadd.f32 %v717, %v874
  %v939 = vadd.f32 %v718, %v875
  %v940 = vadd.f32 %v719, %v876
  %v941 = vadd.f32 %v720, %v877
  %v942 = vadd.f32 %v721, %v878
  %v943 = vadd.f32 %v722, %v879
  %v944 = vadd.f32 %v723, %v880
  %v945 = vadd.f32 %v724, %v881
  %v946 = vadd.f32 %v725, %v882
  %v947 = vadd.f32 %v726, %v883
  %v948 = vadd.f32 %v727, %v884
  %v949 = vadd.f32 %v728, %v885
  %v950 = vadd.f32 %v729, %v886
  %v951 = vadd.f32 %v730, %v887
  %v952 = vadd.f32 %v731, %v888
  %v953 = vadd.f32 %v732, %v889
  %v954 = vadd.f32 %v733, %v890
  %v955 = vadd.f32 %v734, %v891
  %s957 = sor.u32 256, 64
  %958 = vbcast.lane.b32.xlu0 %v738, %s957
  %v959 = vpop.permute.xlu0 %958
  %s961 = sor.u32 256, 72
  %962 = vbcast.lane.b32.xlu0 %v738, %s961
  %v963 = vpop.permute.xlu0 %962
  %s965 = sor.u32 256, 80
  %966 = vbcast.lane.b32.xlu0 %v738, %s965
  %v967 = vpop.permute.xlu0 %966
  %s969 = sor.u32 256, 88
  %970 = vbcast.lane.b32.xlu0 %v738, %s969
  %v971 = vpop.permute.xlu0 %970
  %s973 = sor.u32 256, 96
  %974 = vbcast.lane.b32.xlu0 %v738, %s973
  %v975 = vpop.permute.xlu0 %974
  %s977 = sor.u32 256, 104
  %978 = vbcast.lane.b32.xlu0 %v738, %s977
  %v979 = vpop.permute.xlu0 %978
  %s981 = sor.u32 256, 112
  %982 = vbcast.lane.b32.xlu0 %v738, %s981
  %v983 = vpop.permute.xlu0 %982
  %s985 = sor.u32 256, 120
  %986 = vbcast.lane.b32.xlu0 %v738, %s985
  %v987 = vpop.permute.xlu0 %986
  %s989 = sor.u32 256, 64
  %990 = vbcast.lane.b32.xlu0 %v773, %s989
  %v991 = vpop.permute.xlu0 %990
  %s993 = sor.u32 256, 72
  %994 = vbcast.lane.b32.xlu0 %v773, %s993
  %v995 = vpop.permute.xlu0 %994
  %s997 = sor.u32 256, 80
  %998 = vbcast.lane.b32.xlu0 %v773, %s997
  %v999 = vpop.permute.xlu0 %998
  %s1001 = sor.u32 256, 88
  %1002 = vbcast.lane.b32.xlu0 %v773, %s1001
  %v1003 = vpop.permute.xlu0 %1002
  %s1005 = sor.u32 256, 96
  %1006 = vbcast.lane.b32.xlu0 %v773, %s1005
  %v1007 = vpop.permute.xlu0 %1006
  %s1009 = sor.u32 256, 104
  %1010 = vbcast.lane.b32.xlu0 %v773, %s1009
  %v1011 = vpop.permute.xlu0 %1010
  %s1013 = sor.u32 256, 112
  %1014 = vbcast.lane.b32.xlu0 %v773, %s1013
  %v1015 = vpop.permute.xlu0 %1014
  %s1017 = sor.u32 256, 120
  %1018 = vbcast.lane.b32.xlu0 %v773, %s1017
  %v1019 = vpop.permute.xlu0 %1018
  %s1020 = scalar_lea.vmem %s3, 3
  %v1021 = vld [vmem:[%s1020] ss:$8 sm:$0xf]
  %v1023 = vlaneseq
  %v1024 = vshrl.u32 %v1023, 7
  %v1025 = vsub.s32 0, %v1024
  %v1026 = vrot.slane %v1021, %v1025
  %v1027 = vlaneseq
  %v1028 = vshrl.u32 %v1027, 7
  %v1029 = vsub.s32 1, %v1028
  %v1030 = vrot.slane %v1021, %v1029
  %v1031 = vlaneseq
  %v1032 = vshrl.u32 %v1031, 7
  %v1033 = vsub.s32 2, %v1032
  %v1034 = vrot.slane %v1021, %v1033
  %v1035 = vlaneseq
  %v1036 = vshrl.u32 %v1035, 7
  %v1037 = vsub.s32 3, %v1036
  %v1038 = vrot.slane %v1021, %v1037
  %v1043 = vmul.f32 %v959, %v1026
  %v1044 = vmul.f32 %v959, %v1030
  %v1045 = vmul.f32 %v959, %v1034
  %v1046 = vmul.f32 %v959, %v1038
  %v1047 = vmul.f32 %v963, %v1026
  %v1048 = vmul.f32 %v963, %v1030
  %v1049 = vmul.f32 %v963, %v1034
  %v1050 = vmul.f32 %v963, %v1038
  %v1051 = vmul.f32 %v967, %v1026
  %v1052 = vmul.f32 %v967, %v1030
  %v1053 = vmul.f32 %v967, %v1034
  %v1054 = vmul.f32 %v967, %v1038
  %v1055 = vmul.f32 %v971, %v1026
  %v1056 = vmul.f32 %v971, %v1030
  %v1057 = vmul.f32 %v971, %v1034
  %v1058 = vmul.f32 %v971, %v1038
  %v1059 = vmul.f32 %v975, %v1026
  %v1060 = vmul.f32 %v975, %v1030
  %v1061 = vmul.f32 %v975, %v1034
  %v1062 = vmul.f32 %v975, %v1038
  %v1063 = vmul.f32 %v979, %v1026
  %v1064 = vmul.f32 %v979, %v1030
  %v1065 = vmul.f32 %v979, %v1034
  %v1066 = vmul.f32 %v979, %v1038
  %v1067 = vmul.f32 %v983, %v1026
  %v1068 = vmul.f32 %v983, %v1030
  %v1069 = vmul.f32 %v983, %v1034
  %v1070 = vmul.f32 %v983, %v1038
  %v1071 = vmul.f32 %v987, %v1026
  %v1072 = vmul.f32 %v987, %v1030
  %v1073 = vmul.f32 %v987, %v1034
  %v1074 = vmul.f32 %v987, %v1038
  %v1075 = vmul.f32 %v991, %v1026
  %v1076 = vmul.f32 %v991, %v1030
  %v1077 = vmul.f32 %v991, %v1034
  %v1078 = vmul.f32 %v991, %v1038
  %v1079 = vmul.f32 %v995, %v1026
  %v1080 = vmul.f32 %v995, %v1030
  %v1081 = vmul.f32 %v995, %v1034
  %v1082 = vmul.f32 %v995, %v1038
  %v1083 = vmul.f32 %v999, %v1026
  %v1084 = vmul.f32 %v999, %v1030
  %v1085 = vmul.f32 %v999, %v1034
  %v1086 = vmul.f32 %v999, %v1038
  %v1087 = vmul.f32 %v1003, %v1026
  %v1088 = vmul.f32 %v1003, %v1030
  %v1089 = vmul.f32 %v1003, %v1034
  %v1090 = vmul.f32 %v1003, %v1038
  %v1091 = vmul.f32 %v1007, %v1026
  %v1092 = vmul.f32 %v1007, %v1030
  %v1093 = vmul.f32 %v1007, %v1034
  %v1094 = vmul.f32 %v1007, %v1038
  %v1095 = vmul.f32 %v1011, %v1026
  %v1096 = vmul.f32 %v1011, %v1030
  %v1097 = vmul.f32 %v1011, %v1034
  %v1098 = vmul.f32 %v1011, %v1038
  %v1099 = vmul.f32 %v1015, %v1026
  %v1100 = vmul.f32 %v1015, %v1030
  %v1101 = vmul.f32 %v1015, %v1034
  %v1102 = vmul.f32 %v1015, %v1038
  %v1103 = vmul.f32 %v1019, %v1026
  %v1104 = vmul.f32 %v1019, %v1030
  %v1105 = vmul.f32 %v1019, %v1034
  %v1106 = vmul.f32 %v1019, %v1038
  %v1107 = vadd.f32 %v892, %v1043
  %v1108 = vadd.f32 %v893, %v1044
  %v1109 = vadd.f32 %v894, %v1045
  %v1110 = vadd.f32 %v895, %v1046
  %v1111 = vadd.f32 %v896, %v1047
  %v1112 = vadd.f32 %v897, %v1048
  %v1113 = vadd.f32 %v898, %v1049
  %v1114 = vadd.f32 %v899, %v1050
  %v1115 = vadd.f32 %v900, %v1051
  %v1116 = vadd.f32 %v901, %v1052
  %v1117 = vadd.f32 %v902, %v1053
  %v1118 = vadd.f32 %v903, %v1054
  %v1119 = vadd.f32 %v904, %v1055
  %v1120 = vadd.f32 %v905, %v1056
  %v1121 = vadd.f32 %v906, %v1057
  %v1122 = vadd.f32 %v907, %v1058
  %v1123 = vadd.f32 %v908, %v1059
  %v1124 = vadd.f32 %v909, %v1060
  %v1125 = vadd.f32 %v910, %v1061
  %v1126 = vadd.f32 %v911, %v1062
  %v1127 = vadd.f32 %v912, %v1063
  %v1128 = vadd.f32 %v913, %v1064
  %v1129 = vadd.f32 %v914, %v1065
  %v1130 = vadd.f32 %v915, %v1066
  %v1131 = vadd.f32 %v916, %v1067
  %v1132 = vadd.f32 %v917, %v1068
  %v1133 = vadd.f32 %v918, %v1069
  %v1134 = vadd.f32 %v919, %v1070
  %v1135 = vadd.f32 %v920, %v1071
  %v1136 = vadd.f32 %v921, %v1072
  %v1137 = vadd.f32 %v922, %v1073
  %v1138 = vadd.f32 %v923, %v1074
  %v1139 = vadd.f32 %v924, %v1075
  %v1140 = vadd.f32 %v925, %v1076
  %v1141 = vadd.f32 %v926, %v1077
  %v1142 = vadd.f32 %v927, %v1078
  %v1143 = vadd.f32 %v928, %v1079
  %v1144 = vadd.f32 %v929, %v1080
  %v1145 = vadd.f32 %v930, %v1081
  %v1146 = vadd.f32 %v931, %v1082
  %v1147 = vadd.f32 %v932, %v1083
  %v1148 = vadd.f32 %v933, %v1084
  %v1149 = vadd.f32 %v934, %v1085
  %v1150 = vadd.f32 %v935, %v1086
  %v1151 = vadd.f32 %v936, %v1087
  %v1152 = vadd.f32 %v937, %v1088
  %v1153 = vadd.f32 %v938, %v1089
  %v1154 = vadd.f32 %v939, %v1090
  %v1155 = vadd.f32 %v940, %v1091
  %v1156 = vadd.f32 %v941, %v1092
  %v1157 = vadd.f32 %v942, %v1093
  %v1158 = vadd.f32 %v943, %v1094
  %v1159 = vadd.f32 %v944, %v1095
  %v1160 = vadd.f32 %v945, %v1096
  %v1161 = vadd.f32 %v946, %v1097
  %v1162 = vadd.f32 %v947, %v1098
  %v1163 = vadd.f32 %v948, %v1099
  %v1164 = vadd.f32 %v949, %v1100
  %v1165 = vadd.f32 %v950, %v1101
  %v1166 = vadd.f32 %v951, %v1102
  %v1167 = vadd.f32 %v952, %v1103
  %v1168 = vadd.f32 %v953, %v1104
  %v1169 = vadd.f32 %v954, %v1105
  %v1170 = vadd.f32 %v955, %v1106
  %v1171 = vlaneseq
  %v1172 = vshrl.u32 %v1171, 7
  %v1173 = vsub.s32 0, %v1172
  %v1174 = vrot.slane %v226, %v1173
  %1176 = vbcast.lane.b32.xlu0 %v1174, 256
  %v1177 = vpop.permute.xlu0 %1176
  %s1179 = sor.u32 256, 8
  %1180 = vbcast.lane.b32.xlu0 %v1174, %s1179
  %v1181 = vpop.permute.xlu0 %1180
  %s1183 = sor.u32 256, 16
  %1184 = vbcast.lane.b32.xlu0 %v1174, %s1183
  %v1185 = vpop.permute.xlu0 %1184
  %s1187 = sor.u32 256, 24
  %1188 = vbcast.lane.b32.xlu0 %v1174, %s1187
  %v1189 = vpop.permute.xlu0 %1188
  %s1191 = sor.u32 256, 32
  %1192 = vbcast.lane.b32.xlu0 %v1174, %s1191
  %v1193 = vpop.permute.xlu0 %1192
  %s1195 = sor.u32 256, 40
  %1196 = vbcast.lane.b32.xlu0 %v1174, %s1195
  %v1197 = vpop.permute.xlu0 %1196
  %s1199 = sor.u32 256, 48
  %1200 = vbcast.lane.b32.xlu0 %v1174, %s1199
  %v1201 = vpop.permute.xlu0 %1200
  %s1203 = sor.u32 256, 56
  %1204 = vbcast.lane.b32.xlu0 %v1174, %s1203
  %v1205 = vpop.permute.xlu0 %1204
  %v1206 = vlaneseq
  %v1207 = vshrl.u32 %v1206, 7
  %v1208 = vsub.s32 1, %v1207
  %v1209 = vrot.slane %v226, %v1208
  %1211 = vbcast.lane.b32.xlu0 %v1209, 256
  %v1212 = vpop.permute.xlu0 %1211
  %s1214 = sor.u32 256, 8
  %1215 = vbcast.lane.b32.xlu0 %v1209, %s1214
  %v1216 = vpop.permute.xlu0 %1215
  %s1218 = sor.u32 256, 16
  %1219 = vbcast.lane.b32.xlu0 %v1209, %s1218
  %v1220 = vpop.permute.xlu0 %1219
  %s1222 = sor.u32 256, 24
  %1223 = vbcast.lane.b32.xlu0 %v1209, %s1222
  %v1224 = vpop.permute.xlu0 %1223
  %s1226 = sor.u32 256, 32
  %1227 = vbcast.lane.b32.xlu0 %v1209, %s1226
  %v1228 = vpop.permute.xlu0 %1227
  %s1230 = sor.u32 256, 40
  %1231 = vbcast.lane.b32.xlu0 %v1209, %s1230
  %v1232 = vpop.permute.xlu0 %1231
  %s1234 = sor.u32 256, 48
  %1235 = vbcast.lane.b32.xlu0 %v1209, %s1234
  %v1236 = vpop.permute.xlu0 %1235
  %s1238 = sor.u32 256, 56
  %1239 = vbcast.lane.b32.xlu0 %v1209, %s1238
  %v1240 = vpop.permute.xlu0 %1239
  %s1241 = scalar_lea.vmem %s3, 4
  %v1242 = vld [vmem:[%s1241] ss:$8 sm:$0xf]
  %v1244 = vlaneseq
  %v1245 = vshrl.u32 %v1244, 7
  %v1246 = vsub.s32 0, %v1245
  %v1247 = vrot.slane %v1242, %v1246
  %v1248 = vlaneseq
  %v1249 = vshrl.u32 %v1248, 7
  %v1250 = vsub.s32 1, %v1249
  %v1251 = vrot.slane %v1242, %v1250
  %v1252 = vlaneseq
  %v1253 = vshrl.u32 %v1252, 7
  %v1254 = vsub.s32 2, %v1253
  %v1255 = vrot.slane %v1242, %v1254
  %v1256 = vlaneseq
  %v1257 = vshrl.u32 %v1256, 7
  %v1258 = vsub.s32 3, %v1257
  %v1259 = vrot.slane %v1242, %v1258
  %v1264 = vmul.f32 %v1177, %v1247
  %v1265 = vmul.f32 %v1177, %v1251
  %v1266 = vmul.f32 %v1177, %v1255
  %v1267 = vmul.f32 %v1177, %v1259
  %v1268 = vmul.f32 %v1181, %v1247
  %v1269 = vmul.f32 %v1181, %v1251
  %v1270 = vmul.f32 %v1181, %v1255
  %v1271 = vmul.f32 %v1181, %v1259
  %v1272 = vmul.f32 %v1185, %v1247
  %v1273 = vmul.f32 %v1185, %v1251
  %v1274 = vmul.f32 %v1185, %v1255
  %v1275 = vmul.f32 %v1185, %v1259
  %v1276 = vmul.f32 %v1189, %v1247
  %v1277 = vmul.f32 %v1189, %v1251
  %v1278 = vmul.f32 %v1189, %v1255
  %v1279 = vmul.f32 %v1189, %v1259
  %v1280 = vmul.f32 %v1193, %v1247
  %v1281 = vmul.f32 %v1193, %v1251
  %v1282 = vmul.f32 %v1193, %v1255
  %v1283 = vmul.f32 %v1193, %v1259
  %v1284 = vmul.f32 %v1197, %v1247
  %v1285 = vmul.f32 %v1197, %v1251
  %v1286 = vmul.f32 %v1197, %v1255
  %v1287 = vmul.f32 %v1197, %v1259
  %v1288 = vmul.f32 %v1201, %v1247
  %v1289 = vmul.f32 %v1201, %v1251
  %v1290 = vmul.f32 %v1201, %v1255
  %v1291 = vmul.f32 %v1201, %v1259
  %v1292 = vmul.f32 %v1205, %v1247
  %v1293 = vmul.f32 %v1205, %v1251
  %v1294 = vmul.f32 %v1205, %v1255
  %v1295 = vmul.f32 %v1205, %v1259
  %v1296 = vmul.f32 %v1212, %v1247
  %v1297 = vmul.f32 %v1212, %v1251
  %v1298 = vmul.f32 %v1212, %v1255
  %v1299 = vmul.f32 %v1212, %v1259
  %v1300 = vmul.f32 %v1216, %v1247
  %v1301 = vmul.f32 %v1216, %v1251
  %v1302 = vmul.f32 %v1216, %v1255
  %v1303 = vmul.f32 %v1216, %v1259
  %v1304 = vmul.f32 %v1220, %v1247
  %v1305 = vmul.f32 %v1220, %v1251
  %v1306 = vmul.f32 %v1220, %v1255
  %v1307 = vmul.f32 %v1220, %v1259
  %v1308 = vmul.f32 %v1224, %v1247
  %v1309 = vmul.f32 %v1224, %v1251
  %v1310 = vmul.f32 %v1224, %v1255
  %v1311 = vmul.f32 %v1224, %v1259
  %v1312 = vmul.f32 %v1228, %v1247
  %v1313 = vmul.f32 %v1228, %v1251
  %v1314 = vmul.f32 %v1228, %v1255
  %v1315 = vmul.f32 %v1228, %v1259
  %v1316 = vmul.f32 %v1232, %v1247
  %v1317 = vmul.f32 %v1232, %v1251
  %v1318 = vmul.f32 %v1232, %v1255
  %v1319 = vmul.f32 %v1232, %v1259
  %v1320 = vmul.f32 %v1236, %v1247
  %v1321 = vmul.f32 %v1236, %v1251
  %v1322 = vmul.f32 %v1236, %v1255
  %v1323 = vmul.f32 %v1236, %v1259
  %v1324 = vmul.f32 %v1240, %v1247
  %v1325 = vmul.f32 %v1240, %v1251
  %v1326 = vmul.f32 %v1240, %v1255
  %v1327 = vmul.f32 %v1240, %v1259
  %v1328 = vadd.f32 %v1107, %v1264
  %v1329 = vadd.f32 %v1108, %v1265
  %v1330 = vadd.f32 %v1109, %v1266
  %v1331 = vadd.f32 %v1110, %v1267
  %v1332 = vadd.f32 %v1111, %v1268
  %v1333 = vadd.f32 %v1112, %v1269
  %v1334 = vadd.f32 %v1113, %v1270
  %v1335 = vadd.f32 %v1114, %v1271
  %v1336 = vadd.f32 %v1115, %v1272
  %v1337 = vadd.f32 %v1116, %v1273
  %v1338 = vadd.f32 %v1117, %v1274
  %v1339 = vadd.f32 %v1118, %v1275
  %v1340 = vadd.f32 %v1119, %v1276
  %v1341 = vadd.f32 %v1120, %v1277
  %v1342 = vadd.f32 %v1121, %v1278
  %v1343 = vadd.f32 %v1122, %v1279
  %v1344 = vadd.f32 %v1123, %v1280
  %v1345 = vadd.f32 %v1124, %v1281
  %v1346 = vadd.f32 %v1125, %v1282
  %v1347 = vadd.f32 %v1126, %v1283
  %v1348 = vadd.f32 %v1127, %v1284
  %v1349 = vadd.f32 %v1128, %v1285
  %v1350 = vadd.f32 %v1129, %v1286
  %v1351 = vadd.f32 %v1130, %v1287
  %v1352 = vadd.f32 %v1131, %v1288
  %v1353 = vadd.f32 %v1132, %v1289
  %v1354 = vadd.f32 %v1133, %v1290
  %v1355 = vadd.f32 %v1134, %v1291
  %v1356 = vadd.f32 %v1135, %v1292
  %v1357 = vadd.f32 %v1136, %v1293
  %v1358 = vadd.f32 %v1137, %v1294
  %v1359 = vadd.f32 %v1138, %v1295
  %v1360 = vadd.f32 %v1139, %v1296
  %v1361 = vadd.f32 %v1140, %v1297
  %v1362 = vadd.f32 %v1141, %v1298
  %v1363 = vadd.f32 %v1142, %v1299
  %v1364 = vadd.f32 %v1143, %v1300
  %v1365 = vadd.f32 %v1144, %v1301
  %v1366 = vadd.f32 %v1145, %v1302
  %v1367 = vadd.f32 %v1146, %v1303
  %v1368 = vadd.f32 %v1147, %v1304
  %v1369 = vadd.f32 %v1148, %v1305
  %v1370 = vadd.f32 %v1149, %v1306
  %v1371 = vadd.f32 %v1150, %v1307
  %v1372 = vadd.f32 %v1151, %v1308
  %v1373 = vadd.f32 %v1152, %v1309
  %v1374 = vadd.f32 %v1153, %v1310
  %v1375 = vadd.f32 %v1154, %v1311
  %v1376 = vadd.f32 %v1155, %v1312
  %v1377 = vadd.f32 %v1156, %v1313
  %v1378 = vadd.f32 %v1157, %v1314
  %v1379 = vadd.f32 %v1158, %v1315
  %v1380 = vadd.f32 %v1159, %v1316
  %v1381 = vadd.f32 %v1160, %v1317
  %v1382 = vadd.f32 %v1161, %v1318
  %v1383 = vadd.f32 %v1162, %v1319
  %v1384 = vadd.f32 %v1163, %v1320
  %v1385 = vadd.f32 %v1164, %v1321
  %v1386 = vadd.f32 %v1165, %v1322
  %v1387 = vadd.f32 %v1166, %v1323
  %v1388 = vadd.f32 %v1167, %v1324
  %v1389 = vadd.f32 %v1168, %v1325
  %v1390 = vadd.f32 %v1169, %v1326
  %v1391 = vadd.f32 %v1170, %v1327
  %s1393 = sor.u32 256, 64
  %1394 = vbcast.lane.b32.xlu0 %v1174, %s1393
  %v1395 = vpop.permute.xlu0 %1394
  %s1397 = sor.u32 256, 72
  %1398 = vbcast.lane.b32.xlu0 %v1174, %s1397
  %v1399 = vpop.permute.xlu0 %1398
  %s1401 = sor.u32 256, 80
  %1402 = vbcast.lane.b32.xlu0 %v1174, %s1401
  %v1403 = vpop.permute.xlu0 %1402
  %s1405 = sor.u32 256, 88
  %1406 = vbcast.lane.b32.xlu0 %v1174, %s1405
  %v1407 = vpop.permute.xlu0 %1406
  %s1409 = sor.u32 256, 96
  %1410 = vbcast.lane.b32.xlu0 %v1174, %s1409
  %v1411 = vpop.permute.xlu0 %1410
  %s1413 = sor.u32 256, 104
  %1414 = vbcast.lane.b32.xlu0 %v1174, %s1413
  %v1415 = vpop.permute.xlu0 %1414
  %s1417 = sor.u32 256, 112
  %1418 = vbcast.lane.b32.xlu0 %v1174, %s1417
  %v1419 = vpop.permute.xlu0 %1418
  %s1421 = sor.u32 256, 120
  %1422 = vbcast.lane.b32.xlu0 %v1174, %s1421
  %v1423 = vpop.permute.xlu0 %1422
  %s1425 = sor.u32 256, 64
  %1426 = vbcast.lane.b32.xlu0 %v1209, %s1425
  %v1427 = vpop.permute.xlu0 %1426
  %s1429 = sor.u32 256, 72
  %1430 = vbcast.lane.b32.xlu0 %v1209, %s1429
  %v1431 = vpop.permute.xlu0 %1430
  %s1433 = sor.u32 256, 80
  %1434 = vbcast.lane.b32.xlu0 %v1209, %s1433
  %v1435 = vpop.permute.xlu0 %1434
  %s1437 = sor.u32 256, 88
  %1438 = vbcast.lane.b32.xlu0 %v1209, %s1437
  %v1439 = vpop.permute.xlu0 %1438
  %s1441 = sor.u32 256, 96
  %1442 = vbcast.lane.b32.xlu0 %v1209, %s1441
  %v1443 = vpop.permute.xlu0 %1442
  %s1445 = sor.u32 256, 104
  %1446 = vbcast.lane.b32.xlu0 %v1209, %s1445
  %v1447 = vpop.permute.xlu0 %1446
  %s1449 = sor.u32 256, 112
  %1450 = vbcast.lane.b32.xlu0 %v1209, %s1449
  %v1451 = vpop.permute.xlu0 %1450
  %s1453 = sor.u32 256, 120
  %1454 = vbcast.lane.b32.xlu0 %v1209, %s1453
  %v1455 = vpop.permute.xlu0 %1454
  %s1456 = scalar_lea.vmem %s3, 5
  %v1457 = vld [vmem:[%s1456] ss:$8 sm:$0xf]
  %v1459 = vlaneseq
  %v1460 = vshrl.u32 %v1459, 7
  %v1461 = vsub.s32 0, %v1460
  %v1462 = vrot.slane %v1457, %v1461
  %v1463 = vlaneseq
  %v1464 = vshrl.u32 %v1463, 7
  %v1465 = vsub.s32 1, %v1464
  %v1466 = vrot.slane %v1457, %v1465
  %v1467 = vlaneseq
  %v1468 = vshrl.u32 %v1467, 7
  %v1469 = vsub.s32 2, %v1468
  %v1470 = vrot.slane %v1457, %v1469
  %v1471 = vlaneseq
  %v1472 = vshrl.u32 %v1471, 7
  %v1473 = vsub.s32 3, %v1472
  %v1474 = vrot.slane %v1457, %v1473
  %v1479 = vmul.f32 %v1395, %v1462
  %v1480 = vmul.f32 %v1395, %v1466
  %v1481 = vmul.f32 %v1395, %v1470
  %v1482 = vmul.f32 %v1395, %v1474
  %v1483 = vmul.f32 %v1399, %v1462
  %v1484 = vmul.f32 %v1399, %v1466
  %v1485 = vmul.f32 %v1399, %v1470
  %v1486 = vmul.f32 %v1399, %v1474
  %v1487 = vmul.f32 %v1403, %v1462
  %v1488 = vmul.f32 %v1403, %v1466
  %v1489 = vmul.f32 %v1403, %v1470
  %v1490 = vmul.f32 %v1403, %v1474
  %v1491 = vmul.f32 %v1407, %v1462
  %v1492 = vmul.f32 %v1407, %v1466
  %v1493 = vmul.f32 %v1407, %v1470
  %v1494 = vmul.f32 %v1407, %v1474
  %v1495 = vmul.f32 %v1411, %v1462
  %v1496 = vmul.f32 %v1411, %v1466
  %v1497 = vmul.f32 %v1411, %v1470
  %v1498 = vmul.f32 %v1411, %v1474
  %v1499 = vmul.f32 %v1415, %v1462
  %v1500 = vmul.f32 %v1415, %v1466
  %v1501 = vmul.f32 %v1415, %v1470
  %v1502 = vmul.f32 %v1415, %v1474
  %v1503 = vmul.f32 %v1419, %v1462
  %v1504 = vmul.f32 %v1419, %v1466
  %v1505 = vmul.f32 %v1419, %v1470
  %v1506 = vmul.f32 %v1419, %v1474
  %v1507 = vmul.f32 %v1423, %v1462
  %v1508 = vmul.f32 %v1423, %v1466
  %v1509 = vmul.f32 %v1423, %v1470
  %v1510 = vmul.f32 %v1423, %v1474
  %v1511 = vmul.f32 %v1427, %v1462
  %v1512 = vmul.f32 %v1427, %v1466
  %v1513 = vmul.f32 %v1427, %v1470
  %v1514 = vmul.f32 %v1427, %v1474
  %v1515 = vmul.f32 %v1431, %v1462
  %v1516 = vmul.f32 %v1431, %v1466
  %v1517 = vmul.f32 %v1431, %v1470
  %v1518 = vmul.f32 %v1431, %v1474
  %v1519 = vmul.f32 %v1435, %v1462
  %v1520 = vmul.f32 %v1435, %v1466
  %v1521 = vmul.f32 %v1435, %v1470
  %v1522 = vmul.f32 %v1435, %v1474
  %v1523 = vmul.f32 %v1439, %v1462
  %v1524 = vmul.f32 %v1439, %v1466
  %v1525 = vmul.f32 %v1439, %v1470
  %v1526 = vmul.f32 %v1439, %v1474
  %v1527 = vmul.f32 %v1443, %v1462
  %v1528 = vmul.f32 %v1443, %v1466
  %v1529 = vmul.f32 %v1443, %v1470
  %v1530 = vmul.f32 %v1443, %v1474
  %v1531 = vmul.f32 %v1447, %v1462
  %v1532 = vmul.f32 %v1447, %v1466
  %v1533 = vmul.f32 %v1447, %v1470
  %v1534 = vmul.f32 %v1447, %v1474
  %v1535 = vmul.f32 %v1451, %v1462
  %v1536 = vmul.f32 %v1451, %v1466
  %v1537 = vmul.f32 %v1451, %v1470
  %v1538 = vmul.f32 %v1451, %v1474
  %v1539 = vmul.f32 %v1455, %v1462
  %v1540 = vmul.f32 %v1455, %v1466
  %v1541 = vmul.f32 %v1455, %v1470
  %v1542 = vmul.f32 %v1455, %v1474
  %v1543 = vadd.f32 %v1328, %v1479
  %v1544 = vadd.f32 %v1329, %v1480
  %v1545 = vadd.f32 %v1330, %v1481
  %v1546 = vadd.f32 %v1331, %v1482
  %v1547 = vadd.f32 %v1332, %v1483
  %v1548 = vadd.f32 %v1333, %v1484
  %v1549 = vadd.f32 %v1334, %v1485
  %v1550 = vadd.f32 %v1335, %v1486
  %v1551 = vadd.f32 %v1336, %v1487
  %v1552 = vadd.f32 %v1337, %v1488
  %v1553 = vadd.f32 %v1338, %v1489
  %v1554 = vadd.f32 %v1339, %v1490
  %v1555 = vadd.f32 %v1340, %v1491
  %v1556 = vadd.f32 %v1341, %v1492
  %v1557 = vadd.f32 %v1342, %v1493
  %v1558 = vadd.f32 %v1343, %v1494
  %v1559 = vadd.f32 %v1344, %v1495
  %v1560 = vadd.f32 %v1345, %v1496
  %v1561 = vadd.f32 %v1346, %v1497
  %v1562 = vadd.f32 %v1347, %v1498
  %v1563 = vadd.f32 %v1348, %v1499
  %v1564 = vadd.f32 %v1349, %v1500
  %v1565 = vadd.f32 %v1350, %v1501
  %v1566 = vadd.f32 %v1351, %v1502
  %v1567 = vadd.f32 %v1352, %v1503
  %v1568 = vadd.f32 %v1353, %v1504
  %v1569 = vadd.f32 %v1354, %v1505
  %v1570 = vadd.f32 %v1355, %v1506
  %v1571 = vadd.f32 %v1356, %v1507
  %v1572 = vadd.f32 %v1357, %v1508
  %v1573 = vadd.f32 %v1358, %v1509
  %v1574 = vadd.f32 %v1359, %v1510
  %v1575 = vadd.f32 %v1360, %v1511
  %v1576 = vadd.f32 %v1361, %v1512
  %v1577 = vadd.f32 %v1362, %v1513
  %v1578 = vadd.f32 %v1363, %v1514
  %v1579 = vadd.f32 %v1364, %v1515
  %v1580 = vadd.f32 %v1365, %v1516
  %v1581 = vadd.f32 %v1366, %v1517
  %v1582 = vadd.f32 %v1367, %v1518
  %v1583 = vadd.f32 %v1368, %v1519
  %v1584 = vadd.f32 %v1369, %v1520
  %v1585 = vadd.f32 %v1370, %v1521
  %v1586 = vadd.f32 %v1371, %v1522
  %v1587 = vadd.f32 %v1372, %v1523
  %v1588 = vadd.f32 %v1373, %v1524
  %v1589 = vadd.f32 %v1374, %v1525
  %v1590 = vadd.f32 %v1375, %v1526
  %v1591 = vadd.f32 %v1376, %v1527
  %v1592 = vadd.f32 %v1377, %v1528
  %v1593 = vadd.f32 %v1378, %v1529
  %v1594 = vadd.f32 %v1379, %v1530
  %v1595 = vadd.f32 %v1380, %v1531
  %v1596 = vadd.f32 %v1381, %v1532
  %v1597 = vadd.f32 %v1382, %v1533
  %v1598 = vadd.f32 %v1383, %v1534
  %v1599 = vadd.f32 %v1384, %v1535
  %v1600 = vadd.f32 %v1385, %v1536
  %v1601 = vadd.f32 %v1386, %v1537
  %v1602 = vadd.f32 %v1387, %v1538
  %v1603 = vadd.f32 %v1388, %v1539
  %v1604 = vadd.f32 %v1389, %v1540
  %v1605 = vadd.f32 %v1390, %v1541
  %v1606 = vadd.f32 %v1391, %v1542
  %v1607 = vlaneseq
  %v1608 = vshrl.u32 %v1607, 7
  %v1609 = vsub.s32 0, %v1608
  %v1610 = vrot.slane %v228, %v1609
  %1612 = vbcast.lane.b32.xlu0 %v1610, 256
  %v1613 = vpop.permute.xlu0 %1612
  %s1615 = sor.u32 256, 8
  %1616 = vbcast.lane.b32.xlu0 %v1610, %s1615
  %v1617 = vpop.permute.xlu0 %1616
  %s1619 = sor.u32 256, 16
  %1620 = vbcast.lane.b32.xlu0 %v1610, %s1619
  %v1621 = vpop.permute.xlu0 %1620
  %s1623 = sor.u32 256, 24
  %1624 = vbcast.lane.b32.xlu0 %v1610, %s1623
  %v1625 = vpop.permute.xlu0 %1624
  %s1627 = sor.u32 256, 32
  %1628 = vbcast.lane.b32.xlu0 %v1610, %s1627
  %v1629 = vpop.permute.xlu0 %1628
  %s1631 = sor.u32 256, 40
  %1632 = vbcast.lane.b32.xlu0 %v1610, %s1631
  %v1633 = vpop.permute.xlu0 %1632
  %s1635 = sor.u32 256, 48
  %1636 = vbcast.lane.b32.xlu0 %v1610, %s1635
  %v1637 = vpop.permute.xlu0 %1636
  %s1639 = sor.u32 256, 56
  %1640 = vbcast.lane.b32.xlu0 %v1610, %s1639
  %v1641 = vpop.permute.xlu0 %1640
  %v1642 = vlaneseq
  %v1643 = vshrl.u32 %v1642, 7
  %v1644 = vsub.s32 1, %v1643
  %v1645 = vrot.slane %v228, %v1644
  %1647 = vbcast.lane.b32.xlu0 %v1645, 256
  %v1648 = vpop.permute.xlu0 %1647
  %s1650 = sor.u32 256, 8
  %1651 = vbcast.lane.b32.xlu0 %v1645, %s1650
  %v1652 = vpop.permute.xlu0 %1651
  %s1654 = sor.u32 256, 16
  %1655 = vbcast.lane.b32.xlu0 %v1645, %s1654
  %v1656 = vpop.permute.xlu0 %1655
  %s1658 = sor.u32 256, 24
  %1659 = vbcast.lane.b32.xlu0 %v1645, %s1658
  %v1660 = vpop.permute.xlu0 %1659
  %s1662 = sor.u32 256, 32
  %1663 = vbcast.lane.b32.xlu0 %v1645, %s1662
  %v1664 = vpop.permute.xlu0 %1663
  %s1666 = sor.u32 256, 40
  %1667 = vbcast.lane.b32.xlu0 %v1645, %s1666
  %v1668 = vpop.permute.xlu0 %1667
  %s1670 = sor.u32 256, 48
  %1671 = vbcast.lane.b32.xlu0 %v1645, %s1670
  %v1672 = vpop.permute.xlu0 %1671
  %s1674 = sor.u32 256, 56
  %1675 = vbcast.lane.b32.xlu0 %v1645, %s1674
  %v1676 = vpop.permute.xlu0 %1675
  %s1677 = scalar_lea.vmem %s3, 6
  %v1678 = vld [vmem:[%s1677] ss:$8 sm:$0xf]
  %v1680 = vlaneseq
  %v1681 = vshrl.u32 %v1680, 7
  %v1682 = vsub.s32 0, %v1681
  %v1683 = vrot.slane %v1678, %v1682
  %v1684 = vlaneseq
  %v1685 = vshrl.u32 %v1684, 7
  %v1686 = vsub.s32 1, %v1685
  %v1687 = vrot.slane %v1678, %v1686
  %v1688 = vlaneseq
  %v1689 = vshrl.u32 %v1688, 7
  %v1690 = vsub.s32 2, %v1689
  %v1691 = vrot.slane %v1678, %v1690
  %v1692 = vlaneseq
  %v1693 = vshrl.u32 %v1692, 7
  %v1694 = vsub.s32 3, %v1693
  %v1695 = vrot.slane %v1678, %v1694
  %v1700 = vmul.f32 %v1613, %v1683
  %v1701 = vmul.f32 %v1613, %v1687
  %v1702 = vmul.f32 %v1613, %v1691
  %v1703 = vmul.f32 %v1613, %v1695
  %v1704 = vmul.f32 %v1617, %v1683
  %v1705 = vmul.f32 %v1617, %v1687
  %v1706 = vmul.f32 %v1617, %v1691
  %v1707 = vmul.f32 %v1617, %v1695
  %v1708 = vmul.f32 %v1621, %v1683
  %v1709 = vmul.f32 %v1621, %v1687
  %v1710 = vmul.f32 %v1621, %v1691
  %v1711 = vmul.f32 %v1621, %v1695
  %v1712 = vmul.f32 %v1625, %v1683
  %v1713 = vmul.f32 %v1625, %v1687
  %v1714 = vmul.f32 %v1625, %v1691
  %v1715 = vmul.f32 %v1625, %v1695
  %v1716 = vmul.f32 %v1629, %v1683
  %v1717 = vmul.f32 %v1629, %v1687
  %v1718 = vmul.f32 %v1629, %v1691
  %v1719 = vmul.f32 %v1629, %v1695
  %v1720 = vmul.f32 %v1633, %v1683
  %v1721 = vmul.f32 %v1633, %v1687
  %v1722 = vmul.f32 %v1633, %v1691
  %v1723 = vmul.f32 %v1633, %v1695
  %v1724 = vmul.f32 %v1637, %v1683
  %v1725 = vmul.f32 %v1637, %v1687
  %v1726 = vmul.f32 %v1637, %v1691
  %v1727 = vmul.f32 %v1637, %v1695
  %v1728 = vmul.f32 %v1641, %v1683
  %v1729 = vmul.f32 %v1641, %v1687
  %v1730 = vmul.f32 %v1641, %v1691
  %v1731 = vmul.f32 %v1641, %v1695
  %v1732 = vmul.f32 %v1648, %v1683
  %v1733 = vmul.f32 %v1648, %v1687
  %v1734 = vmul.f32 %v1648, %v1691
  %v1735 = vmul.f32 %v1648, %v1695
  %v1736 = vmul.f32 %v1652, %v1683
  %v1737 = vmul.f32 %v1652, %v1687
  %v1738 = vmul.f32 %v1652, %v1691
  %v1739 = vmul.f32 %v1652, %v1695
  %v1740 = vmul.f32 %v1656, %v1683
  %v1741 = vmul.f32 %v1656, %v1687
  %v1742 = vmul.f32 %v1656, %v1691
  %v1743 = vmul.f32 %v1656, %v1695
  %v1744 = vmul.f32 %v1660, %v1683
  %v1745 = vmul.f32 %v1660, %v1687
  %v1746 = vmul.f32 %v1660, %v1691
  %v1747 = vmul.f32 %v1660, %v1695
  %v1748 = vmul.f32 %v1664, %v1683
  %v1749 = vmul.f32 %v1664, %v1687
  %v1750 = vmul.f32 %v1664, %v1691
  %v1751 = vmul.f32 %v1664, %v1695
  %v1752 = vmul.f32 %v1668, %v1683
  %v1753 = vmul.f32 %v1668, %v1687
  %v1754 = vmul.f32 %v1668, %v1691
  %v1755 = vmul.f32 %v1668, %v1695
  %v1756 = vmul.f32 %v1672, %v1683
  %v1757 = vmul.f32 %v1672, %v1687
  %v1758 = vmul.f32 %v1672, %v1691
  %v1759 = vmul.f32 %v1672, %v1695
  %v1760 = vmul.f32 %v1676, %v1683
  %v1761 = vmul.f32 %v1676, %v1687
  %v1762 = vmul.f32 %v1676, %v1691
  %v1763 = vmul.f32 %v1676, %v1695
  %v1764 = vadd.f32 %v1543, %v1700
  %v1765 = vadd.f32 %v1544, %v1701
  %v1766 = vadd.f32 %v1545, %v1702
  %v1767 = vadd.f32 %v1546, %v1703
  %v1768 = vadd.f32 %v1547, %v1704
  %v1769 = vadd.f32 %v1548, %v1705
  %v1770 = vadd.f32 %v1549, %v1706
  %v1771 = vadd.f32 %v1550, %v1707
  %v1772 = vadd.f32 %v1551, %v1708
  %v1773 = vadd.f32 %v1552, %v1709
  %v1774 = vadd.f32 %v1553, %v1710
  %v1775 = vadd.f32 %v1554, %v1711
  %v1776 = vadd.f32 %v1555, %v1712
  %v1777 = vadd.f32 %v1556, %v1713
  %v1778 = vadd.f32 %v1557, %v1714
  %v1779 = vadd.f32 %v1558, %v1715
  %v1780 = vadd.f32 %v1559, %v1716
  %v1781 = vadd.f32 %v1560, %v1717
  %v1782 = vadd.f32 %v1561, %v1718
  %v1783 = vadd.f32 %v1562, %v1719
  %v1784 = vadd.f32 %v1563, %v1720
  %v1785 = vadd.f32 %v1564, %v1721
  %v1786 = vadd.f32 %v1565, %v1722
  %v1787 = vadd.f32 %v1566, %v1723
  %v1788 = vadd.f32 %v1567, %v1724
  %v1789 = vadd.f32 %v1568, %v1725
  %v1790 = vadd.f32 %v1569, %v1726
  %v1791 = vadd.f32 %v1570, %v1727
  %v1792 = vadd.f32 %v1571, %v1728
  %v1793 = vadd.f32 %v1572, %v1729
  %v1794 = vadd.f32 %v1573, %v1730
  %v1795 = vadd.f32 %v1574, %v1731
  %v1796 = vadd.f32 %v1575, %v1732
  %v1797 = vadd.f32 %v1576, %v1733
  %v1798 = vadd.f32 %v1577, %v1734
  %v1799 = vadd.f32 %v1578, %v1735
  %v1800 = vadd.f32 %v1579, %v1736
  %v1801 = vadd.f32 %v1580, %v1737
  %v1802 = vadd.f32 %v1581, %v1738
  %v1803 = vadd.f32 %v1582, %v1739
  %v1804 = vadd.f32 %v1583, %v1740
  %v1805 = vadd.f32 %v1584, %v1741
  %v1806 = vadd.f32 %v1585, %v1742
  %v1807 = vadd.f32 %v1586, %v1743
  %v1808 = vadd.f32 %v1587, %v1744
  %v1809 = vadd.f32 %v1588, %v1745
  %v1810 = vadd.f32 %v1589, %v1746
  %v1811 = vadd.f32 %v1590, %v1747
  %v1812 = vadd.f32 %v1591, %v1748
  %v1813 = vadd.f32 %v1592, %v1749
  %v1814 = vadd.f32 %v1593, %v1750
  %v1815 = vadd.f32 %v1594, %v1751
  %v1816 = vadd.f32 %v1595, %v1752
  %v1817 = vadd.f32 %v1596, %v1753
  %v1818 = vadd.f32 %v1597, %v1754
  %v1819 = vadd.f32 %v1598, %v1755
  %v1820 = vadd.f32 %v1599, %v1756
  %v1821 = vadd.f32 %v1600, %v1757
  %v1822 = vadd.f32 %v1601, %v1758
  %v1823 = vadd.f32 %v1602, %v1759
  %v1824 = vadd.f32 %v1603, %v1760
  %v1825 = vadd.f32 %v1604, %v1761
  %v1826 = vadd.f32 %v1605, %v1762
  %v1827 = vadd.f32 %v1606, %v1763
  %s1829 = sor.u32 256, 64
  %1830 = vbcast.lane.b32.xlu0 %v1610, %s1829
  %v1831 = vpop.permute.xlu0 %1830
  %s1833 = sor.u32 256, 72
  %1834 = vbcast.lane.b32.xlu0 %v1610, %s1833
  %v1835 = vpop.permute.xlu0 %1834
  %s1837 = sor.u32 256, 80
  %1838 = vbcast.lane.b32.xlu0 %v1610, %s1837
  %v1839 = vpop.permute.xlu0 %1838
  %s1841 = sor.u32 256, 88
  %1842 = vbcast.lane.b32.xlu0 %v1610, %s1841
  %v1843 = vpop.permute.xlu0 %1842
  %s1845 = sor.u32 256, 96
  %1846 = vbcast.lane.b32.xlu0 %v1610, %s1845
  %v1847 = vpop.permute.xlu0 %1846
  %s1849 = sor.u32 256, 104
  %1850 = vbcast.lane.b32.xlu0 %v1610, %s1849
  %v1851 = vpop.permute.xlu0 %1850
  %s1853 = sor.u32 256, 112
  %1854 = vbcast.lane.b32.xlu0 %v1610, %s1853
  %v1855 = vpop.permute.xlu0 %1854
  %s1857 = sor.u32 256, 120
  %1858 = vbcast.lane.b32.xlu0 %v1610, %s1857
  %v1859 = vpop.permute.xlu0 %1858
  %s1861 = sor.u32 256, 64
  %1862 = vbcast.lane.b32.xlu0 %v1645, %s1861
  %v1863 = vpop.permute.xlu0 %1862
  %s1865 = sor.u32 256, 72
  %1866 = vbcast.lane.b32.xlu0 %v1645, %s1865
  %v1867 = vpop.permute.xlu0 %1866
  %s1869 = sor.u32 256, 80
  %1870 = vbcast.lane.b32.xlu0 %v1645, %s1869
  %v1871 = vpop.permute.xlu0 %1870
  %s1873 = sor.u32 256, 88
  %1874 = vbcast.lane.b32.xlu0 %v1645, %s1873
  %v1875 = vpop.permute.xlu0 %1874
  %s1877 = sor.u32 256, 96
  %1878 = vbcast.lane.b32.xlu0 %v1645, %s1877
  %v1879 = vpop.permute.xlu0 %1878
  %s1881 = sor.u32 256, 104
  %1882 = vbcast.lane.b32.xlu0 %v1645, %s1881
  %v1883 = vpop.permute.xlu0 %1882
  %s1885 = sor.u32 256, 112
  %1886 = vbcast.lane.b32.xlu0 %v1645, %s1885
  %v1887 = vpop.permute.xlu0 %1886
  %s1889 = sor.u32 256, 120
  %1890 = vbcast.lane.b32.xlu0 %v1645, %s1889
  %v1891 = vpop.permute.xlu0 %1890
  %s1892 = scalar_lea.vmem %s3, 7
  %v1893 = vld [vmem:[%s1892] ss:$8 sm:$0xf]
  %v1895 = vlaneseq
  %v1896 = vshrl.u32 %v1895, 7
  %v1897 = vsub.s32 0, %v1896
  %v1898 = vrot.slane %v1893, %v1897
  %v1899 = vlaneseq
  %v1900 = vshrl.u32 %v1899, 7
  %v1901 = vsub.s32 1, %v1900
  %v1902 = vrot.slane %v1893, %v1901
  %v1903 = vlaneseq
  %v1904 = vshrl.u32 %v1903, 7
  %v1905 = vsub.s32 2, %v1904
  %v1906 = vrot.slane %v1893, %v1905
  %v1907 = vlaneseq
  %v1908 = vshrl.u32 %v1907, 7
  %v1909 = vsub.s32 3, %v1908
  %v1910 = vrot.slane %v1893, %v1909
  %v1915 = vmul.f32 %v1831, %v1898
  %v1916 = vmul.f32 %v1831, %v1902
  %v1917 = vmul.f32 %v1831, %v1906
  %v1918 = vmul.f32 %v1831, %v1910
  %v1919 = vmul.f32 %v1835, %v1898
  %v1920 = vmul.f32 %v1835, %v1902
  %v1921 = vmul.f32 %v1835, %v1906
  %v1922 = vmul.f32 %v1835, %v1910
  %v1923 = vmul.f32 %v1839, %v1898
  %v1924 = vmul.f32 %v1839, %v1902
  %v1925 = vmul.f32 %v1839, %v1906
  %v1926 = vmul.f32 %v1839, %v1910
  %v1927 = vmul.f32 %v1843, %v1898
  %v1928 = vmul.f32 %v1843, %v1902
  %v1929 = vmul.f32 %v1843, %v1906
  %v1930 = vmul.f32 %v1843, %v1910
  %v1931 = vmul.f32 %v1847, %v1898
  %v1932 = vmul.f32 %v1847, %v1902
  %v1933 = vmul.f32 %v1847, %v1906
  %v1934 = vmul.f32 %v1847, %v1910
  %v1935 = vmul.f32 %v1851, %v1898
  %v1936 = vmul.f32 %v1851, %v1902
  %v1937 = vmul.f32 %v1851, %v1906
  %v1938 = vmul.f32 %v1851, %v1910
  %v1939 = vmul.f32 %v1855, %v1898
  %v1940 = vmul.f32 %v1855, %v1902
  %v1941 = vmul.f32 %v1855, %v1906
  %v1942 = vmul.f32 %v1855, %v1910
  %v1943 = vmul.f32 %v1859, %v1898
  %v1944 = vmul.f32 %v1859, %v1902
  %v1945 = vmul.f32 %v1859, %v1906
  %v1946 = vmul.f32 %v1859, %v1910
  %v1947 = vmul.f32 %v1863, %v1898
  %v1948 = vmul.f32 %v1863, %v1902
  %v1949 = vmul.f32 %v1863, %v1906
  %v1950 = vmul.f32 %v1863, %v1910
  %v1951 = vmul.f32 %v1867, %v1898
  %v1952 = vmul.f32 %v1867, %v1902
  %v1953 = vmul.f32 %v1867, %v1906
  %v1954 = vmul.f32 %v1867, %v1910
  %v1955 = vmul.f32 %v1871, %v1898
  %v1956 = vmul.f32 %v1871, %v1902
  %v1957 = vmul.f32 %v1871, %v1906
  %v1958 = vmul.f32 %v1871, %v1910
  %v1959 = vmul.f32 %v1875, %v1898
  %v1960 = vmul.f32 %v1875, %v1902
  %v1961 = vmul.f32 %v1875, %v1906
  %v1962 = vmul.f32 %v1875, %v1910
  %v1963 = vmul.f32 %v1879, %v1898
  %v1964 = vmul.f32 %v1879, %v1902
  %v1965 = vmul.f32 %v1879, %v1906
  %v1966 = vmul.f32 %v1879, %v1910
  %v1967 = vmul.f32 %v1883, %v1898
  %v1968 = vmul.f32 %v1883, %v1902
  %v1969 = vmul.f32 %v1883, %v1906
  %v1970 = vmul.f32 %v1883, %v1910
  %v1971 = vmul.f32 %v1887, %v1898
  %v1972 = vmul.f32 %v1887, %v1902
  %v1973 = vmul.f32 %v1887, %v1906
  %v1974 = vmul.f32 %v1887, %v1910
  %v1975 = vmul.f32 %v1891, %v1898
  %v1976 = vmul.f32 %v1891, %v1902
  %v1977 = vmul.f32 %v1891, %v1906
  %v1978 = vmul.f32 %v1891, %v1910
  %v1979 = vadd.f32 %v1764, %v1915
  %v1980 = vadd.f32 %v1765, %v1916
  %v1981 = vadd.f32 %v1766, %v1917
  %v1982 = vadd.f32 %v1767, %v1918
  %v1983 = vadd.f32 %v1768, %v1919
  %v1984 = vadd.f32 %v1769, %v1920
  %v1985 = vadd.f32 %v1770, %v1921
  %v1986 = vadd.f32 %v1771, %v1922
  %v1987 = vadd.f32 %v1772, %v1923
  %v1988 = vadd.f32 %v1773, %v1924
  %v1989 = vadd.f32 %v1774, %v1925
  %v1990 = vadd.f32 %v1775, %v1926
  %v1991 = vadd.f32 %v1776, %v1927
  %v1992 = vadd.f32 %v1777, %v1928
  %v1993 = vadd.f32 %v1778, %v1929
  %v1994 = vadd.f32 %v1779, %v1930
  %v1995 = vadd.f32 %v1780, %v1931
  %v1996 = vadd.f32 %v1781, %v1932
  %v1997 = vadd.f32 %v1782, %v1933
  %v1998 = vadd.f32 %v1783, %v1934
  %v1999 = vadd.f32 %v1784, %v1935
  %v2000 = vadd.f32 %v1785, %v1936
  %v2001 = vadd.f32 %v1786, %v1937
  %v2002 = vadd.f32 %v1787, %v1938
  %v2003 = vadd.f32 %v1788, %v1939
  %v2004 = vadd.f32 %v1789, %v1940
  %v2005 = vadd.f32 %v1790, %v1941
  %v2006 = vadd.f32 %v1791, %v1942
  %v2007 = vadd.f32 %v1792, %v1943
  %v2008 = vadd.f32 %v1793, %v1944
  %v2009 = vadd.f32 %v1794, %v1945
  %v2010 = vadd.f32 %v1795, %v1946
  %v2011 = vadd.f32 %v1796, %v1947
  %v2012 = vadd.f32 %v1797, %v1948
  %v2013 = vadd.f32 %v1798, %v1949
  %v2014 = vadd.f32 %v1799, %v1950
  %v2015 = vadd.f32 %v1800, %v1951
  %v2016 = vadd.f32 %v1801, %v1952
  %v2017 = vadd.f32 %v1802, %v1953
  %v2018 = vadd.f32 %v1803, %v1954
  %v2019 = vadd.f32 %v1804, %v1955
  %v2020 = vadd.f32 %v1805, %v1956
  %v2021 = vadd.f32 %v1806, %v1957
  %v2022 = vadd.f32 %v1807, %v1958
  %v2023 = vadd.f32 %v1808, %v1959
  %v2024 = vadd.f32 %v1809, %v1960
  %v2025 = vadd.f32 %v1810, %v1961
  %v2026 = vadd.f32 %v1811, %v1962
  %v2027 = vadd.f32 %v1812, %v1963
  %v2028 = vadd.f32 %v1813, %v1964
  %v2029 = vadd.f32 %v1814, %v1965
  %v2030 = vadd.f32 %v1815, %v1966
  %v2031 = vadd.f32 %v1816, %v1967
  %v2032 = vadd.f32 %v1817, %v1968
  %v2033 = vadd.f32 %v1818, %v1969
  %v2034 = vadd.f32 %v1819, %v1970
  %v2035 = vadd.f32 %v1820, %v1971
  %v2036 = vadd.f32 %v1821, %v1972
  %v2037 = vadd.f32 %v1822, %v1973
  %v2038 = vadd.f32 %v1823, %v1974
  %v2039 = vadd.f32 %v1824, %v1975
  %v2040 = vadd.f32 %v1825, %v1976
  %v2041 = vadd.f32 %v1826, %v1977
  %v2042 = vadd.f32 %v1827, %v1978
  %v2043 = vlaneseq
  %v2044 = vshrl.u32 %v2043, 7
  %v2045 = vsub.s32 0, %v2044
  %v2046 = vrot.slane %v297, %v2045
  %2048 = vbcast.lane.b32.xlu0 %v2046, 256
  %v2049 = vpop.permute.xlu0 %2048
  %s2051 = sor.u32 256, 8
  %2052 = vbcast.lane.b32.xlu0 %v2046, %s2051
  %v2053 = vpop.permute.xlu0 %2052
  %s2055 = sor.u32 256, 16
  %2056 = vbcast.lane.b32.xlu0 %v2046, %s2055
  %v2057 = vpop.permute.xlu0 %2056
  %s2059 = sor.u32 256, 24
  %2060 = vbcast.lane.b32.xlu0 %v2046, %s2059
  %v2061 = vpop.permute.xlu0 %2060
  %s2063 = sor.u32 256, 32
  %2064 = vbcast.lane.b32.xlu0 %v2046, %s2063
  %v2065 = vpop.permute.xlu0 %2064
  %s2067 = sor.u32 256, 40
  %2068 = vbcast.lane.b32.xlu0 %v2046, %s2067
  %v2069 = vpop.permute.xlu0 %2068
  %s2071 = sor.u32 256, 48
  %2072 = vbcast.lane.b32.xlu0 %v2046, %s2071
  %v2073 = vpop.permute.xlu0 %2072
  %s2075 = sor.u32 256, 56
  %2076 = vbcast.lane.b32.xlu0 %v2046, %s2075
  %v2077 = vpop.permute.xlu0 %2076
  %v2078 = vlaneseq
  %v2079 = vshrl.u32 %v2078, 7
  %v2080 = vsub.s32 1, %v2079
  %v2081 = vrot.slane %v297, %v2080
  %2083 = vbcast.lane.b32.xlu0 %v2081, 256
  %v2084 = vpop.permute.xlu0 %2083
  %s2086 = sor.u32 256, 8
  %2087 = vbcast.lane.b32.xlu0 %v2081, %s2086
  %v2088 = vpop.permute.xlu0 %2087
  %s2090 = sor.u32 256, 16
  %2091 = vbcast.lane.b32.xlu0 %v2081, %s2090
  %v2092 = vpop.permute.xlu0 %2091
  %s2094 = sor.u32 256, 24
  %2095 = vbcast.lane.b32.xlu0 %v2081, %s2094
  %v2096 = vpop.permute.xlu0 %2095
  %s2098 = sor.u32 256, 32
  %2099 = vbcast.lane.b32.xlu0 %v2081, %s2098
  %v2100 = vpop.permute.xlu0 %2099
  %s2102 = sor.u32 256, 40
  %2103 = vbcast.lane.b32.xlu0 %v2081, %s2102
  %v2104 = vpop.permute.xlu0 %2103
  %s2106 = sor.u32 256, 48
  %2107 = vbcast.lane.b32.xlu0 %v2081, %s2106
  %v2108 = vpop.permute.xlu0 %2107
  %s2110 = sor.u32 256, 56
  %2111 = vbcast.lane.b32.xlu0 %v2081, %s2110
  %v2112 = vpop.permute.xlu0 %2111
  %s2113 = scalar_lea.vmem %s3, 32
  %v2114 = vld [vmem:[%s2113] ss:$8 sm:$0xf]
  %v2116 = vlaneseq
  %v2117 = vshrl.u32 %v2116, 7
  %v2118 = vsub.s32 0, %v2117
  %v2119 = vrot.slane %v2114, %v2118
  %v2120 = vlaneseq
  %v2121 = vshrl.u32 %v2120, 7
  %v2122 = vsub.s32 1, %v2121
  %v2123 = vrot.slane %v2114, %v2122
  %v2124 = vlaneseq
  %v2125 = vshrl.u32 %v2124, 7
  %v2126 = vsub.s32 2, %v2125
  %v2127 = vrot.slane %v2114, %v2126
  %v2128 = vlaneseq
  %v2129 = vshrl.u32 %v2128, 7
  %v2130 = vsub.s32 3, %v2129
  %v2131 = vrot.slane %v2114, %v2130
  %v2136 = vmul.f32 %v2049, %v2119
  %v2137 = vmul.f32 %v2049, %v2123
  %v2138 = vmul.f32 %v2049, %v2127
  %v2139 = vmul.f32 %v2049, %v2131
  %v2140 = vmul.f32 %v2053, %v2119
  %v2141 = vmul.f32 %v2053, %v2123
  %v2142 = vmul.f32 %v2053, %v2127
  %v2143 = vmul.f32 %v2053, %v2131
  %v2144 = vmul.f32 %v2057, %v2119
  %v2145 = vmul.f32 %v2057, %v2123
  %v2146 = vmul.f32 %v2057, %v2127
  %v2147 = vmul.f32 %v2057, %v2131
  %v2148 = vmul.f32 %v2061, %v2119
  %v2149 = vmul.f32 %v2061, %v2123
  %v2150 = vmul.f32 %v2061, %v2127
  %v2151 = vmul.f32 %v2061, %v2131
  %v2152 = vmul.f32 %v2065, %v2119
  %v2153 = vmul.f32 %v2065, %v2123
  %v2154 = vmul.f32 %v2065, %v2127
  %v2155 = vmul.f32 %v2065, %v2131
  %v2156 = vmul.f32 %v2069, %v2119
  %v2157 = vmul.f32 %v2069, %v2123
  %v2158 = vmul.f32 %v2069, %v2127
  %v2159 = vmul.f32 %v2069, %v2131
  %v2160 = vmul.f32 %v2073, %v2119
  %v2161 = vmul.f32 %v2073, %v2123
  %v2162 = vmul.f32 %v2073, %v2127
  %v2163 = vmul.f32 %v2073, %v2131
  %v2164 = vmul.f32 %v2077, %v2119
  %v2165 = vmul.f32 %v2077, %v2123
  %v2166 = vmul.f32 %v2077, %v2127
  %v2167 = vmul.f32 %v2077, %v2131
  %v2168 = vmul.f32 %v2084, %v2119
  %v2169 = vmul.f32 %v2084, %v2123
  %v2170 = vmul.f32 %v2084, %v2127
  %v2171 = vmul.f32 %v2084, %v2131
  %v2172 = vmul.f32 %v2088, %v2119
  %v2173 = vmul.f32 %v2088, %v2123
  %v2174 = vmul.f32 %v2088, %v2127
  %v2175 = vmul.f32 %v2088, %v2131
  %v2176 = vmul.f32 %v2092, %v2119
  %v2177 = vmul.f32 %v2092, %v2123
  %v2178 = vmul.f32 %v2092, %v2127
  %v2179 = vmul.f32 %v2092, %v2131
  %v2180 = vmul.f32 %v2096, %v2119
  %v2181 = vmul.f32 %v2096, %v2123
  %v2182 = vmul.f32 %v2096, %v2127
  %v2183 = vmul.f32 %v2096, %v2131
  %v2184 = vmul.f32 %v2100, %v2119
  %v2185 = vmul.f32 %v2100, %v2123
  %v2186 = vmul.f32 %v2100, %v2127
  %v2187 = vmul.f32 %v2100, %v2131
  %v2188 = vmul.f32 %v2104, %v2119
  %v2189 = vmul.f32 %v2104, %v2123
  %v2190 = vmul.f32 %v2104, %v2127
  %v2191 = vmul.f32 %v2104, %v2131
  %v2192 = vmul.f32 %v2108, %v2119
  %v2193 = vmul.f32 %v2108, %v2123
  %v2194 = vmul.f32 %v2108, %v2127
  %v2195 = vmul.f32 %v2108, %v2131
  %v2196 = vmul.f32 %v2112, %v2119
  %v2197 = vmul.f32 %v2112, %v2123
  %v2198 = vmul.f32 %v2112, %v2127
  %v2199 = vmul.f32 %v2112, %v2131
  %v2200 = vadd.f32 %v1979, %v2136
  %v2201 = vadd.f32 %v1980, %v2137
  %v2202 = vadd.f32 %v1981, %v2138
  %v2203 = vadd.f32 %v1982, %v2139
  %v2204 = vadd.f32 %v1983, %v2140
  %v2205 = vadd.f32 %v1984, %v2141
  %v2206 = vadd.f32 %v1985, %v2142
  %v2207 = vadd.f32 %v1986, %v2143
  %v2208 = vadd.f32 %v1987, %v2144
  %v2209 = vadd.f32 %v1988, %v2145
  %v2210 = vadd.f32 %v1989, %v2146
  %v2211 = vadd.f32 %v1990, %v2147
  %v2212 = vadd.f32 %v1991, %v2148
  %v2213 = vadd.f32 %v1992, %v2149
  %v2214 = vadd.f32 %v1993, %v2150
  %v2215 = vadd.f32 %v1994, %v2151
  %v2216 = vadd.f32 %v1995, %v2152
  %v2217 = vadd.f32 %v1996, %v2153
  %v2218 = vadd.f32 %v1997, %v2154
  %v2219 = vadd.f32 %v1998, %v2155
  %v2220 = vadd.f32 %v1999, %v2156
  %v2221 = vadd.f32 %v2000, %v2157
  %v2222 = vadd.f32 %v2001, %v2158
  %v2223 = vadd.f32 %v2002, %v2159
  %v2224 = vadd.f32 %v2003, %v2160
  %v2225 = vadd.f32 %v2004, %v2161
  %v2226 = vadd.f32 %v2005, %v2162
  %v2227 = vadd.f32 %v2006, %v2163
  %v2228 = vadd.f32 %v2007, %v2164
  %v2229 = vadd.f32 %v2008, %v2165
  %v2230 = vadd.f32 %v2009, %v2166
  %v2231 = vadd.f32 %v2010, %v2167
  %v2232 = vadd.f32 %v2011, %v2168
  %v2233 = vadd.f32 %v2012, %v2169
  %v2234 = vadd.f32 %v2013, %v2170
  %v2235 = vadd.f32 %v2014, %v2171
  %v2236 = vadd.f32 %v2015, %v2172
  %v2237 = vadd.f32 %v2016, %v2173
  %v2238 = vadd.f32 %v2017, %v2174
  %v2239 = vadd.f32 %v2018, %v2175
  %v2240 = vadd.f32 %v2019, %v2176
  %v2241 = vadd.f32 %v2020, %v2177
  %v2242 = vadd.f32 %v2021, %v2178
  %v2243 = vadd.f32 %v2022, %v2179
  %v2244 = vadd.f32 %v2023, %v2180
  %v2245 = vadd.f32 %v2024, %v2181
  %v2246 = vadd.f32 %v2025, %v2182
  %v2247 = vadd.f32 %v2026, %v2183
  %v2248 = vadd.f32 %v2027, %v2184
  %v2249 = vadd.f32 %v2028, %v2185
  %v2250 = vadd.f32 %v2029, %v2186
  %v2251 = vadd.f32 %v2030, %v2187
  %v2252 = vadd.f32 %v2031, %v2188
  %v2253 = vadd.f32 %v2032, %v2189
  %v2254 = vadd.f32 %v2033, %v2190
  %v2255 = vadd.f32 %v2034, %v2191
  %v2256 = vadd.f32 %v2035, %v2192
  %v2257 = vadd.f32 %v2036, %v2193
  %v2258 = vadd.f32 %v2037, %v2194
  %v2259 = vadd.f32 %v2038, %v2195
  %v2260 = vadd.f32 %v2039, %v2196
  %v2261 = vadd.f32 %v2040, %v2197
  %v2262 = vadd.f32 %v2041, %v2198
  %v2263 = vadd.f32 %v2042, %v2199
  %v2264 = vld [vmem:[%s4] sm:$0xf]
  %v2266 = vlaneseq
  %v2267 = vshrl.u32 %v2266, 7
  %v2268 = vsub.s32 0, %v2267
  %v2269 = vrot.slane %v2264, %v2268
  %v2270 = vlaneseq
  %v2271 = vshrl.u32 %v2270, 7
  %v2272 = vsub.s32 1, %v2271
  %v2273 = vrot.slane %v2264, %v2272
  %v2274 = vlaneseq
  %v2275 = vshrl.u32 %v2274, 7
  %v2276 = vsub.s32 2, %v2275
  %v2277 = vrot.slane %v2264, %v2276
  %v2278 = vlaneseq
  %v2279 = vshrl.u32 %v2278, 7
  %v2280 = vsub.s32 3, %v2279
  %v2281 = vrot.slane %v2264, %v2280
  %v2286 = vadd.f32 %v2200, %v2269
  %v2287 = vadd.f32 %v2201, %v2273
  %v2288 = vadd.f32 %v2202, %v2277
  %v2289 = vadd.f32 %v2203, %v2281
  %v2290 = vadd.f32 %v2204, %v2269
  %v2291 = vadd.f32 %v2205, %v2273
  %v2292 = vadd.f32 %v2206, %v2277
  %v2293 = vadd.f32 %v2207, %v2281
  %v2294 = vadd.f32 %v2208, %v2269
  %v2295 = vadd.f32 %v2209, %v2273
  %v2296 = vadd.f32 %v2210, %v2277
  %v2297 = vadd.f32 %v2211, %v2281
  %v2298 = vadd.f32 %v2212, %v2269
  %v2299 = vadd.f32 %v2213, %v2273
  %v2300 = vadd.f32 %v2214, %v2277
  %v2301 = vadd.f32 %v2215, %v2281
  %v2302 = vadd.f32 %v2216, %v2269
  %v2303 = vadd.f32 %v2217, %v2273
  %v2304 = vadd.f32 %v2218, %v2277
  %v2305 = vadd.f32 %v2219, %v2281
  %v2306 = vadd.f32 %v2220, %v2269
  %v2307 = vadd.f32 %v2221, %v2273
  %v2308 = vadd.f32 %v2222, %v2277
  %v2309 = vadd.f32 %v2223, %v2281
  %v2310 = vadd.f32 %v2224, %v2269
  %v2311 = vadd.f32 %v2225, %v2273
  %v2312 = vadd.f32 %v2226, %v2277
  %v2313 = vadd.f32 %v2227, %v2281
  %v2314 = vadd.f32 %v2228, %v2269
  %v2315 = vadd.f32 %v2229, %v2273
  %v2316 = vadd.f32 %v2230, %v2277
  %v2317 = vadd.f32 %v2231, %v2281
  %v2318 = vadd.f32 %v2232, %v2269
  %v2319 = vadd.f32 %v2233, %v2273
  %v2320 = vadd.f32 %v2234, %v2277
  %v2321 = vadd.f32 %v2235, %v2281
  %v2322 = vadd.f32 %v2236, %v2269
  %v2323 = vadd.f32 %v2237, %v2273
  %v2324 = vadd.f32 %v2238, %v2277
  %v2325 = vadd.f32 %v2239, %v2281
  %v2326 = vadd.f32 %v2240, %v2269
  %v2327 = vadd.f32 %v2241, %v2273
  %v2328 = vadd.f32 %v2242, %v2277
  %v2329 = vadd.f32 %v2243, %v2281
  %v2330 = vadd.f32 %v2244, %v2269
  %v2331 = vadd.f32 %v2245, %v2273
  %v2332 = vadd.f32 %v2246, %v2277
  %v2333 = vadd.f32 %v2247, %v2281
  %v2334 = vadd.f32 %v2248, %v2269
  %v2335 = vadd.f32 %v2249, %v2273
  %v2336 = vadd.f32 %v2250, %v2277
  %v2337 = vadd.f32 %v2251, %v2281
  %v2338 = vadd.f32 %v2252, %v2269
  %v2339 = vadd.f32 %v2253, %v2273
  %v2340 = vadd.f32 %v2254, %v2277
  %v2341 = vadd.f32 %v2255, %v2281
  %v2342 = vadd.f32 %v2256, %v2269
  %v2343 = vadd.f32 %v2257, %v2273
  %v2344 = vadd.f32 %v2258, %v2277
  %v2345 = vadd.f32 %v2259, %v2281
  %v2346 = vadd.f32 %v2260, %v2269
  %v2347 = vadd.f32 %v2261, %v2273
  %v2348 = vadd.f32 %v2262, %v2277
  %v2349 = vadd.f32 %v2263, %v2281
  %vm2350 = vcmp.ge.f32.partialorder %v2286, 0.0
  %vm2351 = vcmp.ge.f32.partialorder %v2287, 0.0
  %vm2352 = vcmp.ge.f32.partialorder %v2288, 0.0
  %vm2353 = vcmp.ge.f32.partialorder %v2289, 0.0
  %vm2354 = vcmp.ge.f32.partialorder %v2290, 0.0
  %vm2355 = vcmp.ge.f32.partialorder %v2291, 0.0
  %vm2356 = vcmp.ge.f32.partialorder %v2292, 0.0
  %vm2357 = vcmp.ge.f32.partialorder %v2293, 0.0
  %vm2358 = vcmp.ge.f32.partialorder %v2294, 0.0
  %vm2359 = vcmp.ge.f32.partialorder %v2295, 0.0
  %vm2360 = vcmp.ge.f32.partialorder %v2296, 0.0
  %vm2361 = vcmp.ge.f32.partialorder %v2297, 0.0
  %vm2362 = vcmp.ge.f32.partialorder %v2298, 0.0
  %vm2363 = vcmp.ge.f32.partialorder %v2299, 0.0
  %vm2364 = vcmp.ge.f32.partialorder %v2300, 0.0
  %vm2365 = vcmp.ge.f32.partialorder %v2301, 0.0
  %vm2366 = vcmp.ge.f32.partialorder %v2302, 0.0
  %vm2367 = vcmp.ge.f32.partialorder %v2303, 0.0
  %vm2368 = vcmp.ge.f32.partialorder %v2304, 0.0
  %vm2369 = vcmp.ge.f32.partialorder %v2305, 0.0
  %vm2370 = vcmp.ge.f32.partialorder %v2306, 0.0
  %vm2371 = vcmp.ge.f32.partialorder %v2307, 0.0
  %vm2372 = vcmp.ge.f32.partialorder %v2308, 0.0
  %vm2373 = vcmp.ge.f32.partialorder %v2309, 0.0
  %vm2374 = vcmp.ge.f32.partialorder %v2310, 0.0
  %vm2375 = vcmp.ge.f32.partialorder %v2311, 0.0
  %vm2376 = vcmp.ge.f32.partialorder %v2312, 0.0
  %vm2377 = vcmp.ge.f32.partialorder %v2313, 0.0
  %vm2378 = vcmp.ge.f32.partialorder %v2314, 0.0
  %vm2379 = vcmp.ge.f32.partialorder %v2315, 0.0
  %vm2380 = vcmp.ge.f32.partialorder %v2316, 0.0
  %vm2381 = vcmp.ge.f32.partialorder %v2317, 0.0
  %vm2382 = vcmp.ge.f32.partialorder %v2318, 0.0
  %vm2383 = vcmp.ge.f32.partialorder %v2319, 0.0
  %vm2384 = vcmp.ge.f32.partialorder %v2320, 0.0
  %vm2385 = vcmp.ge.f32.partialorder %v2321, 0.0
  %vm2386 = vcmp.ge.f32.partialorder %v2322, 0.0
  %vm2387 = vcmp.ge.f32.partialorder %v2323, 0.0
  %vm2388 = vcmp.ge.f32.partialorder %v2324, 0.0
  %vm2389 = vcmp.ge.f32.partialorder %v2325, 0.0
  %vm2390 = vcmp.ge.f32.partialorder %v2326, 0.0
  %vm2391 = vcmp.ge.f32.partialorder %v2327, 0.0
  %vm2392 = vcmp.ge.f32.partialorder %v2328, 0.0
  %vm2393 = vcmp.ge.f32.partialorder %v2329, 0.0
  %vm2394 = vcmp.ge.f32.partialorder %v2330, 0.0
  %vm2395 = vcmp.ge.f32.partialorder %v2331, 0.0
  %vm2396 = vcmp.ge.f32.partialorder %v2332, 0.0
  %vm2397 = vcmp.ge.f32.partialorder %v2333, 0.0
  %vm2398 = vcmp.ge.f32.partialorder %v2334, 0.0
  %vm2399 = vcmp.ge.f32.partialorder %v2335, 0.0
  %vm2400 = vcmp.ge.f32.partialorder %v2336, 0.0
  %vm2401 = vcmp.ge.f32.partialorder %v2337, 0.0
  %vm2402 = vcmp.ge.f32.partialorder %v2338, 0.0
  %vm2403 = vcmp.ge.f32.partialorder %v2339, 0.0
  %vm2404 = vcmp.ge.f32.partialorder %v2340, 0.0
  %vm2405 = vcmp.ge.f32.partialorder %v2341, 0.0
  %vm2406 = vcmp.ge.f32.partialorder %v2342, 0.0
  %vm2407 = vcmp.ge.f32.partialorder %v2343, 0.0
  %vm2408 = vcmp.ge.f32.partialorder %v2344, 0.0
  %vm2409 = vcmp.ge.f32.partialorder %v2345, 0.0
  %vm2410 = vcmp.ge.f32.partialorder %v2346, 0.0
  %vm2411 = vcmp.ge.f32.partialorder %v2347, 0.0
  %vm2412 = vcmp.ge.f32.partialorder %v2348, 0.0
  %vm2413 = vcmp.ge.f32.partialorder %v2349, 0.0
  %v2414 = vmul.f32 %v2286, 0.2
  %v2415 = vmul.f32 %v2287, 0.2
  %v2416 = vmul.f32 %v2288, 0.2
  %v2417 = vmul.f32 %v2289, 0.2
  %v2418 = vmul.f32 %v2290, 0.2
  %v2419 = vmul.f32 %v2291, 0.2
  %v2420 = vmul.f32 %v2292, 0.2
  %v2421 = vmul.f32 %v2293, 0.2
  %v2422 = vmul.f32 %v2294, 0.2
  %v2423 = vmul.f32 %v2295, 0.2
  %v2424 = vmul.f32 %v2296, 0.2
  %v2425 = vmul.f32 %v2297, 0.2
  %v2426 = vmul.f32 %v2298, 0.2
  %v2427 = vmul.f32 %v2299, 0.2
  %v2428 = vmul.f32 %v2300, 0.2
  %v2429 = vmul.f32 %v2301, 0.2
  %v2430 = vmul.f32 %v2302, 0.2
  %v2431 = vmul.f32 %v2303, 0.2
  %v2432 = vmul.f32 %v2304, 0.2
  %v2433 = vmul.f32 %v2305, 0.2
  %v2434 = vmul.f32 %v2306, 0.2
  %v2435 = vmul.f32 %v2307, 0.2
  %v2436 = vmul.f32 %v2308, 0.2
  %v2437 = vmul.f32 %v2309, 0.2
  %v2438 = vmul.f32 %v2310, 0.2
  %v2439 = vmul.f32 %v2311, 0.2
  %v2440 = vmul.f32 %v2312, 0.2
  %v2441 = vmul.f32 %v2313, 0.2
  %v2442 = vmul.f32 %v2314, 0.2
  %v2443 = vmul.f32 %v2315, 0.2
  %v2444 = vmul.f32 %v2316, 0.2
  %v2445 = vmul.f32 %v2317, 0.2
  %v2446 = vmul.f32 %v2318, 0.2
  %v2447 = vmul.f32 %v2319, 0.2
  %v2448 = vmul.f32 %v2320, 0.2
  %v2449 = vmul.f32 %v2321, 0.2
  %v2450 = vmul.f32 %v2322, 0.2
  %v2451 = vmul.f32 %v2323, 0.2
  %v2452 = vmul.f32 %v2324, 0.2
  %v2453 = vmul.f32 %v2325, 0.2
  %v2454 = vmul.f32 %v2326, 0.2
  %v2455 = vmul.f32 %v2327, 0.2
  %v2456 = vmul.f32 %v2328, 0.2
  %v2457 = vmul.f32 %v2329, 0.2
  %v2458 = vmul.f32 %v2330, 0.2
  %v2459 = vmul.f32 %v2331, 0.2
  %v2460 = vmul.f32 %v2332, 0.2
  %v2461 = vmul.f32 %v2333, 0.2
  %v2462 = vmul.f32 %v2334, 0.2
  %v2463 = vmul.f32 %v2335, 0.2
  %v2464 = vmul.f32 %v2336, 0.2
  %v2465 = vmul.f32 %v2337, 0.2
  %v2466 = vmul.f32 %v2338, 0.2
  %v2467 = vmul.f32 %v2339, 0.2
  %v2468 = vmul.f32 %v2340, 0.2
  %v2469 = vmul.f32 %v2341, 0.2
  %v2470 = vmul.f32 %v2342, 0.2
  %v2471 = vmul.f32 %v2343, 0.2
  %v2472 = vmul.f32 %v2344, 0.2
  %v2473 = vmul.f32 %v2345, 0.2
  %v2474 = vmul.f32 %v2346, 0.2
  %v2475 = vmul.f32 %v2347, 0.2
  %v2476 = vmul.f32 %v2348, 0.2
  %v2477 = vmul.f32 %v2349, 0.2
  %v2478 = vsel %vm2350, %v2286, %v2414
  %v2479 = vsel %vm2351, %v2287, %v2415
  %v2480 = vsel %vm2352, %v2288, %v2416
  %v2481 = vsel %vm2353, %v2289, %v2417
  %v2482 = vsel %vm2354, %v2290, %v2418
  %v2483 = vsel %vm2355, %v2291, %v2419
  %v2484 = vsel %vm2356, %v2292, %v2420
  %v2485 = vsel %vm2357, %v2293, %v2421
  %v2486 = vsel %vm2358, %v2294, %v2422
  %v2487 = vsel %vm2359, %v2295, %v2423
  %v2488 = vsel %vm2360, %v2296, %v2424
  %v2489 = vsel %vm2361, %v2297, %v2425
  %v2490 = vsel %vm2362, %v2298, %v2426
  %v2491 = vsel %vm2363, %v2299, %v2427
  %v2492 = vsel %vm2364, %v2300, %v2428
  %v2493 = vsel %vm2365, %v2301, %v2429
  %v2494 = vsel %vm2366, %v2302, %v2430
  %v2495 = vsel %vm2367, %v2303, %v2431
  %v2496 = vsel %vm2368, %v2304, %v2432
  %v2497 = vsel %vm2369, %v2305, %v2433
  %v2498 = vsel %vm2370, %v2306, %v2434
  %v2499 = vsel %vm2371, %v2307, %v2435
  %v2500 = vsel %vm2372, %v2308, %v2436
  %v2501 = vsel %vm2373, %v2309, %v2437
  %v2502 = vsel %vm2374, %v2310, %v2438
  %v2503 = vsel %vm2375, %v2311, %v2439
  %v2504 = vsel %vm2376, %v2312, %v2440
  %v2505 = vsel %vm2377, %v2313, %v2441
  %v2506 = vsel %vm2378, %v2314, %v2442
  %v2507 = vsel %vm2379, %v2315, %v2443
  %v2508 = vsel %vm2380, %v2316, %v2444
  %v2509 = vsel %vm2381, %v2317, %v2445
  %v2510 = vsel %vm2382, %v2318, %v2446
  %v2511 = vsel %vm2383, %v2319, %v2447
  %v2512 = vsel %vm2384, %v2320, %v2448
  %v2513 = vsel %vm2385, %v2321, %v2449
  %v2514 = vsel %vm2386, %v2322, %v2450
  %v2515 = vsel %vm2387, %v2323, %v2451
  %v2516 = vsel %vm2388, %v2324, %v2452
  %v2517 = vsel %vm2389, %v2325, %v2453
  %v2518 = vsel %vm2390, %v2326, %v2454
  %v2519 = vsel %vm2391, %v2327, %v2455
  %v2520 = vsel %vm2392, %v2328, %v2456
  %v2521 = vsel %vm2393, %v2329, %v2457
  %v2522 = vsel %vm2394, %v2330, %v2458
  %v2523 = vsel %vm2395, %v2331, %v2459
  %v2524 = vsel %vm2396, %v2332, %v2460
  %v2525 = vsel %vm2397, %v2333, %v2461
  %v2526 = vsel %vm2398, %v2334, %v2462
  %v2527 = vsel %vm2399, %v2335, %v2463
  %v2528 = vsel %vm2400, %v2336, %v2464
  %v2529 = vsel %vm2401, %v2337, %v2465
  %v2530 = vsel %vm2402, %v2338, %v2466
  %v2531 = vsel %vm2403, %v2339, %v2467
  %v2532 = vsel %vm2404, %v2340, %v2468
  %v2533 = vsel %vm2405, %v2341, %v2469
  %v2534 = vsel %vm2406, %v2342, %v2470
  %v2535 = vsel %vm2407, %v2343, %v2471
  %v2536 = vsel %vm2408, %v2344, %v2472
  %v2537 = vsel %vm2409, %v2345, %v2473
  %v2538 = vsel %vm2410, %v2346, %v2474
  %v2539 = vsel %vm2411, %v2347, %v2475
  %v2540 = vsel %vm2412, %v2348, %v2476
  %v2541 = vsel %vm2413, %v2349, %v2477
  %v2542 = vpack.c.bf16 %v2482, %v2478
  %v2543 = vpack.c.bf16 %v2483, %v2479
  %v2544 = vpack.c.bf16 %v2484, %v2480
  %v2545 = vpack.c.bf16 %v2485, %v2481
  %v2546 = vpack.c.bf16 %v2490, %v2486
  %v2547 = vpack.c.bf16 %v2491, %v2487
  %v2548 = vpack.c.bf16 %v2492, %v2488
  %v2549 = vpack.c.bf16 %v2493, %v2489
  %v2550 = vpack.c.bf16 %v2498, %v2494
  %v2551 = vpack.c.bf16 %v2499, %v2495
  %v2552 = vpack.c.bf16 %v2500, %v2496
  %v2553 = vpack.c.bf16 %v2501, %v2497
  %v2554 = vpack.c.bf16 %v2506, %v2502
  %v2555 = vpack.c.bf16 %v2507, %v2503
  %v2556 = vpack.c.bf16 %v2508, %v2504
  %v2557 = vpack.c.bf16 %v2509, %v2505
  %v2558 = vpack.c.bf16 %v2514, %v2510
  %v2559 = vpack.c.bf16 %v2515, %v2511
  %v2560 = vpack.c.bf16 %v2516, %v2512
  %v2561 = vpack.c.bf16 %v2517, %v2513
  %v2562 = vpack.c.bf16 %v2522, %v2518
  %v2563 = vpack.c.bf16 %v2523, %v2519
  %v2564 = vpack.c.bf16 %v2524, %v2520
  %v2565 = vpack.c.bf16 %v2525, %v2521
  %v2566 = vpack.c.bf16 %v2530, %v2526
  %v2567 = vpack.c.bf16 %v2531, %v2527
  %v2568 = vpack.c.bf16 %v2532, %v2528
  %v2569 = vpack.c.bf16 %v2533, %v2529
  %v2570 = vpack.c.bf16 %v2538, %v2534
  %v2571 = vpack.c.bf16 %v2539, %v2535
  %v2572 = vpack.c.bf16 %v2540, %v2536
  %v2573 = vpack.c.bf16 %v2541, %v2537
  %v2574 = vld [vmem:[%s5] sm:$0xf]
  %v2575 = vld [vmem:[%s5 + $0x4] sm:$0xf]
  %v2576 = vld [vmem:[%s5 + $0x8] sm:$0xf]
  %v2577 = vld [vmem:[%s5 + $0xc] sm:$0xf]
  %v2582 = vunpack.c.l.b16 %v2574
  %v2583 = vunpack.c.l.b16 %v2575
  %v2584 = vunpack.c.l.b16 %v2576
  %v2585 = vunpack.c.l.b16 %v2577
  %v2586 = vpack.c.b16 %v2583, %v2582
  %v2587 = vpack.c.b16 %v2585, %v2584
  %2590 = vmatprep.subr.bf16.mxu0 %v2543
  %2591 = vmatpush1.bf16.msra.mxu0 %v2542
  %2592 = vmatprep.subr.bf16.mxu0 %v2547
  %2593 = vmatpush1.bf16.msra.mxu0 %v2546
  %2594 = vmatprep.subr.bf16.mxu0 %v2551
  %2595 = vmatpush1.bf16.msra.mxu0 %v2550
  %2596 = vmatprep.subr.bf16.mxu0 %v2555
  %2597 = vmatpush1.bf16.msra.mxu0 %v2554
  %2598 = vmatprep.subr.bf16.mxu0 %v2559
  %2599 = vmatpush1.bf16.msra.mxu0 %v2558
  %2600 = vmatprep.subr.bf16.mxu0 %v2563
  %2601 = vmatpush1.bf16.msra.mxu0 %v2562
  %2602 = vmatprep.subr.bf16.mxu0 %v2567
  %2603 = vmatpush1.bf16.msra.mxu0 %v2566
  %2604 = vmatprep.subr.bf16.mxu0 %v2571
  %2605 = vmatpush1.bf16.msra.mxu0 %v2570
  %2606 = vmatprep.subr.bf16.mxu0 0
  %2607 = vmatpush1.bf16.msra.mxu0 0
  %2608 = vmatprep.subr.bf16.mxu0 0
  %2609 = vmatpush1.bf16.msra.mxu0 0
  %2610 = vmatprep.subr.bf16.mxu0 0
  %2611 = vmatpush1.bf16.msra.mxu0 0
  %2612 = vmatprep.subr.bf16.mxu0 0
  %2613 = vmatpush1.bf16.msra.mxu0 0
  %2614 = vmatprep.subr.bf16.mxu0 0
  %2615 = vmatpush1.bf16.msra.mxu0 0
  %2616 = vmatprep.subr.bf16.mxu0 0
  %2617 = vmatpush1.bf16.msra.mxu0 0
  %2618 = vmatprep.subr.bf16.mxu0 0
  %2619 = vmatpush1.bf16.msra.mxu0 0
  %2620 = vmatprep.subr.bf16.mxu0 0
  %2621 = vmatpush1.bf16.msra.mxu0 0
  %2622 = vmatprep.mubr.bf16.mxu0 0
  %2623 = vmatmul.mubr.bf16.gmra.mrb[0].mxu0 %v2586
  %v2624 = vpop.f32.mrb[0].mxu0
  %v2625 = vadd.f32 0.0, %v2624
  %v2626 = vpop.f32.mrb[0].mxu0
  %v2627 = vadd.f32 0.0, %v2626
  %v2628 = vpop.f32.mrb[0].mxu0
  %v2629 = vadd.f32 0.0, %v2628
  %v2630 = vpop.f32.mrb[0].mxu0
  %v2631 = vadd.f32 0.0, %v2630
  %2632 = vmatprep.mubr.bf16.mxu0 0
  %2633 = vmatmul.mubr.bf16.gmra.mrb[0].mxu0 %v2587
  %v2634 = vpop.f32.mrb[0].mxu0
  %v2635 = vadd.f32 0.0, %v2634
  %v2636 = vpop.f32.mrb[0].mxu0
  %v2637 = vadd.f32 0.0, %v2636
  %v2638 = vpop.f32.mrb[0].mxu0
  %v2639 = vadd.f32 0.0, %v2638
  %v2640 = vpop.f32.mrb[0].mxu0
  %v2641 = vadd.f32 0.0, %v2640
  %2642 = vdwg.mxu0
  %2643 = vmatprep.subr.bf16.mxu0 %v2545
  %2644 = vmatpush1.bf16.msra.mxu0 %v2544
  %2645 = vmatprep.subr.bf16.mxu0 %v2549
  %2646 = vmatpush1.bf16.msra.mxu0 %v2548
  %2647 = vmatprep.subr.bf16.mxu0 %v2553
  %2648 = vmatpush1.bf16.msra.mxu0 %v2552
  %2649 = vmatprep.subr.bf16.mxu0 %v2557
  %2650 = vmatpush1.bf16.msra.mxu0 %v2556
  %2651 = vmatprep.subr.bf16.mxu0 %v2561
  %2652 = vmatpush1.bf16.msra.mxu0 %v2560
  %2653 = vmatprep.subr.bf16.mxu0 %v2565
  %2654 = vmatpush1.bf16.msra.mxu0 %v2564
  %2655 = vmatprep.subr.bf16.mxu0 %v2569
  %2656 = vmatpush1.bf16.msra.mxu0 %v2568
  %2657 = vmatprep.subr.bf16.mxu0 %v2573
  %2658 = vmatpush1.bf16.msra.mxu0 %v2572
  %2659 = vmatprep.subr.bf16.mxu0 0
  %2660 = vmatpush1.bf16.msra.mxu0 0
  %2661 = vmatprep.subr.bf16.mxu0 0
  %2662 = vmatpush1.bf16.msra.mxu0 0
  %2663 = vmatprep.subr.bf16.mxu0 0
  %2664 = vmatpush1.bf16.msra.mxu0 0
  %2665 = vmatprep.subr.bf16.mxu0 0
  %2666 = vmatpush1.bf16.msra.mxu0 0
  %2667 = vmatprep.subr.bf16.mxu0 0
  %2668 = vmatpush1.bf16.msra.mxu0 0
  %2669 = vmatprep.subr.bf16.mxu0 0
  %2670 = vmatpush1.bf16.msra.mxu0 0
  %2671 = vmatprep.subr.bf16.mxu0 0
  %2672 = vmatpush1.bf16.msra.mxu0 0
  %2673 = vmatprep.subr.bf16.mxu0 0
  %2674 = vmatpush1.bf16.msra.mxu0 0
  %2675 = vmatprep.mubr.bf16.mxu0 0
  %2676 = vmatmul.mubr.bf16.gmra.mrb[0].mxu0 %v2586
  %v2677 = vpop.f32.mrb[0].mxu0
  %v2678 = vadd.f32 0.0, %v2677
  %v2679 = vpop.f32.mrb[0].mxu0
  %v2680 = vadd.f32 0.0, %v2679
  %v2681 = vpop.f32.mrb[0].mxu0
  %v2682 = vadd.f32 0.0, %v2681
  %v2683 = vpop.f32.mrb[0].mxu0
  %v2684 = vadd.f32 0.0, %v2683
  %2685 = vmatprep.mubr.bf16.mxu0 0
  %2686 = vmatmul.mubr.bf16.gmra.mrb[0].mxu0 %v2587
  %v2687 = vpop.f32.mrb[0].mxu0
  %v2688 = vadd.f32 0.0, %v2687
  %v2689 = vpop.f32.mrb[0].mxu0
  %v2690 = vadd.f32 0.0, %v2689
  %v2691 = vpop.f32.mrb[0].mxu0
  %v2692 = vadd.f32 0.0, %v2691
  %v2693 = vpop.f32.mrb[0].mxu0
  %v2694 = vadd.f32 0.0, %v2693
  %2695 = vdwg.mxu0
  %v2696 = vpack.c.bf16 %v2629, %v2625
  %v2697 = vpack.c.bf16 %v2631, %v2627
  %v2698 = vpack.c.bf16 %v2682, %v2678
  %v2699 = vpack.c.bf16 %v2684, %v2680
  %v2700 = vpack.c.bf16 %v2639, %v2635
  %v2701 = vpack.c.bf16 %v2641, %v2637
  %v2702 = vpack.c.bf16 %v2692, %v2688
  %v2703 = vpack.c.bf16 %v2694, %v2690
  %v2704 = vld [vmem:[%s6] sm:$0xff]
  %v2705 = vld [vmem:[%s6 + $0x8] sm:$0xff]
  %v2706 = vld [vmem:[%s6 + $0x10] sm:$0xff]
  %v2707 = vld [vmem:[%s6 + $0x18] sm:$0xff]
  %v2708 = vld [vmem:[%s6 + $0x20] sm:$0xff]
  %v2709 = vld [vmem:[%s6 + $0x28] sm:$0xff]
  %v2710 = vld [vmem:[%s6 + $0x30] sm:$0xff]
  %v2711 = vld [vmem:[%s6 + $0x38] sm:$0xff]
  %v2712 = vld [vmem:[%s6 + $0x40] sm:$0xff]
  %v2713 = vld [vmem:[%s6 + $0x48] sm:$0xff]
  %v2714 = vld [vmem:[%s6 + $0x50] sm:$0xff]
  %v2715 = vld [vmem:[%s6 + $0x58] sm:$0xff]
  %v2716 = vld [vmem:[%s6 + $0x60] sm:$0xff]
  %v2717 = vld [vmem:[%s6 + $0x68] sm:$0xff]
  %v2718 = vld [vmem:[%s6 + $0x70] sm:$0xff]
  %v2719 = vld [vmem:[%s6 + $0x78] sm:$0xff]
  %v2720 = vld [vmem:[%s6 + $0x80] sm:$0xff]
  %v2721 = vld [vmem:[%s6 + $0x88] sm:$0xff]
  %v2722 = vld [vmem:[%s6 + $0x90] sm:$0xff]
  %v2723 = vld [vmem:[%s6 + $0x98] sm:$0xff]
  %v2724 = vld [vmem:[%s6 + $0xa0] sm:$0xff]
  %v2725 = vld [vmem:[%s6 + $0xa8] sm:$0xff]
  %v2726 = vld [vmem:[%s6 + $0xb0] sm:$0xff]
  %v2727 = vld [vmem:[%s6 + $0xb8] sm:$0xff]
  %v2728 = vld [vmem:[%s6 + $0xc0] sm:$0xff]
  %v2729 = vld [vmem:[%s6 + $0xc8] sm:$0xff]
  %v2730 = vld [vmem:[%s6 + $0xd0] sm:$0xff]
  %v2731 = vld [vmem:[%s6 + $0xd8] sm:$0xff]
  %v2732 = vld [vmem:[%s6 + $0xe0] sm:$0xff]
  %v2733 = vld [vmem:[%s6 + $0xe8] sm:$0xff]
  %v2734 = vld [vmem:[%s6 + $0xf0] sm:$0xff]
  %v2735 = vld [vmem:[%s6 + $0xf8] sm:$0xff]
  %v2736 = vld [vmem:[%s6 + $0x100] sm:$0xff]
  %v2737 = vld [vmem:[%s6 + $0x108] sm:$0xff]
  %v2738 = vld [vmem:[%s6 + $0x110] sm:$0xff]
  %v2739 = vld [vmem:[%s6 + $0x118] sm:$0xff]
  %v2740 = vld [vmem:[%s6 + $0x120] sm:$0xff]
  %v2741 = vld [vmem:[%s6 + $0x128] sm:$0xff]
  %v2742 = vld [vmem:[%s6 + $0x130] sm:$0xff]
  %v2743 = vld [vmem:[%s6 + $0x138] sm:$0xff]
  %v2744 = vld [vmem:[%s6 + $0x140] sm:$0xff]
  %v2745 = vld [vmem:[%s6 + $0x148] sm:$0xff]
  %v2746 = vld [vmem:[%s6 + $0x150] sm:$0xff]
  %v2747 = vld [vmem:[%s6 + $0x158] sm:$0xff]
  %v2748 = vld [vmem:[%s6 + $0x160] sm:$0xff]
  %v2749 = vld [vmem:[%s6 + $0x168] sm:$0xff]
  %v2750 = vld [vmem:[%s6 + $0x170] sm:$0xff]
  %v2751 = vld [vmem:[%s6 + $0x178] sm:$0xff]
  %v2752 = vld [vmem:[%s6 + $0x180] sm:$0xff]
  %v2753 = vld [vmem:[%s6 + $0x188] sm:$0xff]
  %v2754 = vld [vmem:[%s6 + $0x190] sm:$0xff]
  %v2755 = vld [vmem:[%s6 + $0x198] sm:$0xff]
  %v2756 = vld [vmem:[%s6 + $0x1a0] sm:$0xff]
  %v2757 = vld [vmem:[%s6 + $0x1a8] sm:$0xff]
  %v2758 = vld [vmem:[%s6 + $0x1b0] sm:$0xff]
  %v2759 = vld [vmem:[%s6 + $0x1b8] sm:$0xff]
  %v2760 = vld [vmem:[%s6 + $0x1c0] sm:$0xff]
  %v2761 = vld [vmem:[%s6 + $0x1c8] sm:$0xff]
  %v2762 = vld [vmem:[%s6 + $0x1d0] sm:$0xff]
  %v2763 = vld [vmem:[%s6 + $0x1d8] sm:$0xff]
  %v2764 = vld [vmem:[%s6 + $0x1e0] sm:$0xff]
  %v2765 = vld [vmem:[%s6 + $0x1e8] sm:$0xff]
  %v2766 = vld [vmem:[%s6 + $0x1f0] sm:$0xff]
  %v2767 = vld [vmem:[%s6 + $0x1f8] sm:$0xff]
  %v2768 = vld [vmem:[%s6 + $0x200] sm:$0xff]
  %v2769 = vld [vmem:[%s6 + $0x208] sm:$0xff]
  %v2770 = vld [vmem:[%s6 + $0x210] sm:$0xff]
  %v2771 = vld [vmem:[%s6 + $0x218] sm:$0xff]
  %v2772 = vld [vmem:[%s6 + $0x220] sm:$0xff]
  %v2773 = vld [vmem:[%s6 + $0x228] sm:$0xff]
  %v2774 = vld [vmem:[%s6 + $0x230] sm:$0xff]
  %v2775 = vld [vmem:[%s6 + $0x238] sm:$0xff]
  %v2776 = vld [vmem:[%s6 + $0x240] sm:$0xff]
  %v2777 = vld [vmem:[%s6 + $0x248] sm:$0xff]
  %v2778 = vld [vmem:[%s6 + $0x250] sm:$0xff]
  %v2779 = vld [vmem:[%s6 + $0x258] sm:$0xff]
  %v2780 = vld [vmem:[%s6 + $0x260] sm:$0xff]
  %v2781 = vld [vmem:[%s6 + $0x268] sm:$0xff]
  %v2782 = vld [vmem:[%s6 + $0x270] sm:$0xff]
  %v2783 = vld [vmem:[%s6 + $0x278] sm:$0xff]
  %v2784 = vld [vmem:[%s6 + $0x280] sm:$0xff]
  %v2785 = vld [vmem:[%s6 + $0x288] sm:$0xff]
  %v2786 = vld [vmem:[%s6 + $0x290] sm:$0xff]
  %v2787 = vld [vmem:[%s6 + $0x298] sm:$0xff]
  %v2788 = vld [vmem:[%s6 + $0x2a0] sm:$0xff]
  %v2789 = vld [vmem:[%s6 + $0x2a8] sm:$0xff]
  %v2790 = vld [vmem:[%s6 + $0x2b0] sm:$0xff]
  %v2791 = vld [vmem:[%s6 + $0x2b8] sm:$0xff]
  %v2792 = vld [vmem:[%s6 + $0x2c0] sm:$0xff]
  %v2793 = vld [vmem:[%s6 + $0x2c8] sm:$0xff]
  %v2794 = vld [vmem:[%s6 + $0x2d0] sm:$0xff]
  %v2795 = vld [vmem:[%s6 + $0x2d8] sm:$0xff]
  %v2796 = vld [vmem:[%s6 + $0x2e0] sm:$0xff]
  %v2797 = vld [vmem:[%s6 + $0x2e8] sm:$0xff]
  %v2798 = vld [vmem:[%s6 + $0x2f0] sm:$0xff]
  %v2799 = vld [vmem:[%s6 + $0x2f8] sm:$0xff]
  %v2800 = vld [vmem:[%s6 + $0x300] sm:$0xff]
  %v2801 = vld [vmem:[%s6 + $0x308] sm:$0xff]
  %v2802 = vld [vmem:[%s6 + $0x310] sm:$0xff]
  %v2803 = vld [vmem:[%s6 + $0x318] sm:$0xff]
  %v2804 = vld [vmem:[%s6 + $0x320] sm:$0xff]
  %v2805 = vld [vmem:[%s6 + $0x328] sm:$0xff]
  %v2806 = vld [vmem:[%s6 + $0x330] sm:$0xff]
  %v2807 = vld [vmem:[%s6 + $0x338] sm:$0xff]
  %v2808 = vld [vmem:[%s6 + $0x340] sm:$0xff]
  %v2809 = vld [vmem:[%s6 + $0x348] sm:$0xff]
  %v2810 = vld [vmem:[%s6 + $0x350] sm:$0xff]
  %v2811 = vld [vmem:[%s6 + $0x358] sm:$0xff]
  %v2812 = vld [vmem:[%s6 + $0x360] sm:$0xff]
  %v2813 = vld [vmem:[%s6 + $0x368] sm:$0xff]
  %v2814 = vld [vmem:[%s6 + $0x370] sm:$0xff]
  %v2815 = vld [vmem:[%s6 + $0x378] sm:$0xff]
  %v2816 = vld [vmem:[%s6 + $0x380] sm:$0xff]
  %v2817 = vld [vmem:[%s6 + $0x388] sm:$0xff]
  %v2818 = vld [vmem:[%s6 + $0x390] sm:$0xff]
  %v2819 = vld [vmem:[%s6 + $0x398] sm:$0xff]
  %v2820 = vld [vmem:[%s6 + $0x3a0] sm:$0xff]
  %v2821 = vld [vmem:[%s6 + $0x3a8] sm:$0xff]
  %v2822 = vld [vmem:[%s6 + $0x3b0] sm:$0xff]
  %v2823 = vld [vmem:[%s6 + $0x3b8] sm:$0xff]
  %v2824 = vld [vmem:[%s6 + $0x3c0] sm:$0xff]
  %v2825 = vld [vmem:[%s6 + $0x3c8] sm:$0xff]
  %v2826 = vld [vmem:[%s6 + $0x3d0] sm:$0xff]
  %v2827 = vld [vmem:[%s6 + $0x3d8] sm:$0xff]
  %v2828 = vld [vmem:[%s6 + $0x3e0] sm:$0xff]
  %v2829 = vld [vmem:[%s6 + $0x3e8] sm:$0xff]
  %v2830 = vld [vmem:[%s6 + $0x3f0] sm:$0xff]
  %v2831 = vld [vmem:[%s6 + $0x3f8] sm:$0xff]
  %s2832 = scalar_lea.vmem %s5, 16
  %v2833 = vld [vmem:[%s2832] sm:$0xf]
  %v2834 = vld [vmem:[%s2832 + $0x4] sm:$0xf]
  %v2835 = vld [vmem:[%s2832 + $0x8] sm:$0xf]
  %v2836 = vld [vmem:[%s2832 + $0xc] sm:$0xf]
  %v2841 = vunpack.c.l.b16 %v2833
  %v2842 = vunpack.c.l.b16 %v2834
  %v2843 = vunpack.c.l.b16 %v2835
  %v2844 = vunpack.c.l.b16 %v2836
  %v2845 = vpack.c.b16 %v2842, %v2841
  %v2846 = vpack.c.b16 %v2844, %v2843
  %2849 = vmatprep.subr.bf16.mxu0 %v2543
  %2850 = vmatpush1.bf16.msra.mxu0 %v2542
  %2851 = vmatprep.subr.bf16.mxu0 %v2547
  %2852 = vmatpush1.bf16.msra.mxu0 %v2546
  %2853 = vmatprep.subr.bf16.mxu0 %v2551
  %2854 = vmatpush1.bf16.msra.mxu0 %v2550
  %2855 = vmatprep.subr.bf16.mxu0 %v2555
  %2856 = vmatpush1.bf16.msra.mxu0 %v2554
  %2857 = vmatprep.subr.bf16.mxu0 %v2559
  %2858 = vmatpush1.bf16.msra.mxu0 %v2558
  %2859 = vmatprep.subr.bf16.mxu0 %v2563
  %2860 = vmatpush1.bf16.msra.mxu0 %v2562
  %2861 = vmatprep.subr.bf16.mxu0 %v2567
  %2862 = vmatpush1.bf16.msra.mxu0 %v2566
  %2863 = vmatprep.subr.bf16.mxu0 %v2571
  %2864 = vmatpush1.bf16.msra.mxu0 %v2570
  %2865 = vmatprep.subr.bf16.mxu0 0
  %2866 = vmatpush1.bf16.msra.mxu0 0
  %2867 = vmatprep.subr.bf16.mxu0 0
  %2868 = vmatpush1.bf16.msra.mxu0 0
  %2869 = vmatprep.subr.bf16.mxu0 0
  %2870 = vmatpush1.bf16.msra.mxu0 0
  %2871 = vmatprep.subr.bf16.mxu0 0
  %2872 = vmatpush1.bf16.msra.mxu0 0
  %2873 = vmatprep.subr.bf16.mxu0 0
  %2874 = vmatpush1.bf16.msra.mxu0 0
  %2875 = vmatprep.subr.bf16.mxu0 0
  %2876 = vmatpush1.bf16.msra.mxu0 0
  %2877 = vmatprep.subr.bf16.mxu0 0
  %2878 = vmatpush1.bf16.msra.mxu0 0
  %2879 = vmatprep.subr.bf16.mxu0 0
  %2880 = vmatpush1.bf16.msra.mxu0 0
  %2881 = vmatprep.mubr.bf16.mxu0 0
  %2882 = vmatmul.mubr.bf16.gmra.mrb[0].mxu0 %v2845
  %v2883 = vpop.f32.mrb[0].mxu0
  %v2884 = vadd.f32 0.0, %v2883
  %v2885 = vpop.f32.mrb[0].mxu0
  %v2886 = vadd.f32 0.0, %v2885
  %v2887 = vpop.f32.mrb[0].mxu0
  %v2888 = vadd.f32 0.0, %v2887
  %v2889 = vpop.f32.mrb[0].mxu0
  %v2890 = vadd.f32 0.0, %v2889
  %2891 = vmatprep.mubr.bf16.mxu0 0
  %2892 = vmatmul.mubr.bf16.gmra.mrb[0].mxu0 %v2846
  %v2893 = vpop.f32.mrb[0].mxu0
  %v2894 = vadd.f32 0.0, %v2893
  %v2895 = vpop.f32.mrb[0].mxu0
  %v2896 = vadd.f32 0.0, %v2895
  %v2897 = vpop.f32.mrb[0].mxu0
  %v2898 = vadd.f32 0.0, %v2897
  %v2899 = vpop.f32.mrb[0].mxu0
  %v2900 = vadd.f32 0.0, %v2899
  %2901 = vdwg.mxu0
  %2902 = vmatprep.subr.bf16.mxu0 %v2545
  %2903 = vmatpush1.bf16.msra.mxu0 %v2544
  %2904 = vmatprep.subr.bf16.mxu0 %v2549
  %2905 = vmatpush1.bf16.msra.mxu0 %v2548
  %2906 = vmatprep.subr.bf16.mxu0 %v2553
  %2907 = vmatpush1.bf16.msra.mxu0 %v2552
  %2908 = vmatprep.subr.bf16.mxu0 %v2557
  %2909 = vmatpush1.bf16.msra.mxu0 %v2556
  %2910 = vmatprep.subr.bf16.mxu0 %v2561
  %2911 = vmatpush1.bf16.msra.mxu0 %v2560
  %2912 = vmatprep.subr.bf16.mxu0 %v2565
  %2913 = vmatpush1.bf16.msra.mxu0 %v2564
  %2914 = vmatprep.subr.bf16.mxu0 %v2569
  %2915 = vmatpush1.bf16.msra.mxu0 %v2568
  %2916 = vmatprep.subr.bf16.mxu0 %v2573
  %2917 = vmatpush1.bf16.msra.mxu0 %v2572
  %2918 = vmatprep.subr.bf16.mxu0 0
  %2919 = vmatpush1.bf16.msra.mxu0 0
  %2920 = vmatprep.subr.bf16.mxu0 0
  %2921 = vmatpush1.bf16.msra.mxu0 0
  %2922 = vmatprep.subr.bf16.mxu0 0
  %2923 = vmatpush1.bf16.msra.mxu0 0
  %2924 = vmatprep.subr.bf16.mxu0 0
  %2925 = vmatpush1.bf16.msra.mxu0 0
  %2926 = vmatprep.subr.bf16.mxu0 0
  %2927 = vmatpush1.bf16.msra.mxu0 0
  %2928 = vmatprep.subr.bf16.mxu0 0
  %2929 = vmatpush1.bf16.msra.mxu0 0
  %2930 = vmatprep.subr.bf16.mxu0 0
  %2931 = vmatpush1.bf16.msra.mxu0 0
  %2932 = vmatprep.subr.bf16.mxu0 0
  %2933 = vmatpush1.bf16.msra.mxu0 0
  %2934 = vmatprep.mubr.bf16.mxu0 0
  %2935 = vmatmul.mubr.bf16.gmra.mrb[0].mxu0 %v2845
  %v2936 = vpop.f32.mrb[0].mxu0
  %v2937 = vadd.f32 0.0, %v2936
  %v2938 = vpop.f32.mrb[0].mxu0
  %v2939 = vadd.f32 0.0, %v2938
  %v2940 = vpop.f32.mrb[0].mxu0
  %v2941 = vadd.f32 0.0, %v2940
  %v2942 = vpop.f32.mrb[0].mxu0
  %v2943 = vadd.f32 0.0, %v2942
  %2944 = vmatprep.mubr.bf16.mxu0 0
  %2945 = vmatmul.mubr.bf16.gmra.mrb[0].mxu0 %v2846
  %v2946 = vpop.f32.mrb[0].mxu0
  %v2947 = vadd.f32 0.0, %v2946
  %v2948 = vpop.f32.mrb[0].mxu0
  %v2949 = vadd.f32 0.0, %v2948
  %v2950 = vpop.f32.mrb[0].mxu0
  %v2951 = vadd.f32 0.0, %v2950
  %v2952 = vpop.f32.mrb[0].mxu0
  %v2953 = vadd.f32 0.0, %v2952
  %2954 = vdwg.mxu0
  %v2955 = vpack.c.bf16 %v2888, %v2884
  %v2956 = vpack.c.bf16 %v2890, %v2886
  %v2957 = vpack.c.bf16 %v2941, %v2937
  %v2958 = vpack.c.bf16 %v2943, %v2939
  %v2959 = vpack.c.bf16 %v2898, %v2894
  %v2960 = vpack.c.bf16 %v2900, %v2896
  %v2961 = vpack.c.bf16 %v2951, %v2947
  %v2962 = vpack.c.bf16 %v2953, %v2949
  %s2963 = scalar_lea.vmem %s6, 1024
  %v2964 = vld [vmem:[%s2963] sm:$0xff]
  %v2965 = vld [vmem:[%s2963 + $0x8] sm:$0xff]
  %v2966 = vld [vmem:[%s2963 + $0x10] sm:$0xff]
  %v2967 = vld [vmem:[%s2963 + $0x18] sm:$0xff]
  %v2968 = vld [vmem:[%s2963 + $0x20] sm:$0xff]
  %v2969 = vld [vmem:[%s2963 + $0x28] sm:$0xff]
  %v2970 = vld [vmem:[%s2963 + $0x30] sm:$0xff]
  %v2971 = vld [vmem:[%s2963 + $0x38] sm:$0xff]
  %v2972 = vld [vmem:[%s2963 + $0x40] sm:$0xff]
  %v2973 = vld [vmem:[%s2963 + $0x48] sm:$0xff]
  %v2974 = vld [vmem:[%s2963 + $0x50] sm:$0xff]
  %v2975 = vld [vmem:[%s2963 + $0x58] sm:$0xff]
  %v2976 = vld [vmem:[%s2963 + $0x60] sm:$0xff]
  %v2977 = vld [vmem:[%s2963 + $0x68] sm:$0xff]
  %v2978 = vld [vmem:[%s2963 + $0x70] sm:$0xff]
  %v2979 = vld [vmem:[%s2963 + $0x78] sm:$0xff]
  %v2980 = vld [vmem:[%s2963 + $0x80] sm:$0xff]
  %v2981 = vld [vmem:[%s2963 + $0x88] sm:$0xff]
  %v2982 = vld [vmem:[%s2963 + $0x90] sm:$0xff]
  %v2983 = vld [vmem:[%s2963 + $0x98] sm:$0xff]
  %v2984 = vld [vmem:[%s2963 + $0xa0] sm:$0xff]
  %v2985 = vld [vmem:[%s2963 + $0xa8] sm:$0xff]
  %v2986 = vld [vmem:[%s2963 + $0xb0] sm:$0xff]
  %v2987 = vld [vmem:[%s2963 + $0xb8] sm:$0xff]
  %v2988 = vld [vmem:[%s2963 + $0xc0] sm:$0xff]
  %v2989 = vld [vmem:[%s2963 + $0xc8] sm:$0xff]
  %v2990 = vld [vmem:[%s2963 + $0xd0] sm:$0xff]
  %v2991 = vld [vmem:[%s2963 + $0xd8] sm:$0xff]
  %v2992 = vld [vmem:[%s2963 + $0xe0] sm:$0xff]
  %v2993 = vld [vmem:[%s2963 + $0xe8] sm:$0xff]
  %v2994 = vld [vmem:[%s2963 + $0xf0] sm:$0xff]
  %v2995 = vld [vmem:[%s2963 + $0xf8] sm:$0xff]
  %v2996 = vld [vmem:[%s2963 + $0x100] sm:$0xff]
  %v2997 = vld [vmem:[%s2963 + $0x108] sm:$0xff]
  %v2998 = vld [vmem:[%s2963 + $0x110] sm:$0xff]
  %v2999 = vld [vmem:[%s2963 + $0x118] sm:$0xff]
  %v3000 = vld [vmem:[%s2963 + $0x120] sm:$0xff]
  %v3001 = vld [vmem:[%s2963 + $0x128] sm:$0xff]
  %v3002 = vld [vmem:[%s2963 + $0x130] sm:$0xff]
  %v3003 = vld [vmem:[%s2963 + $0x138] sm:$0xff]
  %v3004 = vld [vmem:[%s2963 + $0x140] sm:$0xff]
  %v3005 = vld [vmem:[%s2963 + $0x148] sm:$0xff]
  %v3006 = vld [vmem:[%s2963 + $0x150] sm:$0xff]
  %v3007 = vld [vmem:[%s2963 + $0x158] sm:$0xff]
  %v3008 = vld [vmem:[%s2963 + $0x160] sm:$0xff]
  %v3009 = vld [vmem:[%s2963 + $0x168] sm:$0xff]
  %v3010 = vld [vmem:[%s2963 + $0x170] sm:$0xff]
  %v3011 = vld [vmem:[%s2963 + $0x178] sm:$0xff]
  %v3012 = vld [vmem:[%s2963 + $0x180] sm:$0xff]
  %v3013 = vld [vmem:[%s2963 + $0x188] sm:$0xff]
  %v3014 = vld [vmem:[%s2963 + $0x190] sm:$0xff]
  %v3015 = vld [vmem:[%s2963 + $0x198] sm:$0xff]
  %v3016 = vld [vmem:[%s2963 + $0x1a0] sm:$0xff]
  %v3017 = vld [vmem:[%s2963 + $0x1a8] sm:$0xff]
  %v3018 = vld [vmem:[%s2963 + $0x1b0] sm:$0xff]
  %v3019 = vld [vmem:[%s2963 + $0x1b8] sm:$0xff]
  %v3020 = vld [vmem:[%s2963 + $0x1c0] sm:$0xff]
  %v3021 = vld [vmem:[%s2963 + $0x1c8] sm:$0xff]
  %v3022 = vld [vmem:[%s2963 + $0x1d0] sm:$0xff]
  %v3023 = vld [vmem:[%s2963 + $0x1d8] sm:$0xff]
  %v3024 = vld [vmem:[%s2963 + $0x1e0] sm:$0xff]
  %v3025 = vld [vmem:[%s2963 + $0x1e8] sm:$0xff]
  %v3026 = vld [vmem:[%s2963 + $0x1f0] sm:$0xff]
  %v3027 = vld [vmem:[%s2963 + $0x1f8] sm:$0xff]
  %v3028 = vld [vmem:[%s2963 + $0x200] sm:$0xff]
  %v3029 = vld [vmem:[%s2963 + $0x208] sm:$0xff]
  %v3030 = vld [vmem:[%s2963 + $0x210] sm:$0xff]
  %v3031 = vld [vmem:[%s2963 + $0x218] sm:$0xff]
  %v3032 = vld [vmem:[%s2963 + $0x220] sm:$0xff]
  %v3033 = vld [vmem:[%s2963 + $0x228] sm:$0xff]
  %v3034 = vld [vmem:[%s2963 + $0x230] sm:$0xff]
  %v3035 = vld [vmem:[%s2963 + $0x238] sm:$0xff]
  %v3036 = vld [vmem:[%s2963 + $0x240] sm:$0xff]
  %v3037 = vld [vmem:[%s2963 + $0x248] sm:$0xff]
  %v3038 = vld [vmem:[%s2963 + $0x250] sm:$0xff]
  %v3039 = vld [vmem:[%s2963 + $0x258] sm:$0xff]
  %v3040 = vld [vmem:[%s2963 + $0x260] sm:$0xff]
  %v3041 = vld [vmem:[%s2963 + $0x268] sm:$0xff]
  %v3042 = vld [vmem:[%s2963 + $0x270] sm:$0xff]
  %v3043 = vld [vmem:[%s2963 + $0x278] sm:$0xff]
  %v3044 = vld [vmem:[%s2963 + $0x280] sm:$0xff]
  %v3045 = vld [vmem:[%s2963 + $0x288] sm:$0xff]
  %v3046 = vld [vmem:[%s2963 + $0x290] sm:$0xff]
  %v3047 = vld [vmem:[%s2963 + $0x298] sm:$0xff]
  %v3048 = vld [vmem:[%s2963 + $0x2a0] sm:$0xff]
  %v3049 = vld [vmem:[%s2963 + $0x2a8] sm:$0xff]
  %v3050 = vld [vmem:[%s2963 + $0x2b0] sm:$0xff]
  %v3051 = vld [vmem:[%s2963 + $0x2b8] sm:$0xff]
  %v3052 = vld [vmem:[%s2963 + $0x2c0] sm:$0xff]
  %v3053 = vld [vmem:[%s2963 + $0x2c8] sm:$0xff]
  %v3054 = vld [vmem:[%s2963 + $0x2d0] sm:$0xff]
  %v3055 = vld [vmem:[%s2963 + $0x2d8] sm:$0xff]
  %v3056 = vld [vmem:[%s2963 + $0x2e0] sm:$0xff]
  %v3057 = vld [vmem:[%s2963 + $0x2e8] sm:$0xff]
  %v3058 = vld [vmem:[%s2963 + $0x2f0] sm:$0xff]
  %v3059 = vld [vmem:[%s2963 + $0x2f8] sm:$0xff]
  %v3060 = vld [vmem:[%s2963 + $0x300] sm:$0xff]
  %v3061 = vld [vmem:[%s2963 + $0x308] sm:$0xff]
  %v3062 = vld [vmem:[%s2963 + $0x310] sm:$0xff]
  %v3063 = vld [vmem:[%s2963 + $0x318] sm:$0xff]
  %v3064 = vld [vmem:[%s2963 + $0x320] sm:$0xff]
  %v3065 = vld [vmem:[%s2963 + $0x328] sm:$0xff]
  %v3066 = vld [vmem:[%s2963 + $0x330] sm:$0xff]
  %v3067 = vld [vmem:[%s2963 + $0x338] sm:$0xff]
  %v3068 = vld [vmem:[%s2963 + $0x340] sm:$0xff]
  %v3069 = vld [vmem:[%s2963 + $0x348] sm:$0xff]
  %v3070 = vld [vmem:[%s2963 + $0x350] sm:$0xff]
  %v3071 = vld [vmem:[%s2963 + $0x358] sm:$0xff]
  %v3072 = vld [vmem:[%s2963 + $0x360] sm:$0xff]
  %v3073 = vld [vmem:[%s2963 + $0x368] sm:$0xff]
  %v3074 = vld [vmem:[%s2963 + $0x370] sm:$0xff]
  %v3075 = vld [vmem:[%s2963 + $0x378] sm:$0xff]
  %v3076 = vld [vmem:[%s2963 + $0x380] sm:$0xff]
  %v3077 = vld [vmem:[%s2963 + $0x388] sm:$0xff]
  %v3078 = vld [vmem:[%s2963 + $0x390] sm:$0xff]
  %v3079 = vld [vmem:[%s2963 + $0x398] sm:$0xff]
  %v3080 = vld [vmem:[%s2963 + $0x3a0] sm:$0xff]
  %v3081 = vld [vmem:[%s2963 + $0x3a8] sm:$0xff]
  %v3082 = vld [vmem:[%s2963 + $0x3b0] sm:$0xff]
  %v3083 = vld [vmem:[%s2963 + $0x3b8] sm:$0xff]
  %v3084 = vld [vmem:[%s2963 + $0x3c0] sm:$0xff]
  %v3085 = vld [vmem:[%s2963 + $0x3c8] sm:$0xff]
  %v3086 = vld [vmem:[%s2963 + $0x3d0] sm:$0xff]
  %v3087 = vld [vmem:[%s2963 + $0x3d8] sm:$0xff]
  %v3088 = vld [vmem:[%s2963 + $0x3e0] sm:$0xff]
  %v3089 = vld [vmem:[%s2963 + $0x3e8] sm:$0xff]
  %v3090 = vld [vmem:[%s2963 + $0x3f0] sm:$0xff]
  %v3091 = vld [vmem:[%s2963 + $0x3f8] sm:$0xff]
  %v3220 = vunpack.c.l.b16 %v2964
  %v3221 = vunpack.c.h.b16 %v2964
  %v3222 = vunpack.c.l.b16 %v2965
  %v3223 = vunpack.c.h.b16 %v2965
  %v3224 = vunpack.c.l.b16 %v2966
  %v3225 = vunpack.c.h.b16 %v2966
  %v3226 = vunpack.c.l.b16 %v2967
  %v3227 = vunpack.c.h.b16 %v2967
  %v3228 = vunpack.c.l.b16 %v2968
  %v3229 = vunpack.c.h.b16 %v2968
  %v3230 = vunpack.c.l.b16 %v2969
  %v3231 = vunpack.c.h.b16 %v2969
  %v3232 = vunpack.c.l.b16 %v2970
  %v3233 = vunpack.c.h.b16 %v2970
  %v3234 = vunpack.c.l.b16 %v2971
  %v3235 = vunpack.c.h.b16 %v2971
  %v3236 = vunpack.c.l.b16 %v2972
  %v3237 = vunpack.c.h.b16 %v2972
  %v3238 = vunpack.c.l.b16 %v2973
  %v3239 = vunpack.c.h.b16 %v2973
  %v3240 = vunpack.c.l.b16 %v2974
  %v3241 = vunpack.c.h.b16 %v2974
  %v3242 = vunpack.c.l.b16 %v2975
  %v3243 = vunpack.c.h.b16 %v2975
  %v3244 = vunpack.c.l.b16 %v2976
  %v3245 = vunpack.c.h.b16 %v2976
  %v3246 = vunpack.c.l.b16 %v2977
  %v3247 = vunpack.c.h.b16 %v2977
  %v3248 = vunpack.c.l.b16 %v2978
  %v3249 = vunpack.c.h.b16 %v2978
  %v3250 = vunpack.c.l.b16 %v2979
  %v3251 = vunpack.c.h.b16 %v2979
  %v3252 = vunpack.c.l.b16 %v2980
  %v3253 = vunpack.c.h.b16 %v2980
  %v3254 = vunpack.c.l.b16 %v2981
  %v3255 = vunpack.c.h.b16 %v2981
  %v3256 = vunpack.c.l.b16 %v2982
  %v3257 = vunpack.c.h.b16 %v2982
  %v3258 = vunpack.c.l.b16 %v2983
  %v3259 = vunpack.c.h.b16 %v2983
  %v3260 = vunpack.c.l.b16 %v2984
  %v3261 = vunpack.c.h.b16 %v2984
  %v3262 = vunpack.c.l.b16 %v2985
  %v3263 = vunpack.c.h.b16 %v2985
  %v3264 = vunpack.c.l.b16 %v2986
  %v3265 = vunpack.c.h.b16 %v2986
  %v3266 = vunpack.c.l.b16 %v2987
  %v3267 = vunpack.c.h.b16 %v2987
  %v3268 = vunpack.c.l.b16 %v2988
  %v3269 = vunpack.c.h.b16 %v2988
  %v3270 = vunpack.c.l.b16 %v2989
  %v3271 = vunpack.c.h.b16 %v2989
  %v3272 = vunpack.c.l.b16 %v2990
  %v3273 = vunpack.c.h.b16 %v2990
  %v3274 = vunpack.c.l.b16 %v2991
  %v3275 = vunpack.c.h.b16 %v2991
  %v3276 = vunpack.c.l.b16 %v2992
  %v3277 = vunpack.c.h.b16 %v2992
  %v3278 = vunpack.c.l.b16 %v2993
  %v3279 = vunpack.c.h.b16 %v2993
  %v3280 = vunpack.c.l.b16 %v2994
  %v3281 = vunpack.c.h.b16 %v2994
  %v3282 = vunpack.c.l.b16 %v2995
  %v3283 = vunpack.c.h.b16 %v2995
  %v3284 = vunpack.c.l.b16 %v2996
  %v3285 = vunpack.c.h.b16 %v2996
  %v3286 = vunpack.c.l.b16 %v2997
  %v3287 = vunpack.c.h.b16 %v2997
  %v3288 = vunpack.c.l.b16 %v2998
  %v3289 = vunpack.c.h.b16 %v2998
  %v3290 = vunpack.c.l.b16 %v2999
  %v3291 = vunpack.c.h.b16 %v2999
  %v3292 = vunpack.c.l.b16 %v3000
  %v3293 = vunpack.c.h.b16 %v3000
  %v3294 = vunpack.c.l.b16 %v3001
  %v3295 = vunpack.c.h.b16 %v3001
  %v3296 = vunpack.c.l.b16 %v3002
  %v3297 = vunpack.c.h.b16 %v3002
  %v3298 = vunpack.c.l.b16 %v3003
  %v3299 = vunpack.c.h.b16 %v3003
  %v3300 = vunpack.c.l.b16 %v3004
  %v3301 = vunpack.c.h.b16 %v3004
  %v3302 = vunpack.c.l.b16 %v3005
  %v3303 = vunpack.c.h.b16 %v3005
  %v3304 = vunpack.c.l.b16 %v3006
  %v3305 = vunpack.c.h.b16 %v3006
  %v3306 = vunpack.c.l.b16 %v3007
  %v3307 = vunpack.c.h.b16 %v3007
  %v3308 = vunpack.c.l.b16 %v3008
  %v3309 = vunpack.c.h.b16 %v3008
  %v3310 = vunpack.c.l.b16 %v3009
  %v3311 = vunpack.c.h.b16 %v3009
  %v3312 = vunpack.c.l.b16 %v3010
  %v3313 = vunpack.c.h.b16 %v3010
  %v3314 = vunpack.c.l.b16 %v3011
  %v3315 = vunpack.c.h.b16 %v3011
  %v3316 = vunpack.c.l.b16 %v3012
  %v3317 = vunpack.c.h.b16 %v3012
  %v3318 = vunpack.c.l.b16 %v3013
  %v3319 = vunpack.c.h.b16 %v3013
  %v3320 = vunpack.c.l.b16 %v3014
  %v3321 = vunpack.c.h.b16 %v3014
  %v3322 = vunpack.c.l.b16 %v3015
  %v3323 = vunpack.c.h.b16 %v3015
  %v3324 = vunpack.c.l.b16 %v3016
  %v3325 = vunpack.c.h.b16 %v3016
  %v3326 = vunpack.c.l.b16 %v3017
  %v3327 = vunpack.c.h.b16 %v3017
  %v3328 = vunpack.c.l.b16 %v3018
  %v3329 = vunpack.c.h.b16 %v3018
  %v3330 = vunpack.c.l.b16 %v3019
  %v3331 = vunpack.c.h.b16 %v3019
  %v3332 = vunpack.c.l.b16 %v3020
  %v3333 = vunpack.c.h.b16 %v3020
  %v3334 = vunpack.c.l.b16 %v3021
  %v3335 = vunpack.c.h.b16 %v3021
  %v3336 = vunpack.c.l.b16 %v3022
  %v3337 = vunpack.c.h.b16 %v3022
  %v3338 = vunpack.c.l.b16 %v3023
  %v3339 = vunpack.c.h.b16 %v3023
  %v3340 = vunpack.c.l.b16 %v3024
  %v3341 = vunpack.c.h.b16 %v3024
  %v3342 = vunpack.c.l.b16 %v3025
  %v3343 = vunpack.c.h.b16 %v3025
  %v3344 = vunpack.c.l.b16 %v3026
  %v3345 = vunpack.c.h.b16 %v3026
  %v3346 = vunpack.c.l.b16 %v3027
  %v3347 = vunpack.c.h.b16 %v3027
  %v3348 = vunpack.c.l.b16 %v3028
  %v3349 = vunpack.c.h.b16 %v3028
  %v3350 = vunpack.c.l.b16 %v3029
  %v3351 = vunpack.c.h.b16 %v3029
  %v3352 = vunpack.c.l.b16 %v3030
  %v3353 = vunpack.c.h.b16 %v3030
  %v3354 = vunpack.c.l.b16 %v3031
  %v3355 = vunpack.c.h.b16 %v3031
  %v3356 = vunpack.c.l.b16 %v3032
  %v3357 = vunpack.c.h.b16 %v3032
  %v3358 = vunpack.c.l.b16 %v3033
  %v3359 = vunpack.c.h.b16 %v3033
  %v3360 = vunpack.c.l.b16 %v3034
  %v3361 = vunpack.c.h.b16 %v3034
  %v3362 = vunpack.c.l.b16 %v3035
  %v3363 = vunpack.c.h.b16 %v3035
  %v3364 = vunpack.c.l.b16 %v3036
  %v3365 = vunpack.c.h.b16 %v3036
  %v3366 = vunpack.c.l.b16 %v3037
  %v3367 = vunpack.c.h.b16 %v3037
  %v3368 = vunpack.c.l.b16 %v3038
  %v3369 = vunpack.c.h.b16 %v3038
  %v3370 = vunpack.c.l.b16 %v3039
  %v3371 = vunpack.c.h.b16 %v3039
  %v3372 = vunpack.c.l.b16 %v3040
  %v3373 = vunpack.c.h.b16 %v3040
  %v3374 = vunpack.c.l.b16 %v3041
  %v3375 = vunpack.c.h.b16 %v3041
  %v3376 = vunpack.c.l.b16 %v3042
  %v3377 = vunpack.c.h.b16 %v3042
  %v3378 = vunpack.c.l.b16 %v3043
  %v3379 = vunpack.c.h.b16 %v3043
  %v3380 = vunpack.c.l.b16 %v3044
  %v3381 = vunpack.c.h.b16 %v3044
  %v3382 = vunpack.c.l.b16 %v3045
  %v3383 = vunpack.c.h.b16 %v3045
  %v3384 = vunpack.c.l.b16 %v3046
  %v3385 = vunpack.c.h.b16 %v3046
  %v3386 = vunpack.c.l.b16 %v3047
  %v3387 = vunpack.c.h.b16 %v3047
  %v3388 = vunpack.c.l.b16 %v3048
  %v3389 = vunpack.c.h.b16 %v3048
  %v3390 = vunpack.c.l.b16 %v3049
  %v3391 = vunpack.c.h.b16 %v3049
  %v3392 = vunpack.c.l.b16 %v3050
  %v3393 = vunpack.c.h.b16 %v3050
  %v3394 = vunpack.c.l.b16 %v3051
  %v3395 = vunpack.c.h.b16 %v3051
  %v3396 = vunpack.c.l.b16 %v3052
  %v3397 = vunpack.c.h.b16 %v3052
  %v3398 = vunpack.c.l.b16 %v3053
  %v3399 = vunpack.c.h.b16 %v3053
  %v3400 = vunpack.c.l.b16 %v3054
  %v3401 = vunpack.c.h.b16 %v3054
  %v3402 = vunpack.c.l.b16 %v3055
  %v3403 = vunpack.c.h.b16 %v3055
  %v3404 = vunpack.c.l.b16 %v3056
  %v3405 = vunpack.c.h.b16 %v3056
  %v3406 = vunpack.c.l.b16 %v3057
  %v3407 = vunpack.c.h.b16 %v3057
  %v3408 = vunpack.c.l.b16 %v3058
  %v3409 = vunpack.c.h.b16 %v3058
  %v3410 = vunpack.c.l.b16 %v3059
  %v3411 = vunpack.c.h.b16 %v3059
  %v3412 = vunpack.c.l.b16 %v3060
  %v3413 = vunpack.c.h.b16 %v3060
  %v3414 = vunpack.c.l.b16 %v3061
  %v3415 = vunpack.c.h.b16 %v3061
  %v3416 = vunpack.c.l.b16 %v3062
  %v3417 = vunpack.c.h.b16 %v3062
  %v3418 = vunpack.c.l.b16 %v3063
  %v3419 = vunpack.c.h.b16 %v3063
  %v3420 = vunpack.c.l.b16 %v3064
  %v3421 = vunpack.c.h.b16 %v3064
  %v3422 = vunpack.c.l.b16 %v3065
  %v3423 = vunpack.c.h.b16 %v3065
  %v3424 = vunpack.c.l.b16 %v3066
  %v3425 = vunpack.c.h.b16 %v3066
  %v3426 = vunpack.c.l.b16 %v3067
  %v3427 = vunpack.c.h.b16 %v3067
  %v3428 = vunpack.c.l.b16 %v3068
  %v3429 = vunpack.c.h.b16 %v3068
  %v3430 = vunpack.c.l.b16 %v3069
  %v3431 = vunpack.c.h.b16 %v3069
  %v3432 = vunpack.c.l.b16 %v3070
  %v3433 = vunpack.c.h.b16 %v3070
  %v3434 = vunpack.c.l.b16 %v3071
  %v3435 = vunpack.c.h.b16 %v3071
  %v3436 = vunpack.c.l.b16 %v3072
  %v3437 = vunpack.c.h.b16 %v3072
  %v3438 = vunpack.c.l.b16 %v3073
  %v3439 = vunpack.c.h.b16 %v3073
  %v3440 = vunpack.c.l.b16 %v3074
  %v3441 = vunpack.c.h.b16 %v3074
  %v3442 = vunpack.c.l.b16 %v3075
  %v3443 = vunpack.c.h.b16 %v3075
  %v3444 = vunpack.c.l.b16 %v3076
  %v3445 = vunpack.c.h.b16 %v3076
  %v3446 = vunpack.c.l.b16 %v3077
  %v3447 = vunpack.c.h.b16 %v3077
  %v3448 = vunpack.c.l.b16 %v3078
  %v3449 = vunpack.c.h.b16 %v3078
  %v3450 = vunpack.c.l.b16 %v3079
  %v3451 = vunpack.c.h.b16 %v3079
  %v3452 = vunpack.c.l.b16 %v3080
  %v3453 = vunpack.c.h.b16 %v3080
  %v3454 = vunpack.c.l.b16 %v3081
  %v3455 = vunpack.c.h.b16 %v3081
  %v3456 = vunpack.c.l.b16 %v3082
  %v3457 = vunpack.c.h.b16 %v3082
  %v3458 = vunpack.c.l.b16 %v3083
  %v3459 = vunpack.c.h.b16 %v3083
  %v3460 = vunpack.c.l.b16 %v3084
  %v3461 = vunpack.c.h.b16 %v3084
  %v3462 = vunpack.c.l.b16 %v3085
  %v3463 = vunpack.c.h.b16 %v3085
  %v3464 = vunpack.c.l.b16 %v3086
  %v3465 = vunpack.c.h.b16 %v3086
  %v3466 = vunpack.c.l.b16 %v3087
  %v3467 = vunpack.c.h.b16 %v3087
  %v3468 = vunpack.c.l.b16 %v3088
  %v3469 = vunpack.c.h.b16 %v3088
  %v3470 = vunpack.c.l.b16 %v3089
  %v3471 = vunpack.c.h.b16 %v3089
  %v3472 = vunpack.c.l.b16 %v3090
  %v3473 = vunpack.c.h.b16 %v3090
  %v3474 = vunpack.c.l.b16 %v3091
  %v3475 = vunpack.c.h.b16 %v3091
  %v3476 = vpack.c.b16 %v3224, %v3220
  %v3477 = vpack.c.b16 %v3225, %v3221
  %v3478 = vpack.c.b16 %v3226, %v3222
  %v3479 = vpack.c.b16 %v3227, %v3223
  %v3480 = vpack.c.b16 %v3232, %v3228
  %v3481 = vpack.c.b16 %v3233, %v3229
  %v3482 = vpack.c.b16 %v3234, %v3230
  %v3483 = vpack.c.b16 %v3235, %v3231
  %v3484 = vpack.c.b16 %v3240, %v3236
  %v3485 = vpack.c.b16 %v3241, %v3237
  %v3486 = vpack.c.b16 %v3242, %v3238
  %v3487 = vpack.c.b16 %v3243, %v3239
  %v3488 = vpack.c.b16 %v3248, %v3244
  %v3489 = vpack.c.b16 %v3249, %v3245
  %v3490 = vpack.c.b16 %v3250, %v3246
  %v3491 = vpack.c.b16 %v3251, %v3247
  %v3492 = vpack.c.b16 %v3256, %v3252
  %v3493 = vpack.c.b16 %v3257, %v3253
  %v3494 = vpack.c.b16 %v3258, %v3254
  %v3495 = vpack.c.b16 %v3259, %v3255
  %v3496 = vpack.c.b16 %v3264, %v3260
  %v3497 = vpack.c.b16 %v3265, %v3261
  %v3498 = vpack.c.b16 %v3266, %v3262
  %v3499 = vpack.c.b16 %v3267, %v3263
  %v3500 = vpack.c.b16 %v3272, %v3268
  %v3501 = vpack.c.b16 %v3273, %v3269
  %v3502 = vpack.c.b16 %v3274, %v3270
  %v3503 = vpack.c.b16 %v3275, %v3271
  %v3504 = vpack.c.b16 %v3280, %v3276
  %v3505 = vpack.c.b16 %v3281, %v3277
  %v3506 = vpack.c.b16 %v3282, %v3278
  %v3507 = vpack.c.b16 %v3283, %v3279
  %v3508 = vpack.c.b16 %v3288, %v3284
  %v3509 = vpack.c.b16 %v3289, %v3285
  %v3510 = vpack.c.b16 %v3290, %v3286
  %v3511 = vpack.c.b16 %v3291, %v3287
  %v3512 = vpack.c.b16 %v3296, %v3292
  %v3513 = vpack.c.b16 %v3297, %v3293
  %v3514 = vpack.c.b16 %v3298, %v3294
  %v3515 = vpack.c.b16 %v3299, %v3295
  %v3516 = vpack.c.b16 %v3304, %v3300
  %v3517 = vpack.c.b16 %v3305, %v3301
  %v3518 = vpack.c.b16 %v3306, %v3302
  %v3519 = vpack.c.b16 %v3307, %v3303
  %v3520 = vpack.c.b16 %v3312, %v3308
  %v3521 = vpack.c.b16 %v3313, %v3309
  %v3522 = vpack.c.b16 %v3314, %v3310
  %v3523 = vpack.c.b16 %v3315, %v3311
  %v3524 = vpack.c.b16 %v3320, %v3316
  %v3525 = vpack.c.b16 %v3321, %v3317
  %v3526 = vpack.c.b16 %v3322, %v3318
  %v3527 = vpack.c.b16 %v3323, %v3319
  %v3528 = vpack.c.b16 %v3328, %v3324
  %v3529 = vpack.c.b16 %v3329, %v3325
  %v3530 = vpack.c.b16 %v3330, %v3326
  %v3531 = vpack.c.b16 %v3331, %v3327
  %v3532 = vpack.c.b16 %v3336, %v3332
  %v3533 = vpack.c.b16 %v3337, %v3333
  %v3534 = vpack.c.b16 %v3338, %v3334
  %v3535 = vpack.c.b16 %v3339, %v3335
  %v3536 = vpack.c.b16 %v3344, %v3340
  %v3537 = vpack.c.b16 %v3345, %v3341
  %v3538 = vpack.c.b16 %v3346, %v3342
  %v3539 = vpack.c.b16 %v3347, %v3343
  %v3540 = vpack.c.b16 %v3352, %v3348
  %v3541 = vpack.c.b16 %v3353, %v3349
  %v3542 = vpack.c.b16 %v3354, %v3350
  %v3543 = vpack.c.b16 %v3355, %v3351
  %v3544 = vpack.c.b16 %v3360, %v3356
  %v3545 = vpack.c.b16 %v3361, %v3357
  %v3546 = vpack.c.b16 %v3362, %v3358
  %v3547 = vpack.c.b16 %v3363, %v3359
  %v3548 = vpack.c.b16 %v3368, %v3364
  %v3549 = vpack.c.b16 %v3369, %v3365
  %v3550 = vpack.c.b16 %v3370, %v3366
  %v3551 = vpack.c.b16 %v3371, %v3367
  %v3552 = vpack.c.b16 %v3376, %v3372
  %v3553 = vpack.c.b16 %v3377, %v3373
  %v3554 = vpack.c.b16 %v3378, %v3374
  %v3555 = vpack.c.b16 %v3379, %v3375
  %v3556 = vpack.c.b16 %v3384, %v3380
  %v3557 = vpack.c.b16 %v3385, %v3381
  %v3558 = vpack.c.b16 %v3386, %v3382
  %v3559 = vpack.c.b16 %v3387, %v3383
  %v3560 = vpack.c.b16 %v3392, %v3388
  %v3561 = vpack.c.b16 %v3393, %v3389
  %v3562 = vpack.c.b16 %v3394, %v3390
  %v3563 = vpack.c.b16 %v3395, %v3391
  %v3564 = vpack.c.b16 %v3400, %v3396
  %v3565 = vpack.c.b16 %v3401, %v3397
  %v3566 = vpack.c.b16 %v3402, %v3398
  %v3567 = vpack.c.b16 %v3403, %v3399
  %v3568 = vpack.c.b16 %v3408, %v3404
  %v3569 = vpack.c.b16 %v3409, %v3405
  %v3570 = vpack.c.b16 %v3410, %v3406
  %v3571 = vpack.c.b16 %v3411, %v3407
  %v3572 = vpack.c.b16 %v3416, %v3412
  %v3573 = vpack.c.b16 %v3417, %v3413
  %v3574 = vpack.c.b16 %v3418, %v3414
  %v3575 = vpack.c.b16 %v3419, %v3415
  %v3576 = vpack.c.b16 %v3424, %v3420
  %v3577 = vpack.c.b16 %v3425, %v3421
  %v3578 = vpack.c.b16 %v3426, %v3422
  %v3579 = vpack.c.b16 %v3427, %v3423
  %v3580 = vpack.c.b16 %v3432, %v3428
  %v3581 = vpack.c.b16 %v3433, %v3429
  %v3582 = vpack.c.b16 %v3434, %v3430
  %v3583 = vpack.c.b16 %v3435, %v3431
  %v3584 = vpack.c.b16 %v3440, %v3436
  %v3585 = vpack.c.b16 %v3441, %v3437
  %v3586 = vpack.c.b16 %v3442, %v3438
  %v3587 = vpack.c.b16 %v3443, %v3439
  %v3588 = vpack.c.b16 %v3448, %v3444
  %v3589 = vpack.c.b16 %v3449, %v3445
  %v3590 = vpack.c.b16 %v3450, %v3446
  %v3591 = vpack.c.b16 %v3451, %v3447
  %v3592 = vpack.c.b16 %v3456, %v3452
  %v3593 = vpack.c.b16 %v3457, %v3453
  %v3594 = vpack.c.b16 %v3458, %v3454
  %v3595 = vpack.c.b16 %v3459, %v3455
  %v3596 = vpack.c.b16 %v3464, %v3460
  %v3597 = vpack.c.b16 %v3465, %v3461
  %v3598 = vpack.c.b16 %v3466, %v3462
  %v3599 = vpack.c.b16 %v3467, %v3463
  %v3600 = vpack.c.b16 %v3472, %v3468
  %v3601 = vpack.c.b16 %v3473, %v3469
  %v3602 = vpack.c.b16 %v3474, %v3470
  %v3603 = vpack.c.b16 %v3475, %v3471
  %3732 = vmatprep.subr.bf16.mxu0 %v3477
  %3733 = vmatpush1.bf16.msra.mxu0 %v3476
  %3734 = vmatprep.subr.bf16.mxu0 %v3481
  %3735 = vmatpush1.bf16.msra.mxu0 %v3480
  %3736 = vmatprep.subr.bf16.mxu0 %v3485
  %3737 = vmatpush1.bf16.msra.mxu0 %v3484
  %3738 = vmatprep.subr.bf16.mxu0 %v3489
  %3739 = vmatpush1.bf16.msra.mxu0 %v3488
  %3740 = vmatprep.subr.bf16.mxu0 %v3493
  %3741 = vmatpush1.bf16.msra.mxu0 %v3492
  %3742 = vmatprep.subr.bf16.mxu0 %v3497
  %3743 = vmatpush1.bf16.msra.mxu0 %v3496
  %3744 = vmatprep.subr.bf16.mxu0 %v3501
  %3745 = vmatpush1.bf16.msra.mxu0 %v3500
  %3746 = vmatprep.subr.bf16.mxu0 %v3505
  %3747 = vmatpush1.bf16.msra.mxu0 %v3504
  %3748 = vmatprep.subr.bf16.mxu0 %v3509
  %3749 = vmatpush1.bf16.msra.mxu0 %v3508
  %3750 = vmatprep.subr.bf16.mxu0 %v3513
  %3751 = vmatpush1.bf16.msra.mxu0 %v3512
  %3752 = vmatprep.subr.bf16.mxu0 %v3517
  %3753 = vmatpush1.bf16.msra.mxu0 %v3516
  %3754 = vmatprep.subr.bf16.mxu0 %v3521
  %3755 = vmatpush1.bf16.msra.mxu0 %v3520
  %3756 = vmatprep.subr.bf16.mxu0 %v3525
  %3757 = vmatpush1.bf16.msra.mxu0 %v3524
  %3758 = vmatprep.subr.bf16.mxu0 %v3529
  %3759 = vmatpush1.bf16.msra.mxu0 %v3528
  %3760 = vmatprep.subr.bf16.mxu0 %v3533
  %3761 = vmatpush1.bf16.msra.mxu0 %v3532
  %3762 = vmatprep.subr.bf16.mxu0 %v3537
  %3763 = vmatpush1.bf16.msra.mxu0 %v3536
  %3764 = vmatprep.mubr.bf16.mxu0 %v2956
  %3765 = vmatmul.mubr.bf16.gmra.mrb[0].mxu0 %v2955
  %v3766 = vpop.f32.mrb[0].mxu0
  %v3767 = vadd.f32 0.0, %v3766
  %v3768 = vpop.f32.mrb[0].mxu0
  %v3769 = vadd.f32 0.0, %v3768
  %v3770 = vpop.f32.mrb[0].mxu0
  %v3771 = vadd.f32 0.0, %v3770
  %v3772 = vpop.f32.mrb[0].mxu0
  %v3773 = vadd.f32 0.0, %v3772
  %3774 = vmatprep.mubr.bf16.mxu0 %v2960
  %3775 = vmatmul.mubr.bf16.gmra.mrb[0].mxu0 %v2959
  %v3776 = vpop.f32.mrb[0].mxu0
  %v3777 = vadd.f32 0.0, %v3776
  %v3778 = vpop.f32.mrb[0].mxu0
  %v3779 = vadd.f32 0.0, %v3778
  %v3780 = vpop.f32.mrb[0].mxu0
  %v3781 = vadd.f32 0.0, %v3780
  %v3782 = vpop.f32.mrb[0].mxu0
  %v3783 = vadd.f32 0.0, %v3782
  %3784 = vdwg.mxu0
  %3785 = vmatprep.subr.bf16.mxu0 %v3541
  %3786 = vmatpush1.bf16.msra.mxu0 %v3540
  %3787 = vmatprep.subr.bf16.mxu0 %v3545
  %3788 = vmatpush1.bf16.msra.mxu0 %v3544
  %3789 = vmatprep.subr.bf16.mxu0 %v3549
  %3790 = vmatpush1.bf16.msra.mxu0 %v3548
  %3791 = vmatprep.subr.bf16.mxu0 %v3553
  %3792 = vmatpush1.bf16.msra.mxu0 %v3552
  %3793 = vmatprep.subr.bf16.mxu0 %v3557
  %3794 = vmatpush1.bf16.msra.mxu0 %v3556
  %3795 = vmatprep.subr.bf16.mxu0 %v3561
  %3796 = vmatpush1.bf16.msra.mxu0 %v3560
  %3797 = vmatprep.subr.bf16.mxu0 %v3565
  %3798 = vmatpush1.bf16.msra.mxu0 %v3564
  %3799 = vmatprep.subr.bf16.mxu0 %v3569
  %3800 = vmatpush1.bf16.msra.mxu0 %v3568
  %3801 = vmatprep.subr.bf16.mxu0 %v3573
  %3802 = vmatpush1.bf16.msra.mxu0 %v3572
  %3803 = vmatprep.subr.bf16.mxu0 %v3577
  %3804 = vmatpush1.bf16.msra.mxu0 %v3576
  %3805 = vmatprep.subr.bf16.mxu0 %v3581
  %3806 = vmatpush1.bf16.msra.mxu0 %v3580
  %3807 = vmatprep.subr.bf16.mxu0 %v3585
  %3808 = vmatpush1.bf16.msra.mxu0 %v3584
  %3809 = vmatprep.subr.bf16.mxu0 %v3589
  %3810 = vmatpush1.bf16.msra.mxu0 %v3588
  %3811 = vmatprep.subr.bf16.mxu0 %v3593
  %3812 = vmatpush1.bf16.msra.mxu0 %v3592
  %3813 = vmatprep.subr.bf16.mxu0 %v3597
  %3814 = vmatpush1.bf16.msra.mxu0 %v3596
  %3815 = vmatprep.subr.bf16.mxu0 %v3601
  %3816 = vmatpush1.bf16.msra.mxu0 %v3600
  %3817 = vmatprep.mubr.bf16.mxu0 %v2958
  %3818 = vmatmul.mubr.bf16.gmra.mrb[0].mxu0 %v2957
  %v3819 = vpop.f32.mrb[0].mxu0
  %v3820 = vadd.f32 %v3767, %v3819
  %v3821 = vpop.f32.mrb[0].mxu0
  %v3822 = vadd.f32 %v3769, %v3821
  %v3823 = vpop.f32.mrb[0].mxu0
  %v3824 = vadd.f32 %v3771, %v3823
  %v3825 = vpop.f32.mrb[0].mxu0
  %v3826 = vadd.f32 %v3773, %v3825
  %3827 = vmatprep.mubr.bf16.mxu0 %v2962
  %3828 = vmatmul.mubr.bf16.gmra.mrb[0].mxu0 %v2961
  %v3829 = vpop.f32.mrb[0].mxu0
  %v3830 = vadd.f32 %v3777, %v3829
  %v3831 = vpop.f32.mrb[0].mxu0
  %v3832 = vadd.f32 %v3779, %v3831
  %v3833 = vpop.f32.mrb[0].mxu0
  %v3834 = vadd.f32 %v3781, %v3833
  %v3835 = vpop.f32.mrb[0].mxu0
  %v3836 = vadd.f32 %v3783, %v3835
  %3837 = vdwg.mxu0
  %3838 = vmatprep.subr.bf16.mxu0 %v3479
  %3839 = vmatpush1.bf16.msra.mxu0 %v3478
  %3840 = vmatprep.subr.bf16.mxu0 %v3483
  %3841 = vmatpush1.bf16.msra.mxu0 %v3482
  %3842 = vmatprep.subr.bf16.mxu0 %v3487
  %3843 = vmatpush1.bf16.msra.mxu0 %v3486
  %3844 = vmatprep.subr.bf16.mxu0 %v3491
  %3845 = vmatpush1.bf16.msra.mxu0 %v3490
  %3846 = vmatprep.subr.bf16.mxu0 %v3495
  %3847 = vmatpush1.bf16.msra.mxu0 %v3494
  %3848 = vmatprep.subr.bf16.mxu0 %v3499
  %3849 = vmatpush1.bf16.msra.mxu0 %v3498
  %3850 = vmatprep.subr.bf16.mxu0 %v3503
  %3851 = vmatpush1.bf16.msra.mxu0 %v3502
  %3852 = vmatprep.subr.bf16.mxu0 %v3507
  %3853 = vmatpush1.bf16.msra.mxu0 %v3506
  %3854 = vmatprep.subr.bf16.mxu0 %v3511
  %3855 = vmatpush1.bf16.msra.mxu0 %v3510
  %3856 = vmatprep.subr.bf16.mxu0 %v3515
  %3857 = vmatpush1.bf16.msra.mxu0 %v3514
  %3858 = vmatprep.subr.bf16.mxu0 %v3519
  %3859 = vmatpush1.bf16.msra.mxu0 %v3518
  %3860 = vmatprep.subr.bf16.mxu0 %v3523
  %3861 = vmatpush1.bf16.msra.mxu0 %v3522
  %3862 = vmatprep.subr.bf16.mxu0 %v3527
  %3863 = vmatpush1.bf16.msra.mxu0 %v3526
  %3864 = vmatprep.subr.bf16.mxu0 %v3531
  %3865 = vmatpush1.bf16.msra.mxu0 %v3530
  %3866 = vmatprep.subr.bf16.mxu0 %v3535
  %3867 = vmatpush1.bf16.msra.mxu0 %v3534
  %3868 = vmatprep.subr.bf16.mxu0 %v3539
  %3869 = vmatpush1.bf16.msra.mxu0 %v3538
  %3870 = vmatprep.mubr.bf16.mxu0 %v2956
  %3871 = vmatmul.mubr.bf16.gmra.mrb[0].mxu0 %v2955
  %v3872 = vpop.f32.mrb[0].mxu0
  %v3873 = vadd.f32 0.0, %v3872
  %v3874 = vpop.f32.mrb[0].mxu0
  %v3875 = vadd.f32 0.0, %v3874
  %v3876 = vpop.f32.mrb[0].mxu0
  %v3877 = vadd.f32 0.0, %v3876
  %v3878 = vpop.f32.mrb[0].mxu0
  %v3879 = vadd.f32 0.0, %v3878
  %3880 = vmatprep.mubr.bf16.mxu0 %v2960
  %3881 = vmatmul.mubr.bf16.gmra.mrb[0].mxu0 %v2959
  %v3882 = vpop.f32.mrb[0].mxu0
  %v3883 = vadd.f32 0.0, %v3882
  %v3884 = vpop.f32.mrb[0].mxu0
  %v3885 = vadd.f32 0.0, %v3884
  %v3886 = vpop.f32.mrb[0].mxu0
  %v3887 = vadd.f32 0.0, %v3886
  %v3888 = vpop.f32.mrb[0].mxu0
  %v3889 = vadd.f32 0.0, %v3888
  %3890 = vdwg.mxu0
  %3891 = vmatprep.subr.bf16.mxu0 %v3543
  %3892 = vmatpush1.bf16.msra.mxu0 %v3542
  %3893 = vmatprep.subr.bf16.mxu0 %v3547
  %3894 = vmatpush1.bf16.msra.mxu0 %v3546
  %3895 = vmatprep.subr.bf16.mxu0 %v3551
  %3896 = vmatpush1.bf16.msra.mxu0 %v3550
  %3897 = vmatprep.subr.bf16.mxu0 %v3555
  %3898 = vmatpush1.bf16.msra.mxu0 %v3554
  %3899 = vmatprep.subr.bf16.mxu0 %v3559
  %3900 = vmatpush1.bf16.msra.mxu0 %v3558
  %3901 = vmatprep.subr.bf16.mxu0 %v3563
  %3902 = vmatpush1.bf16.msra.mxu0 %v3562
  %3903 = vmatprep.subr.bf16.mxu0 %v3567
  %3904 = vmatpush1.bf16.msra.mxu0 %v3566
  %3905 = vmatprep.subr.bf16.mxu0 %v3571
  %3906 = vmatpush1.bf16.msra.mxu0 %v3570
  %3907 = vmatprep.subr.bf16.mxu0 %v3575
  %3908 = vmatpush1.bf16.msra.mxu0 %v3574
  %3909 = vmatprep.subr.bf16.mxu0 %v3579
  %3910 = vmatpush1.bf16.msra.mxu0 %v3578
  %3911 = vmatprep.subr.bf16.mxu0 %v3583
  %3912 = vmatpush1.bf16.msra.mxu0 %v3582
  %3913 = vmatprep.subr.bf16.mxu0 %v3587
  %3914 = vmatpush1.bf16.msra.mxu0 %v3586
  %3915 = vmatprep.subr.bf16.mxu0 %v3591
  %3916 = vmatpush1.bf16.msra.mxu0 %v3590
  %3917 = vmatprep.subr.bf16.mxu0 %v3595
  %3918 = vmatpush1.bf16.msra.mxu0 %v3594
  %3919 = vmatprep.subr.bf16.mxu0 %v3599
  %3920 = vmatpush1.bf16.msra.mxu0 %v3598
  %3921 = vmatprep.subr.bf16.mxu0 %v3603
  %3922 = vmatpush1.bf16.msra.mxu0 %v3602
  %3923 = vmatprep.mubr.bf16.mxu0 %v2958
  %3924 = vmatmul.mubr.bf16.gmra.mrb[0].mxu0 %v2957
  %v3925 = vpop.f32.mrb[0].mxu0
  %v3926 = vadd.f32 %v3873, %v3925
  %v3927 = vpop.f32.mrb[0].mxu0
  %v3928 = vadd.f32 %v3875, %v3927
  %v3929 = vpop.f32.mrb[0].mxu0
  %v3930 = vadd.f32 %v3877, %v3929
  %v3931 = vpop.f32.mrb[0].mxu0
  %v3932 = vadd.f32 %v3879, %v3931
  %3933 = vmatprep.mubr.bf16.mxu0 %v2962
  %3934 = vmatmul.mubr.bf16.gmra.mrb[0].mxu0 %v2961
  %v3935 = vpop.f32.mrb[0].mxu0
  %v3936 = vadd.f32 %v3883, %v3935
  %v3937 = vpop.f32.mrb[0].mxu0
  %v3938 = vadd.f32 %v3885, %v3937
  %v3939 = vpop.f32.mrb[0].mxu0
  %v3940 = vadd.f32 %v3887, %v3939
  %v3941 = vpop.f32.mrb[0].mxu0
  %v3942 = vadd.f32 %v3889, %v3941
  %3943 = vdwg.mxu0
  %v4072 = vunpack.c.l.b16 %v2704
  %v4073 = vunpack.c.h.b16 %v2704
  %v4074 = vunpack.c.l.b16 %v2705
  %v4075 = vunpack.c.h.b16 %v2705
  %v4076 = vunpack.c.l.b16 %v2706
  %v4077 = vunpack.c.h.b16 %v2706
  %v4078 = vunpack.c.l.b16 %v2707
  %v4079 = vunpack.c.h.b16 %v2707
  %v4080 = vunpack.c.l.b16 %v2708
  %v4081 = vunpack.c.h.b16 %v2708
  %v4082 = vunpack.c.l.b16 %v2709
  %v4083 = vunpack.c.h.b16 %v2709
  %v4084 = vunpack.c.l.b16 %v2710
  %v4085 = vunpack.c.h.b16 %v2710
  %v4086 = vunpack.c.l.b16 %v2711
  %v4087 = vunpack.c.h.b16 %v2711
  %v4088 = vunpack.c.l.b16 %v2712
  %v4089 = vunpack.c.h.b16 %v2712
  %v4090 = vunpack.c.l.b16 %v2713
  %v4091 = vunpack.c.h.b16 %v2713
  %v4092 = vunpack.c.l.b16 %v2714
  %v4093 = vunpack.c.h.b16 %v2714
  %v4094 = vunpack.c.l.b16 %v2715
  %v4095 = vunpack.c.h.b16 %v2715
  %v4096 = vunpack.c.l.b16 %v2716
  %v4097 = vunpack.c.h.b16 %v2716
  %v4098 = vunpack.c.l.b16 %v2717
  %v4099 = vunpack.c.h.b16 %v2717
  %v4100 = vunpack.c.l.b16 %v2718
  %v4101 = vunpack.c.h.b16 %v2718
  %v4102 = vunpack.c.l.b16 %v2719
  %v4103 = vunpack.c.h.b16 %v2719
  %v4104 = vunpack.c.l.b16 %v2720
  %v4105 = vunpack.c.h.b16 %v2720
  %v4106 = vunpack.c.l.b16 %v2721
  %v4107 = vunpack.c.h.b16 %v2721
  %v4108 = vunpack.c.l.b16 %v2722
  %v4109 = vunpack.c.h.b16 %v2722
  %v4110 = vunpack.c.l.b16 %v2723
  %v4111 = vunpack.c.h.b16 %v2723
  %v4112 = vunpack.c.l.b16 %v2724
  %v4113 = vunpack.c.h.b16 %v2724
  %v4114 = vunpack.c.l.b16 %v2725
  %v4115 = vunpack.c.h.b16 %v2725
  %v4116 = vunpack.c.l.b16 %v2726
  %v4117 = vunpack.c.h.b16 %v2726
  %v4118 = vunpack.c.l.b16 %v2727
  %v4119 = vunpack.c.h.b16 %v2727
  %v4120 = vunpack.c.l.b16 %v2728
  %v4121 = vunpack.c.h.b16 %v2728
  %v4122 = vunpack.c.l.b16 %v2729
  %v4123 = vunpack.c.h.b16 %v2729
  %v4124 = vunpack.c.l.b16 %v2730
  %v4125 = vunpack.c.h.b16 %v2730
  %v4126 = vunpack.c.l.b16 %v2731
  %v4127 = vunpack.c.h.b16 %v2731
  %v4128 = vunpack.c.l.b16 %v2732
  %v4129 = vunpack.c.h.b16 %v2732
  %v4130 = vunpack.c.l.b16 %v2733
  %v4131 = vunpack.c.h.b16 %v2733
  %v4132 = vunpack.c.l.b16 %v2734
  %v4133 = vunpack.c.h.b16 %v2734
  %v4134 = vunpack.c.l.b16 %v2735
  %v4135 = vunpack.c.h.b16 %v2735
  %v4136 = vunpack.c.l.b16 %v2736
  %v4137 = vunpack.c.h.b16 %v2736
  %v4138 = vunpack.c.l.b16 %v2737
  %v4139 = vunpack.c.h.b16 %v2737
  %v4140 = vunpack.c.l.b16 %v2738
  %v4141 = vunpack.c.h.b16 %v2738
  %v4142 = vunpack.c.l.b16 %v2739
  %v4143 = vunpack.c.h.b16 %v2739
  %v4144 = vunpack.c.l.b16 %v2740
  %v4145 = vunpack.c.h.b16 %v2740
  %v4146 = vunpack.c.l.b16 %v2741
  %v4147 = vunpack.c.h.b16 %v2741
  %v4148 = vunpack.c.l.b16 %v2742
  %v4149 = vunpack.c.h.b16 %v2742
  %v4150 = vunpack.c.l.b16 %v2743
  %v4151 = vunpack.c.h.b16 %v2743
  %v4152 = vunpack.c.l.b16 %v2744
  %v4153 = vunpack.c.h.b16 %v2744
  %v4154 = vunpack.c.l.b16 %v2745
  %v4155 = vunpack.c.h.b16 %v2745
  %v4156 = vunpack.c.l.b16 %v2746
  %v4157 = vunpack.c.h.b16 %v2746
  %v4158 = vunpack.c.l.b16 %v2747
  %v4159 = vunpack.c.h.b16 %v2747
  %v4160 = vunpack.c.l.b16 %v2748
  %v4161 = vunpack.c.h.b16 %v2748
  %v4162 = vunpack.c.l.b16 %v2749
  %v4163 = vunpack.c.h.b16 %v2749
  %v4164 = vunpack.c.l.b16 %v2750
  %v4165 = vunpack.c.h.b16 %v2750
  %v4166 = vunpack.c.l.b16 %v2751
  %v4167 = vunpack.c.h.b16 %v2751
  %v4168 = vunpack.c.l.b16 %v2752
  %v4169 = vunpack.c.h.b16 %v2752
  %v4170 = vunpack.c.l.b16 %v2753
  %v4171 = vunpack.c.h.b16 %v2753
  %v4172 = vunpack.c.l.b16 %v2754
  %v4173 = vunpack.c.h.b16 %v2754
  %v4174 = vunpack.c.l.b16 %v2755
  %v4175 = vunpack.c.h.b16 %v2755
  %v4176 = vunpack.c.l.b16 %v2756
  %v4177 = vunpack.c.h.b16 %v2756
  %v4178 = vunpack.c.l.b16 %v2757
  %v4179 = vunpack.c.h.b16 %v2757
  %v4180 = vunpack.c.l.b16 %v2758
  %v4181 = vunpack.c.h.b16 %v2758
  %v4182 = vunpack.c.l.b16 %v2759
  %v4183 = vunpack.c.h.b16 %v2759
  %v4184 = vunpack.c.l.b16 %v2760
  %v4185 = vunpack.c.h.b16 %v2760
  %v4186 = vunpack.c.l.b16 %v2761
  %v4187 = vunpack.c.h.b16 %v2761
  %v4188 = vunpack.c.l.b16 %v2762
  %v4189 = vunpack.c.h.b16 %v2762
  %v4190 = vunpack.c.l.b16 %v2763
  %v4191 = vunpack.c.h.b16 %v2763
  %v4192 = vunpack.c.l.b16 %v2764
  %v4193 = vunpack.c.h.b16 %v2764
  %v4194 = vunpack.c.l.b16 %v2765
  %v4195 = vunpack.c.h.b16 %v2765
  %v4196 = vunpack.c.l.b16 %v2766
  %v4197 = vunpack.c.h.b16 %v2766
  %v4198 = vunpack.c.l.b16 %v2767
  %v4199 = vunpack.c.h.b16 %v2767
  %v4200 = vunpack.c.l.b16 %v2768
  %v4201 = vunpack.c.h.b16 %v2768
  %v4202 = vunpack.c.l.b16 %v2769
  %v4203 = vunpack.c.h.b16 %v2769
  %v4204 = vunpack.c.l.b16 %v2770
  %v4205 = vunpack.c.h.b16 %v2770
  %v4206 = vunpack.c.l.b16 %v2771
  %v4207 = vunpack.c.h.b16 %v2771
  %v4208 = vunpack.c.l.b16 %v2772
  %v4209 = vunpack.c.h.b16 %v2772
  %v4210 = vunpack.c.l.b16 %v2773
  %v4211 = vunpack.c.h.b16 %v2773
  %v4212 = vunpack.c.l.b16 %v2774
  %v4213 = vunpack.c.h.b16 %v2774
  %v4214 = vunpack.c.l.b16 %v2775
  %v4215 = vunpack.c.h.b16 %v2775
  %v4216 = vunpack.c.l.b16 %v2776
  %v4217 = vunpack.c.h.b16 %v2776
  %v4218 = vunpack.c.l.b16 %v2777
  %v4219 = vunpack.c.h.b16 %v2777
  %v4220 = vunpack.c.l.b16 %v2778
  %v4221 = vunpack.c.h.b16 %v2778
  %v4222 = vunpack.c.l.b16 %v2779
  %v4223 = vunpack.c.h.b16 %v2779
  %v4224 = vunpack.c.l.b16 %v2780
  %v4225 = vunpack.c.h.b16 %v2780
  %v4226 = vunpack.c.l.b16 %v2781
  %v4227 = vunpack.c.h.b16 %v2781
  %v4228 = vunpack.c.l.b16 %v2782
  %v4229 = vunpack.c.h.b16 %v2782
  %v4230 = vunpack.c.l.b16 %v2783
  %v4231 = vunpack.c.h.b16 %v2783
  %v4232 = vunpack.c.l.b16 %v2784
  %v4233 = vunpack.c.h.b16 %v2784
  %v4234 = vunpack.c.l.b16 %v2785
  %v4235 = vunpack.c.h.b16 %v2785
  %v4236 = vunpack.c.l.b16 %v2786
  %v4237 = vunpack.c.h.b16 %v2786
  %v4238 = vunpack.c.l.b16 %v2787
  %v4239 = vunpack.c.h.b16 %v2787
  %v4240 = vunpack.c.l.b16 %v2788
  %v4241 = vunpack.c.h.b16 %v2788
  %v4242 = vunpack.c.l.b16 %v2789
  %v4243 = vunpack.c.h.b16 %v2789
  %v4244 = vunpack.c.l.b16 %v2790
  %v4245 = vunpack.c.h.b16 %v2790
  %v4246 = vunpack.c.l.b16 %v2791
  %v4247 = vunpack.c.h.b16 %v2791
  %v4248 = vunpack.c.l.b16 %v2792
  %v4249 = vunpack.c.h.b16 %v2792
  %v4250 = vunpack.c.l.b16 %v2793
  %v4251 = vunpack.c.h.b16 %v2793
  %v4252 = vunpack.c.l.b16 %v2794
  %v4253 = vunpack.c.h.b16 %v2794
  %v4254 = vunpack.c.l.b16 %v2795
  %v4255 = vunpack.c.h.b16 %v2795
  %v4256 = vunpack.c.l.b16 %v2796
  %v4257 = vunpack.c.h.b16 %v2796
  %v4258 = vunpack.c.l.b16 %v2797
  %v4259 = vunpack.c.h.b16 %v2797
  %v4260 = vunpack.c.l.b16 %v2798
  %v4261 = vunpack.c.h.b16 %v2798
  %v4262 = vunpack.c.l.b16 %v2799
  %v4263 = vunpack.c.h.b16 %v2799
  %v4264 = vunpack.c.l.b16 %v2800
  %v4265 = vunpack.c.h.b16 %v2800
  %v4266 = vunpack.c.l.b16 %v2801
  %v4267 = vunpack.c.h.b16 %v2801
  %v4268 = vunpack.c.l.b16 %v2802
  %v4269 = vunpack.c.h.b16 %v2802
  %v4270 = vunpack.c.l.b16 %v2803
  %v4271 = vunpack.c.h.b16 %v2803
  %v4272 = vunpack.c.l.b16 %v2804
  %v4273 = vunpack.c.h.b16 %v2804
  %v4274 = vunpack.c.l.b16 %v2805
  %v4275 = vunpack.c.h.b16 %v2805
  %v4276 = vunpack.c.l.b16 %v2806
  %v4277 = vunpack.c.h.b16 %v2806
  %v4278 = vunpack.c.l.b16 %v2807
  %v4279 = vunpack.c.h.b16 %v2807
  %v4280 = vunpack.c.l.b16 %v2808
  %v4281 = vunpack.c.h.b16 %v2808
  %v4282 = vunpack.c.l.b16 %v2809
  %v4283 = vunpack.c.h.b16 %v2809
  %v4284 = vunpack.c.l.b16 %v2810
  %v4285 = vunpack.c.h.b16 %v2810
  %v4286 = vunpack.c.l.b16 %v2811
  %v4287 = vunpack.c.h.b16 %v2811
  %v4288 = vunpack.c.l.b16 %v2812
  %v4289 = vunpack.c.h.b16 %v2812
  %v4290 = vunpack.c.l.b16 %v2813
  %v4291 = vunpack.c.h.b16 %v2813
  %v4292 = vunpack.c.l.b16 %v2814
  %v4293 = vunpack.c.h.b16 %v2814
  %v4294 = vunpack.c.l.b16 %v2815
  %v4295 = vunpack.c.h.b16 %v2815
  %v4296 = vunpack.c.l.b16 %v2816
  %v4297 = vunpack.c.h.b16 %v2816
  %v4298 = vunpack.c.l.b16 %v2817
  %v4299 = vunpack.c.h.b16 %v2817
  %v4300 = vunpack.c.l.b16 %v2818
  %v4301 = vunpack.c.h.b16 %v2818
  %v4302 = vunpack.c.l.b16 %v2819
  %v4303 = vunpack.c.h.b16 %v2819
  %v4304 = vunpack.c.l.b16 %v2820
  %v4305 = vunpack.c.h.b16 %v2820
  %v4306 = vunpack.c.l.b16 %v2821
  %v4307 = vunpack.c.h.b16 %v2821
  %v4308 = vunpack.c.l.b16 %v2822
  %v4309 = vunpack.c.h.b16 %v2822
  %v4310 = vunpack.c.l.b16 %v2823
  %v4311 = vunpack.c.h.b16 %v2823
  %v4312 = vunpack.c.l.b16 %v2824
  %v4313 = vunpack.c.h.b16 %v2824
  %v4314 = vunpack.c.l.b16 %v2825
  %v4315 = vunpack.c.h.b16 %v2825
  %v4316 = vunpack.c.l.b16 %v2826
  %v4317 = vunpack.c.h.b16 %v2826
  %v4318 = vunpack.c.l.b16 %v2827
  %v4319 = vunpack.c.h.b16 %v2827
  %v4320 = vunpack.c.l.b16 %v2828
  %v4321 = vunpack.c.h.b16 %v2828
  %v4322 = vunpack.c.l.b16 %v2829
  %v4323 = vunpack.c.h.b16 %v2829
  %v4324 = vunpack.c.l.b16 %v2830
  %v4325 = vunpack.c.h.b16 %v2830
  %v4326 = vunpack.c.l.b16 %v2831
  %v4327 = vunpack.c.h.b16 %v2831
  %v4328 = vpack.c.b16 %v4076, %v4072
  %v4329 = vpack.c.b16 %v4077, %v4073
  %v4330 = vpack.c.b16 %v4078, %v4074
  %v4331 = vpack.c.b16 %v4079, %v4075
  %v4332 = vpack.c.b16 %v4084, %v4080
  %v4333 = vpack.c.b16 %v4085, %v4081
  %v4334 = vpack.c.b16 %v4086, %v4082
  %v4335 = vpack.c.b16 %v4087, %v4083
  %v4336 = vpack.c.b16 %v4092, %v4088
  %v4337 = vpack.c.b16 %v4093, %v4089
  %v4338 = vpack.c.b16 %v4094, %v4090
  %v4339 = vpack.c.b16 %v4095, %v4091
  %v4340 = vpack.c.b16 %v4100, %v4096
  %v4341 = vpack.c.b16 %v4101, %v4097
  %v4342 = vpack.c.b16 %v4102, %v4098
  %v4343 = vpack.c.b16 %v4103, %v4099
  %v4344 = vpack.c.b16 %v4108, %v4104
  %v4345 = vpack.c.b16 %v4109, %v4105
  %v4346 = vpack.c.b16 %v4110, %v4106
  %v4347 = vpack.c.b16 %v4111, %v4107
  %v4348 = vpack.c.b16 %v4116, %v4112
  %v4349 = vpack.c.b16 %v4117, %v4113
  %v4350 = vpack.c.b16 %v4118, %v4114
  %v4351 = vpack.c.b16 %v4119, %v4115
  %v4352 = vpack.c.b16 %v4124, %v4120
  %v4353 = vpack.c.b16 %v4125, %v4121
  %v4354 = vpack.c.b16 %v4126, %v4122
  %v4355 = vpack.c.b16 %v4127, %v4123
  %v4356 = vpack.c.b16 %v4132, %v4128
  %v4357 = vpack.c.b16 %v4133, %v4129
  %v4358 = vpack.c.b16 %v4134, %v4130
  %v4359 = vpack.c.b16 %v4135, %v4131
  %v4360 = vpack.c.b16 %v4140, %v4136
  %v4361 = vpack.c.b16 %v4141, %v4137
  %v4362 = vpack.c.b16 %v4142, %v4138
  %v4363 = vpack.c.b16 %v4143, %v4139
  %v4364 = vpack.c.b16 %v4148, %v4144
  %v4365 = vpack.c.b16 %v4149, %v4145
  %v4366 = vpack.c.b16 %v4150, %v4146
  %v4367 = vpack.c.b16 %v4151, %v4147
  %v4368 = vpack.c.b16 %v4156, %v4152
  %v4369 = vpack.c.b16 %v4157, %v4153
  %v4370 = vpack.c.b16 %v4158, %v4154
  %v4371 = vpack.c.b16 %v4159, %v4155
  %v4372 = vpack.c.b16 %v4164, %v4160
  %v4373 = vpack.c.b16 %v4165, %v4161
  %v4374 = vpack.c.b16 %v4166, %v4162
  %v4375 = vpack.c.b16 %v4167, %v4163
  %v4376 = vpack.c.b16 %v4172, %v4168
  %v4377 = vpack.c.b16 %v4173, %v4169
  %v4378 = vpack.c.b16 %v4174, %v4170
  %v4379 = vpack.c.b16 %v4175, %v4171
  %v4380 = vpack.c.b16 %v4180, %v4176
  %v4381 = vpack.c.b16 %v4181, %v4177
  %v4382 = vpack.c.b16 %v4182, %v4178
  %v4383 = vpack.c.b16 %v4183, %v4179
  %v4384 = vpack.c.b16 %v4188, %v4184
  %v4385 = vpack.c.b16 %v4189, %v4185
  %v4386 = vpack.c.b16 %v4190, %v4186
  %v4387 = vpack.c.b16 %v4191, %v4187
  %v4388 = vpack.c.b16 %v4196, %v4192
  %v4389 = vpack.c.b16 %v4197, %v4193
  %v4390 = vpack.c.b16 %v4198, %v4194
  %v4391 = vpack.c.b16 %v4199, %v4195
  %v4392 = vpack.c.b16 %v4204, %v4200
  %v4393 = vpack.c.b16 %v4205, %v4201
  %v4394 = vpack.c.b16 %v4206, %v4202
  %v4395 = vpack.c.b16 %v4207, %v4203
  %v4396 = vpack.c.b16 %v4212, %v4208
  %v4397 = vpack.c.b16 %v4213, %v4209
  %v4398 = vpack.c.b16 %v4214, %v4210
  %v4399 = vpack.c.b16 %v4215, %v4211
  %v4400 = vpack.c.b16 %v4220, %v4216
  %v4401 = vpack.c.b16 %v4221, %v4217
  %v4402 = vpack.c.b16 %v4222, %v4218
  %v4403 = vpack.c.b16 %v4223, %v4219
  %v4404 = vpack.c.b16 %v4228, %v4224
  %v4405 = vpack.c.b16 %v4229, %v4225
  %v4406 = vpack.c.b16 %v4230, %v4226
  %v4407 = vpack.c.b16 %v4231, %v4227
  %v4408 = vpack.c.b16 %v4236, %v4232
  %v4409 = vpack.c.b16 %v4237, %v4233
  %v4410 = vpack.c.b16 %v4238, %v4234
  %v4411 = vpack.c.b16 %v4239, %v4235
  %v4412 = vpack.c.b16 %v4244, %v4240
  %v4413 = vpack.c.b16 %v4245, %v4241
  %v4414 = vpack.c.b16 %v4246, %v4242
  %v4415 = vpack.c.b16 %v4247, %v4243
  %v4416 = vpack.c.b16 %v4252, %v4248
  %v4417 = vpack.c.b16 %v4253, %v4249
  %v4418 = vpack.c.b16 %v4254, %v4250
  %v4419 = vpack.c.b16 %v4255, %v4251
  %v4420 = vpack.c.b16 %v4260, %v4256
  %v4421 = vpack.c.b16 %v4261, %v4257
  %v4422 = vpack.c.b16 %v4262, %v4258
  %v4423 = vpack.c.b16 %v4263, %v4259
  %v4424 = vpack.c.b16 %v4268, %v4264
  %v4425 = vpack.c.b16 %v4269, %v4265
  %v4426 = vpack.c.b16 %v4270, %v4266
  %v4427 = vpack.c.b16 %v4271, %v4267
  %v4428 = vpack.c.b16 %v4276, %v4272
  %v4429 = vpack.c.b16 %v4277, %v4273
  %v4430 = vpack.c.b16 %v4278, %v4274
  %v4431 = vpack.c.b16 %v4279, %v4275
  %v4432 = vpack.c.b16 %v4284, %v4280
  %v4433 = vpack.c.b16 %v4285, %v4281
  %v4434 = vpack.c.b16 %v4286, %v4282
  %v4435 = vpack.c.b16 %v4287, %v4283
  %v4436 = vpack.c.b16 %v4292, %v4288
  %v4437 = vpack.c.b16 %v4293, %v4289
  %v4438 = vpack.c.b16 %v4294, %v4290
  %v4439 = vpack.c.b16 %v4295, %v4291
  %v4440 = vpack.c.b16 %v4300, %v4296
  %v4441 = vpack.c.b16 %v4301, %v4297
  %v4442 = vpack.c.b16 %v4302, %v4298
  %v4443 = vpack.c.b16 %v4303, %v4299
  %v4444 = vpack.c.b16 %v4308, %v4304
  %v4445 = vpack.c.b16 %v4309, %v4305
  %v4446 = vpack.c.b16 %v4310, %v4306
  %v4447 = vpack.c.b16 %v4311, %v4307
  %v4448 = vpack.c.b16 %v4316, %v4312
  %v4449 = vpack.c.b16 %v4317, %v4313
  %v4450 = vpack.c.b16 %v4318, %v4314
  %v4451 = vpack.c.b16 %v4319, %v4315
  %v4452 = vpack.c.b16 %v4324, %v4320
  %v4453 = vpack.c.b16 %v4325, %v4321
  %v4454 = vpack.c.b16 %v4326, %v4322
  %v4455 = vpack.c.b16 %v4327, %v4323
  %4584 = vmatprep.subr.bf16.mxu0 %v4329
  %4585 = vmatpush1.bf16.msra.mxu0 %v4328
  %4586 = vmatprep.subr.bf16.mxu0 %v4333
  %4587 = vmatpush1.bf16.msra.mxu0 %v4332
  %4588 = vmatprep.subr.bf16.mxu0 %v4337
  %4589 = vmatpush1.bf16.msra.mxu0 %v4336
  %4590 = vmatprep.subr.bf16.mxu0 %v4341
  %4591 = vmatpush1.bf16.msra.mxu0 %v4340
  %4592 = vmatprep.subr.bf16.mxu0 %v4345
  %4593 = vmatpush1.bf16.msra.mxu0 %v4344
  %4594 = vmatprep.subr.bf16.mxu0 %v4349
  %4595 = vmatpush1.bf16.msra.mxu0 %v4348
  %4596 = vmatprep.subr.bf16.mxu0 %v4353
  %4597 = vmatpush1.bf16.msra.mxu0 %v4352
  %4598 = vmatprep.subr.bf16.mxu0 %v4357
  %4599 = vmatpush1.bf16.msra.mxu0 %v4356
  %4600 = vmatprep.subr.bf16.mxu0 %v4361
  %4601 = vmatpush1.bf16.msra.mxu0 %v4360
  %4602 = vmatprep.subr.bf16.mxu0 %v4365
  %4603 = vmatpush1.bf16.msra.mxu0 %v4364
  %4604 = vmatprep.subr.bf16.mxu0 %v4369
  %4605 = vmatpush1.bf16.msra.mxu0 %v4368
  %4606 = vmatprep.subr.bf16.mxu0 %v4373
  %4607 = vmatpush1.bf16.msra.mxu0 %v4372
  %4608 = vmatprep.subr.bf16.mxu0 %v4377
  %4609 = vmatpush1.bf16.msra.mxu0 %v4376
  %4610 = vmatprep.subr.bf16.mxu0 %v4381
  %4611 = vmatpush1.bf16.msra.mxu0 %v4380
  %4612 = vmatprep.subr.bf16.mxu0 %v4385
  %4613 = vmatpush1.bf16.msra.mxu0 %v4384
  %4614 = vmatprep.subr.bf16.mxu0 %v4389
  %4615 = vmatpush1.bf16.msra.mxu0 %v4388
  %4616 = vmatprep.mubr.bf16.mxu0 %v2697
  %4617 = vmatmul.mubr.bf16.gmra.mrb[0].mxu0 %v2696
  %v4618 = vpop.f32.mrb[0].mxu0
  %v4619 = vadd.f32 %v3820, %v4618
  %v4620 = vpop.f32.mrb[0].mxu0
  %v4621 = vadd.f32 %v3822, %v4620
  %v4622 = vpop.f32.mrb[0].mxu0
  %v4623 = vadd.f32 %v3824, %v4622
  %v4624 = vpop.f32.mrb[0].mxu0
  %v4625 = vadd.f32 %v3826, %v4624
  %4626 = vmatprep.mubr.bf16.mxu0 %v2701
  %4627 = vmatmul.mubr.bf16.gmra.mrb[0].mxu0 %v2700
  %v4628 = vpop.f32.mrb[0].mxu0
  %v4629 = vadd.f32 %v3830, %v4628
  %v4630 = vpop.f32.mrb[0].mxu0
  %v4631 = vadd.f32 %v3832, %v4630
  %v4632 = vpop.f32.mrb[0].mxu0
  %v4633 = vadd.f32 %v3834, %v4632
  %v4634 = vpop.f32.mrb[0].mxu0
  %v4635 = vadd.f32 %v3836, %v4634
  %4636 = vdwg.mxu0
  %4637 = vmatprep.subr.bf16.mxu0 %v4393
  %4638 = vmatpush1.bf16.msra.mxu0 %v4392
  %4639 = vmatprep.subr.bf16.mxu0 %v4397
  %4640 = vmatpush1.bf16.msra.mxu0 %v4396
  %4641 = vmatprep.subr.bf16.mxu0 %v4401
  %4642 = vmatpush1.bf16.msra.mxu0 %v4400
  %4643 = vmatprep.subr.bf16.mxu0 %v4405
  %4644 = vmatpush1.bf16.msra.mxu0 %v4404
  %4645 = vmatprep.subr.bf16.mxu0 %v4409
  %4646 = vmatpush1.bf16.msra.mxu0 %v4408
  %4647 = vmatprep.subr.bf16.mxu0 %v4413
  %4648 = vmatpush1.bf16.msra.mxu0 %v4412
  %4649 = vmatprep.subr.bf16.mxu0 %v4417
  %4650 = vmatpush1.bf16.msra.mxu0 %v4416
  %4651 = vmatprep.subr.bf16.mxu0 %v4421
  %4652 = vmatpush1.bf16.msra.mxu0 %v4420
  %4653 = vmatprep.subr.bf16.mxu0 %v4425
  %4654 = vmatpush1.bf16.msra.mxu0 %v4424
  %4655 = vmatprep.subr.bf16.mxu0 %v4429
  %4656 = vmatpush1.bf16.msra.mxu0 %v4428
  %4657 = vmatprep.subr.bf16.mxu0 %v4433
  %4658 = vmatpush1.bf16.msra.mxu0 %v4432
  %4659 = vmatprep.subr.bf16.mxu0 %v4437
  %4660 = vmatpush1.bf16.msra.mxu0 %v4436
  %4661 = vmatprep.subr.bf16.mxu0 %v4441
  %4662 = vmatpush1.bf16.msra.mxu0 %v4440
  %4663 = vmatprep.subr.bf16.mxu0 %v4445
  %4664 = vmatpush1.bf16.msra.mxu0 %v4444
  %4665 = vmatprep.subr.bf16.mxu0 %v4449
  %4666 = vmatpush1.bf16.msra.mxu0 %v4448
  %4667 = vmatprep.subr.bf16.mxu0 %v4453
  %4668 = vmatpush1.bf16.msra.mxu0 %v4452
  %4669 = vmatprep.mubr.bf16.mxu0 %v2699
  %4670 = vmatmul.mubr.bf16.gmra.mrb[0].mxu0 %v2698
  %v4671 = vpop.f32.mrb[0].mxu0
  %v4672 = vadd.f32 %v4619, %v4671
  %v4673 = vpop.f32.mrb[0].mxu0
  %v4674 = vadd.f32 %v4621, %v4673
  %v4675 = vpop.f32.mrb[0].mxu0
  %v4676 = vadd.f32 %v4623, %v4675
  %v4677 = vpop.f32.mrb[0].mxu0
  %v4678 = vadd.f32 %v4625, %v4677
  %4679 = vmatprep.mubr.bf16.mxu0 %v2703
  %4680 = vmatmul.mubr.bf16.gmra.mrb[0].mxu0 %v2702
  %v4681 = vpop.f32.mrb[0].mxu0
  %v4682 = vadd.f32 %v4629, %v4681
  %v4683 = vpop.f32.mrb[0].mxu0
  %v4684 = vadd.f32 %v4631, %v4683
  %v4685 = vpop.f32.mrb[0].mxu0
  %v4686 = vadd.f32 %v4633, %v4685
  %v4687 = vpop.f32.mrb[0].mxu0
  %v4688 = vadd.f32 %v4635, %v4687
  %4689 = vdwg.mxu0
  %4690 = vmatprep.subr.bf16.mxu0 %v4331
  %4691 = vmatpush1.bf16.msra.mxu0 %v4330
  %4692 = vmatprep.subr.bf16.mxu0 %v4335
  %4693 = vmatpush1.bf16.msra.mxu0 %v4334
  %4694 = vmatprep.subr.bf16.mxu0 %v4339
  %4695 = vmatpush1.bf16.msra.mxu0 %v4338
  %4696 = vmatprep.subr.bf16.mxu0 %v4343
  %4697 = vmatpush1.bf16.msra.mxu0 %v4342
  %4698 = vmatprep.subr.bf16.mxu0 %v4347
  %4699 = vmatpush1.bf16.msra.mxu0 %v4346
  %4700 = vmatprep.subr.bf16.mxu0 %v4351
  %4701 = vmatpush1.bf16.msra.mxu0 %v4350
  %4702 = vmatprep.subr.bf16.mxu0 %v4355
  %4703 = vmatpush1.bf16.msra.mxu0 %v4354
  %4704 = vmatprep.subr.bf16.mxu0 %v4359
  %4705 = vmatpush1.bf16.msra.mxu0 %v4358
  %4706 = vmatprep.subr.bf16.mxu0 %v4363
  %4707 = vmatpush1.bf16.msra.mxu0 %v4362
  %4708 = vmatprep.subr.bf16.mxu0 %v4367
  %4709 = vmatpush1.bf16.msra.mxu0 %v4366
  %4710 = vmatprep.subr.bf16.mxu0 %v4371
  %4711 = vmatpush1.bf16.msra.mxu0 %v4370
  %4712 = vmatprep.subr.bf16.mxu0 %v4375
  %4713 = vmatpush1.bf16.msra.mxu0 %v4374
  %4714 = vmatprep.subr.bf16.mxu0 %v4379
  %4715 = vmatpush1.bf16.msra.mxu0 %v4378
  %4716 = vmatprep.subr.bf16.mxu0 %v4383
  %4717 = vmatpush1.bf16.msra.mxu0 %v4382
  %4718 = vmatprep.subr.bf16.mxu0 %v4387
  %4719 = vmatpush1.bf16.msra.mxu0 %v4386
  %4720 = vmatprep.subr.bf16.mxu0 %v4391
  %4721 = vmatpush1.bf16.msra.mxu0 %v4390
  %4722 = vmatprep.mubr.bf16.mxu0 %v2697
  %4723 = vmatmul.mubr.bf16.gmra.mrb[0].mxu0 %v2696
  %v4724 = vpop.f32.mrb[0].mxu0
  %v4725 = vadd.f32 %v3926, %v4724
  %v4726 = vpop.f32.mrb[0].mxu0
  %v4727 = vadd.f32 %v3928, %v4726
  %v4728 = vpop.f32.mrb[0].mxu0
  %v4729 = vadd.f32 %v3930, %v4728
  %v4730 = vpop.f32.mrb[0].mxu0
  %v4731 = vadd.f32 %v3932, %v4730
  %4732 = vmatprep.mubr.bf16.mxu0 %v2701
  %4733 = vmatmul.mubr.bf16.gmra.mrb[0].mxu0 %v2700
  %v4734 = vpop.f32.mrb[0].mxu0
  %v4735 = vadd.f32 %v3936, %v4734
  %v4736 = vpop.f32.mrb[0].mxu0
  %v4737 = vadd.f32 %v3938, %v4736
  %v4738 = vpop.f32.mrb[0].mxu0
  %v4739 = vadd.f32 %v3940, %v4738
  %v4740 = vpop.f32.mrb[0].mxu0
  %v4741 = vadd.f32 %v3942, %v4740
  %4742 = vdwg.mxu0
  %4743 = vmatprep.subr.bf16.mxu0 %v4395
  %4744 = vmatpush1.bf16.msra.mxu0 %v4394
  %4745 = vmatprep.subr.bf16.mxu0 %v4399
  %4746 = vmatpush1.bf16.msra.mxu0 %v4398
  %4747 = vmatprep.subr.bf16.mxu0 %v4403
  %4748 = vmatpush1.bf16.msra.mxu0 %v4402
  %4749 = vmatprep.subr.bf16.mxu0 %v4407
  %4750 = vmatpush1.bf16.msra.mxu0 %v4406
  %4751 = vmatprep.subr.bf16.mxu0 %v4411
  %4752 = vmatpush1.bf16.msra.mxu0 %v4410
  %4753 = vmatprep.subr.bf16.mxu0 %v4415
  %4754 = vmatpush1.bf16.msra.mxu0 %v4414
  %4755 = vmatprep.subr.bf16.mxu0 %v4419
  %4756 = vmatpush1.bf16.msra.mxu0 %v4418
  %4757 = vmatprep.subr.bf16.mxu0 %v4423
  %4758 = vmatpush1.bf16.msra.mxu0 %v4422
  %4759 = vmatprep.subr.bf16.mxu0 %v4427
  %4760 = vmatpush1.bf16.msra.mxu0 %v4426
  %4761 = vmatprep.subr.bf16.mxu0 %v4431
  %4762 = vmatpush1.bf16.msra.mxu0 %v4430
  %4763 = vmatprep.subr.bf16.mxu0 %v4435
  %4764 = vmatpush1.bf16.msra.mxu0 %v4434
  %4765 = vmatprep.subr.bf16.mxu0 %v4439
  %4766 = vmatpush1.bf16.msra.mxu0 %v4438
  %4767 = vmatprep.subr.bf16.mxu0 %v4443
  %4768 = vmatpush1.bf16.msra.mxu0 %v4442
  %4769 = vmatprep.subr.bf16.mxu0 %v4447
  %4770 = vmatpush1.bf16.msra.mxu0 %v4446
  %4771 = vmatprep.subr.bf16.mxu0 %v4451
  %4772 = vmatpush1.bf16.msra.mxu0 %v4450
  %4773 = vmatprep.subr.bf16.mxu0 %v4455
  %4774 = vmatpush1.bf16.msra.mxu0 %v4454
  %4775 = vmatprep.mubr.bf16.mxu0 %v2699
  %4776 = vmatmul.mubr.bf16.gmra.mrb[0].mxu0 %v2698
  %v4777 = vpop.f32.mrb[0].mxu0
  %v4778 = vadd.f32 %v4725, %v4777
  %v4779 = vpop.f32.mrb[0].mxu0
  %v4780 = vadd.f32 %v4727, %v4779
  %v4781 = vpop.f32.mrb[0].mxu0
  %v4782 = vadd.f32 %v4729, %v4781
  %v4783 = vpop.f32.mrb[0].mxu0
  %v4784 = vadd.f32 %v4731, %v4783
  %4785 = vmatprep.mubr.bf16.mxu0 %v2703
  %4786 = vmatmul.mubr.bf16.gmra.mrb[0].mxu0 %v2702
  %v4787 = vpop.f32.mrb[0].mxu0
  %v4788 = vadd.f32 %v4735, %v4787
  %v4789 = vpop.f32.mrb[0].mxu0
  %v4790 = vadd.f32 %v4737, %v4789
  %v4791 = vpop.f32.mrb[0].mxu0
  %v4792 = vadd.f32 %v4739, %v4791
  %v4793 = vpop.f32.mrb[0].mxu0
  %v4794 = vadd.f32 %v4741, %v4793
  %4795 = vdwg.mxu0
  %s4796 = scalar_lea.vmem %s5, 32
  %v4797 = vld [vmem:[%s4796] sm:$0xf]
  %v4798 = vld [vmem:[%s4796 + $0x4] sm:$0xf]
  %v4799 = vld [vmem:[%s4796 + $0x8] sm:$0xf]
  %v4800 = vld [vmem:[%s4796 + $0xc] sm:$0xf]
  %v4805 = vunpack.c.l.b16 %v4797
  %v4806 = vunpack.c.l.b16 %v4798
  %v4807 = vunpack.c.l.b16 %v4799
  %v4808 = vunpack.c.l.b16 %v4800
  %v4809 = vpack.c.b16 %v4806, %v4805
  %v4810 = vpack.c.b16 %v4808, %v4807
  %4813 = vmatprep.subr.bf16.mxu0 %v2543
  %4814 = vmatpush1.bf16.msra.mxu0 %v2542
  %4815 = vmatprep.subr.bf16.mxu0 %v2547
  %4816 = vmatpush1.bf16.msra.mxu0 %v2546
  %4817 = vmatprep.subr.bf16.mxu0 %v2551
  %4818 = vmatpush1.bf16.msra.mxu0 %v2550
  %4819 = vmatprep.subr.bf16.mxu0 %v2555
  %4820 = vmatpush1.bf16.msra.mxu0 %v2554
  %4821 = vmatprep.subr.bf16.mxu0 %v2559
  %4822 = vmatpush1.bf16.msra.mxu0 %v2558
  %4823 = vmatprep.subr.bf16.mxu0 %v2563
  %4824 = vmatpush1.bf16.msra.mxu0 %v2562
  %4825 = vmatprep.subr.bf16.mxu0 %v2567
  %4826 = vmatpush1.bf16.msra.mxu0 %v2566
  %4827 = vmatprep.subr.bf16.mxu0 %v2571
  %4828 = vmatpush1.bf16.msra.mxu0 %v2570
  %4829 = vmatprep.subr.bf16.mxu0 0
  %4830 = vmatpush1.bf16.msra.mxu0 0
  %4831 = vmatprep.subr.bf16.mxu0 0
  %4832 = vmatpush1.bf16.msra.mxu0 0
  %4833 = vmatprep.subr.bf16.mxu0 0
  %4834 = vmatpush1.bf16.msra.mxu0 0
  %4835 = vmatprep.subr.bf16.mxu0 0
  %4836 = vmatpush1.bf16.msra.mxu0 0
  %4837 = vmatprep.subr.bf16.mxu0 0
  %4838 = vmatpush1.bf16.msra.mxu0 0
  %4839 = vmatprep.subr.bf16.mxu0 0
  %4840 = vmatpush1.bf16.msra.mxu0 0
  %4841 = vmatprep.subr.bf16.mxu0 0
  %4842 = vmatpush1.bf16.msra.mxu0 0
  %4843 = vmatprep.subr.bf16.mxu0 0
  %4844 = vmatpush1.bf16.msra.mxu0 0
  %4845 = vmatprep.mubr.bf16.mxu0 0
  %4846 = vmatmul.mubr.bf16.gmra.mrb[0].mxu0 %v4809
  %v4847 = vpop.f32.mrb[0].mxu0
  %v4848 = vadd.f32 0.0, %v4847
  %v4849 = vpop.f32.mrb[0].mxu0
  %v4850 = vadd.f32 0.0, %v4849
  %v4851 = vpop.f32.mrb[0].mxu0
  %v4852 = vadd.f32 0.0, %v4851
  %v4853 = vpop.f32.mrb[0].mxu0
  %v4854 = vadd.f32 0.0, %v4853
  %4855 = vmatprep.mubr.bf16.mxu0 0
  %4856 = vmatmul.mubr.bf16.gmra.mrb[0].mxu0 %v4810
  %v4857 = vpop.f32.mrb[0].mxu0
  %v4858 = vadd.f32 0.0, %v4857
  %v4859 = vpop.f32.mrb[0].mxu0
  %v4860 = vadd.f32 0.0, %v4859
  %v4861 = vpop.f32.mrb[0].mxu0
  %v4862 = vadd.f32 0.0, %v4861
  %v4863 = vpop.f32.mrb[0].mxu0
  %v4864 = vadd.f32 0.0, %v4863
  %4865 = vdwg.mxu0
  %4866 = vmatprep.subr.bf16.mxu0 %v2545
  %4867 = vmatpush1.bf16.msra.mxu0 %v2544
  %4868 = vmatprep.subr.bf16.mxu0 %v2549
  %4869 = vmatpush1.bf16.msra.mxu0 %v2548
  %4870 = vmatprep.subr.bf16.mxu0 %v2553
  %4871 = vmatpush1.bf16.msra.mxu0 %v2552
  %4872 = vmatprep.subr.bf16.mxu0 %v2557
  %4873 = vmatpush1.bf16.msra.mxu0 %v2556
  %4874 = vmatprep.subr.bf16.mxu0 %v2561
  %4875 = vmatpush1.bf16.msra.mxu0 %v2560
  %4876 = vmatprep.subr.bf16.mxu0 %v2565
  %4877 = vmatpush1.bf16.msra.mxu0 %v2564
  %4878 = vmatprep.subr.bf16.mxu0 %v2569
  %4879 = vmatpush1.bf16.msra.mxu0 %v2568
  %4880 = vmatprep.subr.bf16.mxu0 %v2573
  %4881 = vmatpush1.bf16.msra.mxu0 %v2572
  %4882 = vmatprep.subr.bf16.mxu0 0
  %4883 = vmatpush1.bf16.msra.mxu0 0
  %4884 = vmatprep.subr.bf16.mxu0 0
  %4885 = vmatpush1.bf16.msra.mxu0 0
  %4886 = vmatprep.subr.bf16.mxu0 0
  %4887 = vmatpush1.bf16.msra.mxu0 0
  %4888 = vmatprep.subr.bf16.mxu0 0
  %4889 = vmatpush1.bf16.msra.mxu0 0
  %4890 = vmatprep.subr.bf16.mxu0 0
  %4891 = vmatpush1.bf16.msra.mxu0 0
  %4892 = vmatprep.subr.bf16.mxu0 0
  %4893 = vmatpush1.bf16.msra.mxu0 0
  %4894 = vmatprep.subr.bf16.mxu0 0
  %4895 = vmatpush1.bf16.msra.mxu0 0
  %4896 = vmatprep.subr.bf16.mxu0 0
  %4897 = vmatpush1.bf16.msra.mxu0 0
  %4898 = vmatprep.mubr.bf16.mxu0 0
  %4899 = vmatmul.mubr.bf16.gmra.mrb[0].mxu0 %v4809
  %v4900 = vpop.f32.mrb[0].mxu0
  %v4901 = vadd.f32 0.0, %v4900
  %v4902 = vpop.f32.mrb[0].mxu0
  %v4903 = vadd.f32 0.0, %v4902
  %v4904 = vpop.f32.mrb[0].mxu0
  %v4905 = vadd.f32 0.0, %v4904
  %v4906 = vpop.f32.mrb[0].mxu0
  %v4907 = vadd.f32 0.0, %v4906
  %4908 = vmatprep.mubr.bf16.mxu0 0
  %4909 = vmatmul.mubr.bf16.gmra.mrb[0].mxu0 %v4810
  %v4910 = vpop.f32.mrb[0].mxu0
  %v4911 = vadd.f32 0.0, %v4910
  %v4912 = vpop.f32.mrb[0].mxu0
  %v4913 = vadd.f32 0.0, %v4912
  %v4914 = vpop.f32.mrb[0].mxu0
  %v4915 = vadd.f32 0.0, %v4914
  %v4916 = vpop.f32.mrb[0].mxu0
  %v4917 = vadd.f32 0.0, %v4916
  %4918 = vdwg.mxu0
  %v4919 = vpack.c.bf16 %v4852, %v4848
  %v4920 = vpack.c.bf16 %v4854, %v4850
  %v4921 = vpack.c.bf16 %v4905, %v4901
  %v4922 = vpack.c.bf16 %v4907, %v4903
  %v4923 = vpack.c.bf16 %v4862, %v4858
  %v4924 = vpack.c.bf16 %v4864, %v4860
  %v4925 = vpack.c.bf16 %v4915, %v4911
  %v4926 = vpack.c.bf16 %v4917, %v4913
  %s4927 = scalar_lea.vmem %s6, 2048
  %v4928 = vld [vmem:[%s4927] sm:$0xff]
  %v4929 = vld [vmem:[%s4927 + $0x8] sm:$0xff]
  %v4930 = vld [vmem:[%s4927 + $0x10] sm:$0xff]
  %v4931 = vld [vmem:[%s4927 + $0x18] sm:$0xff]
  %v4932 = vld [vmem:[%s4927 + $0x20] sm:$0xff]
  %v4933 = vld [vmem:[%s4927 + $0x28] sm:$0xff]
  %v4934 = vld [vmem:[%s4927 + $0x30] sm:$0xff]
  %v4935 = vld [vmem:[%s4927 + $0x38] sm:$0xff]
  %v4936 = vld [vmem:[%s4927 + $0x40] sm:$0xff]
  %v4937 = vld [vmem:[%s4927 + $0x48] sm:$0xff]
  %v4938 = vld [vmem:[%s4927 + $0x50] sm:$0xff]
  %v4939 = vld [vmem:[%s4927 + $0x58] sm:$0xff]
  %v4940 = vld [vmem:[%s4927 + $0x60] sm:$0xff]
  %v4941 = vld [vmem:[%s4927 + $0x68] sm:$0xff]
  %v4942 = vld [vmem:[%s4927 + $0x70] sm:$0xff]
  %v4943 = vld [vmem:[%s4927 + $0x78] sm:$0xff]
  %v4944 = vld [vmem:[%s4927 + $0x80] sm:$0xff]
  %v4945 = vld [vmem:[%s4927 + $0x88] sm:$0xff]
  %v4946 = vld [vmem:[%s4927 + $0x90] sm:$0xff]
  %v4947 = vld [vmem:[%s4927 + $0x98] sm:$0xff]
  %v4948 = vld [vmem:[%s4927 + $0xa0] sm:$0xff]
  %v4949 = vld [vmem:[%s4927 + $0xa8] sm:$0xff]
  %v4950 = vld [vmem:[%s4927 + $0xb0] sm:$0xff]
  %v4951 = vld [vmem:[%s4927 + $0xb8] sm:$0xff]
  %v4952 = vld [vmem:[%s4927 + $0xc0] sm:$0xff]
  %v4953 = vld [vmem:[%s4927 + $0xc8] sm:$0xff]
  %v4954 = vld [vmem:[%s4927 + $0xd0] sm:$0xff]
  %v4955 = vld [vmem:[%s4927 + $0xd8] sm:$0xff]
  %v4956 = vld [vmem:[%s4927 + $0xe0] sm:$0xff]
  %v4957 = vld [vmem:[%s4927 + $0xe8] sm:$0xff]
  %v4958 = vld [vmem:[%s4927 + $0xf0] sm:$0xff]
  %v4959 = vld [vmem:[%s4927 + $0xf8] sm:$0xff]
  %v4960 = vld [vmem:[%s4927 + $0x100] sm:$0xff]
  %v4961 = vld [vmem:[%s4927 + $0x108] sm:$0xff]
  %v4962 = vld [vmem:[%s4927 + $0x110] sm:$0xff]
  %v4963 = vld [vmem:[%s4927 + $0x118] sm:$0xff]
  %v4964 = vld [vmem:[%s4927 + $0x120] sm:$0xff]
  %v4965 = vld [vmem:[%s4927 + $0x128] sm:$0xff]
  %v4966 = vld [vmem:[%s4927 + $0x130] sm:$0xff]
  %v4967 = vld [vmem:[%s4927 + $0x138] sm:$0xff]
  %v4968 = vld [vmem:[%s4927 + $0x140] sm:$0xff]
  %v4969 = vld [vmem:[%s4927 + $0x148] sm:$0xff]
  %v4970 = vld [vmem:[%s4927 + $0x150] sm:$0xff]
  %v4971 = vld [vmem:[%s4927 + $0x158] sm:$0xff]
  %v4972 = vld [vmem:[%s4927 + $0x160] sm:$0xff]
  %v4973 = vld [vmem:[%s4927 + $0x168] sm:$0xff]
  %v4974 = vld [vmem:[%s4927 + $0x170] sm:$0xff]
  %v4975 = vld [vmem:[%s4927 + $0x178] sm:$0xff]
  %v4976 = vld [vmem:[%s4927 + $0x180] sm:$0xff]
  %v4977 = vld [vmem:[%s4927 + $0x188] sm:$0xff]
  %v4978 = vld [vmem:[%s4927 + $0x190] sm:$0xff]
  %v4979 = vld [vmem:[%s4927 + $0x198] sm:$0xff]
  %v4980 = vld [vmem:[%s4927 + $0x1a0] sm:$0xff]
  %v4981 = vld [vmem:[%s4927 + $0x1a8] sm:$0xff]
  %v4982 = vld [vmem:[%s4927 + $0x1b0] sm:$0xff]
  %v4983 = vld [vmem:[%s4927 + $0x1b8] sm:$0xff]
  %v4984 = vld [vmem:[%s4927 + $0x1c0] sm:$0xff]
  %v4985 = vld [vmem:[%s4927 + $0x1c8] sm:$0xff]
  %v4986 = vld [vmem:[%s4927 + $0x1d0] sm:$0xff]
  %v4987 = vld [vmem:[%s4927 + $0x1d8] sm:$0xff]
  %v4988 = vld [vmem:[%s4927 + $0x1e0] sm:$0xff]
  %v4989 = vld [vmem:[%s4927 + $0x1e8] sm:$0xff]
  %v4990 = vld [vmem:[%s4927 + $0x1f0] sm:$0xff]
  %v4991 = vld [vmem:[%s4927 + $0x1f8] sm:$0xff]
  %v4992 = vld [vmem:[%s4927 + $0x200] sm:$0xff]
  %v4993 = vld [vmem:[%s4927 + $0x208] sm:$0xff]
  %v4994 = vld [vmem:[%s4927 + $0x210] sm:$0xff]
  %v4995 = vld [vmem:[%s4927 + $0x218] sm:$0xff]
  %v4996 = vld [vmem:[%s4927 + $0x220] sm:$0xff]
  %v4997 = vld [vmem:[%s4927 + $0x228] sm:$0xff]
  %v4998 = vld [vmem:[%s4927 + $0x230] sm:$0xff]
  %v4999 = vld [vmem:[%s4927 + $0x238] sm:$0xff]
  %v5000 = vld [vmem:[%s4927 + $0x240] sm:$0xff]
  %v5001 = vld [vmem:[%s4927 + $0x248] sm:$0xff]
  %v5002 = vld [vmem:[%s4927 + $0x250] sm:$0xff]
  %v5003 = vld [vmem:[%s4927 + $0x258] sm:$0xff]
  %v5004 = vld [vmem:[%s4927 + $0x260] sm:$0xff]
  %v5005 = vld [vmem:[%s4927 + $0x268] sm:$0xff]
  %v5006 = vld [vmem:[%s4927 + $0x270] sm:$0xff]
  %v5007 = vld [vmem:[%s4927 + $0x278] sm:$0xff]
  %v5008 = vld [vmem:[%s4927 + $0x280] sm:$0xff]
  %v5009 = vld [vmem:[%s4927 + $0x288] sm:$0xff]
  %v5010 = vld [vmem:[%s4927 + $0x290] sm:$0xff]
  %v5011 = vld [vmem:[%s4927 + $0x298] sm:$0xff]
  %v5012 = vld [vmem:[%s4927 + $0x2a0] sm:$0xff]
  %v5013 = vld [vmem:[%s4927 + $0x2a8] sm:$0xff]
  %v5014 = vld [vmem:[%s4927 + $0x2b0] sm:$0xff]
  %v5015 = vld [vmem:[%s4927 + $0x2b8] sm:$0xff]
  %v5016 = vld [vmem:[%s4927 + $0x2c0] sm:$0xff]
  %v5017 = vld [vmem:[%s4927 + $0x2c8] sm:$0xff]
  %v5018 = vld [vmem:[%s4927 + $0x2d0] sm:$0xff]
  %v5019 = vld [vmem:[%s4927 + $0x2d8] sm:$0xff]
  %v5020 = vld [vmem:[%s4927 + $0x2e0] sm:$0xff]
  %v5021 = vld [vmem:[%s4927 + $0x2e8] sm:$0xff]
  %v5022 = vld [vmem:[%s4927 + $0x2f0] sm:$0xff]
  %v5023 = vld [vmem:[%s4927 + $0x2f8] sm:$0xff]
  %v5024 = vld [vmem:[%s4927 + $0x300] sm:$0xff]
  %v5025 = vld [vmem:[%s4927 + $0x308] sm:$0xff]
  %v5026 = vld [vmem:[%s4927 + $0x310] sm:$0xff]
  %v5027 = vld [vmem:[%s4927 + $0x318] sm:$0xff]
  %v5028 = vld [vmem:[%s4927 + $0x320] sm:$0xff]
  %v5029 = vld [vmem:[%s4927 + $0x328] sm:$0xff]
  %v5030 = vld [vmem:[%s4927 + $0x330] sm:$0xff]
  %v5031 = vld [vmem:[%s4927 + $0x338] sm:$0xff]
  %v5032 = vld [vmem:[%s4927 + $0x340] sm:$0xff]
  %v5033 = vld [vmem:[%s4927 + $0x348] sm:$0xff]
  %v5034 = vld [vmem:[%s4927 + $0x350] sm:$0xff]
  %v5035 = vld [vmem:[%s4927 + $0x358] sm:$0xff]
  %v5036 = vld [vmem:[%s4927 + $0x360] sm:$0xff]
  %v5037 = vld [vmem:[%s4927 + $0x368] sm:$0xff]
  %v5038 = vld [vmem:[%s4927 + $0x370] sm:$0xff]
  %v5039 = vld [vmem:[%s4927 + $0x378] sm:$0xff]
  %v5040 = vld [vmem:[%s4927 + $0x380] sm:$0xff]
  %v5041 = vld [vmem:[%s4927 + $0x388] sm:$0xff]
  %v5042 = vld [vmem:[%s4927 + $0x390] sm:$0xff]
  %v5043 = vld [vmem:[%s4927 + $0x398] sm:$0xff]
  %v5044 = vld [vmem:[%s4927 + $0x3a0] sm:$0xff]
  %v5045 = vld [vmem:[%s4927 + $0x3a8] sm:$0xff]
  %v5046 = vld [vmem:[%s4927 + $0x3b0] sm:$0xff]
  %v5047 = vld [vmem:[%s4927 + $0x3b8] sm:$0xff]
  %v5048 = vld [vmem:[%s4927 + $0x3c0] sm:$0xff]
  %v5049 = vld [vmem:[%s4927 + $0x3c8] sm:$0xff]
  %v5050 = vld [vmem:[%s4927 + $0x3d0] sm:$0xff]
  %v5051 = vld [vmem:[%s4927 + $0x3d8] sm:$0xff]
  %v5052 = vld [vmem:[%s4927 + $0x3e0] sm:$0xff]
  %v5053 = vld [vmem:[%s4927 + $0x3e8] sm:$0xff]
  %v5054 = vld [vmem:[%s4927 + $0x3f0] sm:$0xff]
  %v5055 = vld [vmem:[%s4927 + $0x3f8] sm:$0xff]
  %v5184 = vunpack.c.l.b16 %v4928
  %v5185 = vunpack.c.h.b16 %v4928
  %v5186 = vunpack.c.l.b16 %v4929
  %v5187 = vunpack.c.h.b16 %v4929
  %v5188 = vunpack.c.l.b16 %v4930
  %v5189 = vunpack.c.h.b16 %v4930
  %v5190 = vunpack.c.l.b16 %v4931
  %v5191 = vunpack.c.h.b16 %v4931
  %v5192 = vunpack.c.l.b16 %v4932
  %v5193 = vunpack.c.h.b16 %v4932
  %v5194 = vunpack.c.l.b16 %v4933
  %v5195 = vunpack.c.h.b16 %v4933
  %v5196 = vunpack.c.l.b16 %v4934
  %v5197 = vunpack.c.h.b16 %v4934
  %v5198 = vunpack.c.l.b16 %v4935
  %v5199 = vunpack.c.h.b16 %v4935
  %v5200 = vunpack.c.l.b16 %v4936
  %v5201 = vunpack.c.h.b16 %v4936
  %v5202 = vunpack.c.l.b16 %v4937
  %v5203 = vunpack.c.h.b16 %v4937
  %v5204 = vunpack.c.l.b16 %v4938
  %v5205 = vunpack.c.h.b16 %v4938
  %v5206 = vunpack.c.l.b16 %v4939
  %v5207 = vunpack.c.h.b16 %v4939
  %v5208 = vunpack.c.l.b16 %v4940
  %v5209 = vunpack.c.h.b16 %v4940
  %v5210 = vunpack.c.l.b16 %v4941
  %v5211 = vunpack.c.h.b16 %v4941
  %v5212 = vunpack.c.l.b16 %v4942
  %v5213 = vunpack.c.h.b16 %v4942
  %v5214 = vunpack.c.l.b16 %v4943
  %v5215 = vunpack.c.h.b16 %v4943
  %v5216 = vunpack.c.l.b16 %v4944
  %v5217 = vunpack.c.h.b16 %v4944
  %v5218 = vunpack.c.l.b16 %v4945
  %v5219 = vunpack.c.h.b16 %v4945
  %v5220 = vunpack.c.l.b16 %v4946
  %v5221 = vunpack.c.h.b16 %v4946
  %v5222 = vunpack.c.l.b16 %v4947
  %v5223 = vunpack.c.h.b16 %v4947
  %v5224 = vunpack.c.l.b16 %v4948
  %v5225 = vunpack.c.h.b16 %v4948
  %v5226 = vunpack.c.l.b16 %v4949
  %v5227 = vunpack.c.h.b16 %v4949
  %v5228 = vunpack.c.l.b16 %v4950
  %v5229 = vunpack.c.h.b16 %v4950
  %v5230 = vunpack.c.l.b16 %v4951
  %v5231 = vunpack.c.h.b16 %v4951
  %v5232 = vunpack.c.l.b16 %v4952
  %v5233 = vunpack.c.h.b16 %v4952
  %v5234 = vunpack.c.l.b16 %v4953
  %v5235 = vunpack.c.h.b16 %v4953
  %v5236 = vunpack.c.l.b16 %v4954
  %v5237 = vunpack.c.h.b16 %v4954
  %v5238 = vunpack.c.l.b16 %v4955
  %v5239 = vunpack.c.h.b16 %v4955
  %v5240 = vunpack.c.l.b16 %v4956
  %v5241 = vunpack.c.h.b16 %v4956
  %v5242 = vunpack.c.l.b16 %v4957
  %v5243 = vunpack.c.h.b16 %v4957
  %v5244 = vunpack.c.l.b16 %v4958
  %v5245 = vunpack.c.h.b16 %v4958
  %v5246 = vunpack.c.l.b16 %v4959
  %v5247 = vunpack.c.h.b16 %v4959
  %v5248 = vunpack.c.l.b16 %v4960
  %v5249 = vunpack.c.h.b16 %v4960
  %v5250 = vunpack.c.l.b16 %v4961
  %v5251 = vunpack.c.h.b16 %v4961
  %v5252 = vunpack.c.l.b16 %v4962
  %v5253 = vunpack.c.h.b16 %v4962
  %v5254 = vunpack.c.l.b16 %v4963
  %v5255 = vunpack.c.h.b16 %v4963
  %v5256 = vunpack.c.l.b16 %v4964
  %v5257 = vunpack.c.h.b16 %v4964
  %v5258 = vunpack.c.l.b16 %v4965
  %v5259 = vunpack.c.h.b16 %v4965
  %v5260 = vunpack.c.l.b16 %v4966
  %v5261 = vunpack.c.h.b16 %v4966
  %v5262 = vunpack.c.l.b16 %v4967
  %v5263 = vunpack.c.h.b16 %v4967
  %v5264 = vunpack.c.l.b16 %v4968
  %v5265 = vunpack.c.h.b16 %v4968
  %v5266 = vunpack.c.l.b16 %v4969
  %v5267 = vunpack.c.h.b16 %v4969
  %v5268 = vunpack.c.l.b16 %v4970
  %v5269 = vunpack.c.h.b16 %v4970
  %v5270 = vunpack.c.l.b16 %v4971
  %v5271 = vunpack.c.h.b16 %v4971
  %v5272 = vunpack.c.l.b16 %v4972
  %v5273 = vunpack.c.h.b16 %v4972
  %v5274 = vunpack.c.l.b16 %v4973
  %v5275 = vunpack.c.h.b16 %v4973
  %v5276 = vunpack.c.l.b16 %v4974
  %v5277 = vunpack.c.h.b16 %v4974
  %v5278 = vunpack.c.l.b16 %v4975
  %v5279 = vunpack.c.h.b16 %v4975
  %v5280 = vunpack.c.l.b16 %v4976
  %v5281 = vunpack.c.h.b16 %v4976
  %v5282 = vunpack.c.l.b16 %v4977
  %v5283 = vunpack.c.h.b16 %v4977
  %v5284 = vunpack.c.l.b16 %v4978
  %v5285 = vunpack.c.h.b16 %v4978
  %v5286 = vunpack.c.l.b16 %v4979
  %v5287 = vunpack.c.h.b16 %v4979
  %v5288 = vunpack.c.l.b16 %v4980
  %v5289 = vunpack.c.h.b16 %v4980
  %v5290 = vunpack.c.l.b16 %v4981
  %v5291 = vunpack.c.h.b16 %v4981
  %v5292 = vunpack.c.l.b16 %v4982
  %v5293 = vunpack.c.h.b16 %v4982
  %v5294 = vunpack.c.l.b16 %v4983
  %v5295 = vunpack.c.h.b16 %v4983
  %v5296 = vunpack.c.l.b16 %v4984
  %v5297 = vunpack.c.h.b16 %v4984
  %v5298 = vunpack.c.l.b16 %v4985
  %v5299 = vunpack.c.h.b16 %v4985
  %v5300 = vunpack.c.l.b16 %v4986
  %v5301 = vunpack.c.h.b16 %v4986
  %v5302 = vunpack.c.l.b16 %v4987
  %v5303 = vunpack.c.h.b16 %v4987
  %v5304 = vunpack.c.l.b16 %v4988
  %v5305 = vunpack.c.h.b16 %v4988
  %v5306 = vunpack.c.l.b16 %v4989
  %v5307 = vunpack.c.h.b16 %v4989
  %v5308 = vunpack.c.l.b16 %v4990
  %v5309 = vunpack.c.h.b16 %v4990
  %v5310 = vunpack.c.l.b16 %v4991
  %v5311 = vunpack.c.h.b16 %v4991
  %v5312 = vunpack.c.l.b16 %v4992
  %v5313 = vunpack.c.h.b16 %v4992
  %v5314 = vunpack.c.l.b16 %v4993
  %v5315 = vunpack.c.h.b16 %v4993
  %v5316 = vunpack.c.l.b16 %v4994
  %v5317 = vunpack.c.h.b16 %v4994
  %v5318 = vunpack.c.l.b16 %v4995
  %v5319 = vunpack.c.h.b16 %v4995
  %v5320 = vunpack.c.l.b16 %v4996
  %v5321 = vunpack.c.h.b16 %v4996
  %v5322 = vunpack.c.l.b16 %v4997
  %v5323 = vunpack.c.h.b16 %v4997
  %v5324 = vunpack.c.l.b16 %v4998
  %v5325 = vunpack.c.h.b16 %v4998
  %v5326 = vunpack.c.l.b16 %v4999
  %v5327 = vunpack.c.h.b16 %v4999
  %v5328 = vunpack.c.l.b16 %v5000
  %v5329 = vunpack.c.h.b16 %v5000
  %v5330 = vunpack.c.l.b16 %v5001
  %v5331 = vunpack.c.h.b16 %v5001
  %v5332 = vunpack.c.l.b16 %v5002
  %v5333 = vunpack.c.h.b16 %v5002
  %v5334 = vunpack.c.l.b16 %v5003
  %v5335 = vunpack.c.h.b16 %v5003
  %v5336 = vunpack.c.l.b16 %v5004
  %v5337 = vunpack.c.h.b16 %v5004
  %v5338 = vunpack.c.l.b16 %v5005
  %v5339 = vunpack.c.h.b16 %v5005
  %v5340 = vunpack.c.l.b16 %v5006
  %v5341 = vunpack.c.h.b16 %v5006
  %v5342 = vunpack.c.l.b16 %v5007
  %v5343 = vunpack.c.h.b16 %v5007
  %v5344 = vunpack.c.l.b16 %v5008
  %v5345 = vunpack.c.h.b16 %v5008
  %v5346 = vunpack.c.l.b16 %v5009
  %v5347 = vunpack.c.h.b16 %v5009
  %v5348 = vunpack.c.l.b16 %v5010
  %v5349 = vunpack.c.h.b16 %v5010
  %v5350 = vunpack.c.l.b16 %v5011
  %v5351 = vunpack.c.h.b16 %v5011
  %v5352 = vunpack.c.l.b16 %v5012
  %v5353 = vunpack.c.h.b16 %v5012
  %v5354 = vunpack.c.l.b16 %v5013
  %v5355 = vunpack.c.h.b16 %v5013
  %v5356 = vunpack.c.l.b16 %v5014
  %v5357 = vunpack.c.h.b16 %v5014
  %v5358 = vunpack.c.l.b16 %v5015
  %v5359 = vunpack.c.h.b16 %v5015
  %v5360 = vunpack.c.l.b16 %v5016
  %v5361 = vunpack.c.h.b16 %v5016
  %v5362 = vunpack.c.l.b16 %v5017
  %v5363 = vunpack.c.h.b16 %v5017
  %v5364 = vunpack.c.l.b16 %v5018
  %v5365 = vunpack.c.h.b16 %v5018
  %v5366 = vunpack.c.l.b16 %v5019
  %v5367 = vunpack.c.h.b16 %v5019
  %v5368 = vunpack.c.l.b16 %v5020
  %v5369 = vunpack.c.h.b16 %v5020
  %v5370 = vunpack.c.l.b16 %v5021
  %v5371 = vunpack.c.h.b16 %v5021
  %v5372 = vunpack.c.l.b16 %v5022
  %v5373 = vunpack.c.h.b16 %v5022
  %v5374 = vunpack.c.l.b16 %v5023
  %v5375 = vunpack.c.h.b16 %v5023
  %v5376 = vunpack.c.l.b16 %v5024
  %v5377 = vunpack.c.h.b16 %v5024
  %v5378 = vunpack.c.l.b16 %v5025
  %v5379 = vunpack.c.h.b16 %v5025
  %v5380 = vunpack.c.l.b16 %v5026
  %v5381 = vunpack.c.h.b16 %v5026
  %v5382 = vunpack.c.l.b16 %v5027
  %v5383 = vunpack.c.h.b16 %v5027
  %v5384 = vunpack.c.l.b16 %v5028
  %v5385 = vunpack.c.h.b16 %v5028
  %v5386 = vunpack.c.l.b16 %v5029
  %v5387 = vunpack.c.h.b16 %v5029
  %v5388 = vunpack.c.l.b16 %v5030
  %v5389 = vunpack.c.h.b16 %v5030
  %v5390 = vunpack.c.l.b16 %v5031
  %v5391 = vunpack.c.h.b16 %v5031
  %v5392 = vunpack.c.l.b16 %v5032
  %v5393 = vunpack.c.h.b16 %v5032
  %v5394 = vunpack.c.l.b16 %v5033
  %v5395 = vunpack.c.h.b16 %v5033
  %v5396 = vunpack.c.l.b16 %v5034
  %v5397 = vunpack.c.h.b16 %v5034
  %v5398 = vunpack.c.l.b16 %v5035
  %v5399 = vunpack.c.h.b16 %v5035
  %v5400 = vunpack.c.l.b16 %v5036
  %v5401 = vunpack.c.h.b16 %v5036
  %v5402 = vunpack.c.l.b16 %v5037
  %v5403 = vunpack.c.h.b16 %v5037
  %v5404 = vunpack.c.l.b16 %v5038
  %v5405 = vunpack.c.h.b16 %v5038
  %v5406 = vunpack.c.l.b16 %v5039
  %v5407 = vunpack.c.h.b16 %v5039
  %v5408 = vunpack.c.l.b16 %v5040
  %v5409 = vunpack.c.h.b16 %v5040
  %v5410 = vunpack.c.l.b16 %v5041
  %v5411 = vunpack.c.h.b16 %v5041
  %v5412 = vunpack.c.l.b16 %v5042
  %v5413 = vunpack.c.h.b16 %v5042
  %v5414 = vunpack.c.l.b16 %v5043
  %v5415 = vunpack.c.h.b16 %v5043
  %v5416 = vunpack.c.l.b16 %v5044
  %v5417 = vunpack.c.h.b16 %v5044
  %v5418 = vunpack.c.l.b16 %v5045
  %v5419 = vunpack.c.h.b16 %v5045
  %v5420 = vunpack.c.l.b16 %v5046
  %v5421 = vunpack.c.h.b16 %v5046
  %v5422 = vunpack.c.l.b16 %v5047
  %v5423 = vunpack.c.h.b16 %v5047
  %v5424 = vunpack.c.l.b16 %v5048
  %v5425 = vunpack.c.h.b16 %v5048
  %v5426 = vunpack.c.l.b16 %v5049
  %v5427 = vunpack.c.h.b16 %v5049
  %v5428 = vunpack.c.l.b16 %v5050
  %v5429 = vunpack.c.h.b16 %v5050
  %v5430 = vunpack.c.l.b16 %v5051
  %v5431 = vunpack.c.h.b16 %v5051
  %v5432 = vunpack.c.l.b16 %v5052
  %v5433 = vunpack.c.h.b16 %v5052
  %v5434 = vunpack.c.l.b16 %v5053
  %v5435 = vunpack.c.h.b16 %v5053
  %v5436 = vunpack.c.l.b16 %v5054
  %v5437 = vunpack.c.h.b16 %v5054
  %v5438 = vunpack.c.l.b16 %v5055
  %v5439 = vunpack.c.h.b16 %v5055
  %v5440 = vpack.c.b16 %v5188, %v5184
  %v5441 = vpack.c.b16 %v5189, %v5185
  %v5442 = vpack.c.b16 %v5190, %v5186
  %v5443 = vpack.c.b16 %v5191, %v5187
  %v5444 = vpack.c.b16 %v5196, %v5192
  %v5445 = vpack.c.b16 %v5197, %v5193
  %v5446 = vpack.c.b16 %v5198, %v5194
  %v5447 = vpack.c.b16 %v5199, %v5195
  %v5448 = vpack.c.b16 %v5204, %v5200
  %v5449 = vpack.c.b16 %v5205, %v5201
  %v5450 = vpack.c.b16 %v5206, %v5202
  %v5451 = vpack.c.b16 %v5207, %v5203
  %v5452 = vpack.c.b16 %v5212, %v5208
  %v5453 = vpack.c.b16 %v5213, %v5209
  %v5454 = vpack.c.b16 %v5214, %v5210
  %v5455 = vpack.c.b16 %v5215, %v5211
  %v5456 = vpack.c.b16 %v5220, %v5216
  %v5457 = vpack.c.b16 %v5221, %v5217
  %v5458 = vpack.c.b16 %v5222, %v5218
  %v5459 = vpack.c.b16 %v5223, %v5219
  %v5460 = vpack.c.b16 %v5228, %v5224
  %v5461 = vpack.c.b16 %v5229, %v5225
  %v5462 = vpack.c.b16 %v5230, %v5226
  %v5463 = vpack.c.b16 %v5231, %v5227
  %v5464 = vpack.c.b16 %v5236, %v5232
  %v5465 = vpack.c.b16 %v5237, %v5233
  %v5466 = vpack.c.b16 %v5238, %v5234
  %v5467 = vpack.c.b16 %v5239, %v5235
  %v5468 = vpack.c.b16 %v5244, %v5240
  %v5469 = vpack.c.b16 %v5245, %v5241
  %v5470 = vpack.c.b16 %v5246, %v5242
  %v5471 = vpack.c.b16 %v5247, %v5243
  %v5472 = vpack.c.b16 %v5252, %v5248
  %v5473 = vpack.c.b16 %v5253, %v5249
  %v5474 = vpack.c.b16 %v5254, %v5250
  %v5475 = vpack.c.b16 %v5255, %v5251
  %v5476 = vpack.c.b16 %v5260, %v5256
  %v5477 = vpack.c.b16 %v5261, %v5257
  %v5478 = vpack.c.b16 %v5262, %v5258
  %v5479 = vpack.c.b16 %v5263, %v5259
  %v5480 = vpack.c.b16 %v5268, %v5264
  %v5481 = vpack.c.b16 %v5269, %v5265
  %v5482 = vpack.c.b16 %v5270, %v5266
  %v5483 = vpack.c.b16 %v5271, %v5267
  %v5484 = vpack.c.b16 %v5276, %v5272
  %v5485 = vpack.c.b16 %v5277, %v5273
  %v5486 = vpack.c.b16 %v5278, %v5274
  %v5487 = vpack.c.b16 %v5279, %v5275
  %v5488 = vpack.c.b16 %v5284, %v5280
  %v5489 = vpack.c.b16 %v5285, %v5281
  %v5490 = vpack.c.b16 %v5286, %v5282
  %v5491 = vpack.c.b16 %v5287, %v5283
  %v5492 = vpack.c.b16 %v5292, %v5288
  %v5493 = vpack.c.b16 %v5293, %v5289
  %v5494 = vpack.c.b16 %v5294, %v5290
  %v5495 = vpack.c.b16 %v5295, %v5291
  %v5496 = vpack.c.b16 %v5300, %v5296
  %v5497 = vpack.c.b16 %v5301, %v5297
  %v5498 = vpack.c.b16 %v5302, %v5298
  %v5499 = vpack.c.b16 %v5303, %v5299
  %v5500 = vpack.c.b16 %v5308, %v5304
  %v5501 = vpack.c.b16 %v5309, %v5305
  %v5502 = vpack.c.b16 %v5310, %v5306
  %v5503 = vpack.c.b16 %v5311, %v5307
  %v5504 = vpack.c.b16 %v5316, %v5312
  %v5505 = vpack.c.b16 %v5317, %v5313
  %v5506 = vpack.c.b16 %v5318, %v5314
  %v5507 = vpack.c.b16 %v5319, %v5315
  %v5508 = vpack.c.b16 %v5324, %v5320
  %v5509 = vpack.c.b16 %v5325, %v5321
  %v5510 = vpack.c.b16 %v5326, %v5322
  %v5511 = vpack.c.b16 %v5327, %v5323
  %v5512 = vpack.c.b16 %v5332, %v5328
  %v5513 = vpack.c.b16 %v5333, %v5329
  %v5514 = vpack.c.b16 %v5334, %v5330
  %v5515 = vpack.c.b16 %v5335, %v5331
  %v5516 = vpack.c.b16 %v5340, %v5336
  %v5517 = vpack.c.b16 %v5341, %v5337
  %v5518 = vpack.c.b16 %v5342, %v5338
  %v5519 = vpack.c.b16 %v5343, %v5339
  %v5520 = vpack.c.b16 %v5348, %v5344
  %v5521 = vpack.c.b16 %v5349, %v5345
  %v5522 = vpack.c.b16 %v5350, %v5346
  %v5523 = vpack.c.b16 %v5351, %v5347
  %v5524 = vpack.c.b16 %v5356, %v5352
  %v5525 = vpack.c.b16 %v5357, %v5353
  %v5526 = vpack.c.b16 %v5358, %v5354
  %v5527 = vpack.c.b16 %v5359, %v5355
  %v5528 = vpack.c.b16 %v5364, %v5360
  %v5529 = vpack.c.b16 %v5365, %v5361
  %v5530 = vpack.c.b16 %v5366, %v5362
  %v5531 = vpack.c.b16 %v5367, %v5363
  %v5532 = vpack.c.b16 %v5372, %v5368
  %v5533 = vpack.c.b16 %v5373, %v5369
  %v5534 = vpack.c.b16 %v5374, %v5370
  %v5535 = vpack.c.b16 %v5375, %v5371
  %v5536 = vpack.c.b16 %v5380, %v5376
  %v5537 = vpack.c.b16 %v5381, %v5377
  %v5538 = vpack.c.b16 %v5382, %v5378
  %v5539 = vpack.c.b16 %v5383, %v5379
  %v5540 = vpack.c.b16 %v5388, %v5384
  %v5541 = vpack.c.b16 %v5389, %v5385
  %v5542 = vpack.c.b16 %v5390, %v5386
  %v5543 = vpack.c.b16 %v5391, %v5387
  %v5544 = vpack.c.b16 %v5396, %v5392
  %v5545 = vpack.c.b16 %v5397, %v5393
  %v5546 = vpack.c.b16 %v5398, %v5394
  %v5547 = vpack.c.b16 %v5399, %v5395
  %v5548 = vpack.c.b16 %v5404, %v5400
  %v5549 = vpack.c.b16 %v5405, %v5401
  %v5550 = vpack.c.b16 %v5406, %v5402
  %v5551 = vpack.c.b16 %v5407, %v5403
  %v5552 = vpack.c.b16 %v5412, %v5408
  %v5553 = vpack.c.b16 %v5413, %v5409
  %v5554 = vpack.c.b16 %v5414, %v5410
  %v5555 = vpack.c.b16 %v5415, %v5411
  %v5556 = vpack.c.b16 %v5420, %v5416
  %v5557 = vpack.c.b16 %v5421, %v5417
  %v5558 = vpack.c.b16 %v5422, %v5418
  %v5559 = vpack.c.b16 %v5423, %v5419
  %v5560 = vpack.c.b16 %v5428, %v5424
  %v5561 = vpack.c.b16 %v5429, %v5425
  %v5562 = vpack.c.b16 %v5430, %v5426
  %v5563 = vpack.c.b16 %v5431, %v5427
  %v5564 = vpack.c.b16 %v5436, %v5432
  %v5565 = vpack.c.b16 %v5437, %v5433
  %v5566 = vpack.c.b16 %v5438, %v5434
  %v5567 = vpack.c.b16 %v5439, %v5435
  %5696 = vmatprep.subr.bf16.mxu0 %v5441
  %5697 = vmatpush1.bf16.msra.mxu0 %v5440
  %5698 = vmatprep.subr.bf16.mxu0 %v5445
  %5699 = vmatpush1.bf16.msra.mxu0 %v5444
  %5700 = vmatprep.subr.bf16.mxu0 %v5449
  %5701 = vmatpush1.bf16.msra.mxu0 %v5448
  %5702 = vmatprep.subr.bf16.mxu0 %v5453
  %5703 = vmatpush1.bf16.msra.mxu0 %v5452
  %5704 = vmatprep.subr.bf16.mxu0 %v5457
  %5705 = vmatpush1.bf16.msra.mxu0 %v5456
  %5706 = vmatprep.subr.bf16.mxu0 %v5461
  %5707 = vmatpush1.bf16.msra.mxu0 %v5460
  %5708 = vmatprep.subr.bf16.mxu0 %v5465
  %5709 = vmatpush1.bf16.msra.mxu0 %v5464
  %5710 = vmatprep.subr.bf16.mxu0 %v5469
  %5711 = vmatpush1.bf16.msra.mxu0 %v5468
  %5712 = vmatprep.subr.bf16.mxu0 %v5473
  %5713 = vmatpush1.bf16.msra.mxu0 %v5472
  %5714 = vmatprep.subr.bf16.mxu0 %v5477
  %5715 = vmatpush1.bf16.msra.mxu0 %v5476
  %5716 = vmatprep.subr.bf16.mxu0 %v5481
  %5717 = vmatpush1.bf16.msra.mxu0 %v5480
  %5718 = vmatprep.subr.bf16.mxu0 %v5485
  %5719 = vmatpush1.bf16.msra.mxu0 %v5484
  %5720 = vmatprep.subr.bf16.mxu0 %v5489
  %5721 = vmatpush1.bf16.msra.mxu0 %v5488
  %5722 = vmatprep.subr.bf16.mxu0 %v5493
  %5723 = vmatpush1.bf16.msra.mxu0 %v5492
  %5724 = vmatprep.subr.bf16.mxu0 %v5497
  %5725 = vmatpush1.bf16.msra.mxu0 %v5496
  %5726 = vmatprep.subr.bf16.mxu0 %v5501
  %5727 = vmatpush1.bf16.msra.mxu0 %v5500
  %5728 = vmatprep.mubr.bf16.mxu0 %v4920
  %5729 = vmatmul.mubr.bf16.gmra.mrb[0].mxu0 %v4919
  %v5730 = vpop.f32.mrb[0].mxu0
  %v5731 = vadd.f32 0.0, %v5730
  %v5732 = vpop.f32.mrb[0].mxu0
  %v5733 = vadd.f32 0.0, %v5732
  %v5734 = vpop.f32.mrb[0].mxu0
  %v5735 = vadd.f32 0.0, %v5734
  %v5736 = vpop.f32.mrb[0].mxu0
  %v5737 = vadd.f32 0.0, %v5736
  %5738 = vmatprep.mubr.bf16.mxu0 %v4924
  %5739 = vmatmul.mubr.bf16.gmra.mrb[0].mxu0 %v4923
  %v5740 = vpop.f32.mrb[0].mxu0
  %v5741 = vadd.f32 0.0, %v5740
  %v5742 = vpop.f32.mrb[0].mxu0
  %v5743 = vadd.f32 0.0, %v5742
  %v5744 = vpop.f32.mrb[0].mxu0
  %v5745 = vadd.f32 0.0, %v5744
  %v5746 = vpop.f32.mrb[0].mxu0
  %v5747 = vadd.f32 0.0, %v5746
  %5748 = vdwg.mxu0
  %5749 = vmatprep.subr.bf16.mxu0 %v5505
  %5750 = vmatpush1.bf16.msra.mxu0 %v5504
  %5751 = vmatprep.subr.bf16.mxu0 %v5509
  %5752 = vmatpush1.bf16.msra.mxu0 %v5508
  %5753 = vmatprep.subr.bf16.mxu0 %v5513
  %5754 = vmatpush1.bf16.msra.mxu0 %v5512
  %5755 = vmatprep.subr.bf16.mxu0 %v5517
  %5756 = vmatpush1.bf16.msra.mxu0 %v5516
  %5757 = vmatprep.subr.bf16.mxu0 %v5521
  %5758 = vmatpush1.bf16.msra.mxu0 %v5520
  %5759 = vmatprep.subr.bf16.mxu0 %v5525
  %5760 = vmatpush1.bf16.msra.mxu0 %v5524
  %5761 = vmatprep.subr.bf16.mxu0 %v5529
  %5762 = vmatpush1.bf16.msra.mxu0 %v5528
  %5763 = vmatprep.subr.bf16.mxu0 %v5533
  %5764 = vmatpush1.bf16.msra.mxu0 %v5532
  %5765 = vmatprep.subr.bf16.mxu0 %v5537
  %5766 = vmatpush1.bf16.msra.mxu0 %v5536
  %5767 = vmatprep.subr.bf16.mxu0 %v5541
  %5768 = vmatpush1.bf16.msra.mxu0 %v5540
  %5769 = vmatprep.subr.bf16.mxu0 %v5545
  %5770 = vmatpush1.bf16.msra.mxu0 %v5544
  %5771 = vmatprep.subr.bf16.mxu0 %v5549
  %5772 = vmatpush1.bf16.msra.mxu0 %v5548
  %5773 = vmatprep.subr.bf16.mxu0 %v5553
  %5774 = vmatpush1.bf16.msra.mxu0 %v5552
  %5775 = vmatprep.subr.bf16.mxu0 %v5557
  %5776 = vmatpush1.bf16.msra.mxu0 %v5556
  %5777 = vmatprep.subr.bf16.mxu0 %v5561
  %5778 = vmatpush1.bf16.msra.mxu0 %v5560
  %5779 = vmatprep.subr.bf16.mxu0 %v5565
  %5780 = vmatpush1.bf16.msra.mxu0 %v5564
  %5781 = vmatprep.mubr.bf16.mxu0 %v4922
  %5782 = vmatmul.mubr.bf16.gmra.mrb[0].mxu0 %v4921
  %v5783 = vpop.f32.mrb[0].mxu0
  %v5784 = vadd.f32 %v5731, %v5783
  %v5785 = vpop.f32.mrb[0].mxu0
  %v5786 = vadd.f32 %v5733, %v5785
  %v5787 = vpop.f32.mrb[0].mxu0
  %v5788 = vadd.f32 %v5735, %v5787
  %v5789 = vpop.f32.mrb[0].mxu0
  %v5790 = vadd.f32 %v5737, %v5789
  %5791 = vmatprep.mubr.bf16.mxu0 %v4926
  %5792 = vmatmul.mubr.bf16.gmra.mrb[0].mxu0 %v4925
  %v5793 = vpop.f32.mrb[0].mxu0
  %v5794 = vadd.f32 %v5741, %v5793
  %v5795 = vpop.f32.mrb[0].mxu0
  %v5796 = vadd.f32 %v5743, %v5795
  %v5797 = vpop.f32.mrb[0].mxu0
  %v5798 = vadd.f32 %v5745, %v5797
  %v5799 = vpop.f32.mrb[0].mxu0
  %v5800 = vadd.f32 %v5747, %v5799
  %5801 = vdwg.mxu0
  %5802 = vmatprep.subr.bf16.mxu0 %v5443
  %5803 = vmatpush1.bf16.msra.mxu0 %v5442
  %5804 = vmatprep.subr.bf16.mxu0 %v5447
  %5805 = vmatpush1.bf16.msra.mxu0 %v5446
  %5806 = vmatprep.subr.bf16.mxu0 %v5451
  %5807 = vmatpush1.bf16.msra.mxu0 %v5450
  %5808 = vmatprep.subr.bf16.mxu0 %v5455
  %5809 = vmatpush1.bf16.msra.mxu0 %v5454
  %5810 = vmatprep.subr.bf16.mxu0 %v5459
  %5811 = vmatpush1.bf16.msra.mxu0 %v5458
  %5812 = vmatprep.subr.bf16.mxu0 %v5463
  %5813 = vmatpush1.bf16.msra.mxu0 %v5462
  %5814 = vmatprep.subr.bf16.mxu0 %v5467
  %5815 = vmatpush1.bf16.msra.mxu0 %v5466
  %5816 = vmatprep.subr.bf16.mxu0 %v5471
  %5817 = vmatpush1.bf16.msra.mxu0 %v5470
  %5818 = vmatprep.subr.bf16.mxu0 %v5475
  %5819 = vmatpush1.bf16.msra.mxu0 %v5474
  %5820 = vmatprep.subr.bf16.mxu0 %v5479
  %5821 = vmatpush1.bf16.msra.mxu0 %v5478
  %5822 = vmatprep.subr.bf16.mxu0 %v5483
  %5823 = vmatpush1.bf16.msra.mxu0 %v5482
  %5824 = vmatprep.subr.bf16.mxu0 %v5487
  %5825 = vmatpush1.bf16.msra.mxu0 %v5486
  %5826 = vmatprep.subr.bf16.mxu0 %v5491
  %5827 = vmatpush1.bf16.msra.mxu0 %v5490
  %5828 = vmatprep.subr.bf16.mxu0 %v5495
  %5829 = vmatpush1.bf16.msra.mxu0 %v5494
  %5830 = vmatprep.subr.bf16.mxu0 %v5499
  %5831 = vmatpush1.bf16.msra.mxu0 %v5498
  %5832 = vmatprep.subr.bf16.mxu0 %v5503
  %5833 = vmatpush1.bf16.msra.mxu0 %v5502
  %5834 = vmatprep.mubr.bf16.mxu0 %v4920
  %5835 = vmatmul.mubr.bf16.gmra.mrb[0].mxu0 %v4919
  %v5836 = vpop.f32.mrb[0].mxu0
  %v5837 = vadd.f32 0.0, %v5836
  %v5838 = vpop.f32.mrb[0].mxu0
  %v5839 = vadd.f32 0.0, %v5838
  %v5840 = vpop.f32.mrb[0].mxu0
  %v5841 = vadd.f32 0.0, %v5840
  %v5842 = vpop.f32.mrb[0].mxu0
  %v5843 = vadd.f32 0.0, %v5842
  %5844 = vmatprep.mubr.bf16.mxu0 %v4924
  %5845 = vmatmul.mubr.bf16.gmra.mrb[0].mxu0 %v4923
  %v5846 = vpop.f32.mrb[0].mxu0
  %v5847 = vadd.f32 0.0, %v5846
  %v5848 = vpop.f32.mrb[0].mxu0
  %v5849 = vadd.f32 0.0, %v5848
  %v5850 = vpop.f32.mrb[0].mxu0
  %v5851 = vadd.f32 0.0, %v5850
  %v5852 = vpop.f32.mrb[0].mxu0
  %v5853 = vadd.f32 0.0, %v5852
  %5854 = vdwg.mxu0
  %5855 = vmatprep.subr.bf16.mxu0 %v5507
  %5856 = vmatpush1.bf16.msra.mxu0 %v5506
  %5857 = vmatprep.subr.bf16.mxu0 %v5511
  %5858 = vmatpush1.bf16.msra.mxu0 %v5510
  %5859 = vmatprep.subr.bf16.mxu0 %v5515
  %5860 = vmatpush1.bf16.msra.mxu0 %v5514
  %5861 = vmatprep.subr.bf16.mxu0 %v5519
  %5862 = vmatpush1.bf16.msra.mxu0 %v5518
  %5863 = vmatprep.subr.bf16.mxu0 %v5523
  %5864 = vmatpush1.bf16.msra.mxu0 %v5522
  %5865 = vmatprep.subr.bf16.mxu0 %v5527
  %5866 = vmatpush1.bf16.msra.mxu0 %v5526
  %5867 = vmatprep.subr.bf16.mxu0 %v5531
  %5868 = vmatpush1.bf16.msra.mxu0 %v5530
  %5869 = vmatprep.subr.bf16.mxu0 %v5535
  %5870 = vmatpush1.bf16.msra.mxu0 %v5534
  %5871 = vmatprep.subr.bf16.mxu0 %v5539
  %5872 = vmatpush1.bf16.msra.mxu0 %v5538
  %5873 = vmatprep.subr.bf16.mxu0 %v5543
  %5874 = vmatpush1.bf16.msra.mxu0 %v5542
  %5875 = vmatprep.subr.bf16.mxu0 %v5547
  %5876 = vmatpush1.bf16.msra.mxu0 %v5546
  %5877 = vmatprep.subr.bf16.mxu0 %v5551
  %5878 = vmatpush1.bf16.msra.mxu0 %v5550
  %5879 = vmatprep.subr.bf16.mxu0 %v5555
  %5880 = vmatpush1.bf16.msra.mxu0 %v5554
  %5881 = vmatprep.subr.bf16.mxu0 %v5559
  %5882 = vmatpush1.bf16.msra.mxu0 %v5558
  %5883 = vmatprep.subr.bf16.mxu0 %v5563
  %5884 = vmatpush1.bf16.msra.mxu0 %v5562
  %5885 = vmatprep.subr.bf16.mxu0 %v5567
  %5886 = vmatpush1.bf16.msra.mxu0 %v5566
  %5887 = vmatprep.mubr.bf16.mxu0 %v4922
  %5888 = vmatmul.mubr.bf16.gmra.mrb[0].mxu0 %v4921
  %v5889 = vpop.f32.mrb[0].mxu0
  %v5890 = vadd.f32 %v5837, %v5889
  %v5891 = vpop.f32.mrb[0].mxu0
  %v5892 = vadd.f32 %v5839, %v5891
  %v5893 = vpop.f32.mrb[0].mxu0
  %v5894 = vadd.f32 %v5841, %v5893
  %v5895 = vpop.f32.mrb[0].mxu0
  %v5896 = vadd.f32 %v5843, %v5895
  %5897 = vmatprep.mubr.bf16.mxu0 %v4926
  %5898 = vmatmul.mubr.bf16.gmra.mrb[0].mxu0 %v4925
  %v5899 = vpop.f32.mrb[0].mxu0
  %v5900 = vadd.f32 %v5847, %v5899
  %v5901 = vpop.f32.mrb[0].mxu0
  %v5902 = vadd.f32 %v5849, %v5901
  %v5903 = vpop.f32.mrb[0].mxu0
  %v5904 = vadd.f32 %v5851, %v5903
  %v5905 = vpop.f32.mrb[0].mxu0
  %v5906 = vadd.f32 %v5853, %v5905
  %5907 = vdwg.mxu0
  %v5908 = vadd.f32 %v4672, %v5784
  %v5909 = vadd.f32 %v4674, %v5786
  %v5910 = vadd.f32 %v4778, %v5890
  %v5911 = vadd.f32 %v4780, %v5892
  %v5912 = vadd.f32 %v4676, %v5788
  %v5913 = vadd.f32 %v4678, %v5790
  %v5914 = vadd.f32 %v4782, %v5894
  %v5915 = vadd.f32 %v4784, %v5896
  %v5916 = vadd.f32 %v4682, %v5794
  %v5917 = vadd.f32 %v4684, %v5796
  %v5918 = vadd.f32 %v4788, %v5900
  %v5919 = vadd.f32 %v4790, %v5902
  %v5920 = vadd.f32 %v4686, %v5798
  %v5921 = vadd.f32 %v4688, %v5800
  %v5922 = vadd.f32 %v4792, %v5904
  %v5923 = vadd.f32 %v4794, %v5906
  %s5924 = scalar_lea.vmem %s5, 48
  %v5925 = vld [vmem:[%s5924] sm:$0xf]
  %v5926 = vld [vmem:[%s5924 + $0x4] sm:$0xf]
  %v5927 = vld [vmem:[%s5924 + $0x8] sm:$0xf]
  %v5928 = vld [vmem:[%s5924 + $0xc] sm:$0xf]
  %v5933 = vunpack.c.l.b16 %v5925
  %v5934 = vunpack.c.l.b16 %v5926
  %v5935 = vunpack.c.l.b16 %v5927
  %v5936 = vunpack.c.l.b16 %v5928
  %v5937 = vpack.c.b16 %v5934, %v5933
  %v5938 = vpack.c.b16 %v5936, %v5935
  %5941 = vmatprep.subr.bf16.mxu0 %v2543
  %5942 = vmatpush1.bf16.msra.mxu0 %v2542
  %5943 = vmatprep.subr.bf16.mxu0 %v2547
  %5944 = vmatpush1.bf16.msra.mxu0 %v2546
  %5945 = vmatprep.subr.bf16.mxu0 %v2551
  %5946 = vmatpush1.bf16.msra.mxu0 %v2550
  %5947 = vmatprep.subr.bf16.mxu0 %v2555
  %5948 = vmatpush1.bf16.msra.mxu0 %v2554
  %5949 = vmatprep.subr.bf16.mxu0 %v2559
  %5950 = vmatpush1.bf16.msra.mxu0 %v2558
  %5951 = vmatprep.subr.bf16.mxu0 %v2563
  %5952 = vmatpush1.bf16.msra.mxu0 %v2562
  %5953 = vmatprep.subr.bf16.mxu0 %v2567
  %5954 = vmatpush1.bf16.msra.mxu0 %v2566
  %5955 = vmatprep.subr.bf16.mxu0 %v2571
  %5956 = vmatpush1.bf16.msra.mxu0 %v2570
  %5957 = vmatprep.subr.bf16.mxu0 0
  %5958 = vmatpush1.bf16.msra.mxu0 0
  %5959 = vmatprep.subr.bf16.mxu0 0
  %5960 = vmatpush1.bf16.msra.mxu0 0
  %5961 = vmatprep.subr.bf16.mxu0 0
  %5962 = vmatpush1.bf16.msra.mxu0 0
  %5963 = vmatprep.subr.bf16.mxu0 0
  %5964 = vmatpush1.bf16.msra.mxu0 0
  %5965 = vmatprep.subr.bf16.mxu0 0
  %5966 = vmatpush1.bf16.msra.mxu0 0
  %5967 = vmatprep.subr.bf16.mxu0 0
  %5968 = vmatpush1.bf16.msra.mxu0 0
  %5969 = vmatprep.subr.bf16.mxu0 0
  %5970 = vmatpush1.bf16.msra.mxu0 0
  %5971 = vmatprep.subr.bf16.mxu0 0
  %5972 = vmatpush1.bf16.msra.mxu0 0
  %5973 = vmatprep.mubr.bf16.mxu0 0
  %5974 = vmatmul.mubr.bf16.gmra.mrb[0].mxu0 %v5937
  %v5975 = vpop.f32.mrb[0].mxu0
  %v5976 = vadd.f32 0.0, %v5975
  %v5977 = vpop.f32.mrb[0].mxu0
  %v5978 = vadd.f32 0.0, %v5977
  %v5979 = vpop.f32.mrb[0].mxu0
  %v5980 = vadd.f32 0.0, %v5979
  %v5981 = vpop.f32.mrb[0].mxu0
  %v5982 = vadd.f32 0.0, %v5981
  %5983 = vmatprep.mubr.bf16.mxu0 0
  %5984 = vmatmul.mubr.bf16.gmra.mrb[0].mxu0 %v5938
  %v5985 = vpop.f32.mrb[0].mxu0
  %v5986 = vadd.f32 0.0, %v5985
  %v5987 = vpop.f32.mrb[0].mxu0
  %v5988 = vadd.f32 0.0, %v5987
  %v5989 = vpop.f32.mrb[0].mxu0
  %v5990 = vadd.f32 0.0, %v5989
  %v5991 = vpop.f32.mrb[0].mxu0
  %v5992 = vadd.f32 0.0, %v5991
  %5993 = vdwg.mxu0
  %5994 = vmatprep.subr.bf16.mxu0 %v2545
  %5995 = vmatpush1.bf16.msra.mxu0 %v2544
  %5996 = vmatprep.subr.bf16.mxu0 %v2549
  %5997 = vmatpush1.bf16.msra.mxu0 %v2548
  %5998 = vmatprep.subr.bf16.mxu0 %v2553
  %5999 = vmatpush1.bf16.msra.mxu0 %v2552
  %6000 = vmatprep.subr.bf16.mxu0 %v2557
  %6001 = vmatpush1.bf16.msra.mxu0 %v2556
  %6002 = vmatprep.subr.bf16.mxu0 %v2561
  %6003 = vmatpush1.bf16.msra.mxu0 %v2560
  %6004 = vmatprep.subr.bf16.mxu0 %v2565
  %6005 = vmatpush1.bf16.msra.mxu0 %v2564
  %6006 = vmatprep.subr.bf16.mxu0 %v2569
  %6007 = vmatpush1.bf16.msra.mxu0 %v2568
  %6008 = vmatprep.subr.bf16.mxu0 %v2573
  %6009 = vmatpush1.bf16.msra.mxu0 %v2572
  %6010 = vmatprep.subr.bf16.mxu0 0
  %6011 = vmatpush1.bf16.msra.mxu0 0
  %6012 = vmatprep.subr.bf16.mxu0 0
  %6013 = vmatpush1.bf16.msra.mxu0 0
  %6014 = vmatprep.subr.bf16.mxu0 0
  %6015 = vmatpush1.bf16.msra.mxu0 0
  %6016 = vmatprep.subr.bf16.mxu0 0
  %6017 = vmatpush1.bf16.msra.mxu0 0
  %6018 = vmatprep.subr.bf16.mxu0 0
  %6019 = vmatpush1.bf16.msra.mxu0 0
  %6020 = vmatprep.subr.bf16.mxu0 0
  %6021 = vmatpush1.bf16.msra.mxu0 0
  %6022 = vmatprep.subr.bf16.mxu0 0
  %6023 = vmatpush1.bf16.msra.mxu0 0
  %6024 = vmatprep.subr.bf16.mxu0 0
  %6025 = vmatpush1.bf16.msra.mxu0 0
  %6026 = vmatprep.mubr.bf16.mxu0 0
  %6027 = vmatmul.mubr.bf16.gmra.mrb[0].mxu0 %v5937
  %v6028 = vpop.f32.mrb[0].mxu0
  %v6029 = vadd.f32 0.0, %v6028
  %v6030 = vpop.f32.mrb[0].mxu0
  %v6031 = vadd.f32 0.0, %v6030
  %v6032 = vpop.f32.mrb[0].mxu0
  %v6033 = vadd.f32 0.0, %v6032
  %v6034 = vpop.f32.mrb[0].mxu0
  %v6035 = vadd.f32 0.0, %v6034
  %6036 = vmatprep.mubr.bf16.mxu0 0
  %6037 = vmatmul.mubr.bf16.gmra.mrb[0].mxu0 %v5938
  %v6038 = vpop.f32.mrb[0].mxu0
  %v6039 = vadd.f32 0.0, %v6038
  %v6040 = vpop.f32.mrb[0].mxu0
  %v6041 = vadd.f32 0.0, %v6040
  %v6042 = vpop.f32.mrb[0].mxu0
  %v6043 = vadd.f32 0.0, %v6042
  %v6044 = vpop.f32.mrb[0].mxu0
  %v6045 = vadd.f32 0.0, %v6044
  %6046 = vdwg.mxu0
  %v6047 = vpack.c.bf16 %v5980, %v5976
  %v6048 = vpack.c.bf16 %v5982, %v5978
  %v6049 = vpack.c.bf16 %v6033, %v6029
  %v6050 = vpack.c.bf16 %v6035, %v6031
  %v6051 = vpack.c.bf16 %v5990, %v5986
  %v6052 = vpack.c.bf16 %v5992, %v5988
  %v6053 = vpack.c.bf16 %v6043, %v6039
  %v6054 = vpack.c.bf16 %v6045, %v6041
  %s6055 = scalar_lea.vmem %s6, 3072
  %v6056 = vld [vmem:[%s6055] sm:$0xff]
  %v6057 = vld [vmem:[%s6055 + $0x8] sm:$0xff]
  %v6058 = vld [vmem:[%s6055 + $0x10] sm:$0xff]
  %v6059 = vld [vmem:[%s6055 + $0x18] sm:$0xff]
  %v6060 = vld [vmem:[%s6055 + $0x20] sm:$0xff]
  %v6061 = vld [vmem:[%s6055 + $0x28] sm:$0xff]
  %v6062 = vld [vmem:[%s6055 + $0x30] sm:$0xff]
  %v6063 = vld [vmem:[%s6055 + $0x38] sm:$0xff]
  %v6064 = vld [vmem:[%s6055 + $0x40] sm:$0xff]
  %v6065 = vld [vmem:[%s6055 + $0x48] sm:$0xff]
  %v6066 = vld [vmem:[%s6055 + $0x50] sm:$0xff]
  %v6067 = vld [vmem:[%s6055 + $0x58] sm:$0xff]
  %v6068 = vld [vmem:[%s6055 + $0x60] sm:$0xff]
  %v6069 = vld [vmem:[%s6055 + $0x68] sm:$0xff]
  %v6070 = vld [vmem:[%s6055 + $0x70] sm:$0xff]
  %v6071 = vld [vmem:[%s6055 + $0x78] sm:$0xff]
  %v6072 = vld [vmem:[%s6055 + $0x80] sm:$0xff]
  %v6073 = vld [vmem:[%s6055 + $0x88] sm:$0xff]
  %v6074 = vld [vmem:[%s6055 + $0x90] sm:$0xff]
  %v6075 = vld [vmem:[%s6055 + $0x98] sm:$0xff]
  %v6076 = vld [vmem:[%s6055 + $0xa0] sm:$0xff]
  %v6077 = vld [vmem:[%s6055 + $0xa8] sm:$0xff]
  %v6078 = vld [vmem:[%s6055 + $0xb0] sm:$0xff]
  %v6079 = vld [vmem:[%s6055 + $0xb8] sm:$0xff]
  %v6080 = vld [vmem:[%s6055 + $0xc0] sm:$0xff]
  %v6081 = vld [vmem:[%s6055 + $0xc8] sm:$0xff]
  %v6082 = vld [vmem:[%s6055 + $0xd0] sm:$0xff]
  %v6083 = vld [vmem:[%s6055 + $0xd8] sm:$0xff]
  %v6084 = vld [vmem:[%s6055 + $0xe0] sm:$0xff]
  %v6085 = vld [vmem:[%s6055 + $0xe8] sm:$0xff]
  %v6086 = vld [vmem:[%s6055 + $0xf0] sm:$0xff]
  %v6087 = vld [vmem:[%s6055 + $0xf8] sm:$0xff]
  %v6088 = vld [vmem:[%s6055 + $0x100] sm:$0xff]
  %v6089 = vld [vmem:[%s6055 + $0x108] sm:$0xff]
  %v6090 = vld [vmem:[%s6055 + $0x110] sm:$0xff]
  %v6091 = vld [vmem:[%s6055 + $0x118] sm:$0xff]
  %v6092 = vld [vmem:[%s6055 + $0x120] sm:$0xff]
  %v6093 = vld [vmem:[%s6055 + $0x128] sm:$0xff]
  %v6094 = vld [vmem:[%s6055 + $0x130] sm:$0xff]
  %v6095 = vld [vmem:[%s6055 + $0x138] sm:$0xff]
  %v6096 = vld [vmem:[%s6055 + $0x140] sm:$0xff]
  %v6097 = vld [vmem:[%s6055 + $0x148] sm:$0xff]
  %v6098 = vld [vmem:[%s6055 + $0x150] sm:$0xff]
  %v6099 = vld [vmem:[%s6055 + $0x158] sm:$0xff]
  %v6100 = vld [vmem:[%s6055 + $0x160] sm:$0xff]
  %v6101 = vld [vmem:[%s6055 + $0x168] sm:$0xff]
  %v6102 = vld [vmem:[%s6055 + $0x170] sm:$0xff]
  %v6103 = vld [vmem:[%s6055 + $0x178] sm:$0xff]
  %v6104 = vld [vmem:[%s6055 + $0x180] sm:$0xff]
  %v6105 = vld [vmem:[%s6055 + $0x188] sm:$0xff]
  %v6106 = vld [vmem:[%s6055 + $0x190] sm:$0xff]
  %v6107 = vld [vmem:[%s6055 + $0x198] sm:$0xff]
  %v6108 = vld [vmem:[%s6055 + $0x1a0] sm:$0xff]
  %v6109 = vld [vmem:[%s6055 + $0x1a8] sm:$0xff]
  %v6110 = vld [vmem:[%s6055 + $0x1b0] sm:$0xff]
  %v6111 = vld [vmem:[%s6055 + $0x1b8] sm:$0xff]
  %v6112 = vld [vmem:[%s6055 + $0x1c0] sm:$0xff]
  %v6113 = vld [vmem:[%s6055 + $0x1c8] sm:$0xff]
  %v6114 = vld [vmem:[%s6055 + $0x1d0] sm:$0xff]
  %v6115 = vld [vmem:[%s6055 + $0x1d8] sm:$0xff]
  %v6116 = vld [vmem:[%s6055 + $0x1e0] sm:$0xff]
  %v6117 = vld [vmem:[%s6055 + $0x1e8] sm:$0xff]
  %v6118 = vld [vmem:[%s6055 + $0x1f0] sm:$0xff]
  %v6119 = vld [vmem:[%s6055 + $0x1f8] sm:$0xff]
  %v6120 = vld [vmem:[%s6055 + $0x200] sm:$0xff]
  %v6121 = vld [vmem:[%s6055 + $0x208] sm:$0xff]
  %v6122 = vld [vmem:[%s6055 + $0x210] sm:$0xff]
  %v6123 = vld [vmem:[%s6055 + $0x218] sm:$0xff]
  %v6124 = vld [vmem:[%s6055 + $0x220] sm:$0xff]
  %v6125 = vld [vmem:[%s6055 + $0x228] sm:$0xff]
  %v6126 = vld [vmem:[%s6055 + $0x230] sm:$0xff]
  %v6127 = vld [vmem:[%s6055 + $0x238] sm:$0xff]
  %v6128 = vld [vmem:[%s6055 + $0x240] sm:$0xff]
  %v6129 = vld [vmem:[%s6055 + $0x248] sm:$0xff]
  %v6130 = vld [vmem:[%s6055 + $0x250] sm:$0xff]
  %v6131 = vld [vmem:[%s6055 + $0x258] sm:$0xff]
  %v6132 = vld [vmem:[%s6055 + $0x260] sm:$0xff]
  %v6133 = vld [vmem:[%s6055 + $0x268] sm:$0xff]
  %v6134 = vld [vmem:[%s6055 + $0x270] sm:$0xff]
  %v6135 = vld [vmem:[%s6055 + $0x278] sm:$0xff]
  %v6136 = vld [vmem:[%s6055 + $0x280] sm:$0xff]
  %v6137 = vld [vmem:[%s6055 + $0x288] sm:$0xff]
  %v6138 = vld [vmem:[%s6055 + $0x290] sm:$0xff]
  %v6139 = vld [vmem:[%s6055 + $0x298] sm:$0xff]
  %v6140 = vld [vmem:[%s6055 + $0x2a0] sm:$0xff]
  %v6141 = vld [vmem:[%s6055 + $0x2a8] sm:$0xff]
  %v6142 = vld [vmem:[%s6055 + $0x2b0] sm:$0xff]
  %v6143 = vld [vmem:[%s6055 + $0x2b8] sm:$0xff]
  %v6144 = vld [vmem:[%s6055 + $0x2c0] sm:$0xff]
  %v6145 = vld [vmem:[%s6055 + $0x2c8] sm:$0xff]
  %v6146 = vld [vmem:[%s6055 + $0x2d0] sm:$0xff]
  %v6147 = vld [vmem:[%s6055 + $0x2d8] sm:$0xff]
  %v6148 = vld [vmem:[%s6055 + $0x2e0] sm:$0xff]
  %v6149 = vld [vmem:[%s6055 + $0x2e8] sm:$0xff]
  %v6150 = vld [vmem:[%s6055 + $0x2f0] sm:$0xff]
  %v6151 = vld [vmem:[%s6055 + $0x2f8] sm:$0xff]
  %v6152 = vld [vmem:[%s6055 + $0x300] sm:$0xff]
  %v6153 = vld [vmem:[%s6055 + $0x308] sm:$0xff]
  %v6154 = vld [vmem:[%s6055 + $0x310] sm:$0xff]
  %v6155 = vld [vmem:[%s6055 + $0x318] sm:$0xff]
  %v6156 = vld [vmem:[%s6055 + $0x320] sm:$0xff]
  %v6157 = vld [vmem:[%s6055 + $0x328] sm:$0xff]
  %v6158 = vld [vmem:[%s6055 + $0x330] sm:$0xff]
  %v6159 = vld [vmem:[%s6055 + $0x338] sm:$0xff]
  %v6160 = vld [vmem:[%s6055 + $0x340] sm:$0xff]
  %v6161 = vld [vmem:[%s6055 + $0x348] sm:$0xff]
  %v6162 = vld [vmem:[%s6055 + $0x350] sm:$0xff]
  %v6163 = vld [vmem:[%s6055 + $0x358] sm:$0xff]
  %v6164 = vld [vmem:[%s6055 + $0x360] sm:$0xff]
  %v6165 = vld [vmem:[%s6055 + $0x368] sm:$0xff]
  %v6166 = vld [vmem:[%s6055 + $0x370] sm:$0xff]
  %v6167 = vld [vmem:[%s6055 + $0x378] sm:$0xff]
  %v6168 = vld [vmem:[%s6055 + $0x380] sm:$0xff]
  %v6169 = vld [vmem:[%s6055 + $0x388] sm:$0xff]
  %v6170 = vld [vmem:[%s6055 + $0x390] sm:$0xff]
  %v6171 = vld [vmem:[%s6055 + $0x398] sm:$0xff]
  %v6172 = vld [vmem:[%s6055 + $0x3a0] sm:$0xff]
  %v6173 = vld [vmem:[%s6055 + $0x3a8] sm:$0xff]
  %v6174 = vld [vmem:[%s6055 + $0x3b0] sm:$0xff]
  %v6175 = vld [vmem:[%s6055 + $0x3b8] sm:$0xff]
  %v6176 = vld [vmem:[%s6055 + $0x3c0] sm:$0xff]
  %v6177 = vld [vmem:[%s6055 + $0x3c8] sm:$0xff]
  %v6178 = vld [vmem:[%s6055 + $0x3d0] sm:$0xff]
  %v6179 = vld [vmem:[%s6055 + $0x3d8] sm:$0xff]
  %v6180 = vld [vmem:[%s6055 + $0x3e0] sm:$0xff]
  %v6181 = vld [vmem:[%s6055 + $0x3e8] sm:$0xff]
  %v6182 = vld [vmem:[%s6055 + $0x3f0] sm:$0xff]
  %v6183 = vld [vmem:[%s6055 + $0x3f8] sm:$0xff]
  %v6312 = vunpack.c.l.b16 %v6056
  %v6313 = vunpack.c.h.b16 %v6056
  %v6314 = vunpack.c.l.b16 %v6057
  %v6315 = vunpack.c.h.b16 %v6057
  %v6316 = vunpack.c.l.b16 %v6058
  %v6317 = vunpack.c.h.b16 %v6058
  %v6318 = vunpack.c.l.b16 %v6059
  %v6319 = vunpack.c.h.b16 %v6059
  %v6320 = vunpack.c.l.b16 %v6060
  %v6321 = vunpack.c.h.b16 %v6060
  %v6322 = vunpack.c.l.b16 %v6061
  %v6323 = vunpack.c.h.b16 %v6061
  %v6324 = vunpack.c.l.b16 %v6062
  %v6325 = vunpack.c.h.b16 %v6062
  %v6326 = vunpack.c.l.b16 %v6063
  %v6327 = vunpack.c.h.b16 %v6063
  %v6328 = vunpack.c.l.b16 %v6064
  %v6329 = vunpack.c.h.b16 %v6064
  %v6330 = vunpack.c.l.b16 %v6065
  %v6331 = vunpack.c.h.b16 %v6065
  %v6332 = vunpack.c.l.b16 %v6066
  %v6333 = vunpack.c.h.b16 %v6066
  %v6334 = vunpack.c.l.b16 %v6067
  %v6335 = vunpack.c.h.b16 %v6067
  %v6336 = vunpack.c.l.b16 %v6068
  %v6337 = vunpack.c.h.b16 %v6068
  %v6338 = vunpack.c.l.b16 %v6069
  %v6339 = vunpack.c.h.b16 %v6069
  %v6340 = vunpack.c.l.b16 %v6070
  %v6341 = vunpack.c.h.b16 %v6070
  %v6342 = vunpack.c.l.b16 %v6071
  %v6343 = vunpack.c.h.b16 %v6071
  %v6344 = vunpack.c.l.b16 %v6072
  %v6345 = vunpack.c.h.b16 %v6072
  %v6346 = vunpack.c.l.b16 %v6073
  %v6347 = vunpack.c.h.b16 %v6073
  %v6348 = vunpack.c.l.b16 %v6074
  %v6349 = vunpack.c.h.b16 %v6074
  %v6350 = vunpack.c.l.b16 %v6075
  %v6351 = vunpack.c.h.b16 %v6075
  %v6352 = vunpack.c.l.b16 %v6076
  %v6353 = vunpack.c.h.b16 %v6076
  %v6354 = vunpack.c.l.b16 %v6077
  %v6355 = vunpack.c.h.b16 %v6077
  %v6356 = vunpack.c.l.b16 %v6078
  %v6357 = vunpack.c.h.b16 %v6078
  %v6358 = vunpack.c.l.b16 %v6079
  %v6359 = vunpack.c.h.b16 %v6079
  %v6360 = vunpack.c.l.b16 %v6080
  %v6361 = vunpack.c.h.b16 %v6080
  %v6362 = vunpack.c.l.b16 %v6081
  %v6363 = vunpack.c.h.b16 %v6081
  %v6364 = vunpack.c.l.b16 %v6082
  %v6365 = vunpack.c.h.b16 %v6082
  %v6366 = vunpack.c.l.b16 %v6083
  %v6367 = vunpack.c.h.b16 %v6083
  %v6368 = vunpack.c.l.b16 %v6084
  %v6369 = vunpack.c.h.b16 %v6084
  %v6370 = vunpack.c.l.b16 %v6085
  %v6371 = vunpack.c.h.b16 %v6085
  %v6372 = vunpack.c.l.b16 %v6086
  %v6373 = vunpack.c.h.b16 %v6086
  %v6374 = vunpack.c.l.b16 %v6087
  %v6375 = vunpack.c.h.b16 %v6087
  %v6376 = vunpack.c.l.b16 %v6088
  %v6377 = vunpack.c.h.b16 %v6088
  %v6378 = vunpack.c.l.b16 %v6089
  %v6379 = vunpack.c.h.b16 %v6089
  %v6380 = vunpack.c.l.b16 %v6090
  %v6381 = vunpack.c.h.b16 %v6090
  %v6382 = vunpack.c.l.b16 %v6091
  %v6383 = vunpack.c.h.b16 %v6091
  %v6384 = vunpack.c.l.b16 %v6092
  %v6385 = vunpack.c.h.b16 %v6092
  %v6386 = vunpack.c.l.b16 %v6093
  %v6387 = vunpack.c.h.b16 %v6093
  %v6388 = vunpack.c.l.b16 %v6094
  %v6389 = vunpack.c.h.b16 %v6094
  %v6390 = vunpack.c.l.b16 %v6095
  %v6391 = vunpack.c.h.b16 %v6095
  %v6392 = vunpack.c.l.b16 %v6096
  %v6393 = vunpack.c.h.b16 %v6096
  %v6394 = vunpack.c.l.b16 %v6097
  %v6395 = vunpack.c.h.b16 %v6097
  %v6396 = vunpack.c.l.b16 %v6098
  %v6397 = vunpack.c.h.b16 %v6098
  %v6398 = vunpack.c.l.b16 %v6099
  %v6399 = vunpack.c.h.b16 %v6099
  %v6400 = vunpack.c.l.b16 %v6100
  %v6401 = vunpack.c.h.b16 %v6100
  %v6402 = vunpack.c.l.b16 %v6101
  %v6403 = vunpack.c.h.b16 %v6101
  %v6404 = vunpack.c.l.b16 %v6102
  %v6405 = vunpack.c.h.b16 %v6102
  %v6406 = vunpack.c.l.b16 %v6103
  %v6407 = vunpack.c.h.b16 %v6103
  %v6408 = vunpack.c.l.b16 %v6104
  %v6409 = vunpack.c.h.b16 %v6104
  %v6410 = vunpack.c.l.b16 %v6105
  %v6411 = vunpack.c.h.b16 %v6105
  %v6412 = vunpack.c.l.b16 %v6106
  %v6413 = vunpack.c.h.b16 %v6106
  %v6414 = vunpack.c.l.b16 %v6107
  %v6415 = vunpack.c.h.b16 %v6107
  %v6416 = vunpack.c.l.b16 %v6108
  %v6417 = vunpack.c.h.b16 %v6108
  %v6418 = vunpack.c.l.b16 %v6109
  %v6419 = vunpack.c.h.b16 %v6109
  %v6420 = vunpack.c.l.b16 %v6110
  %v6421 = vunpack.c.h.b16 %v6110
  %v6422 = vunpack.c.l.b16 %v6111
  %v6423 = vunpack.c.h.b16 %v6111
  %v6424 = vunpack.c.l.b16 %v6112
  %v6425 = vunpack.c.h.b16 %v6112
  %v6426 = vunpack.c.l.b16 %v6113
  %v6427 = vunpack.c.h.b16 %v6113
  %v6428 = vunpack.c.l.b16 %v6114
  %v6429 = vunpack.c.h.b16 %v6114
  %v6430 = vunpack.c.l.b16 %v6115
  %v6431 = vunpack.c.h.b16 %v6115
  %v6432 = vunpack.c.l.b16 %v6116
  %v6433 = vunpack.c.h.b16 %v6116
  %v6434 = vunpack.c.l.b16 %v6117
  %v6435 = vunpack.c.h.b16 %v6117
  %v6436 = vunpack.c.l.b16 %v6118
  %v6437 = vunpack.c.h.b16 %v6118
  %v6438 = vunpack.c.l.b16 %v6119
  %v6439 = vunpack.c.h.b16 %v6119
  %v6440 = vunpack.c.l.b16 %v6120
  %v6441 = vunpack.c.h.b16 %v6120
  %v6442 = vunpack.c.l.b16 %v6121
  %v6443 = vunpack.c.h.b16 %v6121
  %v6444 = vunpack.c.l.b16 %v6122
  %v6445 = vunpack.c.h.b16 %v6122
  %v6446 = vunpack.c.l.b16 %v6123
  %v6447 = vunpack.c.h.b16 %v6123
  %v6448 = vunpack.c.l.b16 %v6124
  %v6449 = vunpack.c.h.b16 %v6124
  %v6450 = vunpack.c.l.b16 %v6125
  %v6451 = vunpack.c.h.b16 %v6125
  %v6452 = vunpack.c.l.b16 %v6126
  %v6453 = vunpack.c.h.b16 %v6126
  %v6454 = vunpack.c.l.b16 %v6127
  %v6455 = vunpack.c.h.b16 %v6127
  %v6456 = vunpack.c.l.b16 %v6128
  %v6457 = vunpack.c.h.b16 %v6128
  %v6458 = vunpack.c.l.b16 %v6129
  %v6459 = vunpack.c.h.b16 %v6129
  %v6460 = vunpack.c.l.b16 %v6130
  %v6461 = vunpack.c.h.b16 %v6130
  %v6462 = vunpack.c.l.b16 %v6131
  %v6463 = vunpack.c.h.b16 %v6131
  %v6464 = vunpack.c.l.b16 %v6132
  %v6465 = vunpack.c.h.b16 %v6132
  %v6466 = vunpack.c.l.b16 %v6133
  %v6467 = vunpack.c.h.b16 %v6133
  %v6468 = vunpack.c.l.b16 %v6134
  %v6469 = vunpack.c.h.b16 %v6134
  %v6470 = vunpack.c.l.b16 %v6135
  %v6471 = vunpack.c.h.b16 %v6135
  %v6472 = vunpack.c.l.b16 %v6136
  %v6473 = vunpack.c.h.b16 %v6136
  %v6474 = vunpack.c.l.b16 %v6137
  %v6475 = vunpack.c.h.b16 %v6137
  %v6476 = vunpack.c.l.b16 %v6138
  %v6477 = vunpack.c.h.b16 %v6138
  %v6478 = vunpack.c.l.b16 %v6139
  %v6479 = vunpack.c.h.b16 %v6139
  %v6480 = vunpack.c.l.b16 %v6140
  %v6481 = vunpack.c.h.b16 %v6140
  %v6482 = vunpack.c.l.b16 %v6141
  %v6483 = vunpack.c.h.b16 %v6141
  %v6484 = vunpack.c.l.b16 %v6142
  %v6485 = vunpack.c.h.b16 %v6142
  %v6486 = vunpack.c.l.b16 %v6143
  %v6487 = vunpack.c.h.b16 %v6143
  %v6488 = vunpack.c.l.b16 %v6144
  %v6489 = vunpack.c.h.b16 %v6144
  %v6490 = vunpack.c.l.b16 %v6145
  %v6491 = vunpack.c.h.b16 %v6145
  %v6492 = vunpack.c.l.b16 %v6146
  %v6493 = vunpack.c.h.b16 %v6146
  %v6494 = vunpack.c.l.b16 %v6147
  %v6495 = vunpack.c.h.b16 %v6147
  %v6496 = vunpack.c.l.b16 %v6148
  %v6497 = vunpack.c.h.b16 %v6148
  %v6498 = vunpack.c.l.b16 %v6149
  %v6499 = vunpack.c.h.b16 %v6149
  %v6500 = vunpack.c.l.b16 %v6150
  %v6501 = vunpack.c.h.b16 %v6150
  %v6502 = vunpack.c.l.b16 %v6151
  %v6503 = vunpack.c.h.b16 %v6151
  %v6504 = vunpack.c.l.b16 %v6152
  %v6505 = vunpack.c.h.b16 %v6152
  %v6506 = vunpack.c.l.b16 %v6153
  %v6507 = vunpack.c.h.b16 %v6153
  %v6508 = vunpack.c.l.b16 %v6154
  %v6509 = vunpack.c.h.b16 %v6154
  %v6510 = vunpack.c.l.b16 %v6155
  %v6511 = vunpack.c.h.b16 %v6155
  %v6512 = vunpack.c.l.b16 %v6156
  %v6513 = vunpack.c.h.b16 %v6156
  %v6514 = vunpack.c.l.b16 %v6157
  %v6515 = vunpack.c.h.b16 %v6157
  %v6516 = vunpack.c.l.b16 %v6158
  %v6517 = vunpack.c.h.b16 %v6158
  %v6518 = vunpack.c.l.b16 %v6159
  %v6519 = vunpack.c.h.b16 %v6159
  %v6520 = vunpack.c.l.b16 %v6160
  %v6521 = vunpack.c.h.b16 %v6160
  %v6522 = vunpack.c.l.b16 %v6161
  %v6523 = vunpack.c.h.b16 %v6161
  %v6524 = vunpack.c.l.b16 %v6162
  %v6525 = vunpack.c.h.b16 %v6162
  %v6526 = vunpack.c.l.b16 %v6163
  %v6527 = vunpack.c.h.b16 %v6163
  %v6528 = vunpack.c.l.b16 %v6164
  %v6529 = vunpack.c.h.b16 %v6164
  %v6530 = vunpack.c.l.b16 %v6165
  %v6531 = vunpack.c.h.b16 %v6165
  %v6532 = vunpack.c.l.b16 %v6166
  %v6533 = vunpack.c.h.b16 %v6166
  %v6534 = vunpack.c.l.b16 %v6167
  %v6535 = vunpack.c.h.b16 %v6167
  %v6536 = vunpack.c.l.b16 %v6168
  %v6537 = vunpack.c.h.b16 %v6168
  %v6538 = vunpack.c.l.b16 %v6169
  %v6539 = vunpack.c.h.b16 %v6169
  %v6540 = vunpack.c.l.b16 %v6170
  %v6541 = vunpack.c.h.b16 %v6170
  %v6542 = vunpack.c.l.b16 %v6171
  %v6543 = vunpack.c.h.b16 %v6171
  %v6544 = vunpack.c.l.b16 %v6172
  %v6545 = vunpack.c.h.b16 %v6172
  %v6546 = vunpack.c.l.b16 %v6173
  %v6547 = vunpack.c.h.b16 %v6173
  %v6548 = vunpack.c.l.b16 %v6174
  %v6549 = vunpack.c.h.b16 %v6174
  %v6550 = vunpack.c.l.b16 %v6175
  %v6551 = vunpack.c.h.b16 %v6175
  %v6552 = vunpack.c.l.b16 %v6176
  %v6553 = vunpack.c.h.b16 %v6176
  %v6554 = vunpack.c.l.b16 %v6177
  %v6555 = vunpack.c.h.b16 %v6177
  %v6556 = vunpack.c.l.b16 %v6178
  %v6557 = vunpack.c.h.b16 %v6178
  %v6558 = vunpack.c.l.b16 %v6179
  %v6559 = vunpack.c.h.b16 %v6179
  %v6560 = vunpack.c.l.b16 %v6180
  %v6561 = vunpack.c.h.b16 %v6180
  %v6562 = vunpack.c.l.b16 %v6181
  %v6563 = vunpack.c.h.b16 %v6181
  %v6564 = vunpack.c.l.b16 %v6182
  %v6565 = vunpack.c.h.b16 %v6182
  %v6566 = vunpack.c.l.b16 %v6183
  %v6567 = vunpack.c.h.b16 %v6183
  %v6568 = vpack.c.b16 %v6316, %v6312
  %v6569 = vpack.c.b16 %v6317, %v6313
  %v6570 = vpack.c.b16 %v6318, %v6314
  %v6571 = vpack.c.b16 %v6319, %v6315
  %v6572 = vpack.c.b16 %v6324, %v6320
  %v6573 = vpack.c.b16 %v6325, %v6321
  %v6574 = vpack.c.b16 %v6326, %v6322
  %v6575 = vpack.c.b16 %v6327, %v6323
  %v6576 = vpack.c.b16 %v6332, %v6328
  %v6577 = vpack.c.b16 %v6333, %v6329
  %v6578 = vpack.c.b16 %v6334, %v6330
  %v6579 = vpack.c.b16 %v6335, %v6331
  %v6580 = vpack.c.b16 %v6340, %v6336
  %v6581 = vpack.c.b16 %v6341, %v6337
  %v6582 = vpack.c.b16 %v6342, %v6338
  %v6583 = vpack.c.b16 %v6343, %v6339
  %v6584 = vpack.c.b16 %v6348, %v6344
  %v6585 = vpack.c.b16 %v6349, %v6345
  %v6586 = vpack.c.b16 %v6350, %v6346
  %v6587 = vpack.c.b16 %v6351, %v6347
  %v6588 = vpack.c.b16 %v6356, %v6352
  %v6589 = vpack.c.b16 %v6357, %v6353
  %v6590 = vpack.c.b16 %v6358, %v6354
  %v6591 = vpack.c.b16 %v6359, %v6355
  %v6592 = vpack.c.b16 %v6364, %v6360
  %v6593 = vpack.c.b16 %v6365, %v6361
  %v6594 = vpack.c.b16 %v6366, %v6362
  %v6595 = vpack.c.b16 %v6367, %v6363
  %v6596 = vpack.c.b16 %v6372, %v6368
  %v6597 = vpack.c.b16 %v6373, %v6369
  %v6598 = vpack.c.b16 %v6374, %v6370
  %v6599 = vpack.c.b16 %v6375, %v6371
  %v6600 = vpack.c.b16 %v6380, %v6376
  %v6601 = vpack.c.b16 %v6381, %v6377
  %v6602 = vpack.c.b16 %v6382, %v6378
  %v6603 = vpack.c.b16 %v6383, %v6379
  %v6604 = vpack.c.b16 %v6388, %v6384
  %v6605 = vpack.c.b16 %v6389, %v6385
  %v6606 = vpack.c.b16 %v6390, %v6386
  %v6607 = vpack.c.b16 %v6391, %v6387
  %v6608 = vpack.c.b16 %v6396, %v6392
  %v6609 = vpack.c.b16 %v6397, %v6393
  %v6610 = vpack.c.b16 %v6398, %v6394
  %v6611 = vpack.c.b16 %v6399, %v6395
  %v6612 = vpack.c.b16 %v6404, %v6400
  %v6613 = vpack.c.b16 %v6405, %v6401
  %v6614 = vpack.c.b16 %v6406, %v6402
  %v6615 = vpack.c.b16 %v6407, %v6403
  %v6616 = vpack.c.b16 %v6412, %v6408
  %v6617 = vpack.c.b16 %v6413, %v6409
  %v6618 = vpack.c.b16 %v6414, %v6410
  %v6619 = vpack.c.b16 %v6415, %v6411
  %v6620 = vpack.c.b16 %v6420, %v6416
  %v6621 = vpack.c.b16 %v6421, %v6417
  %v6622 = vpack.c.b16 %v6422, %v6418
  %v6623 = vpack.c.b16 %v6423, %v6419
  %v6624 = vpack.c.b16 %v6428, %v6424
  %v6625 = vpack.c.b16 %v6429, %v6425
  %v6626 = vpack.c.b16 %v6430, %v6426
  %v6627 = vpack.c.b16 %v6431, %v6427
  %v6628 = vpack.c.b16 %v6436, %v6432
  %v6629 = vpack.c.b16 %v6437, %v6433
  %v6630 = vpack.c.b16 %v6438, %v6434
  %v6631 = vpack.c.b16 %v6439, %v6435
  %v6632 = vpack.c.b16 %v6444, %v6440
  %v6633 = vpack.c.b16 %v6445, %v6441
  %v6634 = vpack.c.b16 %v6446, %v6442
  %v6635 = vpack.c.b16 %v6447, %v6443
  %v6636 = vpack.c.b16 %v6452, %v6448
  %v6637 = vpack.c.b16 %v6453, %v6449
  %v6638 = vpack.c.b16 %v6454, %v6450
  %v6639 = vpack.c.b16 %v6455, %v6451
  %v6640 = vpack.c.b16 %v6460, %v6456
  %v6641 = vpack.c.b16 %v6461, %v6457
  %v6642 = vpack.c.b16 %v6462, %v6458
  %v6643 = vpack.c.b16 %v6463, %v6459
  %v6644 = vpack.c.b16 %v6468, %v6464
  %v6645 = vpack.c.b16 %v6469, %v6465
  %v6646 = vpack.c.b16 %v6470, %v6466
  %v6647 = vpack.c.b16 %v6471, %v6467
  %v6648 = vpack.c.b16 %v6476, %v6472
  %v6649 = vpack.c.b16 %v6477, %v6473
  %v6650 = vpack.c.b16 %v6478, %v6474
  %v6651 = vpack.c.b16 %v6479, %v6475
  %v6652 = vpack.c.b16 %v6484, %v6480
  %v6653 = vpack.c.b16 %v6485, %v6481
  %v6654 = vpack.c.b16 %v6486, %v6482
  %v6655 = vpack.c.b16 %v6487, %v6483
  %v6656 = vpack.c.b16 %v6492, %v6488
  %v6657 = vpack.c.b16 %v6493, %v6489
  %v6658 = vpack.c.b16 %v6494, %v6490
  %v6659 = vpack.c.b16 %v6495, %v6491
  %v6660 = vpack.c.b16 %v6500, %v6496
  %v6661 = vpack.c.b16 %v6501, %v6497
  %v6662 = vpack.c.b16 %v6502, %v6498
  %v6663 = vpack.c.b16 %v6503, %v6499
  %v6664 = vpack.c.b16 %v6508, %v6504
  %v6665 = vpack.c.b16 %v6509, %v6505
  %v6666 = vpack.c.b16 %v6510, %v6506
  %v6667 = vpack.c.b16 %v6511, %v6507
  %v6668 = vpack.c.b16 %v6516, %v6512
  %v6669 = vpack.c.b16 %v6517, %v6513
  %v6670 = vpack.c.b16 %v6518, %v6514
  %v6671 = vpack.c.b16 %v6519, %v6515
  %v6672 = vpack.c.b16 %v6524, %v6520
  %v6673 = vpack.c.b16 %v6525, %v6521
  %v6674 = vpack.c.b16 %v6526, %v6522
  %v6675 = vpack.c.b16 %v6527, %v6523
  %v6676 = vpack.c.b16 %v6532, %v6528
  %v6677 = vpack.c.b16 %v6533, %v6529
  %v6678 = vpack.c.b16 %v6534, %v6530
  %v6679 = vpack.c.b16 %v6535, %v6531
  %v6680 = vpack.c.b16 %v6540, %v6536
  %v6681 = vpack.c.b16 %v6541, %v6537
  %v6682 = vpack.c.b16 %v6542, %v6538
  %v6683 = vpack.c.b16 %v6543, %v6539
  %v6684 = vpack.c.b16 %v6548, %v6544
  %v6685 = vpack.c.b16 %v6549, %v6545
  %v6686 = vpack.c.b16 %v6550, %v6546
  %v6687 = vpack.c.b16 %v6551, %v6547
  %v6688 = vpack.c.b16 %v6556, %v6552
  %v6689 = vpack.c.b16 %v6557, %v6553
  %v6690 = vpack.c.b16 %v6558, %v6554
  %v6691 = vpack.c.b16 %v6559, %v6555
  %v6692 = vpack.c.b16 %v6564, %v6560
  %v6693 = vpack.c.b16 %v6565, %v6561
  %v6694 = vpack.c.b16 %v6566, %v6562
  %v6695 = vpack.c.b16 %v6567, %v6563
  %6824 = vmatprep.subr.bf16.mxu0 %v6569
  %6825 = vmatpush1.bf16.msra.mxu0 %v6568
  %6826 = vmatprep.subr.bf16.mxu0 %v6573
  %6827 = vmatpush1.bf16.msra.mxu0 %v6572
  %6828 = vmatprep.subr.bf16.mxu0 %v6577
  %6829 = vmatpush1.bf16.msra.mxu0 %v6576
  %6830 = vmatprep.subr.bf16.mxu0 %v6581
  %6831 = vmatpush1.bf16.msra.mxu0 %v6580
  %6832 = vmatprep.subr.bf16.mxu0 %v6585
  %6833 = vmatpush1.bf16.msra.mxu0 %v6584
  %6834 = vmatprep.subr.bf16.mxu0 %v6589
  %6835 = vmatpush1.bf16.msra.mxu0 %v6588
  %6836 = vmatprep.subr.bf16.mxu0 %v6593
  %6837 = vmatpush1.bf16.msra.mxu0 %v6592
  %6838 = vmatprep.subr.bf16.mxu0 %v6597
  %6839 = vmatpush1.bf16.msra.mxu0 %v6596
  %6840 = vmatprep.subr.bf16.mxu0 %v6601
  %6841 = vmatpush1.bf16.msra.mxu0 %v6600
  %6842 = vmatprep.subr.bf16.mxu0 %v6605
  %6843 = vmatpush1.bf16.msra.mxu0 %v6604
  %6844 = vmatprep.subr.bf16.mxu0 %v6609
  %6845 = vmatpush1.bf16.msra.mxu0 %v6608
  %6846 = vmatprep.subr.bf16.mxu0 %v6613
  %6847 = vmatpush1.bf16.msra.mxu0 %v6612
  %6848 = vmatprep.subr.bf16.mxu0 %v6617
  %6849 = vmatpush1.bf16.msra.mxu0 %v6616
  %6850 = vmatprep.subr.bf16.mxu0 %v6621
  %6851 = vmatpush1.bf16.msra.mxu0 %v6620
  %6852 = vmatprep.subr.bf16.mxu0 %v6625
  %6853 = vmatpush1.bf16.msra.mxu0 %v6624
  %6854 = vmatprep.subr.bf16.mxu0 %v6629
  %6855 = vmatpush1.bf16.msra.mxu0 %v6628
  %6856 = vmatprep.mubr.bf16.mxu0 %v6048
  %6857 = vmatmul.mubr.bf16.gmra.mrb[0].mxu0 %v6047
  %v6858 = vpop.f32.mrb[0].mxu0
  %v6859 = vadd.f32 0.0, %v6858
  %v6860 = vpop.f32.mrb[0].mxu0
  %v6861 = vadd.f32 0.0, %v6860
  %v6862 = vpop.f32.mrb[0].mxu0
  %v6863 = vadd.f32 0.0, %v6862
  %v6864 = vpop.f32.mrb[0].mxu0
  %v6865 = vadd.f32 0.0, %v6864
  %6866 = vmatprep.mubr.bf16.mxu0 %v6052
  %6867 = vmatmul.mubr.bf16.gmra.mrb[0].mxu0 %v6051
  %v6868 = vpop.f32.mrb[0].mxu0
  %v6869 = vadd.f32 0.0, %v6868
  %v6870 = vpop.f32.mrb[0].mxu0
  %v6871 = vadd.f32 0.0, %v6870
  %v6872 = vpop.f32.mrb[0].mxu0
  %v6873 = vadd.f32 0.0, %v6872
  %v6874 = vpop.f32.mrb[0].mxu0
  %v6875 = vadd.f32 0.0, %v6874
  %6876 = vdwg.mxu0
  %6877 = vmatprep.subr.bf16.mxu0 %v6633
  %6878 = vmatpush1.bf16.msra.mxu0 %v6632
  %6879 = vmatprep.subr.bf16.mxu0 %v6637
  %6880 = vmatpush1.bf16.msra.mxu0 %v6636
  %6881 = vmatprep.subr.bf16.mxu0 %v6641
  %6882 = vmatpush1.bf16.msra.mxu0 %v6640
  %6883 = vmatprep.subr.bf16.mxu0 %v6645
  %6884 = vmatpush1.bf16.msra.mxu0 %v6644
  %6885 = vmatprep.subr.bf16.mxu0 %v6649
  %6886 = vmatpush1.bf16.msra.mxu0 %v6648
  %6887 = vmatprep.subr.bf16.mxu0 %v6653
  %6888 = vmatpush1.bf16.msra.mxu0 %v6652
  %6889 = vmatprep.subr.bf16.mxu0 %v6657
  %6890 = vmatpush1.bf16.msra.mxu0 %v6656
  %6891 = vmatprep.subr.bf16.mxu0 %v6661
  %6892 = vmatpush1.bf16.msra.mxu0 %v6660
  %6893 = vmatprep.subr.bf16.mxu0 %v6665
  %6894 = vmatpush1.bf16.msra.mxu0 %v6664
  %6895 = vmatprep.subr.bf16.mxu0 %v6669
  %6896 = vmatpush1.bf16.msra.mxu0 %v6668
  %6897 = vmatprep.subr.bf16.mxu0 %v6673
  %6898 = vmatpush1.bf16.msra.mxu0 %v6672
  %6899 = vmatprep.subr.bf16.mxu0 %v6677
  %6900 = vmatpush1.bf16.msra.mxu0 %v6676
  %6901 = vmatprep.subr.bf16.mxu0 %v6681
  %6902 = vmatpush1.bf16.msra.mxu0 %v6680
  %6903 = vmatprep.subr.bf16.mxu0 %v6685
  %6904 = vmatpush1.bf16.msra.mxu0 %v6684
  %6905 = vmatprep.subr.bf16.mxu0 %v6689
  %6906 = vmatpush1.bf16.msra.mxu0 %v6688
  %6907 = vmatprep.subr.bf16.mxu0 %v6693
  %6908 = vmatpush1.bf16.msra.mxu0 %v6692
  %6909 = vmatprep.mubr.bf16.mxu0 %v6050
  %6910 = vmatmul.mubr.bf16.gmra.mrb[0].mxu0 %v6049
  %v6911 = vpop.f32.mrb[0].mxu0
  %v6912 = vadd.f32 %v6859, %v6911
  %v6913 = vpop.f32.mrb[0].mxu0
  %v6914 = vadd.f32 %v6861, %v6913
  %v6915 = vpop.f32.mrb[0].mxu0
  %v6916 = vadd.f32 %v6863, %v6915
  %v6917 = vpop.f32.mrb[0].mxu0
  %v6918 = vadd.f32 %v6865, %v6917
  %6919 = vmatprep.mubr.bf16.mxu0 %v6054
  %6920 = vmatmul.mubr.bf16.gmra.mrb[0].mxu0 %v6053
  %v6921 = vpop.f32.mrb[0].mxu0
  %v6922 = vadd.f32 %v6869, %v6921
  %v6923 = vpop.f32.mrb[0].mxu0
  %v6924 = vadd.f32 %v6871, %v6923
  %v6925 = vpop.f32.mrb[0].mxu0
  %v6926 = vadd.f32 %v6873, %v6925
  %v6927 = vpop.f32.mrb[0].mxu0
  %v6928 = vadd.f32 %v6875, %v6927
  %6929 = vdwg.mxu0
  %6930 = vmatprep.subr.bf16.mxu0 %v6571
  %6931 = vmatpush1.bf16.msra.mxu0 %v6570
  %6932 = vmatprep.subr.bf16.mxu0 %v6575
  %6933 = vmatpush1.bf16.msra.mxu0 %v6574
  %6934 = vmatprep.subr.bf16.mxu0 %v6579
  %6935 = vmatpush1.bf16.msra.mxu0 %v6578
  %6936 = vmatprep.subr.bf16.mxu0 %v6583
  %6937 = vmatpush1.bf16.msra.mxu0 %v6582
  %6938 = vmatprep.subr.bf16.mxu0 %v6587
  %6939 = vmatpush1.bf16.msra.mxu0 %v6586
  %6940 = vmatprep.subr.bf16.mxu0 %v6591
  %6941 = vmatpush1.bf16.msra.mxu0 %v6590
  %6942 = vmatprep.subr.bf16.mxu0 %v6595
  %6943 = vmatpush1.bf16.msra.mxu0 %v6594
  %6944 = vmatprep.subr.bf16.mxu0 %v6599
  %6945 = vmatpush1.bf16.msra.mxu0 %v6598
  %6946 = vmatprep.subr.bf16.mxu0 %v6603
  %6947 = vmatpush1.bf16.msra.mxu0 %v6602
  %6948 = vmatprep.subr.bf16.mxu0 %v6607
  %6949 = vmatpush1.bf16.msra.mxu0 %v6606
  %6950 = vmatprep.subr.bf16.mxu0 %v6611
  %6951 = vmatpush1.bf16.msra.mxu0 %v6610
  %6952 = vmatprep.subr.bf16.mxu0 %v6615
  %6953 = vmatpush1.bf16.msra.mxu0 %v6614
  %6954 = vmatprep.subr.bf16.mxu0 %v6619
  %6955 = vmatpush1.bf16.msra.mxu0 %v6618
  %6956 = vmatprep.subr.bf16.mxu0 %v6623
  %6957 = vmatpush1.bf16.msra.mxu0 %v6622
  %6958 = vmatprep.subr.bf16.mxu0 %v6627
  %6959 = vmatpush1.bf16.msra.mxu0 %v6626
  %6960 = vmatprep.subr.bf16.mxu0 %v6631
  %6961 = vmatpush1.bf16.msra.mxu0 %v6630
  %6962 = vmatprep.mubr.bf16.mxu0 %v6048
  %6963 = vmatmul.mubr.bf16.gmra.mrb[0].mxu0 %v6047
  %v6964 = vpop.f32.mrb[0].mxu0
  %v6965 = vadd.f32 0.0, %v6964
  %v6966 = vpop.f32.mrb[0].mxu0
  %v6967 = vadd.f32 0.0, %v6966
  %v6968 = vpop.f32.mrb[0].mxu0
  %v6969 = vadd.f32 0.0, %v6968
  %v6970 = vpop.f32.mrb[0].mxu0
  %v6971 = vadd.f32 0.0, %v6970
  %6972 = vmatprep.mubr.bf16.mxu0 %v6052
  %6973 = vmatmul.mubr.bf16.gmra.mrb[0].mxu0 %v6051
  %v6974 = vpop.f32.mrb[0].mxu0
  %v6975 = vadd.f32 0.0, %v6974
  %v6976 = vpop.f32.mrb[0].mxu0
  %v6977 = vadd.f32 0.0, %v6976
  %v6978 = vpop.f32.mrb[0].mxu0
  %v6979 = vadd.f32 0.0, %v6978
  %v6980 = vpop.f32.mrb[0].mxu0
  %v6981 = vadd.f32 0.0, %v6980
  %6982 = vdwg.mxu0
  %6983 = vmatprep.subr.bf16.mxu0 %v6635
  %6984 = vmatpush1.bf16.msra.mxu0 %v6634
  %6985 = vmatprep.subr.bf16.mxu0 %v6639
  %6986 = vmatpush1.bf16.msra.mxu0 %v6638
  %6987 = vmatprep.subr.bf16.mxu0 %v6643
  %6988 = vmatpush1.bf16.msra.mxu0 %v6642
  %6989 = vmatprep.subr.bf16.mxu0 %v6647
  %6990 = vmatpush1.bf16.msra.mxu0 %v6646
  %6991 = vmatprep.subr.bf16.mxu0 %v6651
  %6992 = vmatpush1.bf16.msra.mxu0 %v6650
  %6993 = vmatprep.subr.bf16.mxu0 %v6655
  %6994 = vmatpush1.bf16.msra.mxu0 %v6654
  %6995 = vmatprep.subr.bf16.mxu0 %v6659
  %6996 = vmatpush1.bf16.msra.mxu0 %v6658
  %6997 = vmatprep.subr.bf16.mxu0 %v6663
  %6998 = vmatpush1.bf16.msra.mxu0 %v6662
  %6999 = vmatprep.subr.bf16.mxu0 %v6667
  %7000 = vmatpush1.bf16.msra.mxu0 %v6666
  %7001 = vmatprep.subr.bf16.mxu0 %v6671
  %7002 = vmatpush1.bf16.msra.mxu0 %v6670
  %7003 = vmatprep.subr.bf16.mxu0 %v6675
  %7004 = vmatpush1.bf16.msra.mxu0 %v6674
  %7005 = vmatprep.subr.bf16.mxu0 %v6679
  %7006 = vmatpush1.bf16.msra.mxu0 %v6678
  %7007 = vmatprep.subr.bf16.mxu0 %v6683
  %7008 = vmatpush1.bf16.msra.mxu0 %v6682
  %7009 = vmatprep.subr.bf16.mxu0 %v6687
  %7010 = vmatpush1.bf16.msra.mxu0 %v6686
  %7011 = vmatprep.subr.bf16.mxu0 %v6691
  %7012 = vmatpush1.bf16.msra.mxu0 %v6690
  %7013 = vmatprep.subr.bf16.mxu0 %v6695
  %7014 = vmatpush1.bf16.msra.mxu0 %v6694
  %7015 = vmatprep.mubr.bf16.mxu0 %v6050
  %7016 = vmatmul.mubr.bf16.gmra.mrb[0].mxu0 %v6049
  %v7017 = vpop.f32.mrb[0].mxu0
  %v7018 = vadd.f32 %v6965, %v7017
  %v7019 = vpop.f32.mrb[0].mxu0
  %v7020 = vadd.f32 %v6967, %v7019
  %v7021 = vpop.f32.mrb[0].mxu0
  %v7022 = vadd.f32 %v6969, %v7021
  %v7023 = vpop.f32.mrb[0].mxu0
  %v7024 = vadd.f32 %v6971, %v7023
  %7025 = vmatprep.mubr.bf16.mxu0 %v6054
  %7026 = vmatmul.mubr.bf16.gmra.mrb[0].mxu0 %v6053
  %v7027 = vpop.f32.mrb[0].mxu0
  %v7028 = vadd.f32 %v6975, %v7027
  %v7029 = vpop.f32.mrb[0].mxu0
  %v7030 = vadd.f32 %v6977, %v7029
  %v7031 = vpop.f32.mrb[0].mxu0
  %v7032 = vadd.f32 %v6979, %v7031
  %v7033 = vpop.f32.mrb[0].mxu0
  %v7034 = vadd.f32 %v6981, %v7033
  %7035 = vdwg.mxu0
  %v7036 = vadd.f32 %v5908, %v6912
  %v7037 = vadd.f32 %v5909, %v6914
  %v7038 = vadd.f32 %v5910, %v7018
  %v7039 = vadd.f32 %v5911, %v7020
  %v7040 = vadd.f32 %v5912, %v6916
  %v7041 = vadd.f32 %v5913, %v6918
  %v7042 = vadd.f32 %v5914, %v7022
  %v7043 = vadd.f32 %v5915, %v7024
  %v7044 = vadd.f32 %v5916, %v6922
  %v7045 = vadd.f32 %v5917, %v6924
  %v7046 = vadd.f32 %v5918, %v7028
  %v7047 = vadd.f32 %v5919, %v7030
  %v7048 = vadd.f32 %v5920, %v6926
  %v7049 = vadd.f32 %v5921, %v6928
  %v7050 = vadd.f32 %v5922, %v7032
  %v7051 = vadd.f32 %v5923, %v7034
  %s7052 = scalar_lea.vmem %s5, 64
  %v7053 = vld [vmem:[%s7052] sm:$0xf]
  %v7054 = vld [vmem:[%s7052 + $0x4] sm:$0xf]
  %v7055 = vld [vmem:[%s7052 + $0x8] sm:$0xf]
  %v7056 = vld [vmem:[%s7052 + $0xc] sm:$0xf]
  %v7061 = vunpack.c.l.b16 %v7053
  %v7062 = vunpack.c.l.b16 %v7054
  %v7063 = vunpack.c.l.b16 %v7055
  %v7064 = vunpack.c.l.b16 %v7056
  %v7065 = vpack.c.b16 %v7062, %v7061
  %v7066 = vpack.c.b16 %v7064, %v7063
  %7069 = vmatprep.subr.bf16.mxu0 %v2543
  %7070 = vmatpush1.bf16.msra.mxu0 %v2542
  %7071 = vmatprep.subr.bf16.mxu0 %v2547
  %7072 = vmatpush1.bf16.msra.mxu0 %v2546
  %7073 = vmatprep.subr.bf16.mxu0 %v2551
  %7074 = vmatpush1.bf16.msra.mxu0 %v2550
  %7075 = vmatprep.subr.bf16.mxu0 %v2555
  %7076 = vmatpush1.bf16.msra.mxu0 %v2554
  %7077 = vmatprep.subr.bf16.mxu0 %v2559
  %7078 = vmatpush1.bf16.msra.mxu0 %v2558
  %7079 = vmatprep.subr.bf16.mxu0 %v2563
  %7080 = vmatpush1.bf16.msra.mxu0 %v2562
  %7081 = vmatprep.subr.bf16.mxu0 %v2567
  %7082 = vmatpush1.bf16.msra.mxu0 %v2566
  %7083 = vmatprep.subr.bf16.mxu0 %v2571
  %7084 = vmatpush1.bf16.msra.mxu0 %v2570
  %7085 = vmatprep.subr.bf16.mxu0 0
  %7086 = vmatpush1.bf16.msra.mxu0 0
  %7087 = vmatprep.subr.bf16.mxu0 0
  %7088 = vmatpush1.bf16.msra.mxu0 0
  %7089 = vmatprep.subr.bf16.mxu0 0
  %7090 = vmatpush1.bf16.msra.mxu0 0
  %7091 = vmatprep.subr.bf16.mxu0 0
  %7092 = vmatpush1.bf16.msra.mxu0 0
  %7093 = vmatprep.subr.bf16.mxu0 0
  %7094 = vmatpush1.bf16.msra.mxu0 0
  %7095 = vmatprep.subr.bf16.mxu0 0
  %7096 = vmatpush1.bf16.msra.mxu0 0
  %7097 = vmatprep.subr.bf16.mxu0 0
  %7098 = vmatpush1.bf16.msra.mxu0 0
  %7099 = vmatprep.subr.bf16.mxu0 0
  %7100 = vmatpush1.bf16.msra.mxu0 0
  %7101 = vmatprep.mubr.bf16.mxu0 0
  %7102 = vmatmul.mubr.bf16.gmra.mrb[0].mxu0 %v7065
  %v7103 = vpop.f32.mrb[0].mxu0
  %v7104 = vadd.f32 0.0, %v7103
  %v7105 = vpop.f32.mrb[0].mxu0
  %v7106 = vadd.f32 0.0, %v7105
  %v7107 = vpop.f32.mrb[0].mxu0
  %v7108 = vadd.f32 0.0, %v7107
  %v7109 = vpop.f32.mrb[0].mxu0
  %v7110 = vadd.f32 0.0, %v7109
  %7111 = vmatprep.mubr.bf16.mxu0 0
  %7112 = vmatmul.mubr.bf16.gmra.mrb[0].mxu0 %v7066
  %v7113 = vpop.f32.mrb[0].mxu0
  %v7114 = vadd.f32 0.0, %v7113
  %v7115 = vpop.f32.mrb[0].mxu0
  %v7116 = vadd.f32 0.0, %v7115
  %v7117 = vpop.f32.mrb[0].mxu0
  %v7118 = vadd.f32 0.0, %v7117
  %v7119 = vpop.f32.mrb[0].mxu0
  %v7120 = vadd.f32 0.0, %v7119
  %7121 = vdwg.mxu0
  %7122 = vmatprep.subr.bf16.mxu0 %v2545
  %7123 = vmatpush1.bf16.msra.mxu0 %v2544
  %7124 = vmatprep.subr.bf16.mxu0 %v2549
  %7125 = vmatpush1.bf16.msra.mxu0 %v2548
  %7126 = vmatprep.subr.bf16.mxu0 %v2553
  %7127 = vmatpush1.bf16.msra.mxu0 %v2552
  %7128 = vmatprep.subr.bf16.mxu0 %v2557
  %7129 = vmatpush1.bf16.msra.mxu0 %v2556
  %7130 = vmatprep.subr.bf16.mxu0 %v2561
  %7131 = vmatpush1.bf16.msra.mxu0 %v2560
  %7132 = vmatprep.subr.bf16.mxu0 %v2565
  %7133 = vmatpush1.bf16.msra.mxu0 %v2564
  %7134 = vmatprep.subr.bf16.mxu0 %v2569
  %7135 = vmatpush1.bf16.msra.mxu0 %v2568
  %7136 = vmatprep.subr.bf16.mxu0 %v2573
  %7137 = vmatpush1.bf16.msra.mxu0 %v2572
  %7138 = vmatprep.subr.bf16.mxu0 0
  %7139 = vmatpush1.bf16.msra.mxu0 0
  %7140 = vmatprep.subr.bf16.mxu0 0
  %7141 = vmatpush1.bf16.msra.mxu0 0
  %7142 = vmatprep.subr.bf16.mxu0 0
  %7143 = vmatpush1.bf16.msra.mxu0 0
  %7144 = vmatprep.subr.bf16.mxu0 0
  %7145 = vmatpush1.bf16.msra.mxu0 0
  %7146 = vmatprep.subr.bf16.mxu0 0
  %7147 = vmatpush1.bf16.msra.mxu0 0
  %7148 = vmatprep.subr.bf16.mxu0 0
  %7149 = vmatpush1.bf16.msra.mxu0 0
  %7150 = vmatprep.subr.bf16.mxu0 0
  %7151 = vmatpush1.bf16.msra.mxu0 0
  %7152 = vmatprep.subr.bf16.mxu0 0
  %7153 = vmatpush1.bf16.msra.mxu0 0
  %7154 = vmatprep.mubr.bf16.mxu0 0
  %7155 = vmatmul.mubr.bf16.gmra.mrb[0].mxu0 %v7065
  %v7156 = vpop.f32.mrb[0].mxu0
  %v7157 = vadd.f32 0.0, %v7156
  %v7158 = vpop.f32.mrb[0].mxu0
  %v7159 = vadd.f32 0.0, %v7158
  %v7160 = vpop.f32.mrb[0].mxu0
  %v7161 = vadd.f32 0.0, %v7160
  %v7162 = vpop.f32.mrb[0].mxu0
  %v7163 = vadd.f32 0.0, %v7162
  %7164 = vmatprep.mubr.bf16.mxu0 0
  %7165 = vmatmul.mubr.bf16.gmra.mrb[0].mxu0 %v7066
  %v7166 = vpop.f32.mrb[0].mxu0
  %v7167 = vadd.f32 0.0, %v7166
  %v7168 = vpop.f32.mrb[0].mxu0
  %v7169 = vadd.f32 0.0, %v7168
  %v7170 = vpop.f32.mrb[0].mxu0
  %v7171 = vadd.f32 0.0, %v7170
  %v7172 = vpop.f32.mrb[0].mxu0
  %v7173 = vadd.f32 0.0, %v7172
  %7174 = vdwg.mxu0
  %v7175 = vpack.c.bf16 %v7108, %v7104
  %v7176 = vpack.c.bf16 %v7110, %v7106
  %v7177 = vpack.c.bf16 %v7161, %v7157
  %v7178 = vpack.c.bf16 %v7163, %v7159
  %v7179 = vpack.c.bf16 %v7118, %v7114
  %v7180 = vpack.c.bf16 %v7120, %v7116
  %v7181 = vpack.c.bf16 %v7171, %v7167
  %v7182 = vpack.c.bf16 %v7173, %v7169
  %s7183 = scalar_lea.vmem %s6, 4096
  %v7184 = vld [vmem:[%s7183] sm:$0xff]
  %v7185 = vld [vmem:[%s7183 + $0x8] sm:$0xff]
  %v7186 = vld [vmem:[%s7183 + $0x10] sm:$0xff]
  %v7187 = vld [vmem:[%s7183 + $0x18] sm:$0xff]
  %v7188 = vld [vmem:[%s7183 + $0x20] sm:$0xff]
  %v7189 = vld [vmem:[%s7183 + $0x28] sm:$0xff]
  %v7190 = vld [vmem:[%s7183 + $0x30] sm:$0xff]
  %v7191 = vld [vmem:[%s7183 + $0x38] sm:$0xff]
  %v7192 = vld [vmem:[%s7183 + $0x40] sm:$0xff]
  %v7193 = vld [vmem:[%s7183 + $0x48] sm:$0xff]
  %v7194 = vld [vmem:[%s7183 + $0x50] sm:$0xff]
  %v7195 = vld [vmem:[%s7183 + $0x58] sm:$0xff]
  %v7196 = vld [vmem:[%s7183 + $0x60] sm:$0xff]
  %v7197 = vld [vmem:[%s7183 + $0x68] sm:$0xff]
  %v7198 = vld [vmem:[%s7183 + $0x70] sm:$0xff]
  %v7199 = vld [vmem:[%s7183 + $0x78] sm:$0xff]
  %v7200 = vld [vmem:[%s7183 + $0x80] sm:$0xff]
  %v7201 = vld [vmem:[%s7183 + $0x88] sm:$0xff]
  %v7202 = vld [vmem:[%s7183 + $0x90] sm:$0xff]
  %v7203 = vld [vmem:[%s7183 + $0x98] sm:$0xff]
  %v7204 = vld [vmem:[%s7183 + $0xa0] sm:$0xff]
  %v7205 = vld [vmem:[%s7183 + $0xa8] sm:$0xff]
  %v7206 = vld [vmem:[%s7183 + $0xb0] sm:$0xff]
  %v7207 = vld [vmem:[%s7183 + $0xb8] sm:$0xff]
  %v7208 = vld [vmem:[%s7183 + $0xc0] sm:$0xff]
  %v7209 = vld [vmem:[%s7183 + $0xc8] sm:$0xff]
  %v7210 = vld [vmem:[%s7183 + $0xd0] sm:$0xff]
  %v7211 = vld [vmem:[%s7183 + $0xd8] sm:$0xff]
  %v7212 = vld [vmem:[%s7183 + $0xe0] sm:$0xff]
  %v7213 = vld [vmem:[%s7183 + $0xe8] sm:$0xff]
  %v7214 = vld [vmem:[%s7183 + $0xf0] sm:$0xff]
  %v7215 = vld [vmem:[%s7183 + $0xf8] sm:$0xff]
  %v7216 = vld [vmem:[%s7183 + $0x100] sm:$0xff]
  %v7217 = vld [vmem:[%s7183 + $0x108] sm:$0xff]
  %v7218 = vld [vmem:[%s7183 + $0x110] sm:$0xff]
  %v7219 = vld [vmem:[%s7183 + $0x118] sm:$0xff]
  %v7220 = vld [vmem:[%s7183 + $0x120] sm:$0xff]
  %v7221 = vld [vmem:[%s7183 + $0x128] sm:$0xff]
  %v7222 = vld [vmem:[%s7183 + $0x130] sm:$0xff]
  %v7223 = vld [vmem:[%s7183 + $0x138] sm:$0xff]
  %v7224 = vld [vmem:[%s7183 + $0x140] sm:$0xff]
  %v7225 = vld [vmem:[%s7183 + $0x148] sm:$0xff]
  %v7226 = vld [vmem:[%s7183 + $0x150] sm:$0xff]
  %v7227 = vld [vmem:[%s7183 + $0x158] sm:$0xff]
  %v7228 = vld [vmem:[%s7183 + $0x160] sm:$0xff]
  %v7229 = vld [vmem:[%s7183 + $0x168] sm:$0xff]
  %v7230 = vld [vmem:[%s7183 + $0x170] sm:$0xff]
  %v7231 = vld [vmem:[%s7183 + $0x178] sm:$0xff]
  %v7232 = vld [vmem:[%s7183 + $0x180] sm:$0xff]
  %v7233 = vld [vmem:[%s7183 + $0x188] sm:$0xff]
  %v7234 = vld [vmem:[%s7183 + $0x190] sm:$0xff]
  %v7235 = vld [vmem:[%s7183 + $0x198] sm:$0xff]
  %v7236 = vld [vmem:[%s7183 + $0x1a0] sm:$0xff]
  %v7237 = vld [vmem:[%s7183 + $0x1a8] sm:$0xff]
  %v7238 = vld [vmem:[%s7183 + $0x1b0] sm:$0xff]
  %v7239 = vld [vmem:[%s7183 + $0x1b8] sm:$0xff]
  %v7240 = vld [vmem:[%s7183 + $0x1c0] sm:$0xff]
  %v7241 = vld [vmem:[%s7183 + $0x1c8] sm:$0xff]
  %v7242 = vld [vmem:[%s7183 + $0x1d0] sm:$0xff]
  %v7243 = vld [vmem:[%s7183 + $0x1d8] sm:$0xff]
  %v7244 = vld [vmem:[%s7183 + $0x1e0] sm:$0xff]
  %v7245 = vld [vmem:[%s7183 + $0x1e8] sm:$0xff]
  %v7246 = vld [vmem:[%s7183 + $0x1f0] sm:$0xff]
  %v7247 = vld [vmem:[%s7183 + $0x1f8] sm:$0xff]
  %v7248 = vld [vmem:[%s7183 + $0x200] sm:$0xff]
  %v7249 = vld [vmem:[%s7183 + $0x208] sm:$0xff]
  %v7250 = vld [vmem:[%s7183 + $0x210] sm:$0xff]
  %v7251 = vld [vmem:[%s7183 + $0x218] sm:$0xff]
  %v7252 = vld [vmem:[%s7183 + $0x220] sm:$0xff]
  %v7253 = vld [vmem:[%s7183 + $0x228] sm:$0xff]
  %v7254 = vld [vmem:[%s7183 + $0x230] sm:$0xff]
  %v7255 = vld [vmem:[%s7183 + $0x238] sm:$0xff]
  %v7256 = vld [vmem:[%s7183 + $0x240] sm:$0xff]
  %v7257 = vld [vmem:[%s7183 + $0x248] sm:$0xff]
  %v7258 = vld [vmem:[%s7183 + $0x250] sm:$0xff]
  %v7259 = vld [vmem:[%s7183 + $0x258] sm:$0xff]
  %v7260 = vld [vmem:[%s7183 + $0x260] sm:$0xff]
  %v7261 = vld [vmem:[%s7183 + $0x268] sm:$0xff]
  %v7262 = vld [vmem:[%s7183 + $0x270] sm:$0xff]
  %v7263 = vld [vmem:[%s7183 + $0x278] sm:$0xff]
  %v7264 = vld [vmem:[%s7183 + $0x280] sm:$0xff]
  %v7265 = vld [vmem:[%s7183 + $0x288] sm:$0xff]
  %v7266 = vld [vmem:[%s7183 + $0x290] sm:$0xff]
  %v7267 = vld [vmem:[%s7183 + $0x298] sm:$0xff]
  %v7268 = vld [vmem:[%s7183 + $0x2a0] sm:$0xff]
  %v7269 = vld [vmem:[%s7183 + $0x2a8] sm:$0xff]
  %v7270 = vld [vmem:[%s7183 + $0x2b0] sm:$0xff]
  %v7271 = vld [vmem:[%s7183 + $0x2b8] sm:$0xff]
  %v7272 = vld [vmem:[%s7183 + $0x2c0] sm:$0xff]
  %v7273 = vld [vmem:[%s7183 + $0x2c8] sm:$0xff]
  %v7274 = vld [vmem:[%s7183 + $0x2d0] sm:$0xff]
  %v7275 = vld [vmem:[%s7183 + $0x2d8] sm:$0xff]
  %v7276 = vld [vmem:[%s7183 + $0x2e0] sm:$0xff]
  %v7277 = vld [vmem:[%s7183 + $0x2e8] sm:$0xff]
  %v7278 = vld [vmem:[%s7183 + $0x2f0] sm:$0xff]
  %v7279 = vld [vmem:[%s7183 + $0x2f8] sm:$0xff]
  %v7280 = vld [vmem:[%s7183 + $0x300] sm:$0xff]
  %v7281 = vld [vmem:[%s7183 + $0x308] sm:$0xff]
  %v7282 = vld [vmem:[%s7183 + $0x310] sm:$0xff]
  %v7283 = vld [vmem:[%s7183 + $0x318] sm:$0xff]
  %v7284 = vld [vmem:[%s7183 + $0x320] sm:$0xff]
  %v7285 = vld [vmem:[%s7183 + $0x328] sm:$0xff]
  %v7286 = vld [vmem:[%s7183 + $0x330] sm:$0xff]
  %v7287 = vld [vmem:[%s7183 + $0x338] sm:$0xff]
  %v7288 = vld [vmem:[%s7183 + $0x340] sm:$0xff]
  %v7289 = vld [vmem:[%s7183 + $0x348] sm:$0xff]
  %v7290 = vld [vmem:[%s7183 + $0x350] sm:$0xff]
  %v7291 = vld [vmem:[%s7183 + $0x358] sm:$0xff]
  %v7292 = vld [vmem:[%s7183 + $0x360] sm:$0xff]
  %v7293 = vld [vmem:[%s7183 + $0x368] sm:$0xff]
  %v7294 = vld [vmem:[%s7183 + $0x370] sm:$0xff]
  %v7295 = vld [vmem:[%s7183 + $0x378] sm:$0xff]
  %v7296 = vld [vmem:[%s7183 + $0x380] sm:$0xff]
  %v7297 = vld [vmem:[%s7183 + $0x388] sm:$0xff]
  %v7298 = vld [vmem:[%s7183 + $0x390] sm:$0xff]
  %v7299 = vld [vmem:[%s7183 + $0x398] sm:$0xff]
  %v7300 = vld [vmem:[%s7183 + $0x3a0] sm:$0xff]
  %v7301 = vld [vmem:[%s7183 + $0x3a8] sm:$0xff]
  %v7302 = vld [vmem:[%s7183 + $0x3b0] sm:$0xff]
  %v7303 = vld [vmem:[%s7183 + $0x3b8] sm:$0xff]
  %v7304 = vld [vmem:[%s7183 + $0x3c0] sm:$0xff]
  %v7305 = vld [vmem:[%s7183 + $0x3c8] sm:$0xff]
  %v7306 = vld [vmem:[%s7183 + $0x3d0] sm:$0xff]
  %v7307 = vld [vmem:[%s7183 + $0x3d8] sm:$0xff]
  %v7308 = vld [vmem:[%s7183 + $0x3e0] sm:$0xff]
  %v7309 = vld [vmem:[%s7183 + $0x3e8] sm:$0xff]
  %v7310 = vld [vmem:[%s7183 + $0x3f0] sm:$0xff]
  %v7311 = vld [vmem:[%s7183 + $0x3f8] sm:$0xff]
  %v7440 = vunpack.c.l.b16 %v7184
  %v7441 = vunpack.c.h.b16 %v7184
  %v7442 = vunpack.c.l.b16 %v7185
  %v7443 = vunpack.c.h.b16 %v7185
  %v7444 = vunpack.c.l.b16 %v7186
  %v7445 = vunpack.c.h.b16 %v7186
  %v7446 = vunpack.c.l.b16 %v7187
  %v7447 = vunpack.c.h.b16 %v7187
  %v7448 = vunpack.c.l.b16 %v7188
  %v7449 = vunpack.c.h.b16 %v7188
  %v7450 = vunpack.c.l.b16 %v7189
  %v7451 = vunpack.c.h.b16 %v7189
  %v7452 = vunpack.c.l.b16 %v7190
  %v7453 = vunpack.c.h.b16 %v7190
  %v7454 = vunpack.c.l.b16 %v7191
  %v7455 = vunpack.c.h.b16 %v7191
  %v7456 = vunpack.c.l.b16 %v7192
  %v7457 = vunpack.c.h.b16 %v7192
  %v7458 = vunpack.c.l.b16 %v7193
  %v7459 = vunpack.c.h.b16 %v7193
  %v7460 = vunpack.c.l.b16 %v7194
  %v7461 = vunpack.c.h.b16 %v7194
  %v7462 = vunpack.c.l.b16 %v7195
  %v7463 = vunpack.c.h.b16 %v7195
  %v7464 = vunpack.c.l.b16 %v7196
  %v7465 = vunpack.c.h.b16 %v7196
  %v7466 = vunpack.c.l.b16 %v7197
  %v7467 = vunpack.c.h.b16 %v7197
  %v7468 = vunpack.c.l.b16 %v7198
  %v7469 = vunpack.c.h.b16 %v7198
  %v7470 = vunpack.c.l.b16 %v7199
  %v7471 = vunpack.c.h.b16 %v7199
  %v7472 = vunpack.c.l.b16 %v7200
  %v7473 = vunpack.c.h.b16 %v7200
  %v7474 = vunpack.c.l.b16 %v7201
  %v7475 = vunpack.c.h.b16 %v7201
  %v7476 = vunpack.c.l.b16 %v7202
  %v7477 = vunpack.c.h.b16 %v7202
  %v7478 = vunpack.c.l.b16 %v7203
  %v7479 = vunpack.c.h.b16 %v7203
  %v7480 = vunpack.c.l.b16 %v7204
  %v7481 = vunpack.c.h.b16 %v7204
  %v7482 = vunpack.c.l.b16 %v7205
  %v7483 = vunpack.c.h.b16 %v7205
  %v7484 = vunpack.c.l.b16 %v7206
  %v7485 = vunpack.c.h.b16 %v7206
  %v7486 = vunpack.c.l.b16 %v7207
  %v7487 = vunpack.c.h.b16 %v7207
  %v7488 = vunpack.c.l.b16 %v7208
  %v7489 = vunpack.c.h.b16 %v7208
  %v7490 = vunpack.c.l.b16 %v7209
  %v7491 = vunpack.c.h.b16 %v7209
  %v7492 = vunpack.c.l.b16 %v7210
  %v7493 = vunpack.c.h.b16 %v7210
  %v7494 = vunpack.c.l.b16 %v7211
  %v7495 = vunpack.c.h.b16 %v7211
  %v7496 = vunpack.c.l.b16 %v7212
  %v7497 = vunpack.c.h.b16 %v7212
  %v7498 = vunpack.c.l.b16 %v7213
  %v7499 = vunpack.c.h.b16 %v7213
  %v7500 = vunpack.c.l.b16 %v7214
  %v7501 = vunpack.c.h.b16 %v7214
  %v7502 = vunpack.c.l.b16 %v7215
  %v7503 = vunpack.c.h.b16 %v7215
  %v7504 = vunpack.c.l.b16 %v7216
  %v7505 = vunpack.c.h.b16 %v7216
  %v7506 = vunpack.c.l.b16 %v7217
  %v7507 = vunpack.c.h.b16 %v7217
  %v7508 = vunpack.c.l.b16 %v7218
  %v7509 = vunpack.c.h.b16 %v7218
  %v7510 = vunpack.c.l.b16 %v7219
  %v7511 = vunpack.c.h.b16 %v7219
  %v7512 = vunpack.c.l.b16 %v7220
  %v7513 = vunpack.c.h.b16 %v7220
  %v7514 = vunpack.c.l.b16 %v7221
  %v7515 = vunpack.c.h.b16 %v7221
  %v7516 = vunpack.c.l.b16 %v7222
  %v7517 = vunpack.c.h.b16 %v7222
  %v7518 = vunpack.c.l.b16 %v7223
  %v7519 = vunpack.c.h.b16 %v7223
  %v7520 = vunpack.c.l.b16 %v7224
  %v7521 = vunpack.c.h.b16 %v7224
  %v7522 = vunpack.c.l.b16 %v7225
  %v7523 = vunpack.c.h.b16 %v7225
  %v7524 = vunpack.c.l.b16 %v7226
  %v7525 = vunpack.c.h.b16 %v7226
  %v7526 = vunpack.c.l.b16 %v7227
  %v7527 = vunpack.c.h.b16 %v7227
  %v7528 = vunpack.c.l.b16 %v7228
  %v7529 = vunpack.c.h.b16 %v7228
  %v7530 = vunpack.c.l.b16 %v7229
  %v7531 = vunpack.c.h.b16 %v7229
  %v7532 = vunpack.c.l.b16 %v7230
  %v7533 = vunpack.c.h.b16 %v7230
  %v7534 = vunpack.c.l.b16 %v7231
  %v7535 = vunpack.c.h.b16 %v7231
  %v7536 = vunpack.c.l.b16 %v7232
  %v7537 = vunpack.c.h.b16 %v7232
  %v7538 = vunpack.c.l.b16 %v7233
  %v7539 = vunpack.c.h.b16 %v7233
  %v7540 = vunpack.c.l.b16 %v7234
  %v7541 = vunpack.c.h.b16 %v7234
  %v7542 = vunpack.c.l.b16 %v7235
  %v7543 = vunpack.c.h.b16 %v7235
  %v7544 = vunpack.c.l.b16 %v7236
  %v7545 = vunpack.c.h.b16 %v7236
  %v7546 = vunpack.c.l.b16 %v7237
  %v7547 = vunpack.c.h.b16 %v7237
  %v7548 = vunpack.c.l.b16 %v7238
  %v7549 = vunpack.c.h.b16 %v7238
  %v7550 = vunpack.c.l.b16 %v7239
  %v7551 = vunpack.c.h.b16 %v7239
  %v7552 = vunpack.c.l.b16 %v7240
  %v7553 = vunpack.c.h.b16 %v7240
  %v7554 = vunpack.c.l.b16 %v7241
  %v7555 = vunpack.c.h.b16 %v7241
  %v7556 = vunpack.c.l.b16 %v7242
  %v7557 = vunpack.c.h.b16 %v7242
  %v7558 = vunpack.c.l.b16 %v7243
  %v7559 = vunpack.c.h.b16 %v7243
  %v7560 = vunpack.c.l.b16 %v7244
  %v7561 = vunpack.c.h.b16 %v7244
  %v7562 = vunpack.c.l.b16 %v7245
  %v7563 = vunpack.c.h.b16 %v7245
  %v7564 = vunpack.c.l.b16 %v7246
  %v7565 = vunpack.c.h.b16 %v7246
  %v7566 = vunpack.c.l.b16 %v7247
  %v7567 = vunpack.c.h.b16 %v7247
  %v7568 = vunpack.c.l.b16 %v7248
  %v7569 = vunpack.c.h.b16 %v7248
  %v7570 = vunpack.c.l.b16 %v7249
  %v7571 = vunpack.c.h.b16 %v7249
  %v7572 = vunpack.c.l.b16 %v7250
  %v7573 = vunpack.c.h.b16 %v7250
  %v7574 = vunpack.c.l.b16 %v7251
  %v7575 = vunpack.c.h.b16 %v7251
  %v7576 = vunpack.c.l.b16 %v7252
  %v7577 = vunpack.c.h.b16 %v7252
  %v7578 = vunpack.c.l.b16 %v7253
  %v7579 = vunpack.c.h.b16 %v7253
  %v7580 = vunpack.c.l.b16 %v7254
  %v7581 = vunpack.c.h.b16 %v7254
  %v7582 = vunpack.c.l.b16 %v7255
  %v7583 = vunpack.c.h.b16 %v7255
  %v7584 = vunpack.c.l.b16 %v7256
  %v7585 = vunpack.c.h.b16 %v7256
  %v7586 = vunpack.c.l.b16 %v7257
  %v7587 = vunpack.c.h.b16 %v7257
  %v7588 = vunpack.c.l.b16 %v7258
  %v7589 = vunpack.c.h.b16 %v7258
  %v7590 = vunpack.c.l.b16 %v7259
  %v7591 = vunpack.c.h.b16 %v7259
  %v7592 = vunpack.c.l.b16 %v7260
  %v7593 = vunpack.c.h.b16 %v7260
  %v7594 = vunpack.c.l.b16 %v7261
  %v7595 = vunpack.c.h.b16 %v7261
  %v7596 = vunpack.c.l.b16 %v7262
  %v7597 = vunpack.c.h.b16 %v7262
  %v7598 = vunpack.c.l.b16 %v7263
  %v7599 = vunpack.c.h.b16 %v7263
  %v7600 = vunpack.c.l.b16 %v7264
  %v7601 = vunpack.c.h.b16 %v7264
  %v7602 = vunpack.c.l.b16 %v7265
  %v7603 = vunpack.c.h.b16 %v7265
  %v7604 = vunpack.c.l.b16 %v7266
  %v7605 = vunpack.c.h.b16 %v7266
  %v7606 = vunpack.c.l.b16 %v7267
  %v7607 = vunpack.c.h.b16 %v7267
  %v7608 = vunpack.c.l.b16 %v7268
  %v7609 = vunpack.c.h.b16 %v7268
  %v7610 = vunpack.c.l.b16 %v7269
  %v7611 = vunpack.c.h.b16 %v7269
  %v7612 = vunpack.c.l.b16 %v7270
  %v7613 = vunpack.c.h.b16 %v7270
  %v7614 = vunpack.c.l.b16 %v7271
  %v7615 = vunpack.c.h.b16 %v7271
  %v7616 = vunpack.c.l.b16 %v7272
  %v7617 = vunpack.c.h.b16 %v7272
  %v7618 = vunpack.c.l.b16 %v7273
  %v7619 = vunpack.c.h.b16 %v7273
  %v7620 = vunpack.c.l.b16 %v7274
  %v7621 = vunpack.c.h.b16 %v7274
  %v7622 = vunpack.c.l.b16 %v7275
  %v7623 = vunpack.c.h.b16 %v7275
  %v7624 = vunpack.c.l.b16 %v7276
  %v7625 = vunpack.c.h.b16 %v7276
  %v7626 = vunpack.c.l.b16 %v7277
  %v7627 = vunpack.c.h.b16 %v7277
  %v7628 = vunpack.c.l.b16 %v7278
  %v7629 = vunpack.c.h.b16 %v7278
  %v7630 = vunpack.c.l.b16 %v7279
  %v7631 = vunpack.c.h.b16 %v7279
  %v7632 = vunpack.c.l.b16 %v7280
  %v7633 = vunpack.c.h.b16 %v7280
  %v7634 = vunpack.c.l.b16 %v7281
  %v7635 = vunpack.c.h.b16 %v7281
  %v7636 = vunpack.c.l.b16 %v7282
  %v7637 = vunpack.c.h.b16 %v7282
  %v7638 = vunpack.c.l.b16 %v7283
  %v7639 = vunpack.c.h.b16 %v7283
  %v7640 = vunpack.c.l.b16 %v7284
  %v7641 = vunpack.c.h.b16 %v7284
  %v7642 = vunpack.c.l.b16 %v7285
  %v7643 = vunpack.c.h.b16 %v7285
  %v7644 = vunpack.c.l.b16 %v7286
  %v7645 = vunpack.c.h.b16 %v7286
  %v7646 = vunpack.c.l.b16 %v7287
  %v7647 = vunpack.c.h.b16 %v7287
  %v7648 = vunpack.c.l.b16 %v7288
  %v7649 = vunpack.c.h.b16 %v7288
  %v7650 = vunpack.c.l.b16 %v7289
  %v7651 = vunpack.c.h.b16 %v7289
  %v7652 = vunpack.c.l.b16 %v7290
  %v7653 = vunpack.c.h.b16 %v7290
  %v7654 = vunpack.c.l.b16 %v7291
  %v7655 = vunpack.c.h.b16 %v7291
  %v7656 = vunpack.c.l.b16 %v7292
  %v7657 = vunpack.c.h.b16 %v7292
  %v7658 = vunpack.c.l.b16 %v7293
  %v7659 = vunpack.c.h.b16 %v7293
  %v7660 = vunpack.c.l.b16 %v7294
  %v7661 = vunpack.c.h.b16 %v7294
  %v7662 = vunpack.c.l.b16 %v7295
  %v7663 = vunpack.c.h.b16 %v7295
  %v7664 = vunpack.c.l.b16 %v7296
  %v7665 = vunpack.c.h.b16 %v7296
  %v7666 = vunpack.c.l.b16 %v7297
  %v7667 = vunpack.c.h.b16 %v7297
  %v7668 = vunpack.c.l.b16 %v7298
  %v7669 = vunpack.c.h.b16 %v7298
  %v7670 = vunpack.c.l.b16 %v7299
  %v7671 = vunpack.c.h.b16 %v7299
  %v7672 = vunpack.c.l.b16 %v7300
  %v7673 = vunpack.c.h.b16 %v7300
  %v7674 = vunpack.c.l.b16 %v7301
  %v7675 = vunpack.c.h.b16 %v7301
  %v7676 = vunpack.c.l.b16 %v7302
  %v7677 = vunpack.c.h.b16 %v7302
  %v7678 = vunpack.c.l.b16 %v7303
  %v7679 = vunpack.c.h.b16 %v7303
  %v7680 = vunpack.c.l.b16 %v7304
  %v7681 = vunpack.c.h.b16 %v7304
  %v7682 = vunpack.c.l.b16 %v7305
  %v7683 = vunpack.c.h.b16 %v7305
  %v7684 = vunpack.c.l.b16 %v7306
  %v7685 = vunpack.c.h.b16 %v7306
  %v7686 = vunpack.c.l.b16 %v7307
  %v7687 = vunpack.c.h.b16 %v7307
  %v7688 = vunpack.c.l.b16 %v7308
  %v7689 = vunpack.c.h.b16 %v7308
  %v7690 = vunpack.c.l.b16 %v7309
  %v7691 = vunpack.c.h.b16 %v7309
  %v7692 = vunpack.c.l.b16 %v7310
  %v7693 = vunpack.c.h.b16 %v7310
  %v7694 = vunpack.c.l.b16 %v7311
  %v7695 = vunpack.c.h.b16 %v7311
  %v7696 = vpack.c.b16 %v7444, %v7440
  %v7697 = vpack.c.b16 %v7445, %v7441
  %v7698 = vpack.c.b16 %v7446, %v7442
  %v7699 = vpack.c.b16 %v7447, %v7443
  %v7700 = vpack.c.b16 %v7452, %v7448
  %v7701 = vpack.c.b16 %v7453, %v7449
  %v7702 = vpack.c.b16 %v7454, %v7450
  %v7703 = vpack.c.b16 %v7455, %v7451
  %v7704 = vpack.c.b16 %v7460, %v7456
  %v7705 = vpack.c.b16 %v7461, %v7457
  %v7706 = vpack.c.b16 %v7462, %v7458
  %v7707 = vpack.c.b16 %v7463, %v7459
  %v7708 = vpack.c.b16 %v7468, %v7464
  %v7709 = vpack.c.b16 %v7469, %v7465
  %v7710 = vpack.c.b16 %v7470, %v7466
  %v7711 = vpack.c.b16 %v7471, %v7467
  %v7712 = vpack.c.b16 %v7476, %v7472
  %v7713 = vpack.c.b16 %v7477, %v7473
  %v7714 = vpack.c.b16 %v7478, %v7474
  %v7715 = vpack.c.b16 %v7479, %v7475
  %v7716 = vpack.c.b16 %v7484, %v7480
  %v7717 = vpack.c.b16 %v7485, %v7481
  %v7718 = vpack.c.b16 %v7486, %v7482
  %v7719 = vpack.c.b16 %v7487, %v7483
  %v7720 = vpack.c.b16 %v7492, %v7488
  %v7721 = vpack.c.b16 %v7493, %v7489
  %v7722 = vpack.c.b16 %v7494, %v7490
  %v7723 = vpack.c.b16 %v7495, %v7491
  %v7724 = vpack.c.b16 %v7500, %v7496
  %v7725 = vpack.c.b16 %v7501, %v7497
  %v7726 = vpack.c.b16 %v7502, %v7498
  %v7727 = vpack.c.b16 %v7503, %v7499
  %v7728 = vpack.c.b16 %v7508, %v7504
  %v7729 = vpack.c.b16 %v7509, %v7505
  %v7730 = vpack.c.b16 %v7510, %v7506
  %v7731 = vpack.c.b16 %v7511, %v7507
  %v7732 = vpack.c.b16 %v7516, %v7512
  %v7733 = vpack.c.b16 %v7517, %v7513
  %v7734 = vpack.c.b16 %v7518, %v7514
  %v7735 = vpack.c.b16 %v7519, %v7515
  %v7736 = vpack.c.b16 %v7524, %v7520
  %v7737 = vpack.c.b16 %v7525, %v7521
  %v7738 = vpack.c.b16 %v7526, %v7522
  %v7739 = vpack.c.b16 %v7527, %v7523
  %v7740 = vpack.c.b16 %v7532, %v7528
  %v7741 = vpack.c.b16 %v7533, %v7529
  %v7742 = vpack.c.b16 %v7534, %v7530
  %v7743 = vpack.c.b16 %v7535, %v7531
  %v7744 = vpack.c.b16 %v7540, %v7536
  %v7745 = vpack.c.b16 %v7541, %v7537
  %v7746 = vpack.c.b16 %v7542, %v7538
  %v7747 = vpack.c.b16 %v7543, %v7539
  %v7748 = vpack.c.b16 %v7548, %v7544
  %v7749 = vpack.c.b16 %v7549, %v7545
  %v7750 = vpack.c.b16 %v7550, %v7546
  %v7751 = vpack.c.b16 %v7551, %v7547
  %v7752 = vpack.c.b16 %v7556, %v7552
  %v7753 = vpack.c.b16 %v7557, %v7553
  %v7754 = vpack.c.b16 %v7558, %v7554
  %v7755 = vpack.c.b16 %v7559, %v7555
  %v7756 = vpack.c.b16 %v7564, %v7560
  %v7757 = vpack.c.b16 %v7565, %v7561
  %v7758 = vpack.c.b16 %v7566, %v7562
  %v7759 = vpack.c.b16 %v7567, %v7563
  %v7760 = vpack.c.b16 %v7572, %v7568
  %v7761 = vpack.c.b16 %v7573, %v7569
  %v7762 = vpack.c.b16 %v7574, %v7570
  %v7763 = vpack.c.b16 %v7575, %v7571
  %v7764 = vpack.c.b16 %v7580, %v7576
  %v7765 = vpack.c.b16 %v7581, %v7577
  %v7766 = vpack.c.b16 %v7582, %v7578
  %v7767 = vpack.c.b16 %v7583, %v7579
  %v7768 = vpack.c.b16 %v7588, %v7584
  %v7769 = vpack.c.b16 %v7589, %v7585
  %v7770 = vpack.c.b16 %v7590, %v7586
  %v7771 = vpack.c.b16 %v7591, %v7587
  %v7772 = vpack.c.b16 %v7596, %v7592
  %v7773 = vpack.c.b16 %v7597, %v7593
  %v7774 = vpack.c.b16 %v7598, %v7594
  %v7775 = vpack.c.b16 %v7599, %v7595
  %v7776 = vpack.c.b16 %v7604, %v7600
  %v7777 = vpack.c.b16 %v7605, %v7601
  %v7778 = vpack.c.b16 %v7606, %v7602
  %v7779 = vpack.c.b16 %v7607, %v7603
  %v7780 = vpack.c.b16 %v7612, %v7608
  %v7781 = vpack.c.b16 %v7613, %v7609
  %v7782 = vpack.c.b16 %v7614, %v7610
  %v7783 = vpack.c.b16 %v7615, %v7611
  %v7784 = vpack.c.b16 %v7620, %v7616
  %v7785 = vpack.c.b16 %v7621, %v7617
  %v7786 = vpack.c.b16 %v7622, %v7618
  %v7787 = vpack.c.b16 %v7623, %v7619
  %v7788 = vpack.c.b16 %v7628, %v7624
  %v7789 = vpack.c.b16 %v7629, %v7625
  %v7790 = vpack.c.b16 %v7630, %v7626
  %v7791 = vpack.c.b16 %v7631, %v7627
  %v7792 = vpack.c.b16 %v7636, %v7632
  %v7793 = vpack.c.b16 %v7637, %v7633
  %v7794 = vpack.c.b16 %v7638, %v7634
  %v7795 = vpack.c.b16 %v7639, %v7635
  %v7796 = vpack.c.b16 %v7644, %v7640
  %v7797 = vpack.c.b16 %v7645, %v7641
  %v7798 = vpack.c.b16 %v7646, %v7642
  %v7799 = vpack.c.b16 %v7647, %v7643
  %v7800 = vpack.c.b16 %v7652, %v7648
  %v7801 = vpack.c.b16 %v7653, %v7649
  %v7802 = vpack.c.b16 %v7654, %v7650
  %v7803 = vpack.c.b16 %v7655, %v7651
  %v7804 = vpack.c.b16 %v7660, %v7656
  %v7805 = vpack.c.b16 %v7661, %v7657
  %v7806 = vpack.c.b16 %v7662, %v7658
  %v7807 = vpack.c.b16 %v7663, %v7659
  %v7808 = vpack.c.b16 %v7668, %v7664
  %v7809 = vpack.c.b16 %v7669, %v7665
  %v7810 = vpack.c.b16 %v7670, %v7666
  %v7811 = vpack.c.b16 %v7671, %v7667
  %v7812 = vpack.c.b16 %v7676, %v7672
  %v7813 = vpack.c.b16 %v7677, %v7673
  %v7814 = vpack.c.b16 %v7678, %v7674
  %v7815 = vpack.c.b16 %v7679, %v7675
  %v7816 = vpack.c.b16 %v7684, %v7680
  %v7817 = vpack.c.b16 %v7685, %v7681
  %v7818 = vpack.c.b16 %v7686, %v7682
  %v7819 = vpack.c.b16 %v7687, %v7683
  %v7820 = vpack.c.b16 %v7692, %v7688
  %v7821 = vpack.c.b16 %v7693, %v7689
  %v7822 = vpack.c.b16 %v7694, %v7690
  %v7823 = vpack.c.b16 %v7695, %v7691
  %7952 = vmatprep.subr.bf16.mxu0 %v7697
  %7953 = vmatpush1.bf16.msra.mxu0 %v7696
  %7954 = vmatprep.subr.bf16.mxu0 %v7701
  %7955 = vmatpush1.bf16.msra.mxu0 %v7700
  %7956 = vmatprep.subr.bf16.mxu0 %v7705
  %7957 = vmatpush1.bf16.msra.mxu0 %v7704
  %7958 = vmatprep.subr.bf16.mxu0 %v7709
  %7959 = vmatpush1.bf16.msra.mxu0 %v7708
  %7960 = vmatprep.subr.bf16.mxu0 %v7713
  %7961 = vmatpush1.bf16.msra.mxu0 %v7712
  %7962 = vmatprep.subr.bf16.mxu0 %v7717
  %7963 = vmatpush1.bf16.msra.mxu0 %v7716
  %7964 = vmatprep.subr.bf16.mxu0 %v7721
  %7965 = vmatpush1.bf16.msra.mxu0 %v7720
  %7966 = vmatprep.subr.bf16.mxu0 %v7725
  %7967 = vmatpush1.bf16.msra.mxu0 %v7724
  %7968 = vmatprep.subr.bf16.mxu0 %v7729
  %7969 = vmatpush1.bf16.msra.mxu0 %v7728
  %7970 = vmatprep.subr.bf16.mxu0 %v7733
  %7971 = vmatpush1.bf16.msra.mxu0 %v7732
  %7972 = vmatprep.subr.bf16.mxu0 %v7737
  %7973 = vmatpush1.bf16.msra.mxu0 %v7736
  %7974 = vmatprep.subr.bf16.mxu0 %v7741
  %7975 = vmatpush1.bf16.msra.mxu0 %v7740
  %7976 = vmatprep.subr.bf16.mxu0 %v7745
  %7977 = vmatpush1.bf16.msra.mxu0 %v7744
  %7978 = vmatprep.subr.bf16.mxu0 %v7749
  %7979 = vmatpush1.bf16.msra.mxu0 %v7748
  %7980 = vmatprep.subr.bf16.mxu0 %v7753
  %7981 = vmatpush1.bf16.msra.mxu0 %v7752
  %7982 = vmatprep.subr.bf16.mxu0 %v7757
  %7983 = vmatpush1.bf16.msra.mxu0 %v7756
  %7984 = vmatprep.mubr.bf16.mxu0 %v7176
  %7985 = vmatmul.mubr.bf16.gmra.mrb[0].mxu0 %v7175
  %v7986 = vpop.f32.mrb[0].mxu0
  %v7987 = vadd.f32 0.0, %v7986
  %v7988 = vpop.f32.mrb[0].mxu0
  %v7989 = vadd.f32 0.0, %v7988
  %v7990 = vpop.f32.mrb[0].mxu0
  %v7991 = vadd.f32 0.0, %v7990
  %v7992 = vpop.f32.mrb[0].mxu0
  %v7993 = vadd.f32 0.0, %v7992
  %7994 = vmatprep.mubr.bf16.mxu0 %v7180
  %7995 = vmatmul.mubr.bf16.gmra.mrb[0].mxu0 %v7179
  %v7996 = vpop.f32.mrb[0].mxu0
  %v7997 = vadd.f32 0.0, %v7996
  %v7998 = vpop.f32.mrb[0].mxu0
  %v7999 = vadd.f32 0.0, %v7998
  %v8000 = vpop.f32.mrb[0].mxu0
  %v8001 = vadd.f32 0.0, %v8000
  %v8002 = vpop.f32.mrb[0].mxu0
  %v8003 = vadd.f32 0.0, %v8002
  %8004 = vdwg.mxu0
  %8005 = vmatprep.subr.bf16.mxu0 %v7761
  %8006 = vmatpush1.bf16.msra.mxu0 %v7760
  %8007 = vmatprep.subr.bf16.mxu0 %v7765
  %8008 = vmatpush1.bf16.msra.mxu0 %v7764
  %8009 = vmatprep.subr.bf16.mxu0 %v7769
  %8010 = vmatpush1.bf16.msra.mxu0 %v7768
  %8011 = vmatprep.subr.bf16.mxu0 %v7773
  %8012 = vmatpush1.bf16.msra.mxu0 %v7772
  %8013 = vmatprep.subr.bf16.mxu0 %v7777
  %8014 = vmatpush1.bf16.msra.mxu0 %v7776
  %8015 = vmatprep.subr.bf16.mxu0 %v7781
  %8016 = vmatpush1.bf16.msra.mxu0 %v7780
  %8017 = vmatprep.subr.bf16.mxu0 %v7785
  %8018 = vmatpush1.bf16.msra.mxu0 %v7784
  %8019 = vmatprep.subr.bf16.mxu0 %v7789
  %8020 = vmatpush1.bf16.msra.mxu0 %v7788
  %8021 = vmatprep.subr.bf16.mxu0 %v7793
  %8022 = vmatpush1.bf16.msra.mxu0 %v7792
  %8023 = vmatprep.subr.bf16.mxu0 %v7797
  %8024 = vmatpush1.bf16.msra.mxu0 %v7796
  %8025 = vmatprep.subr.bf16.mxu0 %v7801
  %8026 = vmatpush1.bf16.msra.mxu0 %v7800
  %8027 = vmatprep.subr.bf16.mxu0 %v7805
  %8028 = vmatpush1.bf16.msra.mxu0 %v7804
  %8029 = vmatprep.subr.bf16.mxu0 %v7809
  %8030 = vmatpush1.bf16.msra.mxu0 %v7808
  %8031 = vmatprep.subr.bf16.mxu0 %v7813
  %8032 = vmatpush1.bf16.msra.mxu0 %v7812
  %8033 = vmatprep.subr.bf16.mxu0 %v7817
  %8034 = vmatpush1.bf16.msra.mxu0 %v7816
  %8035 = vmatprep.subr.bf16.mxu0 %v7821
  %8036 = vmatpush1.bf16.msra.mxu0 %v7820
  %8037 = vmatprep.mubr.bf16.mxu0 %v7178
  %8038 = vmatmul.mubr.bf16.gmra.mrb[0].mxu0 %v7177
  %v8039 = vpop.f32.mrb[0].mxu0
  %v8040 = vadd.f32 %v7987, %v8039
  %v8041 = vpop.f32.mrb[0].mxu0
  %v8042 = vadd.f32 %v7989, %v8041
  %v8043 = vpop.f32.mrb[0].mxu0
  %v8044 = vadd.f32 %v7991, %v8043
  %v8045 = vpop.f32.mrb[0].mxu0
  %v8046 = vadd.f32 %v7993, %v8045
  %8047 = vmatprep.mubr.bf16.mxu0 %v7182
  %8048 = vmatmul.mubr.bf16.gmra.mrb[0].mxu0 %v7181
  %v8049 = vpop.f32.mrb[0].mxu0
  %v8050 = vadd.f32 %v7997, %v8049
  %v8051 = vpop.f32.mrb[0].mxu0
  %v8052 = vadd.f32 %v7999, %v8051
  %v8053 = vpop.f32.mrb[0].mxu0
  %v8054 = vadd.f32 %v8001, %v8053
  %v8055 = vpop.f32.mrb[0].mxu0
  %v8056 = vadd.f32 %v8003, %v8055
  %8057 = vdwg.mxu0
  %8058 = vmatprep.subr.bf16.mxu0 %v7699
  %8059 = vmatpush1.bf16.msra.mxu0 %v7698
  %8060 = vmatprep.subr.bf16.mxu0 %v7703
  %8061 = vmatpush1.bf16.msra.mxu0 %v7702
  %8062 = vmatprep.subr.bf16.mxu0 %v7707
  %8063 = vmatpush1.bf16.msra.mxu0 %v7706
  %8064 = vmatprep.subr.bf16.mxu0 %v7711
  %8065 = vmatpush1.bf16.msra.mxu0 %v7710
  %8066 = vmatprep.subr.bf16.mxu0 %v7715
  %8067 = vmatpush1.bf16.msra.mxu0 %v7714
  %8068 = vmatprep.subr.bf16.mxu0 %v7719
  %8069 = vmatpush1.bf16.msra.mxu0 %v7718
  %8070 = vmatprep.subr.bf16.mxu0 %v7723
  %8071 = vmatpush1.bf16.msra.mxu0 %v7722
  %8072 = vmatprep.subr.bf16.mxu0 %v7727
  %8073 = vmatpush1.bf16.msra.mxu0 %v7726
  %8074 = vmatprep.subr.bf16.mxu0 %v7731
  %8075 = vmatpush1.bf16.msra.mxu0 %v7730
  %8076 = vmatprep.subr.bf16.mxu0 %v7735
  %8077 = vmatpush1.bf16.msra.mxu0 %v7734
  %8078 = vmatprep.subr.bf16.mxu0 %v7739
  %8079 = vmatpush1.bf16.msra.mxu0 %v7738
  %8080 = vmatprep.subr.bf16.mxu0 %v7743
  %8081 = vmatpush1.bf16.msra.mxu0 %v7742
  %8082 = vmatprep.subr.bf16.mxu0 %v7747
  %8083 = vmatpush1.bf16.msra.mxu0 %v7746
  %8084 = vmatprep.subr.bf16.mxu0 %v7751
  %8085 = vmatpush1.bf16.msra.mxu0 %v7750
  %8086 = vmatprep.subr.bf16.mxu0 %v7755
  %8087 = vmatpush1.bf16.msra.mxu0 %v7754
  %8088 = vmatprep.subr.bf16.mxu0 %v7759
  %8089 = vmatpush1.bf16.msra.mxu0 %v7758
  %8090 = vmatprep.mubr.bf16.mxu0 %v7176
  %8091 = vmatmul.mubr.bf16.gmra.mrb[0].mxu0 %v7175
  %v8092 = vpop.f32.mrb[0].mxu0
  %v8093 = vadd.f32 0.0, %v8092
  %v8094 = vpop.f32.mrb[0].mxu0
  %v8095 = vadd.f32 0.0, %v8094
  %v8096 = vpop.f32.mrb[0].mxu0
  %v8097 = vadd.f32 0.0, %v8096
  %v8098 = vpop.f32.mrb[0].mxu0
  %v8099 = vadd.f32 0.0, %v8098
  %8100 = vmatprep.mubr.bf16.mxu0 %v7180
  %8101 = vmatmul.mubr.bf16.gmra.mrb[0].mxu0 %v7179
  %v8102 = vpop.f32.mrb[0].mxu0
  %v8103 = vadd.f32 0.0, %v8102
  %v8104 = vpop.f32.mrb[0].mxu0
  %v8105 = vadd.f32 0.0, %v8104
  %v8106 = vpop.f32.mrb[0].mxu0
  %v8107 = vadd.f32 0.0, %v8106
  %v8108 = vpop.f32.mrb[0].mxu0
  %v8109 = vadd.f32 0.0, %v8108
  %8110 = vdwg.mxu0
  %8111 = vmatprep.subr.bf16.mxu0 %v7763
  %8112 = vmatpush1.bf16.msra.mxu0 %v7762
  %8113 = vmatprep.subr.bf16.mxu0 %v7767
  %8114 = vmatpush1.bf16.msra.mxu0 %v7766
  %8115 = vmatprep.subr.bf16.mxu0 %v7771
  %8116 = vmatpush1.bf16.msra.mxu0 %v7770
  %8117 = vmatprep.subr.bf16.mxu0 %v7775
  %8118 = vmatpush1.bf16.msra.mxu0 %v7774
  %8119 = vmatprep.subr.bf16.mxu0 %v7779
  %8120 = vmatpush1.bf16.msra.mxu0 %v7778
  %8121 = vmatprep.subr.bf16.mxu0 %v7783
  %8122 = vmatpush1.bf16.msra.mxu0 %v7782
  %8123 = vmatprep.subr.bf16.mxu0 %v7787
  %8124 = vmatpush1.bf16.msra.mxu0 %v7786
  %8125 = vmatprep.subr.bf16.mxu0 %v7791
  %8126 = vmatpush1.bf16.msra.mxu0 %v7790
  %8127 = vmatprep.subr.bf16.mxu0 %v7795
  %8128 = vmatpush1.bf16.msra.mxu0 %v7794
  %8129 = vmatprep.subr.bf16.mxu0 %v7799
  %8130 = vmatpush1.bf16.msra.mxu0 %v7798
  %8131 = vmatprep.subr.bf16.mxu0 %v7803
  %8132 = vmatpush1.bf16.msra.mxu0 %v7802
  %8133 = vmatprep.subr.bf16.mxu0 %v7807
  %8134 = vmatpush1.bf16.msra.mxu0 %v7806
  %8135 = vmatprep.subr.bf16.mxu0 %v7811
  %8136 = vmatpush1.bf16.msra.mxu0 %v7810
  %8137 = vmatprep.subr.bf16.mxu0 %v7815
  %8138 = vmatpush1.bf16.msra.mxu0 %v7814
  %8139 = vmatprep.subr.bf16.mxu0 %v7819
  %8140 = vmatpush1.bf16.msra.mxu0 %v7818
  %8141 = vmatprep.subr.bf16.mxu0 %v7823
  %8142 = vmatpush1.bf16.msra.mxu0 %v7822
  %8143 = vmatprep.mubr.bf16.mxu0 %v7178
  %8144 = vmatmul.mubr.bf16.gmra.mrb[0].mxu0 %v7177
  %v8145 = vpop.f32.mrb[0].mxu0
  %v8146 = vadd.f32 %v8093, %v8145
  %v8147 = vpop.f32.mrb[0].mxu0
  %v8148 = vadd.f32 %v8095, %v8147
  %v8149 = vpop.f32.mrb[0].mxu0
  %v8150 = vadd.f32 %v8097, %v8149
  %v8151 = vpop.f32.mrb[0].mxu0
  %v8152 = vadd.f32 %v8099, %v8151
  %8153 = vmatprep.mubr.bf16.mxu0 %v7182
  %8154 = vmatmul.mubr.bf16.gmra.mrb[0].mxu0 %v7181
  %v8155 = vpop.f32.mrb[0].mxu0
  %v8156 = vadd.f32 %v8103, %v8155
  %v8157 = vpop.f32.mrb[0].mxu0
  %v8158 = vadd.f32 %v8105, %v8157
  %v8159 = vpop.f32.mrb[0].mxu0
  %v8160 = vadd.f32 %v8107, %v8159
  %v8161 = vpop.f32.mrb[0].mxu0
  %v8162 = vadd.f32 %v8109, %v8161
  %8163 = vdwg.mxu0
  %v8164 = vadd.f32 %v7036, %v8040
  %v8165 = vadd.f32 %v7037, %v8042
  %v8166 = vadd.f32 %v7038, %v8146
  %v8167 = vadd.f32 %v7039, %v8148
  %v8168 = vadd.f32 %v7040, %v8044
  %v8169 = vadd.f32 %v7041, %v8046
  %v8170 = vadd.f32 %v7042, %v8150
  %v8171 = vadd.f32 %v7043, %v8152
  %v8172 = vadd.f32 %v7044, %v8050
  %v8173 = vadd.f32 %v7045, %v8052
  %v8174 = vadd.f32 %v7046, %v8156
  %v8175 = vadd.f32 %v7047, %v8158
  %v8176 = vadd.f32 %v7048, %v8054
  %v8177 = vadd.f32 %v7049, %v8056
  %v8178 = vadd.f32 %v7050, %v8160
  %v8179 = vadd.f32 %v7051, %v8162
  %s8180 = scalar_lea.vmem %s5, 80
  %v8181 = vld [vmem:[%s8180] sm:$0xf]
  %v8182 = vld [vmem:[%s8180 + $0x4] sm:$0xf]
  %v8183 = vld [vmem:[%s8180 + $0x8] sm:$0xf]
  %v8184 = vld [vmem:[%s8180 + $0xc] sm:$0xf]
  %v8189 = vunpack.c.l.b16 %v8181
  %v8190 = vunpack.c.l.b16 %v8182
  %v8191 = vunpack.c.l.b16 %v8183
  %v8192 = vunpack.c.l.b16 %v8184
  %v8193 = vpack.c.b16 %v8190, %v8189
  %v8194 = vpack.c.b16 %v8192, %v8191
  %8197 = vmatprep.subr.bf16.mxu0 %v2543
  %8198 = vmatpush1.bf16.msra.mxu0 %v2542
  %8199 = vmatprep.subr.bf16.mxu0 %v2547
  %8200 = vmatpush1.bf16.msra.mxu0 %v2546
  %8201 = vmatprep.subr.bf16.mxu0 %v2551
  %8202 = vmatpush1.bf16.msra.mxu0 %v2550
  %8203 = vmatprep.subr.bf16.mxu0 %v2555
  %8204 = vmatpush1.bf16.msra.mxu0 %v2554
  %8205 = vmatprep.subr.bf16.mxu0 %v2559
  %8206 = vmatpush1.bf16.msra.mxu0 %v2558
  %8207 = vmatprep.subr.bf16.mxu0 %v2563
  %8208 = vmatpush1.bf16.msra.mxu0 %v2562
  %8209 = vmatprep.subr.bf16.mxu0 %v2567
  %8210 = vmatpush1.bf16.msra.mxu0 %v2566
  %8211 = vmatprep.subr.bf16.mxu0 %v2571
  %8212 = vmatpush1.bf16.msra.mxu0 %v2570
  %8213 = vmatprep.subr.bf16.mxu0 0
  %8214 = vmatpush1.bf16.msra.mxu0 0
  %8215 = vmatprep.subr.bf16.mxu0 0
  %8216 = vmatpush1.bf16.msra.mxu0 0
  %8217 = vmatprep.subr.bf16.mxu0 0
  %8218 = vmatpush1.bf16.msra.mxu0 0
  %8219 = vmatprep.subr.bf16.mxu0 0
  %8220 = vmatpush1.bf16.msra.mxu0 0
  %8221 = vmatprep.subr.bf16.mxu0 0
  %8222 = vmatpush1.bf16.msra.mxu0 0
  %8223 = vmatprep.subr.bf16.mxu0 0
  %8224 = vmatpush1.bf16.msra.mxu0 0
  %8225 = vmatprep.subr.bf16.mxu0 0
  %8226 = vmatpush1.bf16.msra.mxu0 0
  %8227 = vmatprep.subr.bf16.mxu0 0
  %8228 = vmatpush1.bf16.msra.mxu0 0
  %8229 = vmatprep.mubr.bf16.mxu0 0
  %8230 = vmatmul.mubr.bf16.gmra.mrb[0].mxu0 %v8193
  %v8231 = vpop.f32.mrb[0].mxu0
  %v8232 = vadd.f32 0.0, %v8231
  %v8233 = vpop.f32.mrb[0].mxu0
  %v8234 = vadd.f32 0.0, %v8233
  %v8235 = vpop.f32.mrb[0].mxu0
  %v8236 = vadd.f32 0.0, %v8235
  %v8237 = vpop.f32.mrb[0].mxu0
  %v8238 = vadd.f32 0.0, %v8237
  %8239 = vmatprep.mubr.bf16.mxu0 0
  %8240 = vmatmul.mubr.bf16.gmra.mrb[0].mxu0 %v8194
  %v8241 = vpop.f32.mrb[0].mxu0
  %v8242 = vadd.f32 0.0, %v8241
  %v8243 = vpop.f32.mrb[0].mxu0
  %v8244 = vadd.f32 0.0, %v8243
  %v8245 = vpop.f32.mrb[0].mxu0
  %v8246 = vadd.f32 0.0, %v8245
  %v8247 = vpop.f32.mrb[0].mxu0
  %v8248 = vadd.f32 0.0, %v8247
  %8249 = vdwg.mxu0
  %8250 = vmatprep.subr.bf16.mxu0 %v2545
  %8251 = vmatpush1.bf16.msra.mxu0 %v2544
  %8252 = vmatprep.subr.bf16.mxu0 %v2549
  %8253 = vmatpush1.bf16.msra.mxu0 %v2548
  %8254 = vmatprep.subr.bf16.mxu0 %v2553
  %8255 = vmatpush1.bf16.msra.mxu0 %v2552
  %8256 = vmatprep.subr.bf16.mxu0 %v2557
  %8257 = vmatpush1.bf16.msra.mxu0 %v2556
  %8258 = vmatprep.subr.bf16.mxu0 %v2561
  %8259 = vmatpush1.bf16.msra.mxu0 %v2560
  %8260 = vmatprep.subr.bf16.mxu0 %v2565
  %8261 = vmatpush1.bf16.msra.mxu0 %v2564
  %8262 = vmatprep.subr.bf16.mxu0 %v2569
  %8263 = vmatpush1.bf16.msra.mxu0 %v2568
  %8264 = vmatprep.subr.bf16.mxu0 %v2573
  %8265 = vmatpush1.bf16.msra.mxu0 %v2572
  %8266 = vmatprep.subr.bf16.mxu0 0
  %8267 = vmatpush1.bf16.msra.mxu0 0
  %8268 = vmatprep.subr.bf16.mxu0 0
  %8269 = vmatpush1.bf16.msra.mxu0 0
  %8270 = vmatprep.subr.bf16.mxu0 0
  %8271 = vmatpush1.bf16.msra.mxu0 0
  %8272 = vmatprep.subr.bf16.mxu0 0
  %8273 = vmatpush1.bf16.msra.mxu0 0
  %8274 = vmatprep.subr.bf16.mxu0 0
  %8275 = vmatpush1.bf16.msra.mxu0 0
  %8276 = vmatprep.subr.bf16.mxu0 0
  %8277 = vmatpush1.bf16.msra.mxu0 0
  %8278 = vmatprep.subr.bf16.mxu0 0
  %8279 = vmatpush1.bf16.msra.mxu0 0
  %8280 = vmatprep.subr.bf16.mxu0 0
  %8281 = vmatpush1.bf16.msra.mxu0 0
  %8282 = vmatprep.mubr.bf16.mxu0 0
  %8283 = vmatmul.mubr.bf16.gmra.mrb[0].mxu0 %v8193
  %v8284 = vpop.f32.mrb[0].mxu0
  %v8285 = vadd.f32 0.0, %v8284
  %v8286 = vpop.f32.mrb[0].mxu0
  %v8287 = vadd.f32 0.0, %v8286
  %v8288 = vpop.f32.mrb[0].mxu0
  %v8289 = vadd.f32 0.0, %v8288
  %v8290 = vpop.f32.mrb[0].mxu0
  %v8291 = vadd.f32 0.0, %v8290
  %8292 = vmatprep.mubr.bf16.mxu0 0
  %8293 = vmatmul.mubr.bf16.gmra.mrb[0].mxu0 %v8194
  %v8294 = vpop.f32.mrb[0].mxu0
  %v8295 = vadd.f32 0.0, %v8294
  %v8296 = vpop.f32.mrb[0].mxu0
  %v8297 = vadd.f32 0.0, %v8296
  %v8298 = vpop.f32.mrb[0].mxu0
  %v8299 = vadd.f32 0.0, %v8298
  %v8300 = vpop.f32.mrb[0].mxu0
  %v8301 = vadd.f32 0.0, %v8300
  %8302 = vdwg.mxu0
  %v8303 = vpack.c.bf16 %v8236, %v8232
  %v8304 = vpack.c.bf16 %v8238, %v8234
  %v8305 = vpack.c.bf16 %v8289, %v8285
  %v8306 = vpack.c.bf16 %v8291, %v8287
  %v8307 = vpack.c.bf16 %v8246, %v8242
  %v8308 = vpack.c.bf16 %v8248, %v8244
  %v8309 = vpack.c.bf16 %v8299, %v8295
  %v8310 = vpack.c.bf16 %v8301, %v8297
  %s8311 = scalar_lea.vmem %s6, 5120
  %v8312 = vld [vmem:[%s8311] sm:$0xff]
  %v8313 = vld [vmem:[%s8311 + $0x8] sm:$0xff]
  %v8314 = vld [vmem:[%s8311 + $0x10] sm:$0xff]
  %v8315 = vld [vmem:[%s8311 + $0x18] sm:$0xff]
  %v8316 = vld [vmem:[%s8311 + $0x20] sm:$0xff]
  %v8317 = vld [vmem:[%s8311 + $0x28] sm:$0xff]
  %v8318 = vld [vmem:[%s8311 + $0x30] sm:$0xff]
  %v8319 = vld [vmem:[%s8311 + $0x38] sm:$0xff]
  %v8320 = vld [vmem:[%s8311 + $0x40] sm:$0xff]
  %v8321 = vld [vmem:[%s8311 + $0x48] sm:$0xff]
  %v8322 = vld [vmem:[%s8311 + $0x50] sm:$0xff]
  %v8323 = vld [vmem:[%s8311 + $0x58] sm:$0xff]
  %v8324 = vld [vmem:[%s8311 + $0x60] sm:$0xff]
  %v8325 = vld [vmem:[%s8311 + $0x68] sm:$0xff]
  %v8326 = vld [vmem:[%s8311 + $0x70] sm:$0xff]
  %v8327 = vld [vmem:[%s8311 + $0x78] sm:$0xff]
  %v8328 = vld [vmem:[%s8311 + $0x80] sm:$0xff]
  %v8329 = vld [vmem:[%s8311 + $0x88] sm:$0xff]
  %v8330 = vld [vmem:[%s8311 + $0x90] sm:$0xff]
  %v8331 = vld [vmem:[%s8311 + $0x98] sm:$0xff]
  %v8332 = vld [vmem:[%s8311 + $0xa0] sm:$0xff]
  %v8333 = vld [vmem:[%s8311 + $0xa8] sm:$0xff]
  %v8334 = vld [vmem:[%s8311 + $0xb0] sm:$0xff]
  %v8335 = vld [vmem:[%s8311 + $0xb8] sm:$0xff]
  %v8336 = vld [vmem:[%s8311 + $0xc0] sm:$0xff]
  %v8337 = vld [vmem:[%s8311 + $0xc8] sm:$0xff]
  %v8338 = vld [vmem:[%s8311 + $0xd0] sm:$0xff]
  %v8339 = vld [vmem:[%s8311 + $0xd8] sm:$0xff]
  %v8340 = vld [vmem:[%s8311 + $0xe0] sm:$0xff]
  %v8341 = vld [vmem:[%s8311 + $0xe8] sm:$0xff]
  %v8342 = vld [vmem:[%s8311 + $0xf0] sm:$0xff]
  %v8343 = vld [vmem:[%s8311 + $0xf8] sm:$0xff]
  %v8344 = vld [vmem:[%s8311 + $0x100] sm:$0xff]
  %v8345 = vld [vmem:[%s8311 + $0x108] sm:$0xff]
  %v8346 = vld [vmem:[%s8311 + $0x110] sm:$0xff]
  %v8347 = vld [vmem:[%s8311 + $0x118] sm:$0xff]
  %v8348 = vld [vmem:[%s8311 + $0x120] sm:$0xff]
  %v8349 = vld [vmem:[%s8311 + $0x128] sm:$0xff]
  %v8350 = vld [vmem:[%s8311 + $0x130] sm:$0xff]
  %v8351 = vld [vmem:[%s8311 + $0x138] sm:$0xff]
  %v8352 = vld [vmem:[%s8311 + $0x140] sm:$0xff]
  %v8353 = vld [vmem:[%s8311 + $0x148] sm:$0xff]
  %v8354 = vld [vmem:[%s8311 + $0x150] sm:$0xff]
  %v8355 = vld [vmem:[%s8311 + $0x158] sm:$0xff]
  %v8356 = vld [vmem:[%s8311 + $0x160] sm:$0xff]
  %v8357 = vld [vmem:[%s8311 + $0x168] sm:$0xff]
  %v8358 = vld [vmem:[%s8311 + $0x170] sm:$0xff]
  %v8359 = vld [vmem:[%s8311 + $0x178] sm:$0xff]
  %v8360 = vld [vmem:[%s8311 + $0x180] sm:$0xff]
  %v8361 = vld [vmem:[%s8311 + $0x188] sm:$0xff]
  %v8362 = vld [vmem:[%s8311 + $0x190] sm:$0xff]
  %v8363 = vld [vmem:[%s8311 + $0x198] sm:$0xff]
  %v8364 = vld [vmem:[%s8311 + $0x1a0] sm:$0xff]
  %v8365 = vld [vmem:[%s8311 + $0x1a8] sm:$0xff]
  %v8366 = vld [vmem:[%s8311 + $0x1b0] sm:$0xff]
  %v8367 = vld [vmem:[%s8311 + $0x1b8] sm:$0xff]
  %v8368 = vld [vmem:[%s8311 + $0x1c0] sm:$0xff]
  %v8369 = vld [vmem:[%s8311 + $0x1c8] sm:$0xff]
  %v8370 = vld [vmem:[%s8311 + $0x1d0] sm:$0xff]
  %v8371 = vld [vmem:[%s8311 + $0x1d8] sm:$0xff]
  %v8372 = vld [vmem:[%s8311 + $0x1e0] sm:$0xff]
  %v8373 = vld [vmem:[%s8311 + $0x1e8] sm:$0xff]
  %v8374 = vld [vmem:[%s8311 + $0x1f0] sm:$0xff]
  %v8375 = vld [vmem:[%s8311 + $0x1f8] sm:$0xff]
  %v8376 = vld [vmem:[%s8311 + $0x200] sm:$0xff]
  %v8377 = vld [vmem:[%s8311 + $0x208] sm:$0xff]
  %v8378 = vld [vmem:[%s8311 + $0x210] sm:$0xff]
  %v8379 = vld [vmem:[%s8311 + $0x218] sm:$0xff]
  %v8380 = vld [vmem:[%s8311 + $0x220] sm:$0xff]
  %v8381 = vld [vmem:[%s8311 + $0x228] sm:$0xff]
  %v8382 = vld [vmem:[%s8311 + $0x230] sm:$0xff]
  %v8383 = vld [vmem:[%s8311 + $0x238] sm:$0xff]
  %v8384 = vld [vmem:[%s8311 + $0x240] sm:$0xff]
  %v8385 = vld [vmem:[%s8311 + $0x248] sm:$0xff]
  %v8386 = vld [vmem:[%s8311 + $0x250] sm:$0xff]
  %v8387 = vld [vmem:[%s8311 + $0x258] sm:$0xff]
  %v8388 = vld [vmem:[%s8311 + $0x260] sm:$0xff]
  %v8389 = vld [vmem:[%s8311 + $0x268] sm:$0xff]
  %v8390 = vld [vmem:[%s8311 + $0x270] sm:$0xff]
  %v8391 = vld [vmem:[%s8311 + $0x278] sm:$0xff]
  %v8392 = vld [vmem:[%s8311 + $0x280] sm:$0xff]
  %v8393 = vld [vmem:[%s8311 + $0x288] sm:$0xff]
  %v8394 = vld [vmem:[%s8311 + $0x290] sm:$0xff]
  %v8395 = vld [vmem:[%s8311 + $0x298] sm:$0xff]
  %v8396 = vld [vmem:[%s8311 + $0x2a0] sm:$0xff]
  %v8397 = vld [vmem:[%s8311 + $0x2a8] sm:$0xff]
  %v8398 = vld [vmem:[%s8311 + $0x2b0] sm:$0xff]
  %v8399 = vld [vmem:[%s8311 + $0x2b8] sm:$0xff]
  %v8400 = vld [vmem:[%s8311 + $0x2c0] sm:$0xff]
  %v8401 = vld [vmem:[%s8311 + $0x2c8] sm:$0xff]
  %v8402 = vld [vmem:[%s8311 + $0x2d0] sm:$0xff]
  %v8403 = vld [vmem:[%s8311 + $0x2d8] sm:$0xff]
  %v8404 = vld [vmem:[%s8311 + $0x2e0] sm:$0xff]
  %v8405 = vld [vmem:[%s8311 + $0x2e8] sm:$0xff]
  %v8406 = vld [vmem:[%s8311 + $0x2f0] sm:$0xff]
  %v8407 = vld [vmem:[%s8311 + $0x2f8] sm:$0xff]
  %v8408 = vld [vmem:[%s8311 + $0x300] sm:$0xff]
  %v8409 = vld [vmem:[%s8311 + $0x308] sm:$0xff]
  %v8410 = vld [vmem:[%s8311 + $0x310] sm:$0xff]
  %v8411 = vld [vmem:[%s8311 + $0x318] sm:$0xff]
  %v8412 = vld [vmem:[%s8311 + $0x320] sm:$0xff]
  %v8413 = vld [vmem:[%s8311 + $0x328] sm:$0xff]
  %v8414 = vld [vmem:[%s8311 + $0x330] sm:$0xff]
  %v8415 = vld [vmem:[%s8311 + $0x338] sm:$0xff]
  %v8416 = vld [vmem:[%s8311 + $0x340] sm:$0xff]
  %v8417 = vld [vmem:[%s8311 + $0x348] sm:$0xff]
  %v8418 = vld [vmem:[%s8311 + $0x350] sm:$0xff]
  %v8419 = vld [vmem:[%s8311 + $0x358] sm:$0xff]
  %v8420 = vld [vmem:[%s8311 + $0x360] sm:$0xff]
  %v8421 = vld [vmem:[%s8311 + $0x368] sm:$0xff]
  %v8422 = vld [vmem:[%s8311 + $0x370] sm:$0xff]
  %v8423 = vld [vmem:[%s8311 + $0x378] sm:$0xff]
  %v8424 = vld [vmem:[%s8311 + $0x380] sm:$0xff]
  %v8425 = vld [vmem:[%s8311 + $0x388] sm:$0xff]
  %v8426 = vld [vmem:[%s8311 + $0x390] sm:$0xff]
  %v8427 = vld [vmem:[%s8311 + $0x398] sm:$0xff]
  %v8428 = vld [vmem:[%s8311 + $0x3a0] sm:$0xff]
  %v8429 = vld [vmem:[%s8311 + $0x3a8] sm:$0xff]
  %v8430 = vld [vmem:[%s8311 + $0x3b0] sm:$0xff]
  %v8431 = vld [vmem:[%s8311 + $0x3b8] sm:$0xff]
  %v8432 = vld [vmem:[%s8311 + $0x3c0] sm:$0xff]
  %v8433 = vld [vmem:[%s8311 + $0x3c8] sm:$0xff]
  %v8434 = vld [vmem:[%s8311 + $0x3d0] sm:$0xff]
  %v8435 = vld [vmem:[%s8311 + $0x3d8] sm:$0xff]
  %v8436 = vld [vmem:[%s8311 + $0x3e0] sm:$0xff]
  %v8437 = vld [vmem:[%s8311 + $0x3e8] sm:$0xff]
  %v8438 = vld [vmem:[%s8311 + $0x3f0] sm:$0xff]
  %v8439 = vld [vmem:[%s8311 + $0x3f8] sm:$0xff]
  %v8568 = vunpack.c.l.b16 %v8312
  %v8569 = vunpack.c.h.b16 %v8312
  %v8570 = vunpack.c.l.b16 %v8313
  %v8571 = vunpack.c.h.b16 %v8313
  %v8572 = vunpack.c.l.b16 %v8314
  %v8573 = vunpack.c.h.b16 %v8314
  %v8574 = vunpack.c.l.b16 %v8315
  %v8575 = vunpack.c.h.b16 %v8315
  %v8576 = vunpack.c.l.b16 %v8316
  %v8577 = vunpack.c.h.b16 %v8316
  %v8578 = vunpack.c.l.b16 %v8317
  %v8579 = vunpack.c.h.b16 %v8317
  %v8580 = vunpack.c.l.b16 %v8318
  %v8581 = vunpack.c.h.b16 %v8318
  %v8582 = vunpack.c.l.b16 %v8319
  %v8583 = vunpack.c.h.b16 %v8319
  %v8584 = vunpack.c.l.b16 %v8320
  %v8585 = vunpack.c.h.b16 %v8320
  %v8586 = vunpack.c.l.b16 %v8321
  %v8587 = vunpack.c.h.b16 %v8321
  %v8588 = vunpack.c.l.b16 %v8322
  %v8589 = vunpack.c.h.b16 %v8322
  %v8590 = vunpack.c.l.b16 %v8323
  %v8591 = vunpack.c.h.b16 %v8323
  %v8592 = vunpack.c.l.b16 %v8324
  %v8593 = vunpack.c.h.b16 %v8324
  %v8594 = vunpack.c.l.b16 %v8325
  %v8595 = vunpack.c.h.b16 %v8325
  %v8596 = vunpack.c.l.b16 %v8326
  %v8597 = vunpack.c.h.b16 %v8326
  %v8598 = vunpack.c.l.b16 %v8327
  %v8599 = vunpack.c.h.b16 %v8327
  %v8600 = vunpack.c.l.b16 %v8328
  %v8601 = vunpack.c.h.b16 %v8328
  %v8602 = vunpack.c.l.b16 %v8329
  %v8603 = vunpack.c.h.b16 %v8329
  %v8604 = vunpack.c.l.b16 %v8330
  %v8605 = vunpack.c.h.b16 %v8330
  %v8606 = vunpack.c.l.b16 %v8331
  %v8607 = vunpack.c.h.b16 %v8331
  %v8608 = vunpack.c.l.b16 %v8332
  %v8609 = vunpack.c.h.b16 %v8332
  %v8610 = vunpack.c.l.b16 %v8333
  %v8611 = vunpack.c.h.b16 %v8333
  %v8612 = vunpack.c.l.b16 %v8334
  %v8613 = vunpack.c.h.b16 %v8334
  %v8614 = vunpack.c.l.b16 %v8335
  %v8615 = vunpack.c.h.b16 %v8335
  %v8616 = vunpack.c.l.b16 %v8336
  %v8617 = vunpack.c.h.b16 %v8336
  %v8618 = vunpack.c.l.b16 %v8337
  %v8619 = vunpack.c.h.b16 %v8337
  %v8620 = vunpack.c.l.b16 %v8338
  %v8621 = vunpack.c.h.b16 %v8338
  %v8622 = vunpack.c.l.b16 %v8339
  %v8623 = vunpack.c.h.b16 %v8339
  %v8624 = vunpack.c.l.b16 %v8340
  %v8625 = vunpack.c.h.b16 %v8340
  %v8626 = vunpack.c.l.b16 %v8341
  %v8627 = vunpack.c.h.b16 %v8341
  %v8628 = vunpack.c.l.b16 %v8342
  %v8629 = vunpack.c.h.b16 %v8342
  %v8630 = vunpack.c.l.b16 %v8343
  %v8631 = vunpack.c.h.b16 %v8343
  %v8632 = vunpack.c.l.b16 %v8344
  %v8633 = vunpack.c.h.b16 %v8344
  %v8634 = vunpack.c.l.b16 %v8345
  %v8635 = vunpack.c.h.b16 %v8345
  %v8636 = vunpack.c.l.b16 %v8346
  %v8637 = vunpack.c.h.b16 %v8346
  %v8638 = vunpack.c.l.b16 %v8347
  %v8639 = vunpack.c.h.b16 %v8347
  %v8640 = vunpack.c.l.b16 %v8348
  %v8641 = vunpack.c.h.b16 %v8348
  %v8642 = vunpack.c.l.b16 %v8349
  %v8643 = vunpack.c.h.b16 %v8349
  %v8644 = vunpack.c.l.b16 %v8350
  %v8645 = vunpack.c.h.b16 %v8350
  %v8646 = vunpack.c.l.b16 %v8351
  %v8647 = vunpack.c.h.b16 %v8351
  %v8648 = vunpack.c.l.b16 %v8352
  %v8649 = vunpack.c.h.b16 %v8352
  %v8650 = vunpack.c.l.b16 %v8353
  %v8651 = vunpack.c.h.b16 %v8353
  %v8652 = vunpack.c.l.b16 %v8354
  %v8653 = vunpack.c.h.b16 %v8354
  %v8654 = vunpack.c.l.b16 %v8355
  %v8655 = vunpack.c.h.b16 %v8355
  %v8656 = vunpack.c.l.b16 %v8356
  %v8657 = vunpack.c.h.b16 %v8356
  %v8658 = vunpack.c.l.b16 %v8357
  %v8659 = vunpack.c.h.b16 %v8357
  %v8660 = vunpack.c.l.b16 %v8358
  %v8661 = vunpack.c.h.b16 %v8358
  %v8662 = vunpack.c.l.b16 %v8359
  %v8663 = vunpack.c.h.b16 %v8359
  %v8664 = vunpack.c.l.b16 %v8360
  %v8665 = vunpack.c.h.b16 %v8360
  %v8666 = vunpack.c.l.b16 %v8361
  %v8667 = vunpack.c.h.b16 %v8361
  %v8668 = vunpack.c.l.b16 %v8362
  %v8669 = vunpack.c.h.b16 %v8362
  %v8670 = vunpack.c.l.b16 %v8363
  %v8671 = vunpack.c.h.b16 %v8363
  %v8672 = vunpack.c.l.b16 %v8364
  %v8673 = vunpack.c.h.b16 %v8364
  %v8674 = vunpack.c.l.b16 %v8365
  %v8675 = vunpack.c.h.b16 %v8365
  %v8676 = vunpack.c.l.b16 %v8366
  %v8677 = vunpack.c.h.b16 %v8366
  %v8678 = vunpack.c.l.b16 %v8367
  %v8679 = vunpack.c.h.b16 %v8367
  %v8680 = vunpack.c.l.b16 %v8368
  %v8681 = vunpack.c.h.b16 %v8368
  %v8682 = vunpack.c.l.b16 %v8369
  %v8683 = vunpack.c.h.b16 %v8369
  %v8684 = vunpack.c.l.b16 %v8370
  %v8685 = vunpack.c.h.b16 %v8370
  %v8686 = vunpack.c.l.b16 %v8371
  %v8687 = vunpack.c.h.b16 %v8371
  %v8688 = vunpack.c.l.b16 %v8372
  %v8689 = vunpack.c.h.b16 %v8372
  %v8690 = vunpack.c.l.b16 %v8373
  %v8691 = vunpack.c.h.b16 %v8373
  %v8692 = vunpack.c.l.b16 %v8374
  %v8693 = vunpack.c.h.b16 %v8374
  %v8694 = vunpack.c.l.b16 %v8375
  %v8695 = vunpack.c.h.b16 %v8375
  %v8696 = vunpack.c.l.b16 %v8376
  %v8697 = vunpack.c.h.b16 %v8376
  %v8698 = vunpack.c.l.b16 %v8377
  %v8699 = vunpack.c.h.b16 %v8377
  %v8700 = vunpack.c.l.b16 %v8378
  %v8701 = vunpack.c.h.b16 %v8378
  %v8702 = vunpack.c.l.b16 %v8379
  %v8703 = vunpack.c.h.b16 %v8379
  %v8704 = vunpack.c.l.b16 %v8380
  %v8705 = vunpack.c.h.b16 %v8380
  %v8706 = vunpack.c.l.b16 %v8381
  %v8707 = vunpack.c.h.b16 %v8381
  %v8708 = vunpack.c.l.b16 %v8382
  %v8709 = vunpack.c.h.b16 %v8382
  %v8710 = vunpack.c.l.b16 %v8383
  %v8711 = vunpack.c.h.b16 %v8383
  %v8712 = vunpack.c.l.b16 %v8384
  %v8713 = vunpack.c.h.b16 %v8384
  %v8714 = vunpack.c.l.b16 %v8385
  %v8715 = vunpack.c.h.b16 %v8385
  %v8716 = vunpack.c.l.b16 %v8386
  %v8717 = vunpack.c.h.b16 %v8386
  %v8718 = vunpack.c.l.b16 %v8387
  %v8719 = vunpack.c.h.b16 %v8387
  %v8720 = vunpack.c.l.b16 %v8388
  %v8721 = vunpack.c.h.b16 %v8388
  %v8722 = vunpack.c.l.b16 %v8389
  %v8723 = vunpack.c.h.b16 %v8389
  %v8724 = vunpack.c.l.b16 %v8390
  %v8725 = vunpack.c.h.b16 %v8390
  %v8726 = vunpack.c.l.b16 %v8391
  %v8727 = vunpack.c.h.b16 %v8391
  %v8728 = vunpack.c.l.b16 %v8392
  %v8729 = vunpack.c.h.b16 %v8392
  %v8730 = vunpack.c.l.b16 %v8393
  %v8731 = vunpack.c.h.b16 %v8393
  %v8732 = vunpack.c.l.b16 %v8394
  %v8733 = vunpack.c.h.b16 %v8394
  %v8734 = vunpack.c.l.b16 %v8395
  %v8735 = vunpack.c.h.b16 %v8395
  %v8736 = vunpack.c.l.b16 %v8396
  %v8737 = vunpack.c.h.b16 %v8396
  %v8738 = vunpack.c.l.b16 %v8397
  %v8739 = vunpack.c.h.b16 %v8397
  %v8740 = vunpack.c.l.b16 %v8398
  %v8741 = vunpack.c.h.b16 %v8398
  %v8742 = vunpack.c.l.b16 %v8399
  %v8743 = vunpack.c.h.b16 %v8399
  %v8744 = vunpack.c.l.b16 %v8400
  %v8745 = vunpack.c.h.b16 %v8400
  %v8746 = vunpack.c.l.b16 %v8401
  %v8747 = vunpack.c.h.b16 %v8401
  %v8748 = vunpack.c.l.b16 %v8402
  %v8749 = vunpack.c.h.b16 %v8402
  %v8750 = vunpack.c.l.b16 %v8403
  %v8751 = vunpack.c.h.b16 %v8403
  %v8752 = vunpack.c.l.b16 %v8404
  %v8753 = vunpack.c.h.b16 %v8404
  %v8754 = vunpack.c.l.b16 %v8405
  %v8755 = vunpack.c.h.b16 %v8405
  %v8756 = vunpack.c.l.b16 %v8406
  %v8757 = vunpack.c.h.b16 %v8406
  %v8758 = vunpack.c.l.b16 %v8407
  %v8759 = vunpack.c.h.b16 %v8407
  %v8760 = vunpack.c.l.b16 %v8408
  %v8761 = vunpack.c.h.b16 %v8408
  %v8762 = vunpack.c.l.b16 %v8409
  %v8763 = vunpack.c.h.b16 %v8409
  %v8764 = vunpack.c.l.b16 %v8410
  %v8765 = vunpack.c.h.b16 %v8410
  %v8766 = vunpack.c.l.b16 %v8411
  %v8767 = vunpack.c.h.b16 %v8411
  %v8768 = vunpack.c.l.b16 %v8412
  %v8769 = vunpack.c.h.b16 %v8412
  %v8770 = vunpack.c.l.b16 %v8413
  %v8771 = vunpack.c.h.b16 %v8413
  %v8772 = vunpack.c.l.b16 %v8414
  %v8773 = vunpack.c.h.b16 %v8414
  %v8774 = vunpack.c.l.b16 %v8415
  %v8775 = vunpack.c.h.b16 %v8415
  %v8776 = vunpack.c.l.b16 %v8416
  %v8777 = vunpack.c.h.b16 %v8416
  %v8778 = vunpack.c.l.b16 %v8417
  %v8779 = vunpack.c.h.b16 %v8417
  %v8780 = vunpack.c.l.b16 %v8418
  %v8781 = vunpack.c.h.b16 %v8418
  %v8782 = vunpack.c.l.b16 %v8419
  %v8783 = vunpack.c.h.b16 %v8419
  %v8784 = vunpack.c.l.b16 %v8420
  %v8785 = vunpack.c.h.b16 %v8420
  %v8786 = vunpack.c.l.b16 %v8421
  %v8787 = vunpack.c.h.b16 %v8421
  %v8788 = vunpack.c.l.b16 %v8422
  %v8789 = vunpack.c.h.b16 %v8422
  %v8790 = vunpack.c.l.b16 %v8423
  %v8791 = vunpack.c.h.b16 %v8423
  %v8792 = vunpack.c.l.b16 %v8424
  %v8793 = vunpack.c.h.b16 %v8424
  %v8794 = vunpack.c.l.b16 %v8425
  %v8795 = vunpack.c.h.b16 %v8425
  %v8796 = vunpack.c.l.b16 %v8426
  %v8797 = vunpack.c.h.b16 %v8426
  %v8798 = vunpack.c.l.b16 %v8427
  %v8799 = vunpack.c.h.b16 %v8427
  %v8800 = vunpack.c.l.b16 %v8428
  %v8801 = vunpack.c.h.b16 %v8428
  %v8802 = vunpack.c.l.b16 %v8429
  %v8803 = vunpack.c.h.b16 %v8429
  %v8804 = vunpack.c.l.b16 %v8430
  %v8805 = vunpack.c.h.b16 %v8430
  %v8806 = vunpack.c.l.b16 %v8431
  %v8807 = vunpack.c.h.b16 %v8431
  %v8808 = vunpack.c.l.b16 %v8432
  %v8809 = vunpack.c.h.b16 %v8432
  %v8810 = vunpack.c.l.b16 %v8433
  %v8811 = vunpack.c.h.b16 %v8433
  %v8812 = vunpack.c.l.b16 %v8434
  %v8813 = vunpack.c.h.b16 %v8434
  %v8814 = vunpack.c.l.b16 %v8435
  %v8815 = vunpack.c.h.b16 %v8435
  %v8816 = vunpack.c.l.b16 %v8436
  %v8817 = vunpack.c.h.b16 %v8436
  %v8818 = vunpack.c.l.b16 %v8437
  %v8819 = vunpack.c.h.b16 %v8437
  %v8820 = vunpack.c.l.b16 %v8438
  %v8821 = vunpack.c.h.b16 %v8438
  %v8822 = vunpack.c.l.b16 %v8439
  %v8823 = vunpack.c.h.b16 %v8439
  %v8824 = vpack.c.b16 %v8572, %v8568
  %v8825 = vpack.c.b16 %v8573, %v8569
  %v8826 = vpack.c.b16 %v8574, %v8570
  %v8827 = vpack.c.b16 %v8575, %v8571
  %v8828 = vpack.c.b16 %v8580, %v8576
  %v8829 = vpack.c.b16 %v8581, %v8577
  %v8830 = vpack.c.b16 %v8582, %v8578
  %v8831 = vpack.c.b16 %v8583, %v8579
  %v8832 = vpack.c.b16 %v8588, %v8584
  %v8833 = vpack.c.b16 %v8589, %v8585
  %v8834 = vpack.c.b16 %v8590, %v8586
  %v8835 = vpack.c.b16 %v8591, %v8587
  %v8836 = vpack.c.b16 %v8596, %v8592
  %v8837 = vpack.c.b16 %v8597, %v8593
  %v8838 = vpack.c.b16 %v8598, %v8594
  %v8839 = vpack.c.b16 %v8599, %v8595
  %v8840 = vpack.c.b16 %v8604, %v8600
  %v8841 = vpack.c.b16 %v8605, %v8601
  %v8842 = vpack.c.b16 %v8606, %v8602
  %v8843 = vpack.c.b16 %v8607, %v8603
  %v8844 = vpack.c.b16 %v8612, %v8608
  %v8845 = vpack.c.b16 %v8613, %v8609
  %v8846 = vpack.c.b16 %v8614, %v8610
  %v8847 = vpack.c.b16 %v8615, %v8611
  %v8848 = vpack.c.b16 %v8620, %v8616
  %v8849 = vpack.c.b16 %v8621, %v8617
  %v8850 = vpack.c.b16 %v8622, %v8618
  %v8851 = vpack.c.b16 %v8623, %v8619
  %v8852 = vpack.c.b16 %v8628, %v8624
  %v8853 = vpack.c.b16 %v8629, %v8625
  %v8854 = vpack.c.b16 %v8630, %v8626
  %v8855 = vpack.c.b16 %v8631, %v8627
  %v8856 = vpack.c.b16 %v8636, %v8632
  %v8857 = vpack.c.b16 %v8637, %v8633
  %v8858 = vpack.c.b16 %v8638, %v8634
  %v8859 = vpack.c.b16 %v8639, %v8635
  %v8860 = vpack.c.b16 %v8644, %v8640
  %v8861 = vpack.c.b16 %v8645, %v8641
  %v8862 = vpack.c.b16 %v8646, %v8642
  %v8863 = vpack.c.b16 %v8647, %v8643
  %v8864 = vpack.c.b16 %v8652, %v8648
  %v8865 = vpack.c.b16 %v8653, %v8649
  %v8866 = vpack.c.b16 %v8654, %v8650
  %v8867 = vpack.c.b16 %v8655, %v8651
  %v8868 = vpack.c.b16 %v8660, %v8656
  %v8869 = vpack.c.b16 %v8661, %v8657
  %v8870 = vpack.c.b16 %v8662, %v8658
  %v8871 = vpack.c.b16 %v8663, %v8659
  %v8872 = vpack.c.b16 %v8668, %v8664
  %v8873 = vpack.c.b16 %v8669, %v8665
  %v8874 = vpack.c.b16 %v8670, %v8666
  %v8875 = vpack.c.b16 %v8671, %v8667
  %v8876 = vpack.c.b16 %v8676, %v8672
  %v8877 = vpack.c.b16 %v8677, %v8673
  %v8878 = vpack.c.b16 %v8678, %v8674
  %v8879 = vpack.c.b16 %v8679, %v8675
  %v8880 = vpack.c.b16 %v8684, %v8680
  %v8881 = vpack.c.b16 %v8685, %v8681
  %v8882 = vpack.c.b16 %v8686, %v8682
  %v8883 = vpack.c.b16 %v8687, %v8683
  %v8884 = vpack.c.b16 %v8692, %v8688
  %v8885 = vpack.c.b16 %v8693, %v8689
  %v8886 = vpack.c.b16 %v8694, %v8690
  %v8887 = vpack.c.b16 %v8695, %v8691
  %v8888 = vpack.c.b16 %v8700, %v8696
  %v8889 = vpack.c.b16 %v8701, %v8697
  %v8890 = vpack.c.b16 %v8702, %v8698
  %v8891 = vpack.c.b16 %v8703, %v8699
  %v8892 = vpack.c.b16 %v8708, %v8704
  %v8893 = vpack.c.b16 %v8709, %v8705
  %v8894 = vpack.c.b16 %v8710, %v8706
  %v8895 = vpack.c.b16 %v8711, %v8707
  %v8896 = vpack.c.b16 %v8716, %v8712
  %v8897 = vpack.c.b16 %v8717, %v8713
  %v8898 = vpack.c.b16 %v8718, %v8714
  %v8899 = vpack.c.b16 %v8719, %v8715
  %v8900 = vpack.c.b16 %v8724, %v8720
  %v8901 = vpack.c.b16 %v8725, %v8721
  %v8902 = vpack.c.b16 %v8726, %v8722
  %v8903 = vpack.c.b16 %v8727, %v8723
  %v8904 = vpack.c.b16 %v8732, %v8728
  %v8905 = vpack.c.b16 %v8733, %v8729
  %v8906 = vpack.c.b16 %v8734, %v8730
  %v8907 = vpack.c.b16 %v8735, %v8731
  %v8908 = vpack.c.b16 %v8740, %v8736
  %v8909 = vpack.c.b16 %v8741, %v8737
  %v8910 = vpack.c.b16 %v8742, %v8738
  %v8911 = vpack.c.b16 %v8743, %v8739
  %v8912 = vpack.c.b16 %v8748, %v8744
  %v8913 = vpack.c.b16 %v8749, %v8745
  %v8914 = vpack.c.b16 %v8750, %v8746
  %v8915 = vpack.c.b16 %v8751, %v8747
  %v8916 = vpack.c.b16 %v8756, %v8752
  %v8917 = vpack.c.b16 %v8757, %v8753
  %v8918 = vpack.c.b16 %v8758, %v8754
  %v8919 = vpack.c.b16 %v8759, %v8755
  %v8920 = vpack.c.b16 %v8764, %v8760
  %v8921 = vpack.c.b16 %v8765, %v8761
  %v8922 = vpack.c.b16 %v8766, %v8762
  %v8923 = vpack.c.b16 %v8767, %v8763
  %v8924 = vpack.c.b16 %v8772, %v8768
  %v8925 = vpack.c.b16 %v8773, %v8769
  %v8926 = vpack.c.b16 %v8774, %v8770
  %v8927 = vpack.c.b16 %v8775, %v8771
  %v8928 = vpack.c.b16 %v8780, %v8776
  %v8929 = vpack.c.b16 %v8781, %v8777
  %v8930 = vpack.c.b16 %v8782, %v8778
  %v8931 = vpack.c.b16 %v8783, %v8779
  %v8932 = vpack.c.b16 %v8788, %v8784
  %v8933 = vpack.c.b16 %v8789, %v8785
  %v8934 = vpack.c.b16 %v8790, %v8786
  %v8935 = vpack.c.b16 %v8791, %v8787
  %v8936 = vpack.c.b16 %v8796, %v8792
  %v8937 = vpack.c.b16 %v8797, %v8793
  %v8938 = vpack.c.b16 %v8798, %v8794
  %v8939 = vpack.c.b16 %v8799, %v8795
  %v8940 = vpack.c.b16 %v8804, %v8800
  %v8941 = vpack.c.b16 %v8805, %v8801
  %v8942 = vpack.c.b16 %v8806, %v8802
  %v8943 = vpack.c.b16 %v8807, %v8803
  %v8944 = vpack.c.b16 %v8812, %v8808
  %v8945 = vpack.c.b16 %v8813, %v8809
  %v8946 = vpack.c.b16 %v8814, %v8810
  %v8947 = vpack.c.b16 %v8815, %v8811
  %v8948 = vpack.c.b16 %v8820, %v8816
  %v8949 = vpack.c.b16 %v8821, %v8817
  %v8950 = vpack.c.b16 %v8822, %v8818
  %v8951 = vpack.c.b16 %v8823, %v8819
  %9080 = vmatprep.subr.bf16.mxu0 %v8825
  %9081 = vmatpush1.bf16.msra.mxu0 %v8824
  %9082 = vmatprep.subr.bf16.mxu0 %v8829
  %9083 = vmatpush1.bf16.msra.mxu0 %v8828
  %9084 = vmatprep.subr.bf16.mxu0 %v8833
  %9085 = vmatpush1.bf16.msra.mxu0 %v8832
  %9086 = vmatprep.subr.bf16.mxu0 %v8837
  %9087 = vmatpush1.bf16.msra.mxu0 %v8836
  %9088 = vmatprep.subr.bf16.mxu0 %v8841
  %9089 = vmatpush1.bf16.msra.mxu0 %v8840
  %9090 = vmatprep.subr.bf16.mxu0 %v8845
  %9091 = vmatpush1.bf16.msra.mxu0 %v8844
  %9092 = vmatprep.subr.bf16.mxu0 %v8849
  %9093 = vmatpush1.bf16.msra.mxu0 %v8848
  %9094 = vmatprep.subr.bf16.mxu0 %v8853
  %9095 = vmatpush1.bf16.msra.mxu0 %v8852
  %9096 = vmatprep.subr.bf16.mxu0 %v8857
  %9097 = vmatpush1.bf16.msra.mxu0 %v8856
  %9098 = vmatprep.subr.bf16.mxu0 %v8861
  %9099 = vmatpush1.bf16.msra.mxu0 %v8860
  %9100 = vmatprep.subr.bf16.mxu0 %v8865
  %9101 = vmatpush1.bf16.msra.mxu0 %v8864
  %9102 = vmatprep.subr.bf16.mxu0 %v8869
  %9103 = vmatpush1.bf16.msra.mxu0 %v8868
  %9104 = vmatprep.subr.bf16.mxu0 %v8873
  %9105 = vmatpush1.bf16.msra.mxu0 %v8872
  %9106 = vmatprep.subr.bf16.mxu0 %v8877
  %9107 = vmatpush1.bf16.msra.mxu0 %v8876
  %9108 = vmatprep.subr.bf16.mxu0 %v8881
  %9109 = vmatpush1.bf16.msra.mxu0 %v8880
  %9110 = vmatprep.subr.bf16.mxu0 %v8885
  %9111 = vmatpush1.bf16.msra.mxu0 %v8884
  %9112 = vmatprep.mubr.bf16.mxu0 %v8304
  %9113 = vmatmul.mubr.bf16.gmra.mrb[0].mxu0 %v8303
  %v9114 = vpop.f32.mrb[0].mxu0
  %v9115 = vadd.f32 0.0, %v9114
  %v9116 = vpop.f32.mrb[0].mxu0
  %v9117 = vadd.f32 0.0, %v9116
  %v9118 = vpop.f32.mrb[0].mxu0
  %v9119 = vadd.f32 0.0, %v9118
  %v9120 = vpop.f32.mrb[0].mxu0
  %v9121 = vadd.f32 0.0, %v9120
  %9122 = vmatprep.mubr.bf16.mxu0 %v8308
  %9123 = vmatmul.mubr.bf16.gmra.mrb[0].mxu0 %v8307
  %v9124 = vpop.f32.mrb[0].mxu0
  %v9125 = vadd.f32 0.0, %v9124
  %v9126 = vpop.f32.mrb[0].mxu0
  %v9127 = vadd.f32 0.0, %v9126
  %v9128 = vpop.f32.mrb[0].mxu0
  %v9129 = vadd.f32 0.0, %v9128
  %v9130 = vpop.f32.mrb[0].mxu0
  %v9131 = vadd.f32 0.0, %v9130
  %9132 = vdwg.mxu0
  %9133 = vmatprep.subr.bf16.mxu0 %v8889
  %9134 = vmatpush1.bf16.msra.mxu0 %v8888
  %9135 = vmatprep.subr.bf16.mxu0 %v8893
  %9136 = vmatpush1.bf16.msra.mxu0 %v8892
  %9137 = vmatprep.subr.bf16.mxu0 %v8897
  %9138 = vmatpush1.bf16.msra.mxu0 %v8896
  %9139 = vmatprep.subr.bf16.mxu0 %v8901
  %9140 = vmatpush1.bf16.msra.mxu0 %v8900
  %9141 = vmatprep.subr.bf16.mxu0 %v8905
  %9142 = vmatpush1.bf16.msra.mxu0 %v8904
  %9143 = vmatprep.subr.bf16.mxu0 %v8909
  %9144 = vmatpush1.bf16.msra.mxu0 %v8908
  %9145 = vmatprep.subr.bf16.mxu0 %v8913
  %9146 = vmatpush1.bf16.msra.mxu0 %v8912
  %9147 = vmatprep.subr.bf16.mxu0 %v8917
  %9148 = vmatpush1.bf16.msra.mxu0 %v8916
  %9149 = vmatprep.subr.bf16.mxu0 %v8921
  %9150 = vmatpush1.bf16.msra.mxu0 %v8920
  %9151 = vmatprep.subr.bf16.mxu0 %v8925
  %9152 = vmatpush1.bf16.msra.mxu0 %v8924
  %9153 = vmatprep.subr.bf16.mxu0 %v8929
  %9154 = vmatpush1.bf16.msra.mxu0 %v8928
  %9155 = vmatprep.subr.bf16.mxu0 %v8933
  %9156 = vmatpush1.bf16.msra.mxu0 %v8932
  %9157 = vmatprep.subr.bf16.mxu0 %v8937
  %9158 = vmatpush1.bf16.msra.mxu0 %v8936
  %9159 = vmatprep.subr.bf16.mxu0 %v8941
  %9160 = vmatpush1.bf16.msra.mxu0 %v8940
  %9161 = vmatprep.subr.bf16.mxu0 %v8945
  %9162 = vmatpush1.bf16.msra.mxu0 %v8944
  %9163 = vmatprep.subr.bf16.mxu0 %v8949
  %9164 = vmatpush1.bf16.msra.mxu0 %v8948
  %9165 = vmatprep.mubr.bf16.mxu0 %v8306
  %9166 = vmatmul.mubr.bf16.gmra.mrb[0].mxu0 %v8305
  %v9167 = vpop.f32.mrb[0].mxu0
  %v9168 = vadd.f32 %v9115, %v9167
  %v9169 = vpop.f32.mrb[0].mxu0
  %v9170 = vadd.f32 %v9117, %v9169
  %v9171 = vpop.f32.mrb[0].mxu0
  %v9172 = vadd.f32 %v9119, %v9171
  %v9173 = vpop.f32.mrb[0].mxu0
  %v9174 = vadd.f32 %v9121, %v9173
  %9175 = vmatprep.mubr.bf16.mxu0 %v8310
  %9176 = vmatmul.mubr.bf16.gmra.mrb[0].mxu0 %v8309
  %v9177 = vpop.f32.mrb[0].mxu0
  %v9178 = vadd.f32 %v9125, %v9177
  %v9179 = vpop.f32.mrb[0].mxu0
  %v9180 = vadd.f32 %v9127, %v9179
  %v9181 = vpop.f32.mrb[0].mxu0
  %v9182 = vadd.f32 %v9129, %v9181
  %v9183 = vpop.f32.mrb[0].mxu0
  %v9184 = vadd.f32 %v9131, %v9183
  %9185 = vdwg.mxu0
  %9186 = vmatprep.subr.bf16.mxu0 %v8827
  %9187 = vmatpush1.bf16.msra.mxu0 %v8826
  %9188 = vmatprep.subr.bf16.mxu0 %v8831
  %9189 = vmatpush1.bf16.msra.mxu0 %v8830
  %9190 = vmatprep.subr.bf16.mxu0 %v8835
  %9191 = vmatpush1.bf16.msra.mxu0 %v8834
  %9192 = vmatprep.subr.bf16.mxu0 %v8839
  %9193 = vmatpush1.bf16.msra.mxu0 %v8838
  %9194 = vmatprep.subr.bf16.mxu0 %v8843
  %9195 = vmatpush1.bf16.msra.mxu0 %v8842
  %9196 = vmatprep.subr.bf16.mxu0 %v8847
  %9197 = vmatpush1.bf16.msra.mxu0 %v8846
  %9198 = vmatprep.subr.bf16.mxu0 %v8851
  %9199 = vmatpush1.bf16.msra.mxu0 %v8850
  %9200 = vmatprep.subr.bf16.mxu0 %v8855
  %9201 = vmatpush1.bf16.msra.mxu0 %v8854
  %9202 = vmatprep.subr.bf16.mxu0 %v8859
  %9203 = vmatpush1.bf16.msra.mxu0 %v8858
  %9204 = vmatprep.subr.bf16.mxu0 %v8863
  %9205 = vmatpush1.bf16.msra.mxu0 %v8862
  %9206 = vmatprep.subr.bf16.mxu0 %v8867
  %9207 = vmatpush1.bf16.msra.mxu0 %v8866
  %9208 = vmatprep.subr.bf16.mxu0 %v8871
  %9209 = vmatpush1.bf16.msra.mxu0 %v8870
  %9210 = vmatprep.subr.bf16.mxu0 %v8875
  %9211 = vmatpush1.bf16.msra.mxu0 %v8874
  %9212 = vmatprep.subr.bf16.mxu0 %v8879
  %9213 = vmatpush1.bf16.msra.mxu0 %v8878
  %9214 = vmatprep.subr.bf16.mxu0 %v8883
  %9215 = vmatpush1.bf16.msra.mxu0 %v8882
  %9216 = vmatprep.subr.bf16.mxu0 %v8887
  %9217 = vmatpush1.bf16.msra.mxu0 %v8886
  %9218 = vmatprep.mubr.bf16.mxu0 %v8304
  %9219 = vmatmul.mubr.bf16.gmra.mrb[0].mxu0 %v8303
  %v9220 = vpop.f32.mrb[0].mxu0
  %v9221 = vadd.f32 0.0, %v9220
  %v9222 = vpop.f32.mrb[0].mxu0
  %v9223 = vadd.f32 0.0, %v9222
  %v9224 = vpop.f32.mrb[0].mxu0
  %v9225 = vadd.f32 0.0, %v9224
  %v9226 = vpop.f32.mrb[0].mxu0
  %v9227 = vadd.f32 0.0, %v9226
  %9228 = vmatprep.mubr.bf16.mxu0 %v8308
  %9229 = vmatmul.mubr.bf16.gmra.mrb[0].mxu0 %v8307
  %v9230 = vpop.f32.mrb[0].mxu0
  %v9231 = vadd.f32 0.0, %v9230
  %v9232 = vpop.f32.mrb[0].mxu0
  %v9233 = vadd.f32 0.0, %v9232
  %v9234 = vpop.f32.mrb[0].mxu0
  %v9235 = vadd.f32 0.0, %v9234
  %v9236 = vpop.f32.mrb[0].mxu0
  %v9237 = vadd.f32 0.0, %v9236
  %9238 = vdwg.mxu0
  %9239 = vmatprep.subr.bf16.mxu0 %v8891
  %9240 = vmatpush1.bf16.msra.mxu0 %v8890
  %9241 = vmatprep.subr.bf16.mxu0 %v8895
  %9242 = vmatpush1.bf16.msra.mxu0 %v8894
  %9243 = vmatprep.subr.bf16.mxu0 %v8899
  %9244 = vmatpush1.bf16.msra.mxu0 %v8898
  %9245 = vmatprep.subr.bf16.mxu0 %v8903
  %9246 = vmatpush1.bf16.msra.mxu0 %v8902
  %9247 = vmatprep.subr.bf16.mxu0 %v8907
  %9248 = vmatpush1.bf16.msra.mxu0 %v8906
  %9249 = vmatprep.subr.bf16.mxu0 %v8911
  %9250 = vmatpush1.bf16.msra.mxu0 %v8910
  %9251 = vmatprep.subr.bf16.mxu0 %v8915
  %9252 = vmatpush1.bf16.msra.mxu0 %v8914
  %9253 = vmatprep.subr.bf16.mxu0 %v8919
  %9254 = vmatpush1.bf16.msra.mxu0 %v8918
  %9255 = vmatprep.subr.bf16.mxu0 %v8923
  %9256 = vmatpush1.bf16.msra.mxu0 %v8922
  %9257 = vmatprep.subr.bf16.mxu0 %v8927
  %9258 = vmatpush1.bf16.msra.mxu0 %v8926
  %9259 = vmatprep.subr.bf16.mxu0 %v8931
  %9260 = vmatpush1.bf16.msra.mxu0 %v8930
  %9261 = vmatprep.subr.bf16.mxu0 %v8935
  %9262 = vmatpush1.bf16.msra.mxu0 %v8934
  %9263 = vmatprep.subr.bf16.mxu0 %v8939
  %9264 = vmatpush1.bf16.msra.mxu0 %v8938
  %9265 = vmatprep.subr.bf16.mxu0 %v8943
  %9266 = vmatpush1.bf16.msra.mxu0 %v8942
  %9267 = vmatprep.subr.bf16.mxu0 %v8947
  %9268 = vmatpush1.bf16.msra.mxu0 %v8946
  %9269 = vmatprep.subr.bf16.mxu0 %v8951
  %9270 = vmatpush1.bf16.msra.mxu0 %v8950
  %9271 = vmatprep.mubr.bf16.mxu0 %v8306
  %9272 = vmatmul.mubr.bf16.gmra.mrb[0].mxu0 %v8305
  %v9273 = vpop.f32.mrb[0].mxu0
  %v9274 = vadd.f32 %v9221, %v9273
  %v9275 = vpop.f32.mrb[0].mxu0
  %v9276 = vadd.f32 %v9223, %v9275
  %v9277 = vpop.f32.mrb[0].mxu0
  %v9278 = vadd.f32 %v9225, %v9277
  %v9279 = vpop.f32.mrb[0].mxu0
  %v9280 = vadd.f32 %v9227, %v9279
  %9281 = vmatprep.mubr.bf16.mxu0 %v8310
  %9282 = vmatmul.mubr.bf16.gmra.mrb[0].mxu0 %v8309
  %v9283 = vpop.f32.mrb[0].mxu0
  %v9284 = vadd.f32 %v9231, %v9283
  %v9285 = vpop.f32.mrb[0].mxu0
  %v9286 = vadd.f32 %v9233, %v9285
  %v9287 = vpop.f32.mrb[0].mxu0
  %v9288 = vadd.f32 %v9235, %v9287
  %v9289 = vpop.f32.mrb[0].mxu0
  %v9290 = vadd.f32 %v9237, %v9289
  %9291 = vdwg.mxu0
  %v9292 = vadd.f32 %v8164, %v9168
  %v9293 = vadd.f32 %v8165, %v9170
  %v9294 = vadd.f32 %v8166, %v9274
  %v9295 = vadd.f32 %v8167, %v9276
  %v9296 = vadd.f32 %v8168, %v9172
  %v9297 = vadd.f32 %v8169, %v9174
  %v9298 = vadd.f32 %v8170, %v9278
  %v9299 = vadd.f32 %v8171, %v9280
  %v9300 = vadd.f32 %v8172, %v9178
  %v9301 = vadd.f32 %v8173, %v9180
  %v9302 = vadd.f32 %v8174, %v9284
  %v9303 = vadd.f32 %v8175, %v9286
  %v9304 = vadd.f32 %v8176, %v9182
  %v9305 = vadd.f32 %v8177, %v9184
  %v9306 = vadd.f32 %v8178, %v9288
  %v9307 = vadd.f32 %v8179, %v9290
  %s9308 = scalar_lea.vmem %s5, 96
  %v9309 = vld [vmem:[%s9308] sm:$0xf]
  %v9310 = vld [vmem:[%s9308 + $0x4] sm:$0xf]
  %v9311 = vld [vmem:[%s9308 + $0x8] sm:$0xf]
  %v9312 = vld [vmem:[%s9308 + $0xc] sm:$0xf]
  %v9317 = vunpack.c.l.b16 %v9309
  %v9318 = vunpack.c.l.b16 %v9310
  %v9319 = vunpack.c.l.b16 %v9311
  %v9320 = vunpack.c.l.b16 %v9312
  %v9321 = vpack.c.b16 %v9318, %v9317
  %v9322 = vpack.c.b16 %v9320, %v9319
  %9325 = vmatprep.subr.bf16.mxu0 %v2543
  %9326 = vmatpush1.bf16.msra.mxu0 %v2542
  %9327 = vmatprep.subr.bf16.mxu0 %v2547
  %9328 = vmatpush1.bf16.msra.mxu0 %v2546
  %9329 = vmatprep.subr.bf16.mxu0 %v2551
  %9330 = vmatpush1.bf16.msra.mxu0 %v2550
  %9331 = vmatprep.subr.bf16.mxu0 %v2555
  %9332 = vmatpush1.bf16.msra.mxu0 %v2554
  %9333 = vmatprep.subr.bf16.mxu0 %v2559
  %9334 = vmatpush1.bf16.msra.mxu0 %v2558
  %9335 = vmatprep.subr.bf16.mxu0 %v2563
  %9336 = vmatpush1.bf16.msra.mxu0 %v2562
  %9337 = vmatprep.subr.bf16.mxu0 %v2567
  %9338 = vmatpush1.bf16.msra.mxu0 %v2566
  %9339 = vmatprep.subr.bf16.mxu0 %v2571
  %9340 = vmatpush1.bf16.msra.mxu0 %v2570
  %9341 = vmatprep.subr.bf16.mxu0 0
  %9342 = vmatpush1.bf16.msra.mxu0 0
  %9343 = vmatprep.subr.bf16.mxu0 0
  %9344 = vmatpush1.bf16.msra.mxu0 0
  %9345 = vmatprep.subr.bf16.mxu0 0
  %9346 = vmatpush1.bf16.msra.mxu0 0
  %9347 = vmatprep.subr.bf16.mxu0 0
  %9348 = vmatpush1.bf16.msra.mxu0 0
  %9349 = vmatprep.subr.bf16.mxu0 0
  %9350 = vmatpush1.bf16.msra.mxu0 0
  %9351 = vmatprep.subr.bf16.mxu0 0
  %9352 = vmatpush1.bf16.msra.mxu0 0
  %9353 = vmatprep.subr.bf16.mxu0 0
  %9354 = vmatpush1.bf16.msra.mxu0 0
  %9355 = vmatprep.subr.bf16.mxu0 0
  %9356 = vmatpush1.bf16.msra.mxu0 0
  %9357 = vmatprep.mubr.bf16.mxu0 0
  %9358 = vmatmul.mubr.bf16.gmra.mrb[0].mxu0 %v9321
  %v9359 = vpop.f32.mrb[0].mxu0
  %v9360 = vadd.f32 0.0, %v9359
  %v9361 = vpop.f32.mrb[0].mxu0
  %v9362 = vadd.f32 0.0, %v9361
  %v9363 = vpop.f32.mrb[0].mxu0
  %v9364 = vadd.f32 0.0, %v9363
  %v9365 = vpop.f32.mrb[0].mxu0
  %v9366 = vadd.f32 0.0, %v9365
  %9367 = vmatprep.mubr.bf16.mxu0 0
  %9368 = vmatmul.mubr.bf16.gmra.mrb[0].mxu0 %v9322
  %v9369 = vpop.f32.mrb[0].mxu0
  %v9370 = vadd.f32 0.0, %v9369
  %v9371 = vpop.f32.mrb[0].mxu0
  %v9372 = vadd.f32 0.0, %v9371
  %v9373 = vpop.f32.mrb[0].mxu0
  %v9374 = vadd.f32 0.0, %v9373
  %v9375 = vpop.f32.mrb[0].mxu0
  %v9376 = vadd.f32 0.0, %v9375
  %9377 = vdwg.mxu0
  %9378 = vmatprep.subr.bf16.mxu0 %v2545
  %9379 = vmatpush1.bf16.msra.mxu0 %v2544
  %9380 = vmatprep.subr.bf16.mxu0 %v2549
  %9381 = vmatpush1.bf16.msra.mxu0 %v2548
  %9382 = vmatprep.subr.bf16.mxu0 %v2553
  %9383 = vmatpush1.bf16.msra.mxu0 %v2552
  %9384 = vmatprep.subr.bf16.mxu0 %v2557
  %9385 = vmatpush1.bf16.msra.mxu0 %v2556
  %9386 = vmatprep.subr.bf16.mxu0 %v2561
  %9387 = vmatpush1.bf16.msra.mxu0 %v2560
  %9388 = vmatprep.subr.bf16.mxu0 %v2565
  %9389 = vmatpush1.bf16.msra.mxu0 %v2564
  %9390 = vmatprep.subr.bf16.mxu0 %v2569
  %9391 = vmatpush1.bf16.msra.mxu0 %v2568
  %9392 = vmatprep.subr.bf16.mxu0 %v2573
  %9393 = vmatpush1.bf16.msra.mxu0 %v2572
  %9394 = vmatprep.subr.bf16.mxu0 0
  %9395 = vmatpush1.bf16.msra.mxu0 0
  %9396 = vmatprep.subr.bf16.mxu0 0
  %9397 = vmatpush1.bf16.msra.mxu0 0
  %9398 = vmatprep.subr.bf16.mxu0 0
  %9399 = vmatpush1.bf16.msra.mxu0 0
  %9400 = vmatprep.subr.bf16.mxu0 0
  %9401 = vmatpush1.bf16.msra.mxu0 0
  %9402 = vmatprep.subr.bf16.mxu0 0
  %9403 = vmatpush1.bf16.msra.mxu0 0
  %9404 = vmatprep.subr.bf16.mxu0 0
  %9405 = vmatpush1.bf16.msra.mxu0 0
  %9406 = vmatprep.subr.bf16.mxu0 0
  %9407 = vmatpush1.bf16.msra.mxu0 0
  %9408 = vmatprep.subr.bf16.mxu0 0
  %9409 = vmatpush1.bf16.msra.mxu0 0
  %9410 = vmatprep.mubr.bf16.mxu0 0
  %9411 = vmatmul.mubr.bf16.gmra.mrb[0].mxu0 %v9321
  %v9412 = vpop.f32.mrb[0].mxu0
  %v9413 = vadd.f32 0.0, %v9412
  %v9414 = vpop.f32.mrb[0].mxu0
  %v9415 = vadd.f32 0.0, %v9414
  %v9416 = vpop.f32.mrb[0].mxu0
  %v9417 = vadd.f32 0.0, %v9416
  %v9418 = vpop.f32.mrb[0].mxu0
  %v9419 = vadd.f32 0.0, %v9418
  %9420 = vmatprep.mubr.bf16.mxu0 0
  %9421 = vmatmul.mubr.bf16.gmra.mrb[0].mxu0 %v9322
  %v9422 = vpop.f32.mrb[0].mxu0
  %v9423 = vadd.f32 0.0, %v9422
  %v9424 = vpop.f32.mrb[0].mxu0
  %v9425 = vadd.f32 0.0, %v9424
  %v9426 = vpop.f32.mrb[0].mxu0
  %v9427 = vadd.f32 0.0, %v9426
  %v9428 = vpop.f32.mrb[0].mxu0
  %v9429 = vadd.f32 0.0, %v9428
  %9430 = vdwg.mxu0
  %v9431 = vpack.c.bf16 %v9364, %v9360
  %v9432 = vpack.c.bf16 %v9366, %v9362
  %v9433 = vpack.c.bf16 %v9417, %v9413
  %v9434 = vpack.c.bf16 %v9419, %v9415
  %v9435 = vpack.c.bf16 %v9374, %v9370
  %v9436 = vpack.c.bf16 %v9376, %v9372
  %v9437 = vpack.c.bf16 %v9427, %v9423
  %v9438 = vpack.c.bf16 %v9429, %v9425
  %s9439 = scalar_lea.vmem %s6, 6144
  %v9440 = vld [vmem:[%s9439] sm:$0xff]
  %v9441 = vld [vmem:[%s9439 + $0x8] sm:$0xff]
  %v9442 = vld [vmem:[%s9439 + $0x10] sm:$0xff]
  %v9443 = vld [vmem:[%s9439 + $0x18] sm:$0xff]
  %v9444 = vld [vmem:[%s9439 + $0x20] sm:$0xff]
  %v9445 = vld [vmem:[%s9439 + $0x28] sm:$0xff]
  %v9446 = vld [vmem:[%s9439 + $0x30] sm:$0xff]
  %v9447 = vld [vmem:[%s9439 + $0x38] sm:$0xff]
  %v9448 = vld [vmem:[%s9439 + $0x40] sm:$0xff]
  %v9449 = vld [vmem:[%s9439 + $0x48] sm:$0xff]
  %v9450 = vld [vmem:[%s9439 + $0x50] sm:$0xff]
  %v9451 = vld [vmem:[%s9439 + $0x58] sm:$0xff]
  %v9452 = vld [vmem:[%s9439 + $0x60] sm:$0xff]
  %v9453 = vld [vmem:[%s9439 + $0x68] sm:$0xff]
  %v9454 = vld [vmem:[%s9439 + $0x70] sm:$0xff]
  %v9455 = vld [vmem:[%s9439 + $0x78] sm:$0xff]
  %v9456 = vld [vmem:[%s9439 + $0x80] sm:$0xff]
  %v9457 = vld [vmem:[%s9439 + $0x88] sm:$0xff]
  %v9458 = vld [vmem:[%s9439 + $0x90] sm:$0xff]
  %v9459 = vld [vmem:[%s9439 + $0x98] sm:$0xff]
  %v9460 = vld [vmem:[%s9439 + $0xa0] sm:$0xff]
  %v9461 = vld [vmem:[%s9439 + $0xa8] sm:$0xff]
  %v9462 = vld [vmem:[%s9439 + $0xb0] sm:$0xff]
  %v9463 = vld [vmem:[%s9439 + $0xb8] sm:$0xff]
  %v9464 = vld [vmem:[%s9439 + $0xc0] sm:$0xff]
  %v9465 = vld [vmem:[%s9439 + $0xc8] sm:$0xff]
  %v9466 = vld [vmem:[%s9439 + $0xd0] sm:$0xff]
  %v9467 = vld [vmem:[%s9439 + $0xd8] sm:$0xff]
  %v9468 = vld [vmem:[%s9439 + $0xe0] sm:$0xff]
  %v9469 = vld [vmem:[%s9439 + $0xe8] sm:$0xff]
  %v9470 = vld [vmem:[%s9439 + $0xf0] sm:$0xff]
  %v9471 = vld [vmem:[%s9439 + $0xf8] sm:$0xff]
  %v9472 = vld [vmem:[%s9439 + $0x100] sm:$0xff]
  %v9473 = vld [vmem:[%s9439 + $0x108] sm:$0xff]
  %v9474 = vld [vmem:[%s9439 + $0x110] sm:$0xff]
  %v9475 = vld [vmem:[%s9439 + $0x118] sm:$0xff]
  %v9476 = vld [vmem:[%s9439 + $0x120] sm:$0xff]
  %v9477 = vld [vmem:[%s9439 + $0x128] sm:$0xff]
  %v9478 = vld [vmem:[%s9439 + $0x130] sm:$0xff]
  %v9479 = vld [vmem:[%s9439 + $0x138] sm:$0xff]
  %v9480 = vld [vmem:[%s9439 + $0x140] sm:$0xff]
  %v9481 = vld [vmem:[%s9439 + $0x148] sm:$0xff]
  %v9482 = vld [vmem:[%s9439 + $0x150] sm:$0xff]
  %v9483 = vld [vmem:[%s9439 + $0x158] sm:$0xff]
  %v9484 = vld [vmem:[%s9439 + $0x160] sm:$0xff]
  %v9485 = vld [vmem:[%s9439 + $0x168] sm:$0xff]
  %v9486 = vld [vmem:[%s9439 + $0x170] sm:$0xff]
  %v9487 = vld [vmem:[%s9439 + $0x178] sm:$0xff]
  %v9488 = vld [vmem:[%s9439 + $0x180] sm:$0xff]
  %v9489 = vld [vmem:[%s9439 + $0x188] sm:$0xff]
  %v9490 = vld [vmem:[%s9439 + $0x190] sm:$0xff]
  %v9491 = vld [vmem:[%s9439 + $0x198] sm:$0xff]
  %v9492 = vld [vmem:[%s9439 + $0x1a0] sm:$0xff]
  %v9493 = vld [vmem:[%s9439 + $0x1a8] sm:$0xff]
  %v9494 = vld [vmem:[%s9439 + $0x1b0] sm:$0xff]
  %v9495 = vld [vmem:[%s9439 + $0x1b8] sm:$0xff]
  %v9496 = vld [vmem:[%s9439 + $0x1c0] sm:$0xff]
  %v9497 = vld [vmem:[%s9439 + $0x1c8] sm:$0xff]
  %v9498 = vld [vmem:[%s9439 + $0x1d0] sm:$0xff]
  %v9499 = vld [vmem:[%s9439 + $0x1d8] sm:$0xff]
  %v9500 = vld [vmem:[%s9439 + $0x1e0] sm:$0xff]
  %v9501 = vld [vmem:[%s9439 + $0x1e8] sm:$0xff]
  %v9502 = vld [vmem:[%s9439 + $0x1f0] sm:$0xff]
  %v9503 = vld [vmem:[%s9439 + $0x1f8] sm:$0xff]
  %v9504 = vld [vmem:[%s9439 + $0x200] sm:$0xff]
  %v9505 = vld [vmem:[%s9439 + $0x208] sm:$0xff]
  %v9506 = vld [vmem:[%s9439 + $0x210] sm:$0xff]
  %v9507 = vld [vmem:[%s9439 + $0x218] sm:$0xff]
  %v9508 = vld [vmem:[%s9439 + $0x220] sm:$0xff]
  %v9509 = vld [vmem:[%s9439 + $0x228] sm:$0xff]
  %v9510 = vld [vmem:[%s9439 + $0x230] sm:$0xff]
  %v9511 = vld [vmem:[%s9439 + $0x238] sm:$0xff]
  %v9512 = vld [vmem:[%s9439 + $0x240] sm:$0xff]
  %v9513 = vld [vmem:[%s9439 + $0x248] sm:$0xff]
  %v9514 = vld [vmem:[%s9439 + $0x250] sm:$0xff]
  %v9515 = vld [vmem:[%s9439 + $0x258] sm:$0xff]
  %v9516 = vld [vmem:[%s9439 + $0x260] sm:$0xff]
  %v9517 = vld [vmem:[%s9439 + $0x268] sm:$0xff]
  %v9518 = vld [vmem:[%s9439 + $0x270] sm:$0xff]
  %v9519 = vld [vmem:[%s9439 + $0x278] sm:$0xff]
  %v9520 = vld [vmem:[%s9439 + $0x280] sm:$0xff]
  %v9521 = vld [vmem:[%s9439 + $0x288] sm:$0xff]
  %v9522 = vld [vmem:[%s9439 + $0x290] sm:$0xff]
  %v9523 = vld [vmem:[%s9439 + $0x298] sm:$0xff]
  %v9524 = vld [vmem:[%s9439 + $0x2a0] sm:$0xff]
  %v9525 = vld [vmem:[%s9439 + $0x2a8] sm:$0xff]
  %v9526 = vld [vmem:[%s9439 + $0x2b0] sm:$0xff]
  %v9527 = vld [vmem:[%s9439 + $0x2b8] sm:$0xff]
  %v9528 = vld [vmem:[%s9439 + $0x2c0] sm:$0xff]
  %v9529 = vld [vmem:[%s9439 + $0x2c8] sm:$0xff]
  %v9530 = vld [vmem:[%s9439 + $0x2d0] sm:$0xff]
  %v9531 = vld [vmem:[%s9439 + $0x2d8] sm:$0xff]
  %v9532 = vld [vmem:[%s9439 + $0x2e0] sm:$0xff]
  %v9533 = vld [vmem:[%s9439 + $0x2e8] sm:$0xff]
  %v9534 = vld [vmem:[%s9439 + $0x2f0] sm:$0xff]
  %v9535 = vld [vmem:[%s9439 + $0x2f8] sm:$0xff]
  %v9536 = vld [vmem:[%s9439 + $0x300] sm:$0xff]
  %v9537 = vld [vmem:[%s9439 + $0x308] sm:$0xff]
  %v9538 = vld [vmem:[%s9439 + $0x310] sm:$0xff]
  %v9539 = vld [vmem:[%s9439 + $0x318] sm:$0xff]
  %v9540 = vld [vmem:[%s9439 + $0x320] sm:$0xff]
  %v9541 = vld [vmem:[%s9439 + $0x328] sm:$0xff]
  %v9542 = vld [vmem:[%s9439 + $0x330] sm:$0xff]
  %v9543 = vld [vmem:[%s9439 + $0x338] sm:$0xff]
  %v9544 = vld [vmem:[%s9439 + $0x340] sm:$0xff]
  %v9545 = vld [vmem:[%s9439 + $0x348] sm:$0xff]
  %v9546 = vld [vmem:[%s9439 + $0x350] sm:$0xff]
  %v9547 = vld [vmem:[%s9439 + $0x358] sm:$0xff]
  %v9548 = vld [vmem:[%s9439 + $0x360] sm:$0xff]
  %v9549 = vld [vmem:[%s9439 + $0x368] sm:$0xff]
  %v9550 = vld [vmem:[%s9439 + $0x370] sm:$0xff]
  %v9551 = vld [vmem:[%s9439 + $0x378] sm:$0xff]
  %v9552 = vld [vmem:[%s9439 + $0x380] sm:$0xff]
  %v9553 = vld [vmem:[%s9439 + $0x388] sm:$0xff]
  %v9554 = vld [vmem:[%s9439 + $0x390] sm:$0xff]
  %v9555 = vld [vmem:[%s9439 + $0x398] sm:$0xff]
  %v9556 = vld [vmem:[%s9439 + $0x3a0] sm:$0xff]
  %v9557 = vld [vmem:[%s9439 + $0x3a8] sm:$0xff]
  %v9558 = vld [vmem:[%s9439 + $0x3b0] sm:$0xff]
  %v9559 = vld [vmem:[%s9439 + $0x3b8] sm:$0xff]
  %v9560 = vld [vmem:[%s9439 + $0x3c0] sm:$0xff]
  %v9561 = vld [vmem:[%s9439 + $0x3c8] sm:$0xff]
  %v9562 = vld [vmem:[%s9439 + $0x3d0] sm:$0xff]
  %v9563 = vld [vmem:[%s9439 + $0x3d8] sm:$0xff]
  %v9564 = vld [vmem:[%s9439 + $0x3e0] sm:$0xff]
  %v9565 = vld [vmem:[%s9439 + $0x3e8] sm:$0xff]
  %v9566 = vld [vmem:[%s9439 + $0x3f0] sm:$0xff]
  %v9567 = vld [vmem:[%s9439 + $0x3f8] sm:$0xff]
  %v9696 = vunpack.c.l.b16 %v9440
  %v9697 = vunpack.c.h.b16 %v9440
  %v9698 = vunpack.c.l.b16 %v9441
  %v9699 = vunpack.c.h.b16 %v9441
  %v9700 = vunpack.c.l.b16 %v9442
  %v9701 = vunpack.c.h.b16 %v9442
  %v9702 = vunpack.c.l.b16 %v9443
  %v9703 = vunpack.c.h.b16 %v9443
  %v9704 = vunpack.c.l.b16 %v9444
  %v9705 = vunpack.c.h.b16 %v9444
  %v9706 = vunpack.c.l.b16 %v9445
  %v9707 = vunpack.c.h.b16 %v9445
  %v9708 = vunpack.c.l.b16 %v9446
  %v9709 = vunpack.c.h.b16 %v9446
  %v9710 = vunpack.c.l.b16 %v9447
  %v9711 = vunpack.c.h.b16 %v9447
  %v9712 = vunpack.c.l.b16 %v9448
  %v9713 = vunpack.c.h.b16 %v9448
  %v9714 = vunpack.c.l.b16 %v9449
  %v9715 = vunpack.c.h.b16 %v9449
  %v9716 = vunpack.c.l.b16 %v9450
  %v9717 = vunpack.c.h.b16 %v9450
  %v9718 = vunpack.c.l.b16 %v9451
  %v9719 = vunpack.c.h.b16 %v9451
  %v9720 = vunpack.c.l.b16 %v9452
  %v9721 = vunpack.c.h.b16 %v9452
  %v9722 = vunpack.c.l.b16 %v9453
  %v9723 = vunpack.c.h.b16 %v9453
  %v9724 = vunpack.c.l.b16 %v9454
  %v9725 = vunpack.c.h.b16 %v9454
  %v9726 = vunpack.c.l.b16 %v9455
  %v9727 = vunpack.c.h.b16 %v9455
  %v9728 = vunpack.c.l.b16 %v9456
  %v9729 = vunpack.c.h.b16 %v9456
  %v9730 = vunpack.c.l.b16 %v9457
  %v9731 = vunpack.c.h.b16 %v9457
  %v9732 = vunpack.c.l.b16 %v9458
  %v9733 = vunpack.c.h.b16 %v9458
  %v9734 = vunpack.c.l.b16 %v9459
  %v9735 = vunpack.c.h.b16 %v9459
  %v9736 = vunpack.c.l.b16 %v9460
  %v9737 = vunpack.c.h.b16 %v9460
  %v9738 = vunpack.c.l.b16 %v9461
  %v9739 = vunpack.c.h.b16 %v9461
  %v9740 = vunpack.c.l.b16 %v9462
  %v9741 = vunpack.c.h.b16 %v9462
  %v9742 = vunpack.c.l.b16 %v9463
  %v9743 = vunpack.c.h.b16 %v9463
  %v9744 = vunpack.c.l.b16 %v9464
  %v9745 = vunpack.c.h.b16 %v9464
  %v9746 = vunpack.c.l.b16 %v9465
  %v9747 = vunpack.c.h.b16 %v9465
  %v9748 = vunpack.c.l.b16 %v9466
  %v9749 = vunpack.c.h.b16 %v9466
  %v9750 = vunpack.c.l.b16 %v9467
  %v9751 = vunpack.c.h.b16 %v9467
  %v9752 = vunpack.c.l.b16 %v9468
  %v9753 = vunpack.c.h.b16 %v9468
  %v9754 = vunpack.c.l.b16 %v9469
  %v9755 = vunpack.c.h.b16 %v9469
  %v9756 = vunpack.c.l.b16 %v9470
  %v9757 = vunpack.c.h.b16 %v9470
  %v9758 = vunpack.c.l.b16 %v9471
  %v9759 = vunpack.c.h.b16 %v9471
  %v9760 = vunpack.c.l.b16 %v9472
  %v9761 = vunpack.c.h.b16 %v9472
  %v9762 = vunpack.c.l.b16 %v9473
  %v9763 = vunpack.c.h.b16 %v9473
  %v9764 = vunpack.c.l.b16 %v9474
  %v9765 = vunpack.c.h.b16 %v9474
  %v9766 = vunpack.c.l.b16 %v9475
  %v9767 = vunpack.c.h.b16 %v9475
  %v9768 = vunpack.c.l.b16 %v9476
  %v9769 = vunpack.c.h.b16 %v9476
  %v9770 = vunpack.c.l.b16 %v9477
  %v9771 = vunpack.c.h.b16 %v9477
  %v9772 = vunpack.c.l.b16 %v9478
  %v9773 = vunpack.c.h.b16 %v9478
  %v9774 = vunpack.c.l.b16 %v9479
  %v9775 = vunpack.c.h.b16 %v9479
  %v9776 = vunpack.c.l.b16 %v9480
  %v9777 = vunpack.c.h.b16 %v9480
  %v9778 = vunpack.c.l.b16 %v9481
  %v9779 = vunpack.c.h.b16 %v9481
  %v9780 = vunpack.c.l.b16 %v9482
  %v9781 = vunpack.c.h.b16 %v9482
  %v9782 = vunpack.c.l.b16 %v9483
  %v9783 = vunpack.c.h.b16 %v9483
  %v9784 = vunpack.c.l.b16 %v9484
  %v9785 = vunpack.c.h.b16 %v9484
  %v9786 = vunpack.c.l.b16 %v9485
  %v9787 = vunpack.c.h.b16 %v9485
  %v9788 = vunpack.c.l.b16 %v9486
  %v9789 = vunpack.c.h.b16 %v9486
  %v9790 = vunpack.c.l.b16 %v9487
  %v9791 = vunpack.c.h.b16 %v9487
  %v9792 = vunpack.c.l.b16 %v9488
  %v9793 = vunpack.c.h.b16 %v9488
  %v9794 = vunpack.c.l.b16 %v9489
  %v9795 = vunpack.c.h.b16 %v9489
  %v9796 = vunpack.c.l.b16 %v9490
  %v9797 = vunpack.c.h.b16 %v9490
  %v9798 = vunpack.c.l.b16 %v9491
  %v9799 = vunpack.c.h.b16 %v9491
  %v9800 = vunpack.c.l.b16 %v9492
  %v9801 = vunpack.c.h.b16 %v9492
  %v9802 = vunpack.c.l.b16 %v9493
  %v9803 = vunpack.c.h.b16 %v9493
  %v9804 = vunpack.c.l.b16 %v9494
  %v9805 = vunpack.c.h.b16 %v9494
  %v9806 = vunpack.c.l.b16 %v9495
  %v9807 = vunpack.c.h.b16 %v9495
  %v9808 = vunpack.c.l.b16 %v9496
  %v9809 = vunpack.c.h.b16 %v9496
  %v9810 = vunpack.c.l.b16 %v9497
  %v9811 = vunpack.c.h.b16 %v9497
  %v9812 = vunpack.c.l.b16 %v9498
  %v9813 = vunpack.c.h.b16 %v9498
  %v9814 = vunpack.c.l.b16 %v9499
  %v9815 = vunpack.c.h.b16 %v9499
  %v9816 = vunpack.c.l.b16 %v9500
  %v9817 = vunpack.c.h.b16 %v9500
  %v9818 = vunpack.c.l.b16 %v9501
  %v9819 = vunpack.c.h.b16 %v9501
  %v9820 = vunpack.c.l.b16 %v9502
  %v9821 = vunpack.c.h.b16 %v9502
  %v9822 = vunpack.c.l.b16 %v9503
  %v9823 = vunpack.c.h.b16 %v9503
  %v9824 = vunpack.c.l.b16 %v9504
  %v9825 = vunpack.c.h.b16 %v9504
  %v9826 = vunpack.c.l.b16 %v9505
  %v9827 = vunpack.c.h.b16 %v9505
  %v9828 = vunpack.c.l.b16 %v9506
  %v9829 = vunpack.c.h.b16 %v9506
  %v9830 = vunpack.c.l.b16 %v9507
  %v9831 = vunpack.c.h.b16 %v9507
  %v9832 = vunpack.c.l.b16 %v9508
  %v9833 = vunpack.c.h.b16 %v9508
  %v9834 = vunpack.c.l.b16 %v9509
  %v9835 = vunpack.c.h.b16 %v9509
  %v9836 = vunpack.c.l.b16 %v9510
  %v9837 = vunpack.c.h.b16 %v9510
  %v9838 = vunpack.c.l.b16 %v9511
  %v9839 = vunpack.c.h.b16 %v9511
  %v9840 = vunpack.c.l.b16 %v9512
  %v9841 = vunpack.c.h.b16 %v9512
  %v9842 = vunpack.c.l.b16 %v9513
  %v9843 = vunpack.c.h.b16 %v9513
  %v9844 = vunpack.c.l.b16 %v9514
  %v9845 = vunpack.c.h.b16 %v9514
  %v9846 = vunpack.c.l.b16 %v9515
  %v9847 = vunpack.c.h.b16 %v9515
  %v9848 = vunpack.c.l.b16 %v9516
  %v9849 = vunpack.c.h.b16 %v9516
  %v9850 = vunpack.c.l.b16 %v9517
  %v9851 = vunpack.c.h.b16 %v9517
  %v9852 = vunpack.c.l.b16 %v9518
  %v9853 = vunpack.c.h.b16 %v9518
  %v9854 = vunpack.c.l.b16 %v9519
  %v9855 = vunpack.c.h.b16 %v9519
  %v9856 = vunpack.c.l.b16 %v9520
  %v9857 = vunpack.c.h.b16 %v9520
  %v9858 = vunpack.c.l.b16 %v9521
  %v9859 = vunpack.c.h.b16 %v9521
  %v9860 = vunpack.c.l.b16 %v9522
  %v9861 = vunpack.c.h.b16 %v9522
  %v9862 = vunpack.c.l.b16 %v9523
  %v9863 = vunpack.c.h.b16 %v9523
  %v9864 = vunpack.c.l.b16 %v9524
  %v9865 = vunpack.c.h.b16 %v9524
  %v9866 = vunpack.c.l.b16 %v9525
  %v9867 = vunpack.c.h.b16 %v9525
  %v9868 = vunpack.c.l.b16 %v9526
  %v9869 = vunpack.c.h.b16 %v9526
  %v9870 = vunpack.c.l.b16 %v9527
  %v9871 = vunpack.c.h.b16 %v9527
  %v9872 = vunpack.c.l.b16 %v9528
  %v9873 = vunpack.c.h.b16 %v9528
  %v9874 = vunpack.c.l.b16 %v9529
  %v9875 = vunpack.c.h.b16 %v9529
  %v9876 = vunpack.c.l.b16 %v9530
  %v9877 = vunpack.c.h.b16 %v9530
  %v9878 = vunpack.c.l.b16 %v9531
  %v9879 = vunpack.c.h.b16 %v9531
  %v9880 = vunpack.c.l.b16 %v9532
  %v9881 = vunpack.c.h.b16 %v9532
  %v9882 = vunpack.c.l.b16 %v9533
  %v9883 = vunpack.c.h.b16 %v9533
  %v9884 = vunpack.c.l.b16 %v9534
  %v9885 = vunpack.c.h.b16 %v9534
  %v9886 = vunpack.c.l.b16 %v9535
  %v9887 = vunpack.c.h.b16 %v9535
  %v9888 = vunpack.c.l.b16 %v9536
  %v9889 = vunpack.c.h.b16 %v9536
  %v9890 = vunpack.c.l.b16 %v9537
  %v9891 = vunpack.c.h.b16 %v9537
  %v9892 = vunpack.c.l.b16 %v9538
  %v9893 = vunpack.c.h.b16 %v9538
  %v9894 = vunpack.c.l.b16 %v9539
  %v9895 = vunpack.c.h.b16 %v9539
  %v9896 = vunpack.c.l.b16 %v9540
  %v9897 = vunpack.c.h.b16 %v9540
  %v9898 = vunpack.c.l.b16 %v9541
  %v9899 = vunpack.c.h.b16 %v9541
  %v9900 = vunpack.c.l.b16 %v9542
  %v9901 = vunpack.c.h.b16 %v9542
  %v9902 = vunpack.c.l.b16 %v9543
  %v9903 = vunpack.c.h.b16 %v9543
  %v9904 = vunpack.c.l.b16 %v9544
  %v9905 = vunpack.c.h.b16 %v9544
  %v9906 = vunpack.c.l.b16 %v9545
  %v9907 = vunpack.c.h.b16 %v9545
  %v9908 = vunpack.c.l.b16 %v9546
  %v9909 = vunpack.c.h.b16 %v9546
  %v9910 = vunpack.c.l.b16 %v9547
  %v9911 = vunpack.c.h.b16 %v9547
  %v9912 = vunpack.c.l.b16 %v9548
  %v9913 = vunpack.c.h.b16 %v9548
  %v9914 = vunpack.c.l.b16 %v9549
  %v9915 = vunpack.c.h.b16 %v9549
  %v9916 = vunpack.c.l.b16 %v9550
  %v9917 = vunpack.c.h.b16 %v9550
  %v9918 = vunpack.c.l.b16 %v9551
  %v9919 = vunpack.c.h.b16 %v9551
  %v9920 = vunpack.c.l.b16 %v9552
  %v9921 = vunpack.c.h.b16 %v9552
  %v9922 = vunpack.c.l.b16 %v9553
  %v9923 = vunpack.c.h.b16 %v9553
  %v9924 = vunpack.c.l.b16 %v9554
  %v9925 = vunpack.c.h.b16 %v9554
  %v9926 = vunpack.c.l.b16 %v9555
  %v9927 = vunpack.c.h.b16 %v9555
  %v9928 = vunpack.c.l.b16 %v9556
  %v9929 = vunpack.c.h.b16 %v9556
  %v9930 = vunpack.c.l.b16 %v9557
  %v9931 = vunpack.c.h.b16 %v9557
  %v9932 = vunpack.c.l.b16 %v9558
  %v9933 = vunpack.c.h.b16 %v9558
  %v9934 = vunpack.c.l.b16 %v9559
  %v9935 = vunpack.c.h.b16 %v9559
  %v9936 = vunpack.c.l.b16 %v9560
  %v9937 = vunpack.c.h.b16 %v9560
  %v9938 = vunpack.c.l.b16 %v9561
  %v9939 = vunpack.c.h.b16 %v9561
  %v9940 = vunpack.c.l.b16 %v9562
  %v9941 = vunpack.c.h.b16 %v9562
  %v9942 = vunpack.c.l.b16 %v9563
  %v9943 = vunpack.c.h.b16 %v9563
  %v9944 = vunpack.c.l.b16 %v9564
  %v9945 = vunpack.c.h.b16 %v9564
  %v9946 = vunpack.c.l.b16 %v9565
  %v9947 = vunpack.c.h.b16 %v9565
  %v9948 = vunpack.c.l.b16 %v9566
  %v9949 = vunpack.c.h.b16 %v9566
  %v9950 = vunpack.c.l.b16 %v9567
  %v9951 = vunpack.c.h.b16 %v9567
  %v9952 = vpack.c.b16 %v9700, %v9696
  %v9953 = vpack.c.b16 %v9701, %v9697
  %v9954 = vpack.c.b16 %v9702, %v9698
  %v9955 = vpack.c.b16 %v9703, %v9699
  %v9956 = vpack.c.b16 %v9708, %v9704
  %v9957 = vpack.c.b16 %v9709, %v9705
  %v9958 = vpack.c.b16 %v9710, %v9706
  %v9959 = vpack.c.b16 %v9711, %v9707
  %v9960 = vpack.c.b16 %v9716, %v9712
  %v9961 = vpack.c.b16 %v9717, %v9713
  %v9962 = vpack.c.b16 %v9718, %v9714
  %v9963 = vpack.c.b16 %v9719, %v9715
  %v9964 = vpack.c.b16 %v9724, %v9720
  %v9965 = vpack.c.b16 %v9725, %v9721
  %v9966 = vpack.c.b16 %v9726, %v9722
  %v9967 = vpack.c.b16 %v9727, %v9723
  %v9968 = vpack.c.b16 %v9732, %v9728
  %v9969 = vpack.c.b16 %v9733, %v9729
  %v9970 = vpack.c.b16 %v9734, %v9730
  %v9971 = vpack.c.b16 %v9735, %v9731
  %v9972 = vpack.c.b16 %v9740, %v9736
  %v9973 = vpack.c.b16 %v9741, %v9737
  %v9974 = vpack.c.b16 %v9742, %v9738
  %v9975 = vpack.c.b16 %v9743, %v9739
  %v9976 = vpack.c.b16 %v9748, %v9744
  %v9977 = vpack.c.b16 %v9749, %v9745
  %v9978 = vpack.c.b16 %v9750, %v9746
  %v9979 = vpack.c.b16 %v9751, %v9747
  %v9980 = vpack.c.b16 %v9756, %v9752
  %v9981 = vpack.c.b16 %v9757, %v9753
  %v9982 = vpack.c.b16 %v9758, %v9754
  %v9983 = vpack.c.b16 %v9759, %v9755
  %v9984 = vpack.c.b16 %v9764, %v9760
  %v9985 = vpack.c.b16 %v9765, %v9761
  %v9986 = vpack.c.b16 %v9766, %v9762
  %v9987 = vpack.c.b16 %v9767, %v9763
  %v9988 = vpack.c.b16 %v9772, %v9768
  %v9989 = vpack.c.b16 %v9773, %v9769
  %v9990 = vpack.c.b16 %v9774, %v9770
  %v9991 = vpack.c.b16 %v9775, %v9771
  %v9992 = vpack.c.b16 %v9780, %v9776
  %v9993 = vpack.c.b16 %v9781, %v9777
  %v9994 = vpack.c.b16 %v9782, %v9778
  %v9995 = vpack.c.b16 %v9783, %v9779
  %v9996 = vpack.c.b16 %v9788, %v9784
  %v9997 = vpack.c.b16 %v9789, %v9785
  %v9998 = vpack.c.b16 %v9790, %v9786
  %v9999 = vpack.c.b16 %v9791, %v9787
  %v10000 = vpack.c.b16 %v9796, %v9792
  %v10001 = vpack.c.b16 %v9797, %v9793
  %v10002 = vpack.c.b16 %v9798, %v9794
  %v10003 = vpack.c.b16 %v9799, %v9795
  %v10004 = vpack.c.b16 %v9804, %v9800
  %v10005 = vpack.c.b16 %v9805, %v9801
  %v10006 = vpack.c.b16 %v9806, %v9802
  %v10007 = vpack.c.b16 %v9807, %v9803
  %v10008 = vpack.c.b16 %v9812, %v9808
  %v10009 = vpack.c.b16 %v9813, %v9809
  %v10010 = vpack.c.b16 %v9814, %v9810
  %v10011 = vpack.c.b16 %v9815, %v9811
  %v10012 = vpack.c.b16 %v9820, %v9816
  %v10013 = vpack.c.b16 %v9821, %v9817
  %v10014 = vpack.c.b16 %v9822, %v9818
  %v10015 = vpack.c.b16 %v9823, %v9819
  %v10016 = vpack.c.b16 %v9828, %v9824
  %v10017 = vpack.c.b16 %v9829, %v9825
  %v10018 = vpack.c.b16 %v9830, %v9826
  %v10019 = vpack.c.b16 %v9831, %v9827
  %v10020 = vpack.c.b16 %v9836, %v9832
  %v10021 = vpack.c.b16 %v9837, %v9833
  %v10022 = vpack.c.b16 %v9838, %v9834
  %v10023 = vpack.c.b16 %v9839, %v9835
  %v10024 = vpack.c.b16 %v9844, %v9840
  %v10025 = vpack.c.b16 %v9845, %v9841
  %v10026 = vpack.c.b16 %v9846, %v9842
  %v10027 = vpack.c.b16 %v9847, %v9843
  %v10028 = vpack.c.b16 %v9852, %v9848
  %v10029 = vpack.c.b16 %v9853, %v9849
  %v10030 = vpack.c.b16 %v9854, %v9850
  %v10031 = vpack.c.b16 %v9855, %v9851
  %v10032 = vpack.c.b16 %v9860, %v9856
  %v10033 = vpack.c.b16 %v9861, %v9857
  %v10034 = vpack.c.b16 %v9862, %v9858
  %v10035 = vpack.c.b16 %v9863, %v9859
  %v10036 = vpack.c.b16 %v9868, %v9864
  %v10037 = vpack.c.b16 %v9869, %v9865
  %v10038 = vpack.c.b16 %v9870, %v9866
  %v10039 = vpack.c.b16 %v9871, %v9867
  %v10040 = vpack.c.b16 %v9876, %v9872
  %v10041 = vpack.c.b16 %v9877, %v9873
  %v10042 = vpack.c.b16 %v9878, %v9874
  %v10043 = vpack.c.b16 %v9879, %v9875
  %v10044 = vpack.c.b16 %v9884, %v9880
  %v10045 = vpack.c.b16 %v9885, %v9881
  %v10046 = vpack.c.b16 %v9886, %v9882
  %v10047 = vpack.c.b16 %v9887, %v9883
  %v10048 = vpack.c.b16 %v9892, %v9888
  %v10049 = vpack.c.b16 %v9893, %v9889
  %v10050 = vpack.c.b16 %v9894, %v9890
  %v10051 = vpack.c.b16 %v9895, %v9891
  %v10052 = vpack.c.b16 %v9900, %v9896
  %v10053 = vpack.c.b16 %v9901, %v9897
  %v10054 = vpack.c.b16 %v9902, %v9898
  %v10055 = vpack.c.b16 %v9903, %v9899
  %v10056 = vpack.c.b16 %v9908, %v9904
  %v10057 = vpack.c.b16 %v9909, %v9905
  %v10058 = vpack.c.b16 %v9910, %v9906
  %v10059 = vpack.c.b16 %v9911, %v9907
  %v10060 = vpack.c.b16 %v9916, %v9912
  %v10061 = vpack.c.b16 %v9917, %v9913
  %v10062 = vpack.c.b16 %v9918, %v9914
  %v10063 = vpack.c.b16 %v9919, %v9915
  %v10064 = vpack.c.b16 %v9924, %v9920
  %v10065 = vpack.c.b16 %v9925, %v9921
  %v10066 = vpack.c.b16 %v9926, %v9922
  %v10067 = vpack.c.b16 %v9927, %v9923
  %v10068 = vpack.c.b16 %v9932, %v9928
  %v10069 = vpack.c.b16 %v9933, %v9929
  %v10070 = vpack.c.b16 %v9934, %v9930
  %v10071 = vpack.c.b16 %v9935, %v9931
  %v10072 = vpack.c.b16 %v9940, %v9936
  %v10073 = vpack.c.b16 %v9941, %v9937
  %v10074 = vpack.c.b16 %v9942, %v9938
  %v10075 = vpack.c.b16 %v9943, %v9939
  %v10076 = vpack.c.b16 %v9948, %v9944
  %v10077 = vpack.c.b16 %v9949, %v9945
  %v10078 = vpack.c.b16 %v9950, %v9946
  %v10079 = vpack.c.b16 %v9951, %v9947
  %10208 = vmatprep.subr.bf16.mxu0 %v9953
  %10209 = vmatpush1.bf16.msra.mxu0 %v9952
  %10210 = vmatprep.subr.bf16.mxu0 %v9957
  %10211 = vmatpush1.bf16.msra.mxu0 %v9956
  %10212 = vmatprep.subr.bf16.mxu0 %v9961
  %10213 = vmatpush1.bf16.msra.mxu0 %v9960
  %10214 = vmatprep.subr.bf16.mxu0 %v9965
  %10215 = vmatpush1.bf16.msra.mxu0 %v9964
  %10216 = vmatprep.subr.bf16.mxu0 %v9969
  %10217 = vmatpush1.bf16.msra.mxu0 %v9968
  %10218 = vmatprep.subr.bf16.mxu0 %v9973
  %10219 = vmatpush1.bf16.msra.mxu0 %v9972
  %10220 = vmatprep.subr.bf16.mxu0 %v9977
  %10221 = vmatpush1.bf16.msra.mxu0 %v9976
  %10222 = vmatprep.subr.bf16.mxu0 %v9981
  %10223 = vmatpush1.bf16.msra.mxu0 %v9980
  %10224 = vmatprep.subr.bf16.mxu0 %v9985
  %10225 = vmatpush1.bf16.msra.mxu0 %v9984
  %10226 = vmatprep.subr.bf16.mxu0 %v9989
  %10227 = vmatpush1.bf16.msra.mxu0 %v9988
  %10228 = vmatprep.subr.bf16.mxu0 %v9993
  %10229 = vmatpush1.bf16.msra.mxu0 %v9992
  %10230 = vmatprep.subr.bf16.mxu0 %v9997
  %10231 = vmatpush1.bf16.msra.mxu0 %v9996
  %10232 = vmatprep.subr.bf16.mxu0 %v10001
  %10233 = vmatpush1.bf16.msra.mxu0 %v10000
  %10234 = vmatprep.subr.bf16.mxu0 %v10005
  %10235 = vmatpush1.bf16.msra.mxu0 %v10004
  %10236 = vmatprep.subr.bf16.mxu0 %v10009
  %10237 = vmatpush1.bf16.msra.mxu0 %v10008
  %10238 = vmatprep.subr.bf16.mxu0 %v10013
  %10239 = vmatpush1.bf16.msra.mxu0 %v10012
  %10240 = vmatprep.mubr.bf16.mxu0 %v9432
  %10241 = vmatmul.mubr.bf16.gmra.mrb[0].mxu0 %v9431
  %v10242 = vpop.f32.mrb[0].mxu0
  %v10243 = vadd.f32 0.0, %v10242
  %v10244 = vpop.f32.mrb[0].mxu0
  %v10245 = vadd.f32 0.0, %v10244
  %v10246 = vpop.f32.mrb[0].mxu0
  %v10247 = vadd.f32 0.0, %v10246
  %v10248 = vpop.f32.mrb[0].mxu0
  %v10249 = vadd.f32 0.0, %v10248
  %10250 = vmatprep.mubr.bf16.mxu0 %v9436
  %10251 = vmatmul.mubr.bf16.gmra.mrb[0].mxu0 %v9435
  %v10252 = vpop.f32.mrb[0].mxu0
  %v10253 = vadd.f32 0.0, %v10252
  %v10254 = vpop.f32.mrb[0].mxu0
  %v10255 = vadd.f32 0.0, %v10254
  %v10256 = vpop.f32.mrb[0].mxu0
  %v10257 = vadd.f32 0.0, %v10256
  %v10258 = vpop.f32.mrb[0].mxu0
  %v10259 = vadd.f32 0.0, %v10258
  %10260 = vdwg.mxu0
  %10261 = vmatprep.subr.bf16.mxu0 %v10017
  %10262 = vmatpush1.bf16.msra.mxu0 %v10016
  %10263 = vmatprep.subr.bf16.mxu0 %v10021
  %10264 = vmatpush1.bf16.msra.mxu0 %v10020
  %10265 = vmatprep.subr.bf16.mxu0 %v10025
  %10266 = vmatpush1.bf16.msra.mxu0 %v10024
  %10267 = vmatprep.subr.bf16.mxu0 %v10029
  %10268 = vmatpush1.bf16.msra.mxu0 %v10028
  %10269 = vmatprep.subr.bf16.mxu0 %v10033
  %10270 = vmatpush1.bf16.msra.mxu0 %v10032
  %10271 = vmatprep.subr.bf16.mxu0 %v10037
  %10272 = vmatpush1.bf16.msra.mxu0 %v10036
  %10273 = vmatprep.subr.bf16.mxu0 %v10041
  %10274 = vmatpush1.bf16.msra.mxu0 %v10040
  %10275 = vmatprep.subr.bf16.mxu0 %v10045
  %10276 = vmatpush1.bf16.msra.mxu0 %v10044
  %10277 = vmatprep.subr.bf16.mxu0 %v10049
  %10278 = vmatpush1.bf16.msra.mxu0 %v10048
  %10279 = vmatprep.subr.bf16.mxu0 %v10053
  %10280 = vmatpush1.bf16.msra.mxu0 %v10052
  %10281 = vmatprep.subr.bf16.mxu0 %v10057
  %10282 = vmatpush1.bf16.msra.mxu0 %v10056
  %10283 = vmatprep.subr.bf16.mxu0 %v10061
  %10284 = vmatpush1.bf16.msra.mxu0 %v10060
  %10285 = vmatprep.subr.bf16.mxu0 %v10065
  %10286 = vmatpush1.bf16.msra.mxu0 %v10064
  %10287 = vmatprep.subr.bf16.mxu0 %v10069
  %10288 = vmatpush1.bf16.msra.mxu0 %v10068
  %10289 = vmatprep.subr.bf16.mxu0 %v10073
  %10290 = vmatpush1.bf16.msra.mxu0 %v10072
  %10291 = vmatprep.subr.bf16.mxu0 %v10077
  %10292 = vmatpush1.bf16.msra.mxu0 %v10076
  %10293 = vmatprep.mubr.bf16.mxu0 %v9434
  %10294 = vmatmul.mubr.bf16.gmra.mrb[0].mxu0 %v9433
  %v10295 = vpop.f32.mrb[0].mxu0
  %v10296 = vadd.f32 %v10243, %v10295
  %v10297 = vpop.f32.mrb[0].mxu0
  %v10298 = vadd.f32 %v10245, %v10297
  %v10299 = vpop.f32.mrb[0].mxu0
  %v10300 = vadd.f32 %v10247, %v10299
  %v10301 = vpop.f32.mrb[0].mxu0
  %v10302 = vadd.f32 %v10249, %v10301
  %10303 = vmatprep.mubr.bf16.mxu0 %v9438
  %10304 = vmatmul.mubr.bf16.gmra.mrb[0].mxu0 %v9437
  %v10305 = vpop.f32.mrb[0].mxu0
  %v10306 = vadd.f32 %v10253, %v10305
  %v10307 = vpop.f32.mrb[0].mxu0
  %v10308 = vadd.f32 %v10255, %v10307
  %v10309 = vpop.f32.mrb[0].mxu0
  %v10310 = vadd.f32 %v10257, %v10309
  %v10311 = vpop.f32.mrb[0].mxu0
  %v10312 = vadd.f32 %v10259, %v10311
  %10313 = vdwg.mxu0
  %10314 = vmatprep.subr.bf16.mxu0 %v9955
  %10315 = vmatpush1.bf16.msra.mxu0 %v9954
  %10316 = vmatprep.subr.bf16.mxu0 %v9959
  %10317 = vmatpush1.bf16.msra.mxu0 %v9958
  %10318 = vmatprep.subr.bf16.mxu0 %v9963
  %10319 = vmatpush1.bf16.msra.mxu0 %v9962
  %10320 = vmatprep.subr.bf16.mxu0 %v9967
  %10321 = vmatpush1.bf16.msra.mxu0 %v9966
  %10322 = vmatprep.subr.bf16.mxu0 %v9971
  %10323 = vmatpush1.bf16.msra.mxu0 %v9970
  %10324 = vmatprep.subr.bf16.mxu0 %v9975
  %10325 = vmatpush1.bf16.msra.mxu0 %v9974
  %10326 = vmatprep.subr.bf16.mxu0 %v9979
  %10327 = vmatpush1.bf16.msra.mxu0 %v9978
  %10328 = vmatprep.subr.bf16.mxu0 %v9983
  %10329 = vmatpush1.bf16.msra.mxu0 %v9982
  %10330 = vmatprep.subr.bf16.mxu0 %v9987
  %10331 = vmatpush1.bf16.msra.mxu0 %v9986
  %10332 = vmatprep.subr.bf16.mxu0 %v9991
  %10333 = vmatpush1.bf16.msra.mxu0 %v9990
  %10334 = vmatprep.subr.bf16.mxu0 %v9995
  %10335 = vmatpush1.bf16.msra.mxu0 %v9994
  %10336 = vmatprep.subr.bf16.mxu0 %v9999
  %10337 = vmatpush1.bf16.msra.mxu0 %v9998
  %10338 = vmatprep.subr.bf16.mxu0 %v10003
  %10339 = vmatpush1.bf16.msra.mxu0 %v10002
  %10340 = vmatprep.subr.bf16.mxu0 %v10007
  %10341 = vmatpush1.bf16.msra.mxu0 %v10006
  %10342 = vmatprep.subr.bf16.mxu0 %v10011
  %10343 = vmatpush1.bf16.msra.mxu0 %v10010
  %10344 = vmatprep.subr.bf16.mxu0 %v10015
  %10345 = vmatpush1.bf16.msra.mxu0 %v10014
  %10346 = vmatprep.mubr.bf16.mxu0 %v9432
  %10347 = vmatmul.mubr.bf16.gmra.mrb[0].mxu0 %v9431
  %v10348 = vpop.f32.mrb[0].mxu0
  %v10349 = vadd.f32 0.0, %v10348
  %v10350 = vpop.f32.mrb[0].mxu0
  %v10351 = vadd.f32 0.0, %v10350
  %v10352 = vpop.f32.mrb[0].mxu0
  %v10353 = vadd.f32 0.0, %v10352
  %v10354 = vpop.f32.mrb[0].mxu0
  %v10355 = vadd.f32 0.0, %v10354
  %10356 = vmatprep.mubr.bf16.mxu0 %v9436
  %10357 = vmatmul.mubr.bf16.gmra.mrb[0].mxu0 %v9435
  %v10358 = vpop.f32.mrb[0].mxu0
  %v10359 = vadd.f32 0.0, %v10358
  %v10360 = vpop.f32.mrb[0].mxu0
  %v10361 = vadd.f32 0.0, %v10360
  %v10362 = vpop.f32.mrb[0].mxu0
  %v10363 = vadd.f32 0.0, %v10362
  %v10364 = vpop.f32.mrb[0].mxu0
  %v10365 = vadd.f32 0.0, %v10364
  %10366 = vdwg.mxu0
  %10367 = vmatprep.subr.bf16.mxu0 %v10019
  %10368 = vmatpush1.bf16.msra.mxu0 %v10018
  %10369 = vmatprep.subr.bf16.mxu0 %v10023
  %10370 = vmatpush1.bf16.msra.mxu0 %v10022
  %10371 = vmatprep.subr.bf16.mxu0 %v10027
  %10372 = vmatpush1.bf16.msra.mxu0 %v10026
  %10373 = vmatprep.subr.bf16.mxu0 %v10031
  %10374 = vmatpush1.bf16.msra.mxu0 %v10030
  %10375 = vmatprep.subr.bf16.mxu0 %v10035
  %10376 = vmatpush1.bf16.msra.mxu0 %v10034
  %10377 = vmatprep.subr.bf16.mxu0 %v10039
  %10378 = vmatpush1.bf16.msra.mxu0 %v10038
  %10379 = vmatprep.subr.bf16.mxu0 %v10043
  %10380 = vmatpush1.bf16.msra.mxu0 %v10042
  %10381 = vmatprep.subr.bf16.mxu0 %v10047
  %10382 = vmatpush1.bf16.msra.mxu0 %v10046
  %10383 = vmatprep.subr.bf16.mxu0 %v10051
  %10384 = vmatpush1.bf16.msra.mxu0 %v10050
  %10385 = vmatprep.subr.bf16.mxu0 %v10055
  %10386 = vmatpush1.bf16.msra.mxu0 %v10054
  %10387 = vmatprep.subr.bf16.mxu0 %v10059
  %10388 = vmatpush1.bf16.msra.mxu0 %v10058
  %10389 = vmatprep.subr.bf16.mxu0 %v10063
  %10390 = vmatpush1.bf16.msra.mxu0 %v10062
  %10391 = vmatprep.subr.bf16.mxu0 %v10067
  %10392 = vmatpush1.bf16.msra.mxu0 %v10066
  %10393 = vmatprep.subr.bf16.mxu0 %v10071
  %10394 = vmatpush1.bf16.msra.mxu0 %v10070
  %10395 = vmatprep.subr.bf16.mxu0 %v10075
  %10396 = vmatpush1.bf16.msra.mxu0 %v10074
  %10397 = vmatprep.subr.bf16.mxu0 %v10079
  %10398 = vmatpush1.bf16.msra.mxu0 %v10078
  %10399 = vmatprep.mubr.bf16.mxu0 %v9434
  %10400 = vmatmul.mubr.bf16.gmra.mrb[0].mxu0 %v9433
  %v10401 = vpop.f32.mrb[0].mxu0
  %v10402 = vadd.f32 %v10349, %v10401
  %v10403 = vpop.f32.mrb[0].mxu0
  %v10404 = vadd.f32 %v10351, %v10403
  %v10405 = vpop.f32.mrb[0].mxu0
  %v10406 = vadd.f32 %v10353, %v10405
  %v10407 = vpop.f32.mrb[0].mxu0
  %v10408 = vadd.f32 %v10355, %v10407
  %10409 = vmatprep.mubr.bf16.mxu0 %v9438
  %10410 = vmatmul.mubr.bf16.gmra.mrb[0].mxu0 %v9437
  %v10411 = vpop.f32.mrb[0].mxu0
  %v10412 = vadd.f32 %v10359, %v10411
  %v10413 = vpop.f32.mrb[0].mxu0
  %v10414 = vadd.f32 %v10361, %v10413
  %v10415 = vpop.f32.mrb[0].mxu0
  %v10416 = vadd.f32 %v10363, %v10415
  %v10417 = vpop.f32.mrb[0].mxu0
  %v10418 = vadd.f32 %v10365, %v10417
  %10419 = vdwg.mxu0
  %v10420 = vadd.f32 %v9292, %v10296
  %v10421 = vadd.f32 %v9293, %v10298
  %v10422 = vadd.f32 %v9294, %v10402
  %v10423 = vadd.f32 %v9295, %v10404
  %v10424 = vadd.f32 %v9296, %v10300
  %v10425 = vadd.f32 %v9297, %v10302
  %v10426 = vadd.f32 %v9298, %v10406
  %v10427 = vadd.f32 %v9299, %v10408
  %v10428 = vadd.f32 %v9300, %v10306
  %v10429 = vadd.f32 %v9301, %v10308
  %v10430 = vadd.f32 %v9302, %v10412
  %v10431 = vadd.f32 %v9303, %v10414
  %v10432 = vadd.f32 %v9304, %v10310
  %v10433 = vadd.f32 %v9305, %v10312
  %v10434 = vadd.f32 %v9306, %v10416
  %v10435 = vadd.f32 %v9307, %v10418
  %s10436 = scalar_lea.vmem %s5, 112
  %v10437 = vld [vmem:[%s10436] sm:$0xf]
  %v10438 = vld [vmem:[%s10436 + $0x4] sm:$0xf]
  %v10439 = vld [vmem:[%s10436 + $0x8] sm:$0xf]
  %v10440 = vld [vmem:[%s10436 + $0xc] sm:$0xf]
  %v10445 = vunpack.c.l.b16 %v10437
  %v10446 = vunpack.c.l.b16 %v10438
  %v10447 = vunpack.c.l.b16 %v10439
  %v10448 = vunpack.c.l.b16 %v10440
  %v10449 = vpack.c.b16 %v10446, %v10445
  %v10450 = vpack.c.b16 %v10448, %v10447
  %10453 = vmatprep.subr.bf16.mxu0 %v2543
  %10454 = vmatpush1.bf16.msra.mxu0 %v2542
  %10455 = vmatprep.subr.bf16.mxu0 %v2547
  %10456 = vmatpush1.bf16.msra.mxu0 %v2546
  %10457 = vmatprep.subr.bf16.mxu0 %v2551
  %10458 = vmatpush1.bf16.msra.mxu0 %v2550
  %10459 = vmatprep.subr.bf16.mxu0 %v2555
  %10460 = vmatpush1.bf16.msra.mxu0 %v2554
  %10461 = vmatprep.subr.bf16.mxu0 %v2559
  %10462 = vmatpush1.bf16.msra.mxu0 %v2558
  %10463 = vmatprep.subr.bf16.mxu0 %v2563
  %10464 = vmatpush1.bf16.msra.mxu0 %v2562
  %10465 = vmatprep.subr.bf16.mxu0 %v2567
  %10466 = vmatpush1.bf16.msra.mxu0 %v2566
  %10467 = vmatprep.subr.bf16.mxu0 %v2571
  %10468 = vmatpush1.bf16.msra.mxu0 %v2570
  %10469 = vmatprep.subr.bf16.mxu0 0
  %10470 = vmatpush1.bf16.msra.mxu0 0
  %10471 = vmatprep.subr.bf16.mxu0 0
  %10472 = vmatpush1.bf16.msra.mxu0 0
  %10473 = vmatprep.subr.bf16.mxu0 0
  %10474 = vmatpush1.bf16.msra.mxu0 0
  %10475 = vmatprep.subr.bf16.mxu0 0
  %10476 = vmatpush1.bf16.msra.mxu0 0
  %10477 = vmatprep.subr.bf16.mxu0 0
  %10478 = vmatpush1.bf16.msra.mxu0 0
  %10479 = vmatprep.subr.bf16.mxu0 0
  %10480 = vmatpush1.bf16.msra.mxu0 0
  %10481 = vmatprep.subr.bf16.mxu0 0
  %10482 = vmatpush1.bf16.msra.mxu0 0
  %10483 = vmatprep.subr.bf16.mxu0 0
  %10484 = vmatpush1.bf16.msra.mxu0 0
  %10485 = vmatprep.mubr.bf16.mxu0 0
  %10486 = vmatmul.mubr.bf16.gmra.mrb[0].mxu0 %v10449
  %v10487 = vpop.f32.mrb[0].mxu0
  %v10488 = vadd.f32 0.0, %v10487
  %v10489 = vpop.f32.mrb[0].mxu0
  %v10490 = vadd.f32 0.0, %v10489
  %v10491 = vpop.f32.mrb[0].mxu0
  %v10492 = vadd.f32 0.0, %v10491
  %v10493 = vpop.f32.mrb[0].mxu0
  %v10494 = vadd.f32 0.0, %v10493
  %10495 = vmatprep.mubr.bf16.mxu0 0
  %10496 = vmatmul.mubr.bf16.gmra.mrb[0].mxu0 %v10450
  %v10497 = vpop.f32.mrb[0].mxu0
  %v10498 = vadd.f32 0.0, %v10497
  %v10499 = vpop.f32.mrb[0].mxu0
  %v10500 = vadd.f32 0.0, %v10499
  %v10501 = vpop.f32.mrb[0].mxu0
  %v10502 = vadd.f32 0.0, %v10501
  %v10503 = vpop.f32.mrb[0].mxu0
  %v10504 = vadd.f32 0.0, %v10503
  %10505 = vdwg.mxu0
  %10506 = vmatprep.subr.bf16.mxu0 %v2545
  %10507 = vmatpush1.bf16.msra.mxu0 %v2544
  %10508 = vmatprep.subr.bf16.mxu0 %v2549
  %10509 = vmatpush1.bf16.msra.mxu0 %v2548
  %10510 = vmatprep.subr.bf16.mxu0 %v2553
  %10511 = vmatpush1.bf16.msra.mxu0 %v2552
  %10512 = vmatprep.subr.bf16.mxu0 %v2557
  %10513 = vmatpush1.bf16.msra.mxu0 %v2556
  %10514 = vmatprep.subr.bf16.mxu0 %v2561
  %10515 = vmatpush1.bf16.msra.mxu0 %v2560
  %10516 = vmatprep.subr.bf16.mxu0 %v2565
  %10517 = vmatpush1.bf16.msra.mxu0 %v2564
  %10518 = vmatprep.subr.bf16.mxu0 %v2569
  %10519 = vmatpush1.bf16.msra.mxu0 %v2568
  %10520 = vmatprep.subr.bf16.mxu0 %v2573
  %10521 = vmatpush1.bf16.msra.mxu0 %v2572
  %10522 = vmatprep.subr.bf16.mxu0 0
  %10523 = vmatpush1.bf16.msra.mxu0 0
  %10524 = vmatprep.subr.bf16.mxu0 0
  %10525 = vmatpush1.bf16.msra.mxu0 0
  %10526 = vmatprep.subr.bf16.mxu0 0
  %10527 = vmatpush1.bf16.msra.mxu0 0
  %10528 = vmatprep.subr.bf16.mxu0 0
  %10529 = vmatpush1.bf16.msra.mxu0 0
  %10530 = vmatprep.subr.bf16.mxu0 0
  %10531 = vmatpush1.bf16.msra.mxu0 0
  %10532 = vmatprep.subr.bf16.mxu0 0
  %10533 = vmatpush1.bf16.msra.mxu0 0
  %10534 = vmatprep.subr.bf16.mxu0 0
  %10535 = vmatpush1.bf16.msra.mxu0 0
  %10536 = vmatprep.subr.bf16.mxu0 0
  %10537 = vmatpush1.bf16.msra.mxu0 0
  %10538 = vmatprep.mubr.bf16.mxu0 0
  %10539 = vmatmul.mubr.bf16.gmra.mrb[0].mxu0 %v10449
  %v10540 = vpop.f32.mrb[0].mxu0
  %v10541 = vadd.f32 0.0, %v10540
  %v10542 = vpop.f32.mrb[0].mxu0
  %v10543 = vadd.f32 0.0, %v10542
  %v10544 = vpop.f32.mrb[0].mxu0
  %v10545 = vadd.f32 0.0, %v10544
  %v10546 = vpop.f32.mrb[0].mxu0
  %v10547 = vadd.f32 0.0, %v10546
  %10548 = vmatprep.mubr.bf16.mxu0 0
  %10549 = vmatmul.mubr.bf16.gmra.mrb[0].mxu0 %v10450
  %v10550 = vpop.f32.mrb[0].mxu0
  %v10551 = vadd.f32 0.0, %v10550
  %v10552 = vpop.f32.mrb[0].mxu0
  %v10553 = vadd.f32 0.0, %v10552
  %v10554 = vpop.f32.mrb[0].mxu0
  %v10555 = vadd.f32 0.0, %v10554
  %v10556 = vpop.f32.mrb[0].mxu0
  %v10557 = vadd.f32 0.0, %v10556
  %10558 = vdwg.mxu0
  %v10559 = vpack.c.bf16 %v10492, %v10488
  %v10560 = vpack.c.bf16 %v10494, %v10490
  %v10561 = vpack.c.bf16 %v10545, %v10541
  %v10562 = vpack.c.bf16 %v10547, %v10543
  %v10563 = vpack.c.bf16 %v10502, %v10498
  %v10564 = vpack.c.bf16 %v10504, %v10500
  %v10565 = vpack.c.bf16 %v10555, %v10551
  %v10566 = vpack.c.bf16 %v10557, %v10553
  %s10567 = scalar_lea.vmem %s6, 7168
  %v10568 = vld [vmem:[%s10567] sm:$0xff]
  %v10569 = vld [vmem:[%s10567 + $0x8] sm:$0xff]
  %v10570 = vld [vmem:[%s10567 + $0x10] sm:$0xff]
  %v10571 = vld [vmem:[%s10567 + $0x18] sm:$0xff]
  %v10572 = vld [vmem:[%s10567 + $0x20] sm:$0xff]
  %v10573 = vld [vmem:[%s10567 + $0x28] sm:$0xff]
  %v10574 = vld [vmem:[%s10567 + $0x30] sm:$0xff]
  %v10575 = vld [vmem:[%s10567 + $0x38] sm:$0xff]
  %v10576 = vld [vmem:[%s10567 + $0x40] sm:$0xff]
  %v10577 = vld [vmem:[%s10567 + $0x48] sm:$0xff]
  %v10578 = vld [vmem:[%s10567 + $0x50] sm:$0xff]
  %v10579 = vld [vmem:[%s10567 + $0x58] sm:$0xff]
  %v10580 = vld [vmem:[%s10567 + $0x60] sm:$0xff]
  %v10581 = vld [vmem:[%s10567 + $0x68] sm:$0xff]
  %v10582 = vld [vmem:[%s10567 + $0x70] sm:$0xff]
  %v10583 = vld [vmem:[%s10567 + $0x78] sm:$0xff]
  %v10584 = vld [vmem:[%s10567 + $0x80] sm:$0xff]
  %v10585 = vld [vmem:[%s10567 + $0x88] sm:$0xff]
  %v10586 = vld [vmem:[%s10567 + $0x90] sm:$0xff]
  %v10587 = vld [vmem:[%s10567 + $0x98] sm:$0xff]
  %v10588 = vld [vmem:[%s10567 + $0xa0] sm:$0xff]
  %v10589 = vld [vmem:[%s10567 + $0xa8] sm:$0xff]
  %v10590 = vld [vmem:[%s10567 + $0xb0] sm:$0xff]
  %v10591 = vld [vmem:[%s10567 + $0xb8] sm:$0xff]
  %v10592 = vld [vmem:[%s10567 + $0xc0] sm:$0xff]
  %v10593 = vld [vmem:[%s10567 + $0xc8] sm:$0xff]
  %v10594 = vld [vmem:[%s10567 + $0xd0] sm:$0xff]
  %v10595 = vld [vmem:[%s10567 + $0xd8] sm:$0xff]
  %v10596 = vld [vmem:[%s10567 + $0xe0] sm:$0xff]
  %v10597 = vld [vmem:[%s10567 + $0xe8] sm:$0xff]
  %v10598 = vld [vmem:[%s10567 + $0xf0] sm:$0xff]
  %v10599 = vld [vmem:[%s10567 + $0xf8] sm:$0xff]
  %v10600 = vld [vmem:[%s10567 + $0x100] sm:$0xff]
  %v10601 = vld [vmem:[%s10567 + $0x108] sm:$0xff]
  %v10602 = vld [vmem:[%s10567 + $0x110] sm:$0xff]
  %v10603 = vld [vmem:[%s10567 + $0x118] sm:$0xff]
  %v10604 = vld [vmem:[%s10567 + $0x120] sm:$0xff]
  %v10605 = vld [vmem:[%s10567 + $0x128] sm:$0xff]
  %v10606 = vld [vmem:[%s10567 + $0x130] sm:$0xff]
  %v10607 = vld [vmem:[%s10567 + $0x138] sm:$0xff]
  %v10608 = vld [vmem:[%s10567 + $0x140] sm:$0xff]
  %v10609 = vld [vmem:[%s10567 + $0x148] sm:$0xff]
  %v10610 = vld [vmem:[%s10567 + $0x150] sm:$0xff]
  %v10611 = vld [vmem:[%s10567 + $0x158] sm:$0xff]
  %v10612 = vld [vmem:[%s10567 + $0x160] sm:$0xff]
  %v10613 = vld [vmem:[%s10567 + $0x168] sm:$0xff]
  %v10614 = vld [vmem:[%s10567 + $0x170] sm:$0xff]
  %v10615 = vld [vmem:[%s10567 + $0x178] sm:$0xff]
  %v10616 = vld [vmem:[%s10567 + $0x180] sm:$0xff]
  %v10617 = vld [vmem:[%s10567 + $0x188] sm:$0xff]
  %v10618 = vld [vmem:[%s10567 + $0x190] sm:$0xff]
  %v10619 = vld [vmem:[%s10567 + $0x198] sm:$0xff]
  %v10620 = vld [vmem:[%s10567 + $0x1a0] sm:$0xff]
  %v10621 = vld [vmem:[%s10567 + $0x1a8] sm:$0xff]
  %v10622 = vld [vmem:[%s10567 + $0x1b0] sm:$0xff]
  %v10623 = vld [vmem:[%s10567 + $0x1b8] sm:$0xff]
  %v10624 = vld [vmem:[%s10567 + $0x1c0] sm:$0xff]
  %v10625 = vld [vmem:[%s10567 + $0x1c8] sm:$0xff]
  %v10626 = vld [vmem:[%s10567 + $0x1d0] sm:$0xff]
  %v10627 = vld [vmem:[%s10567 + $0x1d8] sm:$0xff]
  %v10628 = vld [vmem:[%s10567 + $0x1e0] sm:$0xff]
  %v10629 = vld [vmem:[%s10567 + $0x1e8] sm:$0xff]
  %v10630 = vld [vmem:[%s10567 + $0x1f0] sm:$0xff]
  %v10631 = vld [vmem:[%s10567 + $0x1f8] sm:$0xff]
  %v10632 = vld [vmem:[%s10567 + $0x200] sm:$0xff]
  %v10633 = vld [vmem:[%s10567 + $0x208] sm:$0xff]
  %v10634 = vld [vmem:[%s10567 + $0x210] sm:$0xff]
  %v10635 = vld [vmem:[%s10567 + $0x218] sm:$0xff]
  %v10636 = vld [vmem:[%s10567 + $0x220] sm:$0xff]
  %v10637 = vld [vmem:[%s10567 + $0x228] sm:$0xff]
  %v10638 = vld [vmem:[%s10567 + $0x230] sm:$0xff]
  %v10639 = vld [vmem:[%s10567 + $0x238] sm:$0xff]
  %v10640 = vld [vmem:[%s10567 + $0x240] sm:$0xff]
  %v10641 = vld [vmem:[%s10567 + $0x248] sm:$0xff]
  %v10642 = vld [vmem:[%s10567 + $0x250] sm:$0xff]
  %v10643 = vld [vmem:[%s10567 + $0x258] sm:$0xff]
  %v10644 = vld [vmem:[%s10567 + $0x260] sm:$0xff]
  %v10645 = vld [vmem:[%s10567 + $0x268] sm:$0xff]
  %v10646 = vld [vmem:[%s10567 + $0x270] sm:$0xff]
  %v10647 = vld [vmem:[%s10567 + $0x278] sm:$0xff]
  %v10648 = vld [vmem:[%s10567 + $0x280] sm:$0xff]
  %v10649 = vld [vmem:[%s10567 + $0x288] sm:$0xff]
  %v10650 = vld [vmem:[%s10567 + $0x290] sm:$0xff]
  %v10651 = vld [vmem:[%s10567 + $0x298] sm:$0xff]
  %v10652 = vld [vmem:[%s10567 + $0x2a0] sm:$0xff]
  %v10653 = vld [vmem:[%s10567 + $0x2a8] sm:$0xff]
  %v10654 = vld [vmem:[%s10567 + $0x2b0] sm:$0xff]
  %v10655 = vld [vmem:[%s10567 + $0x2b8] sm:$0xff]
  %v10656 = vld [vmem:[%s10567 + $0x2c0] sm:$0xff]
  %v10657 = vld [vmem:[%s10567 + $0x2c8] sm:$0xff]
  %v10658 = vld [vmem:[%s10567 + $0x2d0] sm:$0xff]
  %v10659 = vld [vmem:[%s10567 + $0x2d8] sm:$0xff]
  %v10660 = vld [vmem:[%s10567 + $0x2e0] sm:$0xff]
  %v10661 = vld [vmem:[%s10567 + $0x2e8] sm:$0xff]
  %v10662 = vld [vmem:[%s10567 + $0x2f0] sm:$0xff]
  %v10663 = vld [vmem:[%s10567 + $0x2f8] sm:$0xff]
  %v10664 = vld [vmem:[%s10567 + $0x300] sm:$0xff]
  %v10665 = vld [vmem:[%s10567 + $0x308] sm:$0xff]
  %v10666 = vld [vmem:[%s10567 + $0x310] sm:$0xff]
  %v10667 = vld [vmem:[%s10567 + $0x318] sm:$0xff]
  %v10668 = vld [vmem:[%s10567 + $0x320] sm:$0xff]
  %v10669 = vld [vmem:[%s10567 + $0x328] sm:$0xff]
  %v10670 = vld [vmem:[%s10567 + $0x330] sm:$0xff]
  %v10671 = vld [vmem:[%s10567 + $0x338] sm:$0xff]
  %v10672 = vld [vmem:[%s10567 + $0x340] sm:$0xff]
  %v10673 = vld [vmem:[%s10567 + $0x348] sm:$0xff]
  %v10674 = vld [vmem:[%s10567 + $0x350] sm:$0xff]
  %v10675 = vld [vmem:[%s10567 + $0x358] sm:$0xff]
  %v10676 = vld [vmem:[%s10567 + $0x360] sm:$0xff]
  %v10677 = vld [vmem:[%s10567 + $0x368] sm:$0xff]
  %v10678 = vld [vmem:[%s10567 + $0x370] sm:$0xff]
  %v10679 = vld [vmem:[%s10567 + $0x378] sm:$0xff]
  %v10680 = vld [vmem:[%s10567 + $0x380] sm:$0xff]
  %v10681 = vld [vmem:[%s10567 + $0x388] sm:$0xff]
  %v10682 = vld [vmem:[%s10567 + $0x390] sm:$0xff]
  %v10683 = vld [vmem:[%s10567 + $0x398] sm:$0xff]
  %v10684 = vld [vmem:[%s10567 + $0x3a0] sm:$0xff]
  %v10685 = vld [vmem:[%s10567 + $0x3a8] sm:$0xff]
  %v10686 = vld [vmem:[%s10567 + $0x3b0] sm:$0xff]
  %v10687 = vld [vmem:[%s10567 + $0x3b8] sm:$0xff]
  %v10688 = vld [vmem:[%s10567 + $0x3c0] sm:$0xff]
  %v10689 = vld [vmem:[%s10567 + $0x3c8] sm:$0xff]
  %v10690 = vld [vmem:[%s10567 + $0x3d0] sm:$0xff]
  %v10691 = vld [vmem:[%s10567 + $0x3d8] sm:$0xff]
  %v10692 = vld [vmem:[%s10567 + $0x3e0] sm:$0xff]
  %v10693 = vld [vmem:[%s10567 + $0x3e8] sm:$0xff]
  %v10694 = vld [vmem:[%s10567 + $0x3f0] sm:$0xff]
  %v10695 = vld [vmem:[%s10567 + $0x3f8] sm:$0xff]
  %v10824 = vunpack.c.l.b16 %v10568
  %v10825 = vunpack.c.h.b16 %v10568
  %v10826 = vunpack.c.l.b16 %v10569
  %v10827 = vunpack.c.h.b16 %v10569
  %v10828 = vunpack.c.l.b16 %v10570
  %v10829 = vunpack.c.h.b16 %v10570
  %v10830 = vunpack.c.l.b16 %v10571
  %v10831 = vunpack.c.h.b16 %v10571
  %v10832 = vunpack.c.l.b16 %v10572
  %v10833 = vunpack.c.h.b16 %v10572
  %v10834 = vunpack.c.l.b16 %v10573
  %v10835 = vunpack.c.h.b16 %v10573
  %v10836 = vunpack.c.l.b16 %v10574
  %v10837 = vunpack.c.h.b16 %v10574
  %v10838 = vunpack.c.l.b16 %v10575
  %v10839 = vunpack.c.h.b16 %v10575
  %v10840 = vunpack.c.l.b16 %v10576
  %v10841 = vunpack.c.h.b16 %v10576
  %v10842 = vunpack.c.l.b16 %v10577
  %v10843 = vunpack.c.h.b16 %v10577
  %v10844 = vunpack.c.l.b16 %v10578
  %v10845 = vunpack.c.h.b16 %v10578
  %v10846 = vunpack.c.l.b16 %v10579
  %v10847 = vunpack.c.h.b16 %v10579
  %v10848 = vunpack.c.l.b16 %v10580
  %v10849 = vunpack.c.h.b16 %v10580
  %v10850 = vunpack.c.l.b16 %v10581
  %v10851 = vunpack.c.h.b16 %v10581
  %v10852 = vunpack.c.l.b16 %v10582
  %v10853 = vunpack.c.h.b16 %v10582
  %v10854 = vunpack.c.l.b16 %v10583
  %v10855 = vunpack.c.h.b16 %v10583
  %v10856 = vunpack.c.l.b16 %v10584
  %v10857 = vunpack.c.h.b16 %v10584
  %v10858 = vunpack.c.l.b16 %v10585
  %v10859 = vunpack.c.h.b16 %v10585
  %v10860 = vunpack.c.l.b16 %v10586
  %v10861 = vunpack.c.h.b16 %v10586
  %v10862 = vunpack.c.l.b16 %v10587
  %v10863 = vunpack.c.h.b16 %v10587
  %v10864 = vunpack.c.l.b16 %v10588
  %v10865 = vunpack.c.h.b16 %v10588
  %v10866 = vunpack.c.l.b16 %v10589
  %v10867 = vunpack.c.h.b16 %v10589
  %v10868 = vunpack.c.l.b16 %v10590
  %v10869 = vunpack.c.h.b16 %v10590
  %v10870 = vunpack.c.l.b16 %v10591
  %v10871 = vunpack.c.h.b16 %v10591
  %v10872 = vunpack.c.l.b16 %v10592
  %v10873 = vunpack.c.h.b16 %v10592
  %v10874 = vunpack.c.l.b16 %v10593
  %v10875 = vunpack.c.h.b16 %v10593
  %v10876 = vunpack.c.l.b16 %v10594
  %v10877 = vunpack.c.h.b16 %v10594
  %v10878 = vunpack.c.l.b16 %v10595
  %v10879 = vunpack.c.h.b16 %v10595
  %v10880 = vunpack.c.l.b16 %v10596
  %v10881 = vunpack.c.h.b16 %v10596
  %v10882 = vunpack.c.l.b16 %v10597
  %v10883 = vunpack.c.h.b16 %v10597
  %v10884 = vunpack.c.l.b16 %v10598
  %v10885 = vunpack.c.h.b16 %v10598
  %v10886 = vunpack.c.l.b16 %v10599
  %v10887 = vunpack.c.h.b16 %v10599
  %v10888 = vunpack.c.l.b16 %v10600
  %v10889 = vunpack.c.h.b16 %v10600
  %v10890 = vunpack.c.l.b16 %v10601
  %v10891 = vunpack.c.h.b16 %v10601
  %v10892 = vunpack.c.l.b16 %v10602
  %v10893 = vunpack.c.h.b16 %v10602
  %v10894 = vunpack.c.l.b16 %v10603
  %v10895 = vunpack.c.h.b16 %v10603
  %v10896 = vunpack.c.l.b16 %v10604
  %v10897 = vunpack.c.h.b16 %v10604
  %v10898 = vunpack.c.l.b16 %v10605
  %v10899 = vunpack.c.h.b16 %v10605
  %v10900 = vunpack.c.l.b16 %v10606
  %v10901 = vunpack.c.h.b16 %v10606
  %v10902 = vunpack.c.l.b16 %v10607
  %v10903 = vunpack.c.h.b16 %v10607
  %v10904 = vunpack.c.l.b16 %v10608
  %v10905 = vunpack.c.h.b16 %v10608
  %v10906 = vunpack.c.l.b16 %v10609
  %v10907 = vunpack.c.h.b16 %v10609
  %v10908 = vunpack.c.l.b16 %v10610
  %v10909 = vunpack.c.h.b16 %v10610
  %v10910 = vunpack.c.l.b16 %v10611
  %v10911 = vunpack.c.h.b16 %v10611
  %v10912 = vunpack.c.l.b16 %v10612
  %v10913 = vunpack.c.h.b16 %v10612
  %v10914 = vunpack.c.l.b16 %v10613
  %v10915 = vunpack.c.h.b16 %v10613
  %v10916 = vunpack.c.l.b16 %v10614
  %v10917 = vunpack.c.h.b16 %v10614
  %v10918 = vunpack.c.l.b16 %v10615
  %v10919 = vunpack.c.h.b16 %v10615
  %v10920 = vunpack.c.l.b16 %v10616
  %v10921 = vunpack.c.h.b16 %v10616
  %v10922 = vunpack.c.l.b16 %v10617
  %v10923 = vunpack.c.h.b16 %v10617
  %v10924 = vunpack.c.l.b16 %v10618
  %v10925 = vunpack.c.h.b16 %v10618
  %v10926 = vunpack.c.l.b16 %v10619
  %v10927 = vunpack.c.h.b16 %v10619
  %v10928 = vunpack.c.l.b16 %v10620
  %v10929 = vunpack.c.h.b16 %v10620
  %v10930 = vunpack.c.l.b16 %v10621
  %v10931 = vunpack.c.h.b16 %v10621
  %v10932 = vunpack.c.l.b16 %v10622
  %v10933 = vunpack.c.h.b16 %v10622
  %v10934 = vunpack.c.l.b16 %v10623
  %v10935 = vunpack.c.h.b16 %v10623
  %v10936 = vunpack.c.l.b16 %v10624
  %v10937 = vunpack.c.h.b16 %v10624
  %v10938 = vunpack.c.l.b16 %v10625
  %v10939 = vunpack.c.h.b16 %v10625
  %v10940 = vunpack.c.l.b16 %v10626
  %v10941 = vunpack.c.h.b16 %v10626
  %v10942 = vunpack.c.l.b16 %v10627
  %v10943 = vunpack.c.h.b16 %v10627
  %v10944 = vunpack.c.l.b16 %v10628
  %v10945 = vunpack.c.h.b16 %v10628
  %v10946 = vunpack.c.l.b16 %v10629
  %v10947 = vunpack.c.h.b16 %v10629
  %v10948 = vunpack.c.l.b16 %v10630
  %v10949 = vunpack.c.h.b16 %v10630
  %v10950 = vunpack.c.l.b16 %v10631
  %v10951 = vunpack.c.h.b16 %v10631
  %v10952 = vunpack.c.l.b16 %v10632
  %v10953 = vunpack.c.h.b16 %v10632
  %v10954 = vunpack.c.l.b16 %v10633
  %v10955 = vunpack.c.h.b16 %v10633
  %v10956 = vunpack.c.l.b16 %v10634
  %v10957 = vunpack.c.h.b16 %v10634
  %v10958 = vunpack.c.l.b16 %v10635
  %v10959 = vunpack.c.h.b16 %v10635
  %v10960 = vunpack.c.l.b16 %v10636
  %v10961 = vunpack.c.h.b16 %v10636
  %v10962 = vunpack.c.l.b16 %v10637
  %v10963 = vunpack.c.h.b16 %v10637
  %v10964 = vunpack.c.l.b16 %v10638
  %v10965 = vunpack.c.h.b16 %v10638
  %v10966 = vunpack.c.l.b16 %v10639
  %v10967 = vunpack.c.h.b16 %v10639
  %v10968 = vunpack.c.l.b16 %v10640
  %v10969 = vunpack.c.h.b16 %v10640
  %v10970 = vunpack.c.l.b16 %v10641
  %v10971 = vunpack.c.h.b16 %v10641
  %v10972 = vunpack.c.l.b16 %v10642
  %v10973 = vunpack.c.h.b16 %v10642
  %v10974 = vunpack.c.l.b16 %v10643
  %v10975 = vunpack.c.h.b16 %v10643
  %v10976 = vunpack.c.l.b16 %v10644
  %v10977 = vunpack.c.h.b16 %v10644
  %v10978 = vunpack.c.l.b16 %v10645
  %v10979 = vunpack.c.h.b16 %v10645
  %v10980 = vunpack.c.l.b16 %v10646
  %v10981 = vunpack.c.h.b16 %v10646
  %v10982 = vunpack.c.l.b16 %v10647
  %v10983 = vunpack.c.h.b16 %v10647
  %v10984 = vunpack.c.l.b16 %v10648
  %v10985 = vunpack.c.h.b16 %v10648
  %v10986 = vunpack.c.l.b16 %v10649
  %v10987 = vunpack.c.h.b16 %v10649
  %v10988 = vunpack.c.l.b16 %v10650
  %v10989 = vunpack.c.h.b16 %v10650
  %v10990 = vunpack.c.l.b16 %v10651
  %v10991 = vunpack.c.h.b16 %v10651
  %v10992 = vunpack.c.l.b16 %v10652
  %v10993 = vunpack.c.h.b16 %v10652
  %v10994 = vunpack.c.l.b16 %v10653
  %v10995 = vunpack.c.h.b16 %v10653
  %v10996 = vunpack.c.l.b16 %v10654
  %v10997 = vunpack.c.h.b16 %v10654
  %v10998 = vunpack.c.l.b16 %v10655
  %v10999 = vunpack.c.h.b16 %v10655
  %v11000 = vunpack.c.l.b16 %v10656
  %v11001 = vunpack.c.h.b16 %v10656
  %v11002 = vunpack.c.l.b16 %v10657
  %v11003 = vunpack.c.h.b16 %v10657
  %v11004 = vunpack.c.l.b16 %v10658
  %v11005 = vunpack.c.h.b16 %v10658
  %v11006 = vunpack.c.l.b16 %v10659
  %v11007 = vunpack.c.h.b16 %v10659
  %v11008 = vunpack.c.l.b16 %v10660
  %v11009 = vunpack.c.h.b16 %v10660
  %v11010 = vunpack.c.l.b16 %v10661
  %v11011 = vunpack.c.h.b16 %v10661
  %v11012 = vunpack.c.l.b16 %v10662
  %v11013 = vunpack.c.h.b16 %v10662
  %v11014 = vunpack.c.l.b16 %v10663
  %v11015 = vunpack.c.h.b16 %v10663
  %v11016 = vunpack.c.l.b16 %v10664
  %v11017 = vunpack.c.h.b16 %v10664
  %v11018 = vunpack.c.l.b16 %v10665
  %v11019 = vunpack.c.h.b16 %v10665
  %v11020 = vunpack.c.l.b16 %v10666
  %v11021 = vunpack.c.h.b16 %v10666
  %v11022 = vunpack.c.l.b16 %v10667
  %v11023 = vunpack.c.h.b16 %v10667
  %v11024 = vunpack.c.l.b16 %v10668
  %v11025 = vunpack.c.h.b16 %v10668
  %v11026 = vunpack.c.l.b16 %v10669
  %v11027 = vunpack.c.h.b16 %v10669
  %v11028 = vunpack.c.l.b16 %v10670
  %v11029 = vunpack.c.h.b16 %v10670
  %v11030 = vunpack.c.l.b16 %v10671
  %v11031 = vunpack.c.h.b16 %v10671
  %v11032 = vunpack.c.l.b16 %v10672
  %v11033 = vunpack.c.h.b16 %v10672
  %v11034 = vunpack.c.l.b16 %v10673
  %v11035 = vunpack.c.h.b16 %v10673
  %v11036 = vunpack.c.l.b16 %v10674
  %v11037 = vunpack.c.h.b16 %v10674
  %v11038 = vunpack.c.l.b16 %v10675
  %v11039 = vunpack.c.h.b16 %v10675
  %v11040 = vunpack.c.l.b16 %v10676
  %v11041 = vunpack.c.h.b16 %v10676
  %v11042 = vunpack.c.l.b16 %v10677
  %v11043 = vunpack.c.h.b16 %v10677
  %v11044 = vunpack.c.l.b16 %v10678
  %v11045 = vunpack.c.h.b16 %v10678
  %v11046 = vunpack.c.l.b16 %v10679
  %v11047 = vunpack.c.h.b16 %v10679
  %v11048 = vunpack.c.l.b16 %v10680
  %v11049 = vunpack.c.h.b16 %v10680
  %v11050 = vunpack.c.l.b16 %v10681
  %v11051 = vunpack.c.h.b16 %v10681
  %v11052 = vunpack.c.l.b16 %v10682
  %v11053 = vunpack.c.h.b16 %v10682
  %v11054 = vunpack.c.l.b16 %v10683
  %v11055 = vunpack.c.h.b16 %v10683
  %v11056 = vunpack.c.l.b16 %v10684
  %v11057 = vunpack.c.h.b16 %v10684
  %v11058 = vunpack.c.l.b16 %v10685
  %v11059 = vunpack.c.h.b16 %v10685
  %v11060 = vunpack.c.l.b16 %v10686
  %v11061 = vunpack.c.h.b16 %v10686
  %v11062 = vunpack.c.l.b16 %v10687
  %v11063 = vunpack.c.h.b16 %v10687
  %v11064 = vunpack.c.l.b16 %v10688
  %v11065 = vunpack.c.h.b16 %v10688
  %v11066 = vunpack.c.l.b16 %v10689
  %v11067 = vunpack.c.h.b16 %v10689
  %v11068 = vunpack.c.l.b16 %v10690
  %v11069 = vunpack.c.h.b16 %v10690
  %v11070 = vunpack.c.l.b16 %v10691
  %v11071 = vunpack.c.h.b16 %v10691
  %v11072 = vunpack.c.l.b16 %v10692
  %v11073 = vunpack.c.h.b16 %v10692
  %v11074 = vunpack.c.l.b16 %v10693
  %v11075 = vunpack.c.h.b16 %v10693
  %v11076 = vunpack.c.l.b16 %v10694
  %v11077 = vunpack.c.h.b16 %v10694
  %v11078 = vunpack.c.l.b16 %v10695
  %v11079 = vunpack.c.h.b16 %v10695
  %v11080 = vpack.c.b16 %v10828, %v10824
  %v11081 = vpack.c.b16 %v10829, %v10825
  %v11082 = vpack.c.b16 %v10830, %v10826
  %v11083 = vpack.c.b16 %v10831, %v10827
  %v11084 = vpack.c.b16 %v10836, %v10832
  %v11085 = vpack.c.b16 %v10837, %v10833
  %v11086 = vpack.c.b16 %v10838, %v10834
  %v11087 = vpack.c.b16 %v10839, %v10835
  %v11088 = vpack.c.b16 %v10844, %v10840
  %v11089 = vpack.c.b16 %v10845, %v10841
  %v11090 = vpack.c.b16 %v10846, %v10842
  %v11091 = vpack.c.b16 %v10847, %v10843
  %v11092 = vpack.c.b16 %v10852, %v10848
  %v11093 = vpack.c.b16 %v10853, %v10849
  %v11094 = vpack.c.b16 %v10854, %v10850
  %v11095 = vpack.c.b16 %v10855, %v10851
  %v11096 = vpack.c.b16 %v10860, %v10856
  %v11097 = vpack.c.b16 %v10861, %v10857
  %v11098 = vpack.c.b16 %v10862, %v10858
  %v11099 = vpack.c.b16 %v10863, %v10859
  %v11100 = vpack.c.b16 %v10868, %v10864
  %v11101 = vpack.c.b16 %v10869, %v10865
  %v11102 = vpack.c.b16 %v10870, %v10866
  %v11103 = vpack.c.b16 %v10871, %v10867
  %v11104 = vpack.c.b16 %v10876, %v10872
  %v11105 = vpack.c.b16 %v10877, %v10873
  %v11106 = vpack.c.b16 %v10878, %v10874
  %v11107 = vpack.c.b16 %v10879, %v10875
  %v11108 = vpack.c.b16 %v10884, %v10880
  %v11109 = vpack.c.b16 %v10885, %v10881
  %v11110 = vpack.c.b16 %v10886, %v10882
  %v11111 = vpack.c.b16 %v10887, %v10883
  %v11112 = vpack.c.b16 %v10892, %v10888
  %v11113 = vpack.c.b16 %v10893, %v10889
  %v11114 = vpack.c.b16 %v10894, %v10890
  %v11115 = vpack.c.b16 %v10895, %v10891
  %v11116 = vpack.c.b16 %v10900, %v10896
  %v11117 = vpack.c.b16 %v10901, %v10897
  %v11118 = vpack.c.b16 %v10902, %v10898
  %v11119 = vpack.c.b16 %v10903, %v10899
  %v11120 = vpack.c.b16 %v10908, %v10904
  %v11121 = vpack.c.b16 %v10909, %v10905
  %v11122 = vpack.c.b16 %v10910, %v10906
  %v11123 = vpack.c.b16 %v10911, %v10907
  %v11124 = vpack.c.b16 %v10916, %v10912
  %v11125 = vpack.c.b16 %v10917, %v10913
  %v11126 = vpack.c.b16 %v10918, %v10914
  %v11127 = vpack.c.b16 %v10919, %v10915
  %v11128 = vpack.c.b16 %v10924, %v10920
  %v11129 = vpack.c.b16 %v10925, %v10921
  %v11130 = vpack.c.b16 %v10926, %v10922
  %v11131 = vpack.c.b16 %v10927, %v10923
  %v11132 = vpack.c.b16 %v10932, %v10928
  %v11133 = vpack.c.b16 %v10933, %v10929
  %v11134 = vpack.c.b16 %v10934, %v10930
  %v11135 = vpack.c.b16 %v10935, %v10931
  %v11136 = vpack.c.b16 %v10940, %v10936
  %v11137 = vpack.c.b16 %v10941, %v10937
  %v11138 = vpack.c.b16 %v10942, %v10938
  %v11139 = vpack.c.b16 %v10943, %v10939
  %v11140 = vpack.c.b16 %v10948, %v10944
  %v11141 = vpack.c.b16 %v10949, %v10945
  %v11142 = vpack.c.b16 %v10950, %v10946
  %v11143 = vpack.c.b16 %v10951, %v10947
  %v11144 = vpack.c.b16 %v10956, %v10952
  %v11145 = vpack.c.b16 %v10957, %v10953
  %v11146 = vpack.c.b16 %v10958, %v10954
  %v11147 = vpack.c.b16 %v10959, %v10955
  %v11148 = vpack.c.b16 %v10964, %v10960
  %v11149 = vpack.c.b16 %v10965, %v10961
  %v11150 = vpack.c.b16 %v10966, %v10962
  %v11151 = vpack.c.b16 %v10967, %v10963
  %v11152 = vpack.c.b16 %v10972, %v10968
  %v11153 = vpack.c.b16 %v10973, %v10969
  %v11154 = vpack.c.b16 %v10974, %v10970
  %v11155 = vpack.c.b16 %v10975, %v10971
  %v11156 = vpack.c.b16 %v10980, %v10976
  %v11157 = vpack.c.b16 %v10981, %v10977
  %v11158 = vpack.c.b16 %v10982, %v10978
  %v11159 = vpack.c.b16 %v10983, %v10979
  %v11160 = vpack.c.b16 %v10988, %v10984
  %v11161 = vpack.c.b16 %v10989, %v10985
  %v11162 = vpack.c.b16 %v10990, %v10986
  %v11163 = vpack.c.b16 %v10991, %v10987
  %v11164 = vpack.c.b16 %v10996, %v10992
  %v11165 = vpack.c.b16 %v10997, %v10993
  %v11166 = vpack.c.b16 %v10998, %v10994
  %v11167 = vpack.c.b16 %v10999, %v10995
  %v11168 = vpack.c.b16 %v11004, %v11000
  %v11169 = vpack.c.b16 %v11005, %v11001
  %v11170 = vpack.c.b16 %v11006, %v11002
  %v11171 = vpack.c.b16 %v11007, %v11003
  %v11172 = vpack.c.b16 %v11012, %v11008
  %v11173 = vpack.c.b16 %v11013, %v11009
  %v11174 = vpack.c.b16 %v11014, %v11010
  %v11175 = vpack.c.b16 %v11015, %v11011
  %v11176 = vpack.c.b16 %v11020, %v11016
  %v11177 = vpack.c.b16 %v11021, %v11017
  %v11178 = vpack.c.b16 %v11022, %v11018
  %v11179 = vpack.c.b16 %v11023, %v11019
  %v11180 = vpack.c.b16 %v11028, %v11024
  %v11181 = vpack.c.b16 %v11029, %v11025
  %v11182 = vpack.c.b16 %v11030, %v11026
  %v11183 = vpack.c.b16 %v11031, %v11027
  %v11184 = vpack.c.b16 %v11036, %v11032
  %v11185 = vpack.c.b16 %v11037, %v11033
  %v11186 = vpack.c.b16 %v11038, %v11034
  %v11187 = vpack.c.b16 %v11039, %v11035
  %v11188 = vpack.c.b16 %v11044, %v11040
  %v11189 = vpack.c.b16 %v11045, %v11041
  %v11190 = vpack.c.b16 %v11046, %v11042
  %v11191 = vpack.c.b16 %v11047, %v11043
  %v11192 = vpack.c.b16 %v11052, %v11048
  %v11193 = vpack.c.b16 %v11053, %v11049
  %v11194 = vpack.c.b16 %v11054, %v11050
  %v11195 = vpack.c.b16 %v11055, %v11051
  %v11196 = vpack.c.b16 %v11060, %v11056
  %v11197 = vpack.c.b16 %v11061, %v11057
  %v11198 = vpack.c.b16 %v11062, %v11058
  %v11199 = vpack.c.b16 %v11063, %v11059
  %v11200 = vpack.c.b16 %v11068, %v11064
  %v11201 = vpack.c.b16 %v11069, %v11065
  %v11202 = vpack.c.b16 %v11070, %v11066
  %v11203 = vpack.c.b16 %v11071, %v11067
  %v11204 = vpack.c.b16 %v11076, %v11072
  %v11205 = vpack.c.b16 %v11077, %v11073
  %v11206 = vpack.c.b16 %v11078, %v11074
  %v11207 = vpack.c.b16 %v11079, %v11075
  %11336 = vmatprep.subr.bf16.mxu0 %v11081
  %11337 = vmatpush1.bf16.msra.mxu0 %v11080
  %11338 = vmatprep.subr.bf16.mxu0 %v11085
  %11339 = vmatpush1.bf16.msra.mxu0 %v11084
  %11340 = vmatprep.subr.bf16.mxu0 %v11089
  %11341 = vmatpush1.bf16.msra.mxu0 %v11088
  %11342 = vmatprep.subr.bf16.mxu0 %v11093
  %11343 = vmatpush1.bf16.msra.mxu0 %v11092
  %11344 = vmatprep.subr.bf16.mxu0 %v11097
  %11345 = vmatpush1.bf16.msra.mxu0 %v11096
  %11346 = vmatprep.subr.bf16.mxu0 %v11101
  %11347 = vmatpush1.bf16.msra.mxu0 %v11100
  %11348 = vmatprep.subr.bf16.mxu0 %v11105
  %11349 = vmatpush1.bf16.msra.mxu0 %v11104
  %11350 = vmatprep.subr.bf16.mxu0 %v11109
  %11351 = vmatpush1.bf16.msra.mxu0 %v11108
  %11352 = vmatprep.subr.bf16.mxu0 %v11113
  %11353 = vmatpush1.bf16.msra.mxu0 %v11112
  %11354 = vmatprep.subr.bf16.mxu0 %v11117
  %11355 = vmatpush1.bf16.msra.mxu0 %v11116
  %11356 = vmatprep.subr.bf16.mxu0 %v11121
  %11357 = vmatpush1.bf16.msra.mxu0 %v11120
  %11358 = vmatprep.subr.bf16.mxu0 %v11125
  %11359 = vmatpush1.bf16.msra.mxu0 %v11124
  %11360 = vmatprep.subr.bf16.mxu0 %v11129
  %11361 = vmatpush1.bf16.msra.mxu0 %v11128
  %11362 = vmatprep.subr.bf16.mxu0 %v11133
  %11363 = vmatpush1.bf16.msra.mxu0 %v11132
  %11364 = vmatprep.subr.bf16.mxu0 %v11137
  %11365 = vmatpush1.bf16.msra.mxu0 %v11136
  %11366 = vmatprep.subr.bf16.mxu0 %v11141
  %11367 = vmatpush1.bf16.msra.mxu0 %v11140
  %11368 = vmatprep.mubr.bf16.mxu0 %v10560
  %11369 = vmatmul.mubr.bf16.gmra.mrb[0].mxu0 %v10559
  %v11370 = vpop.f32.mrb[0].mxu0
  %v11371 = vadd.f32 0.0, %v11370
  %v11372 = vpop.f32.mrb[0].mxu0
  %v11373 = vadd.f32 0.0, %v11372
  %v11374 = vpop.f32.mrb[0].mxu0
  %v11375 = vadd.f32 0.0, %v11374
  %v11376 = vpop.f32.mrb[0].mxu0
  %v11377 = vadd.f32 0.0, %v11376
  %11378 = vmatprep.mubr.bf16.mxu0 %v10564
  %11379 = vmatmul.mubr.bf16.gmra.mrb[0].mxu0 %v10563
  %v11380 = vpop.f32.mrb[0].mxu0
  %v11381 = vadd.f32 0.0, %v11380
  %v11382 = vpop.f32.mrb[0].mxu0
  %v11383 = vadd.f32 0.0, %v11382
  %v11384 = vpop.f32.mrb[0].mxu0
  %v11385 = vadd.f32 0.0, %v11384
  %v11386 = vpop.f32.mrb[0].mxu0
  %v11387 = vadd.f32 0.0, %v11386
  %11388 = vdwg.mxu0
  %11389 = vmatprep.subr.bf16.mxu0 %v11145
  %11390 = vmatpush1.bf16.msra.mxu0 %v11144
  %11391 = vmatprep.subr.bf16.mxu0 %v11149
  %11392 = vmatpush1.bf16.msra.mxu0 %v11148
  %11393 = vmatprep.subr.bf16.mxu0 %v11153
  %11394 = vmatpush1.bf16.msra.mxu0 %v11152
  %11395 = vmatprep.subr.bf16.mxu0 %v11157
  %11396 = vmatpush1.bf16.msra.mxu0 %v11156
  %11397 = vmatprep.subr.bf16.mxu0 %v11161
  %11398 = vmatpush1.bf16.msra.mxu0 %v11160
  %11399 = vmatprep.subr.bf16.mxu0 %v11165
  %11400 = vmatpush1.bf16.msra.mxu0 %v11164
  %11401 = vmatprep.subr.bf16.mxu0 %v11169
  %11402 = vmatpush1.bf16.msra.mxu0 %v11168
  %11403 = vmatprep.subr.bf16.mxu0 %v11173
  %11404 = vmatpush1.bf16.msra.mxu0 %v11172
  %11405 = vmatprep.subr.bf16.mxu0 %v11177
  %11406 = vmatpush1.bf16.msra.mxu0 %v11176
  %11407 = vmatprep.subr.bf16.mxu0 %v11181
  %11408 = vmatpush1.bf16.msra.mxu0 %v11180
  %11409 = vmatprep.subr.bf16.mxu0 %v11185
  %11410 = vmatpush1.bf16.msra.mxu0 %v11184
  %11411 = vmatprep.subr.bf16.mxu0 %v11189
  %11412 = vmatpush1.bf16.msra.mxu0 %v11188
  %11413 = vmatprep.subr.bf16.mxu0 %v11193
  %11414 = vmatpush1.bf16.msra.mxu0 %v11192
  %11415 = vmatprep.subr.bf16.mxu0 %v11197
  %11416 = vmatpush1.bf16.msra.mxu0 %v11196
  %11417 = vmatprep.subr.bf16.mxu0 %v11201
  %11418 = vmatpush1.bf16.msra.mxu0 %v11200
  %11419 = vmatprep.subr.bf16.mxu0 %v11205
  %11420 = vmatpush1.bf16.msra.mxu0 %v11204
  %11421 = vmatprep.mubr.bf16.mxu0 %v10562
  %11422 = vmatmul.mubr.bf16.gmra.mrb[0].mxu0 %v10561
  %v11423 = vpop.f32.mrb[0].mxu0
  %v11424 = vadd.f32 %v11371, %v11423
  %v11425 = vpop.f32.mrb[0].mxu0
  %v11426 = vadd.f32 %v11373, %v11425
  %v11427 = vpop.f32.mrb[0].mxu0
  %v11428 = vadd.f32 %v11375, %v11427
  %v11429 = vpop.f32.mrb[0].mxu0
  %v11430 = vadd.f32 %v11377, %v11429
  %11431 = vmatprep.mubr.bf16.mxu0 %v10566
  %11432 = vmatmul.mubr.bf16.gmra.mrb[0].mxu0 %v10565
  %v11433 = vpop.f32.mrb[0].mxu0
  %v11434 = vadd.f32 %v11381, %v11433
  %v11435 = vpop.f32.mrb[0].mxu0
  %v11436 = vadd.f32 %v11383, %v11435
  %v11437 = vpop.f32.mrb[0].mxu0
  %v11438 = vadd.f32 %v11385, %v11437
  %v11439 = vpop.f32.mrb[0].mxu0
  %v11440 = vadd.f32 %v11387, %v11439
  %11441 = vdwg.mxu0
  %11442 = vmatprep.subr.bf16.mxu0 %v11083
  %11443 = vmatpush1.bf16.msra.mxu0 %v11082
  %11444 = vmatprep.subr.bf16.mxu0 %v11087
  %11445 = vmatpush1.bf16.msra.mxu0 %v11086
  %11446 = vmatprep.subr.bf16.mxu0 %v11091
  %11447 = vmatpush1.bf16.msra.mxu0 %v11090
  %11448 = vmatprep.subr.bf16.mxu0 %v11095
  %11449 = vmatpush1.bf16.msra.mxu0 %v11094
  %11450 = vmatprep.subr.bf16.mxu0 %v11099
  %11451 = vmatpush1.bf16.msra.mxu0 %v11098
  %11452 = vmatprep.subr.bf16.mxu0 %v11103
  %11453 = vmatpush1.bf16.msra.mxu0 %v11102
  %11454 = vmatprep.subr.bf16.mxu0 %v11107
  %11455 = vmatpush1.bf16.msra.mxu0 %v11106
  %11456 = vmatprep.subr.bf16.mxu0 %v11111
  %11457 = vmatpush1.bf16.msra.mxu0 %v11110
  %11458 = vmatprep.subr.bf16.mxu0 %v11115
  %11459 = vmatpush1.bf16.msra.mxu0 %v11114
  %11460 = vmatprep.subr.bf16.mxu0 %v11119
  %11461 = vmatpush1.bf16.msra.mxu0 %v11118
  %11462 = vmatprep.subr.bf16.mxu0 %v11123
  %11463 = vmatpush1.bf16.msra.mxu0 %v11122
  %11464 = vmatprep.subr.bf16.mxu0 %v11127
  %11465 = vmatpush1.bf16.msra.mxu0 %v11126
  %11466 = vmatprep.subr.bf16.mxu0 %v11131
  %11467 = vmatpush1.bf16.msra.mxu0 %v11130
  %11468 = vmatprep.subr.bf16.mxu0 %v11135
  %11469 = vmatpush1.bf16.msra.mxu0 %v11134
  %11470 = vmatprep.subr.bf16.mxu0 %v11139
  %11471 = vmatpush1.bf16.msra.mxu0 %v11138
  %11472 = vmatprep.subr.bf16.mxu0 %v11143
  %11473 = vmatpush1.bf16.msra.mxu0 %v11142
  %11474 = vmatprep.mubr.bf16.mxu0 %v10560
  %11475 = vmatmul.mubr.bf16.gmra.mrb[0].mxu0 %v10559
  %v11476 = vpop.f32.mrb[0].mxu0
  %v11477 = vadd.f32 0.0, %v11476
  %v11478 = vpop.f32.mrb[0].mxu0
  %v11479 = vadd.f32 0.0, %v11478
  %v11480 = vpop.f32.mrb[0].mxu0
  %v11481 = vadd.f32 0.0, %v11480
  %v11482 = vpop.f32.mrb[0].mxu0
  %v11483 = vadd.f32 0.0, %v11482
  %11484 = vmatprep.mubr.bf16.mxu0 %v10564
  %11485 = vmatmul.mubr.bf16.gmra.mrb[0].mxu0 %v10563
  %v11486 = vpop.f32.mrb[0].mxu0
  %v11487 = vadd.f32 0.0, %v11486
  %v11488 = vpop.f32.mrb[0].mxu0
  %v11489 = vadd.f32 0.0, %v11488
  %v11490 = vpop.f32.mrb[0].mxu0
  %v11491 = vadd.f32 0.0, %v11490
  %v11492 = vpop.f32.mrb[0].mxu0
  %v11493 = vadd.f32 0.0, %v11492
  %11494 = vdwg.mxu0
  %11495 = vmatprep.subr.bf16.mxu0 %v11147
  %11496 = vmatpush1.bf16.msra.mxu0 %v11146
  %11497 = vmatprep.subr.bf16.mxu0 %v11151
  %11498 = vmatpush1.bf16.msra.mxu0 %v11150
  %11499 = vmatprep.subr.bf16.mxu0 %v11155
  %11500 = vmatpush1.bf16.msra.mxu0 %v11154
  %11501 = vmatprep.subr.bf16.mxu0 %v11159
  %11502 = vmatpush1.bf16.msra.mxu0 %v11158
  %11503 = vmatprep.subr.bf16.mxu0 %v11163
  %11504 = vmatpush1.bf16.msra.mxu0 %v11162
  %11505 = vmatprep.subr.bf16.mxu0 %v11167
  %11506 = vmatpush1.bf16.msra.mxu0 %v11166
  %11507 = vmatprep.subr.bf16.mxu0 %v11171
  %11508 = vmatpush1.bf16.msra.mxu0 %v11170
  %11509 = vmatprep.subr.bf16.mxu0 %v11175
  %11510 = vmatpush1.bf16.msra.mxu0 %v11174
  %11511 = vmatprep.subr.bf16.mxu0 %v11179
  %11512 = vmatpush1.bf16.msra.mxu0 %v11178
  %11513 = vmatprep.subr.bf16.mxu0 %v11183
  %11514 = vmatpush1.bf16.msra.mxu0 %v11182
  %11515 = vmatprep.subr.bf16.mxu0 %v11187
  %11516 = vmatpush1.bf16.msra.mxu0 %v11186
  %11517 = vmatprep.subr.bf16.mxu0 %v11191
  %11518 = vmatpush1.bf16.msra.mxu0 %v11190
  %11519 = vmatprep.subr.bf16.mxu0 %v11195
  %11520 = vmatpush1.bf16.msra.mxu0 %v11194
  %11521 = vmatprep.subr.bf16.mxu0 %v11199
  %11522 = vmatpush1.bf16.msra.mxu0 %v11198
  %11523 = vmatprep.subr.bf16.mxu0 %v11203
  %11524 = vmatpush1.bf16.msra.mxu0 %v11202
  %11525 = vmatprep.subr.bf16.mxu0 %v11207
  %11526 = vmatpush1.bf16.msra.mxu0 %v11206
  %11527 = vmatprep.mubr.bf16.mxu0 %v10562
  %11528 = vmatmul.mubr.bf16.gmra.mrb[0].mxu0 %v10561
  %v11529 = vpop.f32.mrb[0].mxu0
  %v11530 = vadd.f32 %v11477, %v11529
  %v11531 = vpop.f32.mrb[0].mxu0
  %v11532 = vadd.f32 %v11479, %v11531
  %v11533 = vpop.f32.mrb[0].mxu0
  %v11534 = vadd.f32 %v11481, %v11533
  %v11535 = vpop.f32.mrb[0].mxu0
  %v11536 = vadd.f32 %v11483, %v11535
  %11537 = vmatprep.mubr.bf16.mxu0 %v10566
  %11538 = vmatmul.mubr.bf16.gmra.mrb[0].mxu0 %v10565
  %v11539 = vpop.f32.mrb[0].mxu0
  %v11540 = vadd.f32 %v11487, %v11539
  %v11541 = vpop.f32.mrb[0].mxu0
  %v11542 = vadd.f32 %v11489, %v11541
  %v11543 = vpop.f32.mrb[0].mxu0
  %v11544 = vadd.f32 %v11491, %v11543
  %v11545 = vpop.f32.mrb[0].mxu0
  %v11546 = vadd.f32 %v11493, %v11545
  %11547 = vdwg.mxu0
  %v11548 = vadd.f32 %v10420, %v11424
  %v11549 = vadd.f32 %v10421, %v11426
  %v11550 = vadd.f32 %v10422, %v11530
  %v11551 = vadd.f32 %v10423, %v11532
  %v11552 = vadd.f32 %v10424, %v11428
  %v11553 = vadd.f32 %v10425, %v11430
  %v11554 = vadd.f32 %v10426, %v11534
  %v11555 = vadd.f32 %v10427, %v11536
  %v11556 = vadd.f32 %v10428, %v11434
  %v11557 = vadd.f32 %v10429, %v11436
  %v11558 = vadd.f32 %v10430, %v11540
  %v11559 = vadd.f32 %v10431, %v11542
  %v11560 = vadd.f32 %v10432, %v11438
  %v11561 = vadd.f32 %v10433, %v11440
  %v11562 = vadd.f32 %v10434, %v11544
  %v11563 = vadd.f32 %v10435, %v11546
  %s11564 = scalar_lea.vmem %s5, 128
  %v11565 = vld [vmem:[%s11564] sm:$0xf]
  %v11566 = vld [vmem:[%s11564 + $0x4] sm:$0xf]
  %v11567 = vld [vmem:[%s11564 + $0x8] sm:$0xf]
  %v11568 = vld [vmem:[%s11564 + $0xc] sm:$0xf]
  %v11573 = vunpack.c.l.b16 %v11565
  %v11574 = vunpack.c.l.b16 %v11566
  %v11575 = vunpack.c.l.b16 %v11567
  %v11576 = vunpack.c.l.b16 %v11568
  %v11577 = vpack.c.b16 %v11574, %v11573
  %v11578 = vpack.c.b16 %v11576, %v11575
  %11581 = vmatprep.subr.bf16.mxu0 %v2543
  %11582 = vmatpush1.bf16.msra.mxu0 %v2542
  %11583 = vmatprep.subr.bf16.mxu0 %v2547
  %11584 = vmatpush1.bf16.msra.mxu0 %v2546
  %11585 = vmatprep.subr.bf16.mxu0 %v2551
  %11586 = vmatpush1.bf16.msra.mxu0 %v2550
  %11587 = vmatprep.subr.bf16.mxu0 %v2555
  %11588 = vmatpush1.bf16.msra.mxu0 %v2554
  %11589 = vmatprep.subr.bf16.mxu0 %v2559
  %11590 = vmatpush1.bf16.msra.mxu0 %v2558
  %11591 = vmatprep.subr.bf16.mxu0 %v2563
  %11592 = vmatpush1.bf16.msra.mxu0 %v2562
  %11593 = vmatprep.subr.bf16.mxu0 %v2567
  %11594 = vmatpush1.bf16.msra.mxu0 %v2566
  %11595 = vmatprep.subr.bf16.mxu0 %v2571
  %11596 = vmatpush1.bf16.msra.mxu0 %v2570
  %11597 = vmatprep.subr.bf16.mxu0 0
  %11598 = vmatpush1.bf16.msra.mxu0 0
  %11599 = vmatprep.subr.bf16.mxu0 0
  %11600 = vmatpush1.bf16.msra.mxu0 0
  %11601 = vmatprep.subr.bf16.mxu0 0
  %11602 = vmatpush1.bf16.msra.mxu0 0
  %11603 = vmatprep.subr.bf16.mxu0 0
  %11604 = vmatpush1.bf16.msra.mxu0 0
  %11605 = vmatprep.subr.bf16.mxu0 0
  %11606 = vmatpush1.bf16.msra.mxu0 0
  %11607 = vmatprep.subr.bf16.mxu0 0
  %11608 = vmatpush1.bf16.msra.mxu0 0
  %11609 = vmatprep.subr.bf16.mxu0 0
  %11610 = vmatpush1.bf16.msra.mxu0 0
  %11611 = vmatprep.subr.bf16.mxu0 0
  %11612 = vmatpush1.bf16.msra.mxu0 0
  %11613 = vmatprep.mubr.bf16.mxu0 0
  %11614 = vmatmul.mubr.bf16.gmra.mrb[0].mxu0 %v11577
  %v11615 = vpop.f32.mrb[0].mxu0
  %v11616 = vadd.f32 0.0, %v11615
  %v11617 = vpop.f32.mrb[0].mxu0
  %v11618 = vadd.f32 0.0, %v11617
  %v11619 = vpop.f32.mrb[0].mxu0
  %v11620 = vadd.f32 0.0, %v11619
  %v11621 = vpop.f32.mrb[0].mxu0
  %v11622 = vadd.f32 0.0, %v11621
  %11623 = vmatprep.mubr.bf16.mxu0 0
  %11624 = vmatmul.mubr.bf16.gmra.mrb[0].mxu0 %v11578
  %v11625 = vpop.f32.mrb[0].mxu0
  %v11626 = vadd.f32 0.0, %v11625
  %v11627 = vpop.f32.mrb[0].mxu0
  %v11628 = vadd.f32 0.0, %v11627
  %v11629 = vpop.f32.mrb[0].mxu0
  %v11630 = vadd.f32 0.0, %v11629
  %v11631 = vpop.f32.mrb[0].mxu0
  %v11632 = vadd.f32 0.0, %v11631
  %11633 = vdwg.mxu0
  %11634 = vmatprep.subr.bf16.mxu0 %v2545
  %11635 = vmatpush1.bf16.msra.mxu0 %v2544
  %11636 = vmatprep.subr.bf16.mxu0 %v2549
  %11637 = vmatpush1.bf16.msra.mxu0 %v2548
  %11638 = vmatprep.subr.bf16.mxu0 %v2553
  %11639 = vmatpush1.bf16.msra.mxu0 %v2552
  %11640 = vmatprep.subr.bf16.mxu0 %v2557
  %11641 = vmatpush1.bf16.msra.mxu0 %v2556
  %11642 = vmatprep.subr.bf16.mxu0 %v2561
  %11643 = vmatpush1.bf16.msra.mxu0 %v2560
  %11644 = vmatprep.subr.bf16.mxu0 %v2565
  %11645 = vmatpush1.bf16.msra.mxu0 %v2564
  %11646 = vmatprep.subr.bf16.mxu0 %v2569
  %11647 = vmatpush1.bf16.msra.mxu0 %v2568
  %11648 = vmatprep.subr.bf16.mxu0 %v2573
  %11649 = vmatpush1.bf16.msra.mxu0 %v2572
  %11650 = vmatprep.subr.bf16.mxu0 0
  %11651 = vmatpush1.bf16.msra.mxu0 0
  %11652 = vmatprep.subr.bf16.mxu0 0
  %11653 = vmatpush1.bf16.msra.mxu0 0
  %11654 = vmatprep.subr.bf16.mxu0 0
  %11655 = vmatpush1.bf16.msra.mxu0 0
  %11656 = vmatprep.subr.bf16.mxu0 0
  %11657 = vmatpush1.bf16.msra.mxu0 0
  %11658 = vmatprep.subr.bf16.mxu0 0
  %11659 = vmatpush1.bf16.msra.mxu0 0
  %11660 = vmatprep.subr.bf16.mxu0 0
  %11661 = vmatpush1.bf16.msra.mxu0 0
  %11662 = vmatprep.subr.bf16.mxu0 0
  %11663 = vmatpush1.bf16.msra.mxu0 0
  %11664 = vmatprep.subr.bf16.mxu0 0
  %11665 = vmatpush1.bf16.msra.mxu0 0
  %11666 = vmatprep.mubr.bf16.mxu0 0
  %11667 = vmatmul.mubr.bf16.gmra.mrb[0].mxu0 %v11577
  %v11668 = vpop.f32.mrb[0].mxu0
  %v11669 = vadd.f32 0.0, %v11668
  %v11670 = vpop.f32.mrb[0].mxu0
  %v11671 = vadd.f32 0.0, %v11670
  %v11672 = vpop.f32.mrb[0].mxu0
  %v11673 = vadd.f32 0.0, %v11672
  %v11674 = vpop.f32.mrb[0].mxu0
  %v11675 = vadd.f32 0.0, %v11674
  %11676 = vmatprep.mubr.bf16.mxu0 0
  %11677 = vmatmul.mubr.bf16.gmra.mrb[0].mxu0 %v11578
  %v11678 = vpop.f32.mrb[0].mxu0
  %v11679 = vadd.f32 0.0, %v11678
  %v11680 = vpop.f32.mrb[0].mxu0
  %v11681 = vadd.f32 0.0, %v11680
  %v11682 = vpop.f32.mrb[0].mxu0
  %v11683 = vadd.f32 0.0, %v11682
  %v11684 = vpop.f32.mrb[0].mxu0
  %v11685 = vadd.f32 0.0, %v11684
  %11686 = vdwg.mxu0
  %v11687 = vpack.c.bf16 %v11620, %v11616
  %v11688 = vpack.c.bf16 %v11622, %v11618
  %v11689 = vpack.c.bf16 %v11673, %v11669
  %v11690 = vpack.c.bf16 %v11675, %v11671
  %v11691 = vpack.c.bf16 %v11630, %v11626
  %v11692 = vpack.c.bf16 %v11632, %v11628
  %v11693 = vpack.c.bf16 %v11683, %v11679
  %v11694 = vpack.c.bf16 %v11685, %v11681
  %s11695 = scalar_lea.vmem %s6, 8192
  %v11696 = vld [vmem:[%s11695] sm:$0xff]
  %v11697 = vld [vmem:[%s11695 + $0x8] sm:$0xff]
  %v11698 = vld [vmem:[%s11695 + $0x10] sm:$0xff]
  %v11699 = vld [vmem:[%s11695 + $0x18] sm:$0xff]
  %v11700 = vld [vmem:[%s11695 + $0x20] sm:$0xff]
  %v11701 = vld [vmem:[%s11695 + $0x28] sm:$0xff]
  %v11702 = vld [vmem:[%s11695 + $0x30] sm:$0xff]
  %v11703 = vld [vmem:[%s11695 + $0x38] sm:$0xff]
  %v11704 = vld [vmem:[%s11695 + $0x40] sm:$0xff]
  %v11705 = vld [vmem:[%s11695 + $0x48] sm:$0xff]
  %v11706 = vld [vmem:[%s11695 + $0x50] sm:$0xff]
  %v11707 = vld [vmem:[%s11695 + $0x58] sm:$0xff]
  %v11708 = vld [vmem:[%s11695 + $0x60] sm:$0xff]
  %v11709 = vld [vmem:[%s11695 + $0x68] sm:$0xff]
  %v11710 = vld [vmem:[%s11695 + $0x70] sm:$0xff]
  %v11711 = vld [vmem:[%s11695 + $0x78] sm:$0xff]
  %v11712 = vld [vmem:[%s11695 + $0x80] sm:$0xff]
  %v11713 = vld [vmem:[%s11695 + $0x88] sm:$0xff]
  %v11714 = vld [vmem:[%s11695 + $0x90] sm:$0xff]
  %v11715 = vld [vmem:[%s11695 + $0x98] sm:$0xff]
  %v11716 = vld [vmem:[%s11695 + $0xa0] sm:$0xff]
  %v11717 = vld [vmem:[%s11695 + $0xa8] sm:$0xff]
  %v11718 = vld [vmem:[%s11695 + $0xb0] sm:$0xff]
  %v11719 = vld [vmem:[%s11695 + $0xb8] sm:$0xff]
  %v11720 = vld [vmem:[%s11695 + $0xc0] sm:$0xff]
  %v11721 = vld [vmem:[%s11695 + $0xc8] sm:$0xff]
  %v11722 = vld [vmem:[%s11695 + $0xd0] sm:$0xff]
  %v11723 = vld [vmem:[%s11695 + $0xd8] sm:$0xff]
  %v11724 = vld [vmem:[%s11695 + $0xe0] sm:$0xff]
  %v11725 = vld [vmem:[%s11695 + $0xe8] sm:$0xff]
  %v11726 = vld [vmem:[%s11695 + $0xf0] sm:$0xff]
  %v11727 = vld [vmem:[%s11695 + $0xf8] sm:$0xff]
  %v11728 = vld [vmem:[%s11695 + $0x100] sm:$0xff]
  %v11729 = vld [vmem:[%s11695 + $0x108] sm:$0xff]
  %v11730 = vld [vmem:[%s11695 + $0x110] sm:$0xff]
  %v11731 = vld [vmem:[%s11695 + $0x118] sm:$0xff]
  %v11732 = vld [vmem:[%s11695 + $0x120] sm:$0xff]
  %v11733 = vld [vmem:[%s11695 + $0x128] sm:$0xff]
  %v11734 = vld [vmem:[%s11695 + $0x130] sm:$0xff]
  %v11735 = vld [vmem:[%s11695 + $0x138] sm:$0xff]
  %v11736 = vld [vmem:[%s11695 + $0x140] sm:$0xff]
  %v11737 = vld [vmem:[%s11695 + $0x148] sm:$0xff]
  %v11738 = vld [vmem:[%s11695 + $0x150] sm:$0xff]
  %v11739 = vld [vmem:[%s11695 + $0x158] sm:$0xff]
  %v11740 = vld [vmem:[%s11695 + $0x160] sm:$0xff]
  %v11741 = vld [vmem:[%s11695 + $0x168] sm:$0xff]
  %v11742 = vld [vmem:[%s11695 + $0x170] sm:$0xff]
  %v11743 = vld [vmem:[%s11695 + $0x178] sm:$0xff]
  %v11744 = vld [vmem:[%s11695 + $0x180] sm:$0xff]
  %v11745 = vld [vmem:[%s11695 + $0x188] sm:$0xff]
  %v11746 = vld [vmem:[%s11695 + $0x190] sm:$0xff]
  %v11747 = vld [vmem:[%s11695 + $0x198] sm:$0xff]
  %v11748 = vld [vmem:[%s11695 + $0x1a0] sm:$0xff]
  %v11749 = vld [vmem:[%s11695 + $0x1a8] sm:$0xff]
  %v11750 = vld [vmem:[%s11695 + $0x1b0] sm:$0xff]
  %v11751 = vld [vmem:[%s11695 + $0x1b8] sm:$0xff]
  %v11752 = vld [vmem:[%s11695 + $0x1c0] sm:$0xff]
  %v11753 = vld [vmem:[%s11695 + $0x1c8] sm:$0xff]
  %v11754 = vld [vmem:[%s11695 + $0x1d0] sm:$0xff]
  %v11755 = vld [vmem:[%s11695 + $0x1d8] sm:$0xff]
  %v11756 = vld [vmem:[%s11695 + $0x1e0] sm:$0xff]
  %v11757 = vld [vmem:[%s11695 + $0x1e8] sm:$0xff]
  %v11758 = vld [vmem:[%s11695 + $0x1f0] sm:$0xff]
  %v11759 = vld [vmem:[%s11695 + $0x1f8] sm:$0xff]
  %v11760 = vld [vmem:[%s11695 + $0x200] sm:$0xff]
  %v11761 = vld [vmem:[%s11695 + $0x208] sm:$0xff]
  %v11762 = vld [vmem:[%s11695 + $0x210] sm:$0xff]
  %v11763 = vld [vmem:[%s11695 + $0x218] sm:$0xff]
  %v11764 = vld [vmem:[%s11695 + $0x220] sm:$0xff]
  %v11765 = vld [vmem:[%s11695 + $0x228] sm:$0xff]
  %v11766 = vld [vmem:[%s11695 + $0x230] sm:$0xff]
  %v11767 = vld [vmem:[%s11695 + $0x238] sm:$0xff]
  %v11768 = vld [vmem:[%s11695 + $0x240] sm:$0xff]
  %v11769 = vld [vmem:[%s11695 + $0x248] sm:$0xff]
  %v11770 = vld [vmem:[%s11695 + $0x250] sm:$0xff]
  %v11771 = vld [vmem:[%s11695 + $0x258] sm:$0xff]
  %v11772 = vld [vmem:[%s11695 + $0x260] sm:$0xff]
  %v11773 = vld [vmem:[%s11695 + $0x268] sm:$0xff]
  %v11774 = vld [vmem:[%s11695 + $0x270] sm:$0xff]
  %v11775 = vld [vmem:[%s11695 + $0x278] sm:$0xff]
  %v11776 = vld [vmem:[%s11695 + $0x280] sm:$0xff]
  %v11777 = vld [vmem:[%s11695 + $0x288] sm:$0xff]
  %v11778 = vld [vmem:[%s11695 + $0x290] sm:$0xff]
  %v11779 = vld [vmem:[%s11695 + $0x298] sm:$0xff]
  %v11780 = vld [vmem:[%s11695 + $0x2a0] sm:$0xff]
  %v11781 = vld [vmem:[%s11695 + $0x2a8] sm:$0xff]
  %v11782 = vld [vmem:[%s11695 + $0x2b0] sm:$0xff]
  %v11783 = vld [vmem:[%s11695 + $0x2b8] sm:$0xff]
  %v11784 = vld [vmem:[%s11695 + $0x2c0] sm:$0xff]
  %v11785 = vld [vmem:[%s11695 + $0x2c8] sm:$0xff]
  %v11786 = vld [vmem:[%s11695 + $0x2d0] sm:$0xff]
  %v11787 = vld [vmem:[%s11695 + $0x2d8] sm:$0xff]
  %v11788 = vld [vmem:[%s11695 + $0x2e0] sm:$0xff]
  %v11789 = vld [vmem:[%s11695 + $0x2e8] sm:$0xff]
  %v11790 = vld [vmem:[%s11695 + $0x2f0] sm:$0xff]
  %v11791 = vld [vmem:[%s11695 + $0x2f8] sm:$0xff]
  %v11792 = vld [vmem:[%s11695 + $0x300] sm:$0xff]
  %v11793 = vld [vmem:[%s11695 + $0x308] sm:$0xff]
  %v11794 = vld [vmem:[%s11695 + $0x310] sm:$0xff]
  %v11795 = vld [vmem:[%s11695 + $0x318] sm:$0xff]
  %v11796 = vld [vmem:[%s11695 + $0x320] sm:$0xff]
  %v11797 = vld [vmem:[%s11695 + $0x328] sm:$0xff]
  %v11798 = vld [vmem:[%s11695 + $0x330] sm:$0xff]
  %v11799 = vld [vmem:[%s11695 + $0x338] sm:$0xff]
  %v11800 = vld [vmem:[%s11695 + $0x340] sm:$0xff]
  %v11801 = vld [vmem:[%s11695 + $0x348] sm:$0xff]
  %v11802 = vld [vmem:[%s11695 + $0x350] sm:$0xff]
  %v11803 = vld [vmem:[%s11695 + $0x358] sm:$0xff]
  %v11804 = vld [vmem:[%s11695 + $0x360] sm:$0xff]
  %v11805 = vld [vmem:[%s11695 + $0x368] sm:$0xff]
  %v11806 = vld [vmem:[%s11695 + $0x370] sm:$0xff]
  %v11807 = vld [vmem:[%s11695 + $0x378] sm:$0xff]
  %v11808 = vld [vmem:[%s11695 + $0x380] sm:$0xff]
  %v11809 = vld [vmem:[%s11695 + $0x388] sm:$0xff]
  %v11810 = vld [vmem:[%s11695 + $0x390] sm:$0xff]
  %v11811 = vld [vmem:[%s11695 + $0x398] sm:$0xff]
  %v11812 = vld [vmem:[%s11695 + $0x3a0] sm:$0xff]
  %v11813 = vld [vmem:[%s11695 + $0x3a8] sm:$0xff]
  %v11814 = vld [vmem:[%s11695 + $0x3b0] sm:$0xff]
  %v11815 = vld [vmem:[%s11695 + $0x3b8] sm:$0xff]
  %v11816 = vld [vmem:[%s11695 + $0x3c0] sm:$0xff]
  %v11817 = vld [vmem:[%s11695 + $0x3c8] sm:$0xff]
  %v11818 = vld [vmem:[%s11695 + $0x3d0] sm:$0xff]
  %v11819 = vld [vmem:[%s11695 + $0x3d8] sm:$0xff]
  %v11820 = vld [vmem:[%s11695 + $0x3e0] sm:$0xff]
  %v11821 = vld [vmem:[%s11695 + $0x3e8] sm:$0xff]
  %v11822 = vld [vmem:[%s11695 + $0x3f0] sm:$0xff]
  %v11823 = vld [vmem:[%s11695 + $0x3f8] sm:$0xff]
  %v11952 = vunpack.c.l.b16 %v11696
  %v11953 = vunpack.c.h.b16 %v11696
  %v11954 = vunpack.c.l.b16 %v11697
  %v11955 = vunpack.c.h.b16 %v11697
  %v11956 = vunpack.c.l.b16 %v11698
  %v11957 = vunpack.c.h.b16 %v11698
  %v11958 = vunpack.c.l.b16 %v11699
  %v11959 = vunpack.c.h.b16 %v11699
  %v11960 = vunpack.c.l.b16 %v11700
  %v11961 = vunpack.c.h.b16 %v11700
  %v11962 = vunpack.c.l.b16 %v11701
  %v11963 = vunpack.c.h.b16 %v11701
  %v11964 = vunpack.c.l.b16 %v11702
  %v11965 = vunpack.c.h.b16 %v11702
  %v11966 = vunpack.c.l.b16 %v11703
  %v11967 = vunpack.c.h.b16 %v11703
  %v11968 = vunpack.c.l.b16 %v11704
  %v11969 = vunpack.c.h.b16 %v11704
  %v11970 = vunpack.c.l.b16 %v11705
  %v11971 = vunpack.c.h.b16 %v11705
  %v11972 = vunpack.c.l.b16 %v11706
  %v11973 = vunpack.c.h.b16 %v11706
  %v11974 = vunpack.c.l.b16 %v11707
  %v11975 = vunpack.c.h.b16 %v11707
  %v11976 = vunpack.c.l.b16 %v11708
  %v11977 = vunpack.c.h.b16 %v11708
  %v11978 = vunpack.c.l.b16 %v11709
  %v11979 = vunpack.c.h.b16 %v11709
  %v11980 = vunpack.c.l.b16 %v11710
  %v11981 = vunpack.c.h.b16 %v11710
  %v11982 = vunpack.c.l.b16 %v11711
  %v11983 = vunpack.c.h.b16 %v11711
  %v11984 = vunpack.c.l.b16 %v11712
  %v11985 = vunpack.c.h.b16 %v11712
  %v11986 = vunpack.c.l.b16 %v11713
  %v11987 = vunpack.c.h.b16 %v11713
  %v11988 = vunpack.c.l.b16 %v11714
  %v11989 = vunpack.c.h.b16 %v11714
  %v11990 = vunpack.c.l.b16 %v11715
  %v11991 = vunpack.c.h.b16 %v11715
  %v11992 = vunpack.c.l.b16 %v11716
  %v11993 = vunpack.c.h.b16 %v11716
  %v11994 = vunpack.c.l.b16 %v11717
  %v11995 = vunpack.c.h.b16 %v11717
  %v11996 = vunpack.c.l.b16 %v11718
  %v11997 = vunpack.c.h.b16 %v11718
  %v11998 = vunpack.c.l.b16 %v11719
  %v11999 = vunpack.c.h.b16 %v11719
  %v12000 = vunpack.c.l.b16 %v11720
  %v12001 = vunpack.c.h.b16 %v11720
  %v12002 = vunpack.c.l.b16 %v11721
  %v12003 = vunpack.c.h.b16 %v11721
  %v12004 = vunpack.c.l.b16 %v11722
  %v12005 = vunpack.c.h.b16 %v11722
  %v12006 = vunpack.c.l.b16 %v11723
  %v12007 = vunpack.c.h.b16 %v11723
  %v12008 = vunpack.c.l.b16 %v11724
  %v12009 = vunpack.c.h.b16 %v11724
  %v12010 = vunpack.c.l.b16 %v11725
  %v12011 = vunpack.c.h.b16 %v11725
  %v12012 = vunpack.c.l.b16 %v11726
  %v12013 = vunpack.c.h.b16 %v11726
  %v12014 = vunpack.c.l.b16 %v11727
  %v12015 = vunpack.c.h.b16 %v11727
  %v12016 = vunpack.c.l.b16 %v11728
  %v12017 = vunpack.c.h.b16 %v11728
  %v12018 = vunpack.c.l.b16 %v11729
  %v12019 = vunpack.c.h.b16 %v11729
  %v12020 = vunpack.c.l.b16 %v11730
  %v12021 = vunpack.c.h.b16 %v11730
  %v12022 = vunpack.c.l.b16 %v11731
  %v12023 = vunpack.c.h.b16 %v11731
  %v12024 = vunpack.c.l.b16 %v11732
  %v12025 = vunpack.c.h.b16 %v11732
  %v12026 = vunpack.c.l.b16 %v11733
  %v12027 = vunpack.c.h.b16 %v11733
  %v12028 = vunpack.c.l.b16 %v11734
  %v12029 = vunpack.c.h.b16 %v11734
  %v12030 = vunpack.c.l.b16 %v11735
  %v12031 = vunpack.c.h.b16 %v11735
  %v12032 = vunpack.c.l.b16 %v11736
  %v12033 = vunpack.c.h.b16 %v11736
  %v12034 = vunpack.c.l.b16 %v11737
  %v12035 = vunpack.c.h.b16 %v11737
  %v12036 = vunpack.c.l.b16 %v11738
  %v12037 = vunpack.c.h.b16 %v11738
  %v12038 = vunpack.c.l.b16 %v11739
  %v12039 = vunpack.c.h.b16 %v11739
  %v12040 = vunpack.c.l.b16 %v11740
  %v12041 = vunpack.c.h.b16 %v11740
  %v12042 = vunpack.c.l.b16 %v11741
  %v12043 = vunpack.c.h.b16 %v11741
  %v12044 = vunpack.c.l.b16 %v11742
  %v12045 = vunpack.c.h.b16 %v11742
  %v12046 = vunpack.c.l.b16 %v11743
  %v12047 = vunpack.c.h.b16 %v11743
  %v12048 = vunpack.c.l.b16 %v11744
  %v12049 = vunpack.c.h.b16 %v11744
  %v12050 = vunpack.c.l.b16 %v11745
  %v12051 = vunpack.c.h.b16 %v11745
  %v12052 = vunpack.c.l.b16 %v11746
  %v12053 = vunpack.c.h.b16 %v11746
  %v12054 = vunpack.c.l.b16 %v11747
  %v12055 = vunpack.c.h.b16 %v11747
  %v12056 = vunpack.c.l.b16 %v11748
  %v12057 = vunpack.c.h.b16 %v11748
  %v12058 = vunpack.c.l.b16 %v11749
  %v12059 = vunpack.c.h.b16 %v11749
  %v12060 = vunpack.c.l.b16 %v11750
  %v12061 = vunpack.c.h.b16 %v11750
  %v12062 = vunpack.c.l.b16 %v11751
  %v12063 = vunpack.c.h.b16 %v11751
  %v12064 = vunpack.c.l.b16 %v11752
  %v12065 = vunpack.c.h.b16 %v11752
  %v12066 = vunpack.c.l.b16 %v11753
  %v12067 = vunpack.c.h.b16 %v11753
  %v12068 = vunpack.c.l.b16 %v11754
  %v12069 = vunpack.c.h.b16 %v11754
  %v12070 = vunpack.c.l.b16 %v11755
  %v12071 = vunpack.c.h.b16 %v11755
  %v12072 = vunpack.c.l.b16 %v11756
  %v12073 = vunpack.c.h.b16 %v11756
  %v12074 = vunpack.c.l.b16 %v11757
  %v12075 = vunpack.c.h.b16 %v11757
  %v12076 = vunpack.c.l.b16 %v11758
  %v12077 = vunpack.c.h.b16 %v11758
  %v12078 = vunpack.c.l.b16 %v11759
  %v12079 = vunpack.c.h.b16 %v11759
  %v12080 = vunpack.c.l.b16 %v11760
  %v12081 = vunpack.c.h.b16 %v11760
  %v12082 = vunpack.c.l.b16 %v11761
  %v12083 = vunpack.c.h.b16 %v11761
  %v12084 = vunpack.c.l.b16 %v11762
  %v12085 = vunpack.c.h.b16 %v11762
  %v12086 = vunpack.c.l.b16 %v11763
  %v12087 = vunpack.c.h.b16 %v11763
  %v12088 = vunpack.c.l.b16 %v11764
  %v12089 = vunpack.c.h.b16 %v11764
  %v12090 = vunpack.c.l.b16 %v11765
  %v12091 = vunpack.c.h.b16 %v11765
  %v12092 = vunpack.c.l.b16 %v11766
  %v12093 = vunpack.c.h.b16 %v11766
  %v12094 = vunpack.c.l.b16 %v11767
  %v12095 = vunpack.c.h.b16 %v11767
  %v12096 = vunpack.c.l.b16 %v11768
  %v12097 = vunpack.c.h.b16 %v11768
  %v12098 = vunpack.c.l.b16 %v11769
  %v12099 = vunpack.c.h.b16 %v11769
  %v12100 = vunpack.c.l.b16 %v11770
  %v12101 = vunpack.c.h.b16 %v11770
  %v12102 = vunpack.c.l.b16 %v11771
  %v12103 = vunpack.c.h.b16 %v11771
  %v12104 = vunpack.c.l.b16 %v11772
  %v12105 = vunpack.c.h.b16 %v11772
  %v12106 = vunpack.c.l.b16 %v11773
  %v12107 = vunpack.c.h.b16 %v11773
  %v12108 = vunpack.c.l.b16 %v11774
  %v12109 = vunpack.c.h.b16 %v11774
  %v12110 = vunpack.c.l.b16 %v11775
  %v12111 = vunpack.c.h.b16 %v11775
  %v12112 = vunpack.c.l.b16 %v11776
  %v12113 = vunpack.c.h.b16 %v11776
  %v12114 = vunpack.c.l.b16 %v11777
  %v12115 = vunpack.c.h.b16 %v11777
  %v12116 = vunpack.c.l.b16 %v11778
  %v12117 = vunpack.c.h.b16 %v11778
  %v12118 = vunpack.c.l.b16 %v11779
  %v12119 = vunpack.c.h.b16 %v11779
  %v12120 = vunpack.c.l.b16 %v11780
  %v12121 = vunpack.c.h.b16 %v11780
  %v12122 = vunpack.c.l.b16 %v11781
  %v12123 = vunpack.c.h.b16 %v11781
  %v12124 = vunpack.c.l.b16 %v11782
  %v12125 = vunpack.c.h.b16 %v11782
  %v12126 = vunpack.c.l.b16 %v11783
  %v12127 = vunpack.c.h.b16 %v11783
  %v12128 = vunpack.c.l.b16 %v11784
  %v12129 = vunpack.c.h.b16 %v11784
  %v12130 = vunpack.c.l.b16 %v11785
  %v12131 = vunpack.c.h.b16 %v11785
  %v12132 = vunpack.c.l.b16 %v11786
  %v12133 = vunpack.c.h.b16 %v11786
  %v12134 = vunpack.c.l.b16 %v11787
  %v12135 = vunpack.c.h.b16 %v11787
  %v12136 = vunpack.c.l.b16 %v11788
  %v12137 = vunpack.c.h.b16 %v11788
  %v12138 = vunpack.c.l.b16 %v11789
  %v12139 = vunpack.c.h.b16 %v11789
  %v12140 = vunpack.c.l.b16 %v11790
  %v12141 = vunpack.c.h.b16 %v11790
  %v12142 = vunpack.c.l.b16 %v11791
  %v12143 = vunpack.c.h.b16 %v11791
  %v12144 = vunpack.c.l.b16 %v11792
  %v12145 = vunpack.c.h.b16 %v11792
  %v12146 = vunpack.c.l.b16 %v11793
  %v12147 = vunpack.c.h.b16 %v11793
  %v12148 = vunpack.c.l.b16 %v11794
  %v12149 = vunpack.c.h.b16 %v11794
  %v12150 = vunpack.c.l.b16 %v11795
  %v12151 = vunpack.c.h.b16 %v11795
  %v12152 = vunpack.c.l.b16 %v11796
  %v12153 = vunpack.c.h.b16 %v11796
  %v12154 = vunpack.c.l.b16 %v11797
  %v12155 = vunpack.c.h.b16 %v11797
  %v12156 = vunpack.c.l.b16 %v11798
  %v12157 = vunpack.c.h.b16 %v11798
  %v12158 = vunpack.c.l.b16 %v11799
  %v12159 = vunpack.c.h.b16 %v11799
  %v12160 = vunpack.c.l.b16 %v11800
  %v12161 = vunpack.c.h.b16 %v11800
  %v12162 = vunpack.c.l.b16 %v11801
  %v12163 = vunpack.c.h.b16 %v11801
  %v12164 = vunpack.c.l.b16 %v11802
  %v12165 = vunpack.c.h.b16 %v11802
  %v12166 = vunpack.c.l.b16 %v11803
  %v12167 = vunpack.c.h.b16 %v11803
  %v12168 = vunpack.c.l.b16 %v11804
  %v12169 = vunpack.c.h.b16 %v11804
  %v12170 = vunpack.c.l.b16 %v11805
  %v12171 = vunpack.c.h.b16 %v11805
  %v12172 = vunpack.c.l.b16 %v11806
  %v12173 = vunpack.c.h.b16 %v11806
  %v12174 = vunpack.c.l.b16 %v11807
  %v12175 = vunpack.c.h.b16 %v11807
  %v12176 = vunpack.c.l.b16 %v11808
  %v12177 = vunpack.c.h.b16 %v11808
  %v12178 = vunpack.c.l.b16 %v11809
  %v12179 = vunpack.c.h.b16 %v11809
  %v12180 = vunpack.c.l.b16 %v11810
  %v12181 = vunpack.c.h.b16 %v11810
  %v12182 = vunpack.c.l.b16 %v11811
  %v12183 = vunpack.c.h.b16 %v11811
  %v12184 = vunpack.c.l.b16 %v11812
  %v12185 = vunpack.c.h.b16 %v11812
  %v12186 = vunpack.c.l.b16 %v11813
  %v12187 = vunpack.c.h.b16 %v11813
  %v12188 = vunpack.c.l.b16 %v11814
  %v12189 = vunpack.c.h.b16 %v11814
  %v12190 = vunpack.c.l.b16 %v11815
  %v12191 = vunpack.c.h.b16 %v11815
  %v12192 = vunpack.c.l.b16 %v11816
  %v12193 = vunpack.c.h.b16 %v11816
  %v12194 = vunpack.c.l.b16 %v11817
  %v12195 = vunpack.c.h.b16 %v11817
  %v12196 = vunpack.c.l.b16 %v11818
  %v12197 = vunpack.c.h.b16 %v11818
  %v12198 = vunpack.c.l.b16 %v11819
  %v12199 = vunpack.c.h.b16 %v11819
  %v12200 = vunpack.c.l.b16 %v11820
  %v12201 = vunpack.c.h.b16 %v11820
  %v12202 = vunpack.c.l.b16 %v11821
  %v12203 = vunpack.c.h.b16 %v11821
  %v12204 = vunpack.c.l.b16 %v11822
  %v12205 = vunpack.c.h.b16 %v11822
  %v12206 = vunpack.c.l.b16 %v11823
  %v12207 = vunpack.c.h.b16 %v11823
  %v12208 = vpack.c.b16 %v11956, %v11952
  %v12209 = vpack.c.b16 %v11957, %v11953
  %v12210 = vpack.c.b16 %v11958, %v11954
  %v12211 = vpack.c.b16 %v11959, %v11955
  %v12212 = vpack.c.b16 %v11964, %v11960
  %v12213 = vpack.c.b16 %v11965, %v11961
  %v12214 = vpack.c.b16 %v11966, %v11962
  %v12215 = vpack.c.b16 %v11967, %v11963
  %v12216 = vpack.c.b16 %v11972, %v11968
  %v12217 = vpack.c.b16 %v11973, %v11969
  %v12218 = vpack.c.b16 %v11974, %v11970
  %v12219 = vpack.c.b16 %v11975, %v11971
  %v12220 = vpack.c.b16 %v11980, %v11976
  %v12221 = vpack.c.b16 %v11981, %v11977
  %v12222 = vpack.c.b16 %v11982, %v11978
  %v12223 = vpack.c.b16 %v11983, %v11979
  %v12224 = vpack.c.b16 %v11988, %v11984
  %v12225 = vpack.c.b16 %v11989, %v11985
  %v12226 = vpack.c.b16 %v11990, %v11986
  %v12227 = vpack.c.b16 %v11991, %v11987
  %v12228 = vpack.c.b16 %v11996, %v11992
  %v12229 = vpack.c.b16 %v11997, %v11993
  %v12230 = vpack.c.b16 %v11998, %v11994
  %v12231 = vpack.c.b16 %v11999, %v11995
  %v12232 = vpack.c.b16 %v12004, %v12000
  %v12233 = vpack.c.b16 %v12005, %v12001
  %v12234 = vpack.c.b16 %v12006, %v12002
  %v12235 = vpack.c.b16 %v12007, %v12003
  %v12236 = vpack.c.b16 %v12012, %v12008
  %v12237 = vpack.c.b16 %v12013, %v12009
  %v12238 = vpack.c.b16 %v12014, %v12010
  %v12239 = vpack.c.b16 %v12015, %v12011
  %v12240 = vpack.c.b16 %v12020, %v12016
  %v12241 = vpack.c.b16 %v12021, %v12017
  %v12242 = vpack.c.b16 %v12022, %v12018
  %v12243 = vpack.c.b16 %v12023, %v12019
  %v12244 = vpack.c.b16 %v12028, %v12024
  %v12245 = vpack.c.b16 %v12029, %v12025
  %v12246 = vpack.c.b16 %v12030, %v12026
  %v12247 = vpack.c.b16 %v12031, %v12027
  %v12248 = vpack.c.b16 %v12036, %v12032
  %v12249 = vpack.c.b16 %v12037, %v12033
  %v12250 = vpack.c.b16 %v12038, %v12034
  %v12251 = vpack.c.b16 %v12039, %v12035
  %v12252 = vpack.c.b16 %v12044, %v12040
  %v12253 = vpack.c.b16 %v12045, %v12041
  %v12254 = vpack.c.b16 %v12046, %v12042
  %v12255 = vpack.c.b16 %v12047, %v12043
  %v12256 = vpack.c.b16 %v12052, %v12048
  %v12257 = vpack.c.b16 %v12053, %v12049
  %v12258 = vpack.c.b16 %v12054, %v12050
  %v12259 = vpack.c.b16 %v12055, %v12051
  %v12260 = vpack.c.b16 %v12060, %v12056
  %v12261 = vpack.c.b16 %v12061, %v12057
  %v12262 = vpack.c.b16 %v12062, %v12058
  %v12263 = vpack.c.b16 %v12063, %v12059
  %v12264 = vpack.c.b16 %v12068, %v12064
  %v12265 = vpack.c.b16 %v12069, %v12065
  %v12266 = vpack.c.b16 %v12070, %v12066
  %v12267 = vpack.c.b16 %v12071, %v12067
  %v12268 = vpack.c.b16 %v12076, %v12072
  %v12269 = vpack.c.b16 %v12077, %v12073
  %v12270 = vpack.c.b16 %v12078, %v12074
  %v12271 = vpack.c.b16 %v12079, %v12075
  %v12272 = vpack.c.b16 %v12084, %v12080
  %v12273 = vpack.c.b16 %v12085, %v12081
  %v12274 = vpack.c.b16 %v12086, %v12082
  %v12275 = vpack.c.b16 %v12087, %v12083
  %v12276 = vpack.c.b16 %v12092, %v12088
  %v12277 = vpack.c.b16 %v12093, %v12089
  %v12278 = vpack.c.b16 %v12094, %v12090
  %v12279 = vpack.c.b16 %v12095, %v12091
  %v12280 = vpack.c.b16 %v12100, %v12096
  %v12281 = vpack.c.b16 %v12101, %v12097
  %v12282 = vpack.c.b16 %v12102, %v12098
  %v12283 = vpack.c.b16 %v12103, %v12099
  %v12284 = vpack.c.b16 %v12108, %v12104
  %v12285 = vpack.c.b16 %v12109, %v12105
  %v12286 = vpack.c.b16 %v12110, %v12106
  %v12287 = vpack.c.b16 %v12111, %v12107
  %v12288 = vpack.c.b16 %v12116, %v12112
  %v12289 = vpack.c.b16 %v12117, %v12113
  %v12290 = vpack.c.b16 %v12118, %v12114
  %v12291 = vpack.c.b16 %v12119, %v12115
  %v12292 = vpack.c.b16 %v12124, %v12120
  %v12293 = vpack.c.b16 %v12125, %v12121
  %v12294 = vpack.c.b16 %v12126, %v12122
  %v12295 = vpack.c.b16 %v12127, %v12123
  %v12296 = vpack.c.b16 %v12132, %v12128
  %v12297 = vpack.c.b16 %v12133, %v12129
  %v12298 = vpack.c.b16 %v12134, %v12130
  %v12299 = vpack.c.b16 %v12135, %v12131
  %v12300 = vpack.c.b16 %v12140, %v12136
  %v12301 = vpack.c.b16 %v12141, %v12137
  %v12302 = vpack.c.b16 %v12142, %v12138
  %v12303 = vpack.c.b16 %v12143, %v12139
  %v12304 = vpack.c.b16 %v12148, %v12144
  %v12305 = vpack.c.b16 %v12149, %v12145
  %v12306 = vpack.c.b16 %v12150, %v12146
  %v12307 = vpack.c.b16 %v12151, %v12147
  %v12308 = vpack.c.b16 %v12156, %v12152
  %v12309 = vpack.c.b16 %v12157, %v12153
  %v12310 = vpack.c.b16 %v12158, %v12154
  %v12311 = vpack.c.b16 %v12159, %v12155
  %v12312 = vpack.c.b16 %v12164, %v12160
  %v12313 = vpack.c.b16 %v12165, %v12161
  %v12314 = vpack.c.b16 %v12166, %v12162
  %v12315 = vpack.c.b16 %v12167, %v12163
  %v12316 = vpack.c.b16 %v12172, %v12168
  %v12317 = vpack.c.b16 %v12173, %v12169
  %v12318 = vpack.c.b16 %v12174, %v12170
  %v12319 = vpack.c.b16 %v12175, %v12171
  %v12320 = vpack.c.b16 %v12180, %v12176
  %v12321 = vpack.c.b16 %v12181, %v12177
  %v12322 = vpack.c.b16 %v12182, %v12178
  %v12323 = vpack.c.b16 %v12183, %v12179
  %v12324 = vpack.c.b16 %v12188, %v12184
  %v12325 = vpack.c.b16 %v12189, %v12185
  %v12326 = vpack.c.b16 %v12190, %v12186
  %v12327 = vpack.c.b16 %v12191, %v12187
  %v12328 = vpack.c.b16 %v12196, %v12192
  %v12329 = vpack.c.b16 %v12197, %v12193
  %v12330 = vpack.c.b16 %v12198, %v12194
  %v12331 = vpack.c.b16 %v12199, %v12195
  %v12332 = vpack.c.b16 %v12204, %v12200
  %v12333 = vpack.c.b16 %v12205, %v12201
  %v12334 = vpack.c.b16 %v12206, %v12202
  %v12335 = vpack.c.b16 %v12207, %v12203
  %12464 = vmatprep.subr.bf16.mxu0 %v12209
  %12465 = vmatpush1.bf16.msra.mxu0 %v12208
  %12466 = vmatprep.subr.bf16.mxu0 %v12213
  %12467 = vmatpush1.bf16.msra.mxu0 %v12212
  %12468 = vmatprep.subr.bf16.mxu0 %v12217
  %12469 = vmatpush1.bf16.msra.mxu0 %v12216
  %12470 = vmatprep.subr.bf16.mxu0 %v12221
  %12471 = vmatpush1.bf16.msra.mxu0 %v12220
  %12472 = vmatprep.subr.bf16.mxu0 %v12225
  %12473 = vmatpush1.bf16.msra.mxu0 %v12224
  %12474 = vmatprep.subr.bf16.mxu0 %v12229
  %12475 = vmatpush1.bf16.msra.mxu0 %v12228
  %12476 = vmatprep.subr.bf16.mxu0 %v12233
  %12477 = vmatpush1.bf16.msra.mxu0 %v12232
  %12478 = vmatprep.subr.bf16.mxu0 %v12237
  %12479 = vmatpush1.bf16.msra.mxu0 %v12236
  %12480 = vmatprep.subr.bf16.mxu0 %v12241
  %12481 = vmatpush1.bf16.msra.mxu0 %v12240
  %12482 = vmatprep.subr.bf16.mxu0 %v12245
  %12483 = vmatpush1.bf16.msra.mxu0 %v12244
  %12484 = vmatprep.subr.bf16.mxu0 %v12249
  %12485 = vmatpush1.bf16.msra.mxu0 %v12248
  %12486 = vmatprep.subr.bf16.mxu0 %v12253
  %12487 = vmatpush1.bf16.msra.mxu0 %v12252
  %12488 = vmatprep.subr.bf16.mxu0 %v12257
  %12489 = vmatpush1.bf16.msra.mxu0 %v12256
  %12490 = vmatprep.subr.bf16.mxu0 %v12261
  %12491 = vmatpush1.bf16.msra.mxu0 %v12260
  %12492 = vmatprep.subr.bf16.mxu0 %v12265
  %12493 = vmatpush1.bf16.msra.mxu0 %v12264
  %12494 = vmatprep.subr.bf16.mxu0 %v12269
  %12495 = vmatpush1.bf16.msra.mxu0 %v12268
  %12496 = vmatprep.mubr.bf16.mxu0 %v11688
  %12497 = vmatmul.mubr.bf16.gmra.mrb[0].mxu0 %v11687
  %v12498 = vpop.f32.mrb[0].mxu0
  %v12499 = vadd.f32 0.0, %v12498
  %v12500 = vpop.f32.mrb[0].mxu0
  %v12501 = vadd.f32 0.0, %v12500
  %v12502 = vpop.f32.mrb[0].mxu0
  %v12503 = vadd.f32 0.0, %v12502
  %v12504 = vpop.f32.mrb[0].mxu0
  %v12505 = vadd.f32 0.0, %v12504
  %12506 = vmatprep.mubr.bf16.mxu0 %v11692
  %12507 = vmatmul.mubr.bf16.gmra.mrb[0].mxu0 %v11691
  %v12508 = vpop.f32.mrb[0].mxu0
  %v12509 = vadd.f32 0.0, %v12508
  %v12510 = vpop.f32.mrb[0].mxu0
  %v12511 = vadd.f32 0.0, %v12510
  %v12512 = vpop.f32.mrb[0].mxu0
  %v12513 = vadd.f32 0.0, %v12512
  %v12514 = vpop.f32.mrb[0].mxu0
  %v12515 = vadd.f32 0.0, %v12514
  %12516 = vdwg.mxu0
  %12517 = vmatprep.subr.bf16.mxu0 %v12273
  %12518 = vmatpush1.bf16.msra.mxu0 %v12272
  %12519 = vmatprep.subr.bf16.mxu0 %v12277
  %12520 = vmatpush1.bf16.msra.mxu0 %v12276
  %12521 = vmatprep.subr.bf16.mxu0 %v12281
  %12522 = vmatpush1.bf16.msra.mxu0 %v12280
  %12523 = vmatprep.subr.bf16.mxu0 %v12285
  %12524 = vmatpush1.bf16.msra.mxu0 %v12284
  %12525 = vmatprep.subr.bf16.mxu0 %v12289
  %12526 = vmatpush1.bf16.msra.mxu0 %v12288
  %12527 = vmatprep.subr.bf16.mxu0 %v12293
  %12528 = vmatpush1.bf16.msra.mxu0 %v12292
  %12529 = vmatprep.subr.bf16.mxu0 %v12297
  %12530 = vmatpush1.bf16.msra.mxu0 %v12296
  %12531 = vmatprep.subr.bf16.mxu0 %v12301
  %12532 = vmatpush1.bf16.msra.mxu0 %v12300
  %12533 = vmatprep.subr.bf16.mxu0 %v12305
  %12534 = vmatpush1.bf16.msra.mxu0 %v12304
  %12535 = vmatprep.subr.bf16.mxu0 %v12309
  %12536 = vmatpush1.bf16.msra.mxu0 %v12308
  %12537 = vmatprep.subr.bf16.mxu0 %v12313
  %12538 = vmatpush1.bf16.msra.mxu0 %v12312
  %12539 = vmatprep.subr.bf16.mxu0 %v12317
  %12540 = vmatpush1.bf16.msra.mxu0 %v12316
  %12541 = vmatprep.subr.bf16.mxu0 %v12321
  %12542 = vmatpush1.bf16.msra.mxu0 %v12320
  %12543 = vmatprep.subr.bf16.mxu0 %v12325
  %12544 = vmatpush1.bf16.msra.mxu0 %v12324
  %12545 = vmatprep.subr.bf16.mxu0 %v12329
  %12546 = vmatpush1.bf16.msra.mxu0 %v12328
  %12547 = vmatprep.subr.bf16.mxu0 %v12333
  %12548 = vmatpush1.bf16.msra.mxu0 %v12332
  %12549 = vmatprep.mubr.bf16.mxu0 %v11690
  %12550 = vmatmul.mubr.bf16.gmra.mrb[0].mxu0 %v11689
  %v12551 = vpop.f32.mrb[0].mxu0
  %v12552 = vadd.f32 %v12499, %v12551
  %v12553 = vpop.f32.mrb[0].mxu0
  %v12554 = vadd.f32 %v12501, %v12553
  %v12555 = vpop.f32.mrb[0].mxu0
  %v12556 = vadd.f32 %v12503, %v12555
  %v12557 = vpop.f32.mrb[0].mxu0
  %v12558 = vadd.f32 %v12505, %v12557
  %12559 = vmatprep.mubr.bf16.mxu0 %v11694
  %12560 = vmatmul.mubr.bf16.gmra.mrb[0].mxu0 %v11693
  %v12561 = vpop.f32.mrb[0].mxu0
  %v12562 = vadd.f32 %v12509, %v12561
  %v12563 = vpop.f32.mrb[0].mxu0
  %v12564 = vadd.f32 %v12511, %v12563
  %v12565 = vpop.f32.mrb[0].mxu0
  %v12566 = vadd.f32 %v12513, %v12565
  %v12567 = vpop.f32.mrb[0].mxu0
  %v12568 = vadd.f32 %v12515, %v12567
  %12569 = vdwg.mxu0
  %12570 = vmatprep.subr.bf16.mxu0 %v12211
  %12571 = vmatpush1.bf16.msra.mxu0 %v12210
  %12572 = vmatprep.subr.bf16.mxu0 %v12215
  %12573 = vmatpush1.bf16.msra.mxu0 %v12214
  %12574 = vmatprep.subr.bf16.mxu0 %v12219
  %12575 = vmatpush1.bf16.msra.mxu0 %v12218
  %12576 = vmatprep.subr.bf16.mxu0 %v12223
  %12577 = vmatpush1.bf16.msra.mxu0 %v12222
  %12578 = vmatprep.subr.bf16.mxu0 %v12227
  %12579 = vmatpush1.bf16.msra.mxu0 %v12226
  %12580 = vmatprep.subr.bf16.mxu0 %v12231
  %12581 = vmatpush1.bf16.msra.mxu0 %v12230
  %12582 = vmatprep.subr.bf16.mxu0 %v12235
  %12583 = vmatpush1.bf16.msra.mxu0 %v12234
  %12584 = vmatprep.subr.bf16.mxu0 %v12239
  %12585 = vmatpush1.bf16.msra.mxu0 %v12238
  %12586 = vmatprep.subr.bf16.mxu0 %v12243
  %12587 = vmatpush1.bf16.msra.mxu0 %v12242
  %12588 = vmatprep.subr.bf16.mxu0 %v12247
  %12589 = vmatpush1.bf16.msra.mxu0 %v12246
  %12590 = vmatprep.subr.bf16.mxu0 %v12251
  %12591 = vmatpush1.bf16.msra.mxu0 %v12250
  %12592 = vmatprep.subr.bf16.mxu0 %v12255
  %12593 = vmatpush1.bf16.msra.mxu0 %v12254
  %12594 = vmatprep.subr.bf16.mxu0 %v12259
  %12595 = vmatpush1.bf16.msra.mxu0 %v12258
  %12596 = vmatprep.subr.bf16.mxu0 %v12263
  %12597 = vmatpush1.bf16.msra.mxu0 %v12262
  %12598 = vmatprep.subr.bf16.mxu0 %v12267
  %12599 = vmatpush1.bf16.msra.mxu0 %v12266
  %12600 = vmatprep.subr.bf16.mxu0 %v12271
  %12601 = vmatpush1.bf16.msra.mxu0 %v12270
  %12602 = vmatprep.mubr.bf16.mxu0 %v11688
  %12603 = vmatmul.mubr.bf16.gmra.mrb[0].mxu0 %v11687
  %v12604 = vpop.f32.mrb[0].mxu0
  %v12605 = vadd.f32 0.0, %v12604
  %v12606 = vpop.f32.mrb[0].mxu0
  %v12607 = vadd.f32 0.0, %v12606
  %v12608 = vpop.f32.mrb[0].mxu0
  %v12609 = vadd.f32 0.0, %v12608
  %v12610 = vpop.f32.mrb[0].mxu0
  %v12611 = vadd.f32 0.0, %v12610
  %12612 = vmatprep.mubr.bf16.mxu0 %v11692
  %12613 = vmatmul.mubr.bf16.gmra.mrb[0].mxu0 %v11691
  %v12614 = vpop.f32.mrb[0].mxu0
  %v12615 = vadd.f32 0.0, %v12614
  %v12616 = vpop.f32.mrb[0].mxu0
  %v12617 = vadd.f32 0.0, %v12616
  %v12618 = vpop.f32.mrb[0].mxu0
  %v12619 = vadd.f32 0.0, %v12618
  %v12620 = vpop.f32.mrb[0].mxu0
  %v12621 = vadd.f32 0.0, %v12620
  %12622 = vdwg.mxu0
  %12623 = vmatprep.subr.bf16.mxu0 %v12275
  %12624 = vmatpush1.bf16.msra.mxu0 %v12274
  %12625 = vmatprep.subr.bf16.mxu0 %v12279
  %12626 = vmatpush1.bf16.msra.mxu0 %v12278
  %12627 = vmatprep.subr.bf16.mxu0 %v12283
  %12628 = vmatpush1.bf16.msra.mxu0 %v12282
  %12629 = vmatprep.subr.bf16.mxu0 %v12287
  %12630 = vmatpush1.bf16.msra.mxu0 %v12286
  %12631 = vmatprep.subr.bf16.mxu0 %v12291
  %12632 = vmatpush1.bf16.msra.mxu0 %v12290
  %12633 = vmatprep.subr.bf16.mxu0 %v12295
  %12634 = vmatpush1.bf16.msra.mxu0 %v12294
  %12635 = vmatprep.subr.bf16.mxu0 %v12299
  %12636 = vmatpush1.bf16.msra.mxu0 %v12298
  %12637 = vmatprep.subr.bf16.mxu0 %v12303
  %12638 = vmatpush1.bf16.msra.mxu0 %v12302
  %12639 = vmatprep.subr.bf16.mxu0 %v12307
  %12640 = vmatpush1.bf16.msra.mxu0 %v12306
  %12641 = vmatprep.subr.bf16.mxu0 %v12311
  %12642 = vmatpush1.bf16.msra.mxu0 %v12310
  %12643 = vmatprep.subr.bf16.mxu0 %v12315
  %12644 = vmatpush1.bf16.msra.mxu0 %v12314
  %12645 = vmatprep.subr.bf16.mxu0 %v12319
  %12646 = vmatpush1.bf16.msra.mxu0 %v12318
  %12647 = vmatprep.subr.bf16.mxu0 %v12323
  %12648 = vmatpush1.bf16.msra.mxu0 %v12322
  %12649 = vmatprep.subr.bf16.mxu0 %v12327
  %12650 = vmatpush1.bf16.msra.mxu0 %v12326
  %12651 = vmatprep.subr.bf16.mxu0 %v12331
  %12652 = vmatpush1.bf16.msra.mxu0 %v12330
  %12653 = vmatprep.subr.bf16.mxu0 %v12335
  %12654 = vmatpush1.bf16.msra.mxu0 %v12334
  %12655 = vmatprep.mubr.bf16.mxu0 %v11690
  %12656 = vmatmul.mubr.bf16.gmra.mrb[0].mxu0 %v11689
  %v12657 = vpop.f32.mrb[0].mxu0
  %v12658 = vadd.f32 %v12605, %v12657
  %v12659 = vpop.f32.mrb[0].mxu0
  %v12660 = vadd.f32 %v12607, %v12659
  %v12661 = vpop.f32.mrb[0].mxu0
  %v12662 = vadd.f32 %v12609, %v12661
  %v12663 = vpop.f32.mrb[0].mxu0
  %v12664 = vadd.f32 %v12611, %v12663
  %12665 = vmatprep.mubr.bf16.mxu0 %v11694
  %12666 = vmatmul.mubr.bf16.gmra.mrb[0].mxu0 %v11693
  %v12667 = vpop.f32.mrb[0].mxu0
  %v12668 = vadd.f32 %v12615, %v12667
  %v12669 = vpop.f32.mrb[0].mxu0
  %v12670 = vadd.f32 %v12617, %v12669
  %v12671 = vpop.f32.mrb[0].mxu0
  %v12672 = vadd.f32 %v12619, %v12671
  %v12673 = vpop.f32.mrb[0].mxu0
  %v12674 = vadd.f32 %v12621, %v12673
  %12675 = vdwg.mxu0
  %v12676 = vadd.f32 %v11548, %v12552
  %v12677 = vadd.f32 %v11549, %v12554
  %v12678 = vadd.f32 %v11550, %v12658
  %v12679 = vadd.f32 %v11551, %v12660
  %v12680 = vadd.f32 %v11552, %v12556
  %v12681 = vadd.f32 %v11553, %v12558
  %v12682 = vadd.f32 %v11554, %v12662
  %v12683 = vadd.f32 %v11555, %v12664
  %v12684 = vadd.f32 %v11556, %v12562
  %v12685 = vadd.f32 %v11557, %v12564
  %v12686 = vadd.f32 %v11558, %v12668
  %v12687 = vadd.f32 %v11559, %v12670
  %v12688 = vadd.f32 %v11560, %v12566
  %v12689 = vadd.f32 %v11561, %v12568
  %v12690 = vadd.f32 %v11562, %v12672
  %v12691 = vadd.f32 %v11563, %v12674
  %v12692 = vld [vmem:[%s7] sm:$0xf]
  %v12694 = vlaneseq
  %v12695 = vshrl.u32 %v12694, 7
  %v12696 = vsub.s32 0, %v12695
  %v12697 = vrot.slane %v12692, %v12696
  %v12698 = vlaneseq
  %v12699 = vshrl.u32 %v12698, 7
  %v12700 = vsub.s32 1, %v12699
  %v12701 = vrot.slane %v12692, %v12700
  %v12702 = vlaneseq
  %v12703 = vshrl.u32 %v12702, 7
  %v12704 = vsub.s32 2, %v12703
  %v12705 = vrot.slane %v12692, %v12704
  %v12706 = vlaneseq
  %v12707 = vshrl.u32 %v12706, 7
  %v12708 = vsub.s32 3, %v12707
  %v12709 = vrot.slane %v12692, %v12708
  %v12714 = vadd.f32 %v12676, %v12697
  %v12715 = vadd.f32 %v12677, %v12701
  %v12716 = vadd.f32 %v12678, %v12705
  %v12717 = vadd.f32 %v12679, %v12709
  %v12718 = vadd.f32 %v12680, %v12697
  %v12719 = vadd.f32 %v12681, %v12701
  %v12720 = vadd.f32 %v12682, %v12705
  %v12721 = vadd.f32 %v12683, %v12709
  %v12722 = vadd.f32 %v12684, %v12697
  %v12723 = vadd.f32 %v12685, %v12701
  %v12724 = vadd.f32 %v12686, %v12705
  %v12725 = vadd.f32 %v12687, %v12709
  %v12726 = vadd.f32 %v12688, %v12697
  %v12727 = vadd.f32 %v12689, %v12701
  %v12728 = vadd.f32 %v12690, %v12705
  %v12729 = vadd.f32 %v12691, %v12709
  %vm12730 = vcmp.ge.f32.partialorder %v12714, 0.0
  %vm12731 = vcmp.ge.f32.partialorder %v12715, 0.0
  %vm12732 = vcmp.ge.f32.partialorder %v12716, 0.0
  %vm12733 = vcmp.ge.f32.partialorder %v12717, 0.0
  %vm12734 = vcmp.ge.f32.partialorder %v12718, 0.0
  %vm12735 = vcmp.ge.f32.partialorder %v12719, 0.0
  %vm12736 = vcmp.ge.f32.partialorder %v12720, 0.0
  %vm12737 = vcmp.ge.f32.partialorder %v12721, 0.0
  %vm12738 = vcmp.ge.f32.partialorder %v12722, 0.0
  %vm12739 = vcmp.ge.f32.partialorder %v12723, 0.0
  %vm12740 = vcmp.ge.f32.partialorder %v12724, 0.0
  %vm12741 = vcmp.ge.f32.partialorder %v12725, 0.0
  %vm12742 = vcmp.ge.f32.partialorder %v12726, 0.0
  %vm12743 = vcmp.ge.f32.partialorder %v12727, 0.0
  %vm12744 = vcmp.ge.f32.partialorder %v12728, 0.0
  %vm12745 = vcmp.ge.f32.partialorder %v12729, 0.0
  %v12746 = vmul.f32 %v12714, 0.2
  %v12747 = vmul.f32 %v12715, 0.2
  %v12748 = vmul.f32 %v12716, 0.2
  %v12749 = vmul.f32 %v12717, 0.2
  %v12750 = vmul.f32 %v12718, 0.2
  %v12751 = vmul.f32 %v12719, 0.2
  %v12752 = vmul.f32 %v12720, 0.2
  %v12753 = vmul.f32 %v12721, 0.2
  %v12754 = vmul.f32 %v12722, 0.2
  %v12755 = vmul.f32 %v12723, 0.2
  %v12756 = vmul.f32 %v12724, 0.2
  %v12757 = vmul.f32 %v12725, 0.2
  %v12758 = vmul.f32 %v12726, 0.2
  %v12759 = vmul.f32 %v12727, 0.2
  %v12760 = vmul.f32 %v12728, 0.2
  %v12761 = vmul.f32 %v12729, 0.2
  %v12762 = vsel %vm12730, %v12714, %v12746
  %v12763 = vsel %vm12731, %v12715, %v12747
  %v12764 = vsel %vm12732, %v12716, %v12748
  %v12765 = vsel %vm12733, %v12717, %v12749
  %v12766 = vsel %vm12734, %v12718, %v12750
  %v12767 = vsel %vm12735, %v12719, %v12751
  %v12768 = vsel %vm12736, %v12720, %v12752
  %v12769 = vsel %vm12737, %v12721, %v12753
  %v12770 = vsel %vm12738, %v12722, %v12754
  %v12771 = vsel %vm12739, %v12723, %v12755
  %v12772 = vsel %vm12740, %v12724, %v12756
  %v12773 = vsel %vm12741, %v12725, %v12757
  %v12774 = vsel %vm12742, %v12726, %v12758
  %v12775 = vsel %vm12743, %v12727, %v12759
  %v12776 = vsel %vm12744, %v12728, %v12760
  %v12777 = vsel %vm12745, %v12729, %v12761
  %12778 = vst [vmem:[%s8] sm:$0xff] %v12762
  %12779 = vst [vmem:[%s8 + $0x8] sm:$0xff] %v12763
  %12780 = vst [vmem:[%s8 + $0x10] sm:$0xff] %v12764
  %12781 = vst [vmem:[%s8 + $0x18] sm:$0xff] %v12765
  %12782 = vst [vmem:[%s8 + $0x20] sm:$0xff] %v12766
  %12783 = vst [vmem:[%s8 + $0x28] sm:$0xff] %v12767
  %12784 = vst [vmem:[%s8 + $0x30] sm:$0xff] %v12768
  %12785 = vst [vmem:[%s8 + $0x38] sm:$0xff] %v12769
  %12786 = vst [vmem:[%s8 + $0x40] sm:$0xff] %v12770
  %12787 = vst [vmem:[%s8 + $0x48] sm:$0xff] %v12771
  %12788 = vst [vmem:[%s8 + $0x50] sm:$0xff] %v12772
  %12789 = vst [vmem:[%s8 + $0x58] sm:$0xff] %v12773
  %12790 = vst [vmem:[%s8 + $0x60] sm:$0xff] %v12774
  %12791 = vst [vmem:[%s8 + $0x68] sm:$0xff] %v12775
  %12792 = vst [vmem:[%s8 + $0x70] sm:$0xff] %v12776
  %12793 = vst [vmem:[%s8 + $0x78] sm:$0xff] %v12777
  // Predicated region
  $region34: #{forward.1} parent=0 // pred_check
    _
  $region35: #{forward.1} parent=0 // pred_check_branch
    %12795 = sbr.rel (0) target = $region37
  $region36: #{forward.1} parent=0 // pred_region
    _
  $region37: #{forward.1} parent=0 // pred_fallthru
    _
  // Predicated region
  $region38: #{forward.1} parent=0 // pred_check
    _
  $region39: #{forward.1} parent=0 // pred_check_branch
    %12797 = sbr.rel (0) target = $region41
  $region40: #{forward.1} parent=0 // pred_region
    _
  $region41: #{forward.1} parent=0 // pred_fallthru
    _

</llo_original>
